<compile_context>
chip_gen: v7x
topology: tpu7x:2x2x1
jax: 0.10.0
libtpu: 0.0.40
codegen_flags: <defaults>
</compile_context>

<pallas_src>
import jax
import jax.numpy as jnp
from jax import lax
from jax.experimental import pallas as pl
from jax.experimental.pallas import tpu as pltpu

EPS = 1e-5
MATMUL_DTYPE = jnp.bfloat16          # MXU operand dtype (f32 accumulation)
STORE_DTYPE = jnp.bfloat16           # HBM dtype of the y1/y2 intermediates
LANE = 128
SUBLANE = 8
VMEM_LIMIT_BYTES = 48 * 1024 * 1024  # stays inside v7x's 64 MiB physical VMEM with headroom
TARGET_M_ROWS = 1024                 # target matmul rows per grid step

_TAPS = tuple((dy, dx) for dy in range(3) for dx in range(3))


def _round_up(x, m):
    return (x + m - 1) // m * m


def _pick_batch_tile(N, H, W, cout_p):
    """Samples per grid step: big enough to amortize per-step overhead / fill the MXU,
    small enough to fit the VMEM budget and keep >=2 parallel grid steps (megacore)."""
    bpe = 2  # bf16
    per_sample_io = 2 * 2 * H * W * cout_p * bpe                 # y1 in + y2 out, double-buffered
    fixed = (H + 2) * (W + 2) * cout_p * bpe + 9 * cout_p * cout_p * bpe
    budget = VMEM_LIMIT_BYTES // 2
    bt_vmem = max(1, (budget - fixed) // per_sample_io)
    bt_rows = max(1, TARGET_M_ROWS // (H * W))
    bt = int(min(N, bt_vmem, bt_rows, max(1, N // 2)))
    bt = max(1, bt)
    while N % bt:                                                # keep the grid exact
        bt -= 1
    return bt


# ---------------------------------------------------------------------------
# in-kernel helpers
# ---------------------------------------------------------------------------
def _zero_halo_border(pad_ref, H, W):
    """Zero ONLY the 1-px border of the (H+2, W+2, C) halo buffer (interior rewritten later).
    Unconditional (no program_id gate): with "parallel" grid semantics each TensorCore has
    its own scratch and its own grid slice, so first-step-only init would be wrong."""
    C = pad_ref.shape[-1]
    dt = pad_ref.dtype
    pad_ref[0:1, :, :] = jnp.zeros((1, W + 2, C), dt)
    pad_ref[H + 1:H + 2, :, :] = jnp.zeros((1, W + 2, C), dt)
    pad_ref[1:H + 1, 0:1, :] = jnp.zeros((H, 1, C), dt)
    pad_ref[1:H + 1, W + 1:W + 2, :] = jnp.zeros((H, 1, C), dt)


# ---------------------------------------------------------------------------
# kernels
# ---------------------------------------------------------------------------
def _conv1_stats_kernel(x_ref, w_ref, y_ref, s_ref, pad_ref, patch_ref):
    """Phase 1: conv1 via im2col (one MXU matmul per sample, K padded to a lane multiple)
    + per-tile partial BN1 stats from the f32 accumulator."""
    B, H, W, _ = x_ref.shape
    cin_p = pad_ref.shape[-1]
    cout_p = y_ref.shape[-1]
    k_used = 9 * cin_p
    k_pad = patch_ref.shape[-1]

    _zero_halo_border(pad_ref, H, W)
    if k_pad > k_used:  # zero the lane-pad tail of the contraction dim (once per step)
        patch_ref[:, k_used:] = jnp.zeros((H * W, k_pad - k_used), patch_ref.dtype)

    ssum = jnp.zeros((1, cout_p), jnp.float32)
    ssq = jnp.zeros((1, cout_p), jnp.float32)
    for s in range(B):
        pad_ref[1:H + 1, 1:W + 1, :] = x_ref[s]
        for t, (dy, dx) in enumerate(_TAPS):
            patch_ref[:, t * cin_p:(t + 1) * cin_p] = (
                pad_ref[dy:dy + H, dx:dx + W, :].reshape(H * W, cin_p))
        y = jnp.dot(patch_ref[...], w_ref[...], preferred_element_type=jnp.float32)
        y_ref[s] = y.reshape(H, W, cout_p).astype(y_ref.dtype)
        ssum += jnp.sum(y, axis=0, keepdims=True)
        ssq += jnp.sum(y * y, axis=0, keepdims=True)
    s_ref[0] = jnp.concatenate([ssum, ssq], axis=0)   # single (2, Cout_p) store


def _bnrelu_conv2_stats_kernel(y1_ref, sc_ref, sh_ref, w_ref, y2_ref, s_ref, pad_ref):
    """Phase 2: BN1 affine (folded global stats) + ReLU, then conv2 as 9 accumulating
    tap matmuls (K = Cout_p) on shifted halo-buffer views + partial BN2 stats."""
    B, H, W, cout_p = y2_ref.shape
    sc = sc_ref[...].reshape(1, 1, cout_p)      # f32 (1,1,C)
    sh = sh_ref[...].reshape(1, 1, cout_p)

    _zero_halo_border(pad_ref, H, W)

    ssum = jnp.zeros((1, cout_p), jnp.float32)
    ssq = jnp.zeros((1, cout_p), jnp.float32)
    for s in range(B):
        z = jnp.maximum(y1_ref[s].astype(jnp.float32) * sc + sh, 0.0)   # BN1 + ReLU in f32
        pad_ref[1:H + 1, 1:W + 1, :] = z.astype(pad_ref.dtype)          # bf16 for the MXU
        acc = jnp.zeros((H * W, cout_p), jnp.float32)
        for t, (dy, dx) in enumerate(_TAPS):                            # 9 tap matmuls
            acc += jnp.dot(pad_ref[dy:dy + H, dx:dx + W, :].reshape(H * W, cout_p),
                           w_ref[t], preferred_element_type=jnp.float32)
        y2_ref[s] = acc.reshape(H, W, cout_p).astype(y2_ref.dtype)
        ssum += jnp.sum(acc, axis=0, keepdims=True)
        ssq += jnp.sum(acc * acc, axis=0, keepdims=True)
    s_ref[0] = jnp.concatenate([ssum, ssq], axis=0)


# ---------------------------------------------------------------------------
# wrapper helpers
# ---------------------------------------------------------------------------
def _pack_weight_im2col(w_oihw, cin_p, cout_p, k_p):
    """(Cout, Cin, 3, 3) -> (K_p, Cout_p) matching the im2col column order (zero tail rows)."""
    cout, cin = w_oihw.shape[0], w_oihw.shape[1]
    w = jnp.transpose(w_oihw, (2, 3, 1, 0))                            # (3,3,Cin,Cout)
    w = jnp.pad(w, ((0, 0), (0, 0), (0, cin_p - cin), (0, cout_p - cout)))
    w = w.reshape(9 * cin_p, cout_p)
    w = jnp.pad(w, ((0, k_p - 9 * cin_p), (0, 0)))
    return w.astype(MATMUL_DTYPE)


def _pack_weight_taps(w_oihw, cin_p, cout_p):
    """(Cout, Cin, 3, 3) -> (9, Cin_p, Cout_p); index t = dy*3+dx matches _TAPS order."""
    cout, cin = w_oihw.shape[0], w_oihw.shape[1]
    w = jnp.transpose(w_oihw, (2, 3, 1, 0))                            # (3,3,Cin,Cout)
    w = jnp.pad(w, ((0, 0), (0, 0), (0, cin_p - cin), (0, cout_p - cout)))
    return w.reshape(9, cin_p, cout_p).astype(MATMUL_DTYPE)


def _fold_bn(stats, count, gamma, beta):
    """Reduce per-tile (sum, sum_sq) partials -> per-channel affine scale/shift (tiny O(C) op).
    One-pass variance, clamped >= 0.  TODO(synk): Welford-style merge for very large N*H*W."""
    s = jnp.sum(stats, axis=0)                 # (2, C)
    mean = s[0] / count
    var = jnp.maximum(s[1] / count - mean * mean, 0.0)
    inv = lax.rsqrt(var + EPS)
    scale = gamma * inv
    shift = beta - mean * scale
    return scale[None, :], shift[None, :]      # (1, C)


@jax.jit
def double_conv(x_nchw, params):
    """DoubleConv forward. NCHW in/out (PyTorch convention), training-mode BatchNorm."""
    x = jnp.transpose(x_nchw, (0, 2, 3, 1))    # NCHW -> NHWC (channels on the lane axis)
    N, H, W, Cin = x.shape
    Cout = params["w1_oihw"].shape[0]
    Cin_p = _round_up(max(Cin, SUBLANE), SUBLANE)
    Cout_p = _round_up(Cout, LANE)             # NOTE: use 256 for Cout>=129 on v6e/v7x
    K1_p = _round_up(9 * Cin_p, LANE)
    count = N * H * W
    B_TILE = _pick_batch_tile(N, H, W, Cout_p)
    G = N // B_TILE

    # channel pad + bf16 cast only; the 1-px spatial halo is built inside the kernels.
    x = jnp.pad(x, ((0, 0), (0, 0), (0, 0), (0, Cin_p - Cin))).astype(MATMUL_DTYPE)

    w1 = _pack_weight_im2col(params["w1_oihw"], Cin_p, Cout_p, K1_p)   # (K1_p,  Cout_p)
    w2 = _pack_weight_taps(params["w2_oihw"], Cout_p, Cout_p)          # (9, Cout_p, Cout_p)
    # zero-padded gamma/beta required (see header note); b1/b2 intentionally unused here.
    g1 = jnp.pad(params["g1"], (0, Cout_p - Cout))
    be1 = jnp.pad(params["be1"], (0, Cout_p - Cout))

    cparams = pltpu.CompilerParams(
        dimension_semantics=("parallel",),     # independent batch tiles -> both TCs on v7x
        vmem_limit_bytes=VMEM_LIMIT_BYTES)

    def vspec(c):
        return pl.BlockSpec((B_TILE, H, W, c), lambda n: (n, 0, 0, 0))

    def whole(shape):
        return pl.BlockSpec(shape, lambda n, _s=shape: (0,) * len(_s))

    sspec = pl.BlockSpec((1, 2, Cout_p), lambda n: (n, 0, 0))

    # ---- phase 1: conv1 (im2col, K padded to 128) + partial BN1 stats ------
    y1, s1 = pl.pallas_call(
        _conv1_stats_kernel,
        grid=(G,),
        in_specs=[vspec(Cin_p), whole((K1_p, Cout_p))],
        out_specs=(vspec(Cout_p), sspec),
        out_shape=(jax.ShapeDtypeStruct((N, H, W, Cout_p), STORE_DTYPE),
                   jax.ShapeDtypeStruct((G, 2, Cout_p), jnp.float32)),
        scratch_shapes=[pltpu.VMEM((H + 2, W + 2, Cin_p), MATMUL_DTYPE),   # halo buffer
                        pltpu.VMEM((H * W, K1_p), MATMUL_DTYPE)],          # im2col patch
        compiler_params=cparams,
    )(x, w1)

    scale1, shift1 = _fold_bn(s1, count, g1, be1)          # (1, Cout_p) f32

    # ---- phase 2: BN1 + ReLU + conv2 (9 tap matmuls) + partial BN2 stats ---
    y2, s2 = pl.pallas_call(
        _bnrelu_conv2_stats_kernel,
        grid=(G,),
        in_specs=[vspec(Cout_p), whole((1, Cout_p)), whole((1, Cout_p)),
                  whole((9, Cout_p, Cout_p))],
        out_specs=(vspec(Cout_p), sspec),
        out_shape=(jax.ShapeDtypeStruct((N, H, W, Cout_p), STORE_DTYPE),
                   jax.ShapeDtypeStruct((G, 2, Cout_p), jnp.float32)),
        scratch_shapes=[pltpu.VMEM((H + 2, W + 2, Cout_p), MATMUL_DTYPE)],  # no patch scratch
        compiler_params=cparams,
    )(y1, scale1, shift1, w2)

    # ---- epilogue: BN2 affine + ReLU fused into the XLA transpose ----------
    scale2, shift2 = _fold_bn(s2[..., :Cout], count, params["g2"], params["be2"])
    y2r = y2[..., :Cout].astype(jnp.float32)               # slice padded channels first
    out = jnp.maximum(y2r * scale2.reshape(1, 1, 1, Cout) + shift2.reshape(1, 1, 1, Cout), 0.0)
    return jnp.transpose(out, (0, 3, 1, 2))                # NHWC -> NCHW


# ---------------------------------------------------------------------------
# params / reference
# ---------------------------------------------------------------------------
def init_params(key, in_channels, out_channels):
    """PyTorch-layout parameters. BN gamma/beta randomized (PyTorch default is ones/zeros)
    so the affine path is actually exercised."""
    k1, k2, k3, k4, k5, k6, k7, k8 = jax.random.split(key, 8)

    def conv_init(kw, kb, cin, cout):
        bound = 1.0 / (cin * 9) ** 0.5
        w = jax.random.uniform(kw, (cout, cin, 3, 3), jnp.float32, -bound, bound)
        b = jax.random.uniform(kb, (cout,), jnp.float32, -bound, bound)
        return w, b

    w1, b1 = conv_init(k1, k2, in_channels, out_channels)
    w2, b2 = conv_init(k3, k4, out_channels, out_channels)
    return {
        "w1_oihw": w1, "b1": b1,
        "g1": 1.0 + 0.1 * jax.random.normal(k5, (out_channels,), jnp.float32),
        "be1": 0.1 * jax.random.normal(k6, (out_channels,), jnp.float32),
        "w2_oihw": w2, "b2": b2,
        "g2": 1.0 + 0.1 * jax.random.normal(k7, (out_channels,), jnp.float32),
        "be2": 0.1 * jax.random.normal(k8, (out_channels,), jnp.float32),
    }


def ref_forward(x_nchw, p, matmul_dtype=MATMUL_DTYPE):
    """Pure-JAX NCHW reference of the PyTorch forward (training-mode batch-stat BN).
    `matmul_dtype` pre-rounds matmul operands to mirror the kernel's mixed precision."""
    cast = lambda a: a.astype(matmul_dtype).astype(jnp.float32)

    def conv(x, w_oihw, b):
        y = lax.conv_general_dilated(
            cast(x), cast(w_oihw), (1, 1), ((1, 1), (1, 1)),
            dimension_numbers=("NCHW", "OIHW", "NCHW"),
            precision=lax.Precision.HIGHEST)
        return y + b.reshape(1, -1, 1, 1)

    def bn_relu(x, g, be):
        mean = jnp.mean(x, axis=(0, 2, 3), keepdims=True)
        var = jnp.mean((x - mean) ** 2, axis=(0, 2, 3), keepdims=True)
        y = (x - mean) * lax.rsqrt(var + EPS) * g.reshape(1, -1, 1, 1) \
            + be.reshape(1, -1, 1, 1)
        return jnp.maximum(y, 0.0)

    h = bn_relu(conv(x_nchw, p["w1_oihw"], p["b1"]), p["g1"], p["be1"])
    return bn_relu(conv(h, p["w2_oihw"], p["b2"]), p["g2"], p["be2"])


if __name__ == "__main__":
    key = jax.random.PRNGKey(0)
    kx, kp = jax.random.split(key)

    N, Cin, H, W = 2, 4, 16, 16
    Cout = 8

    x = jax.random.normal(kx, (N, Cin, H, W), jnp.float32)
    params = init_params(kp, Cin, Cout)

    out = jax.block_until_ready(double_conv(x, params))
    assert out.shape == (N, Cout, H, W), out.shape
    assert bool(jnp.all(jnp.isfinite(out)))

    # Primary check: reference under the same mixed-precision policy as the kernel
    # (bf16 matmul operands + bf16-stored intermediates, f32 accumulation / BN math).
    ref_mixed = ref_forward(x, params, MATMUL_DTYPE)
    err_mixed = float(jnp.max(jnp.abs(out - ref_mixed)))
    assert jnp.allclose(out, ref_mixed, atol=8e-2, rtol=5e-2), err_mixed

    # Sanity check against the exact-f32 reference (bounds inherent bf16 rounding noise;
    # output is O(1) after two BatchNorm normalizations).
    ref_f32 = ref_forward(x, params, jnp.float32)
    err_f32 = float(jnp.max(jnp.abs(out - ref_f32)))
    assert jnp.allclose(out, ref_f32, atol=1.5e-1, rtol=1e-1), err_f32

    print("KERNEL_OK")
</pallas_src>

<mosaic_0001>
module attributes {stable_mosaic.version = 11 : i64} {
  func.func @_conv1_stats_kernel(%arg0: i32, %arg1: memref<1x16x16x8xbf16, #tpu.memory_space<vmem>>, %arg2: memref<128x128xbf16, #tpu.memory_space<vmem>>, %arg3: memref<1x16x16x128xbf16, #tpu.memory_space<vmem>>, %arg4: memref<1x2x128xf32, #tpu.memory_space<vmem>>, %arg5: memref<18x18x8xbf16, #tpu.memory_space<vmem>>, %arg6: memref<256x128xbf16, #tpu.memory_space<vmem>>) attributes {dimension_semantics = [#tpu.dimension_semantics<parallel>], iteration_bounds = array<i64: 2>, scalar_prefetch = 0 : i64, scratch_operands = 2 : i64, tpu.core_type = #tpu.core_type<tc>, window_params = [{transform_indices = @transform_0, window_bounds = array<i64: 1, 16, 16, 8>}, {pipeline_mode = #tpu.pipeline_mode<synchronous>, transform_indices = @transform_1, window_bounds = array<i64: 128, 128>}, {transform_indices = @transform_2, window_bounds = array<i64: 1, 16, 16, 128>}, {transform_indices = @transform_3, window_bounds = array<i64: 1, 2, 128>}]} {
    %cst = arith.constant 0.000000e+00 : bf16
    %0 = vector.broadcast %cst : bf16 to vector<1x18x8xbf16>
    %c0 = arith.constant 0 : index
    %c0_0 = arith.constant 0 : index
    %c0_1 = arith.constant 0 : index
    %1 = vector.load %arg5[%c0, %c0_0, %c0_1] : memref<18x18x8xbf16, #tpu.memory_space<vmem>>, vector<1x18x8xbf16>
    tpu.vector_store %arg5[%c0, %c0_0, %c0_1], %0 {strides = array<i32>} : memref<18x18x8xbf16, #tpu.memory_space<vmem>>, vector<1x18x8xbf16>,
    %cst_2 = arith.constant 0.000000e+00 : bf16
    %2 = vector.broadcast %cst_2 : bf16 to vector<1x18x8xbf16>
    %c17 = arith.constant 17 : index
    %c0_3 = arith.constant 0 : index
    %c0_4 = arith.constant 0 : index
    %3 = vector.load %arg5[%c17, %c0_3, %c0_4] : memref<18x18x8xbf16, #tpu.memory_space<vmem>>, vector<1x18x8xbf16>
    tpu.vector_store %arg5[%c17, %c0_3, %c0_4], %2 {strides = array<i32>} : memref<18x18x8xbf16, #tpu.memory_space<vmem>>, vector<1x18x8xbf16>,
    %cst_5 = arith.constant 0.000000e+00 : bf16
    %4 = vector.broadcast %cst_5 : bf16 to vector<16x1x8xbf16>
    %c1 = arith.constant 1 : index
    %c0_6 = arith.constant 0 : index
    %c0_7 = arith.constant 0 : index
    %5 = vector.load %arg5[%c1, %c0_6, %c0_7] : memref<18x18x8xbf16, #tpu.memory_space<vmem>>, vector<16x1x8xbf16>
    tpu.vector_store %arg5[%c1, %c0_6, %c0_7], %4 {strides = array<i32>} : memref<18x18x8xbf16, #tpu.memory_space<vmem>>, vector<16x1x8xbf16>,
    %cst_8 = arith.constant 0.000000e+00 : bf16
    %6 = vector.broadcast %cst_8 : bf16 to vector<16x1x8xbf16>
    %c1_9 = arith.constant 1 : index
    %c17_10 = arith.constant 17 : index
    %c0_11 = arith.constant 0 : index
    %7 = vector.load %arg5[%c1_9, %c17_10, %c0_11] : memref<18x18x8xbf16, #tpu.memory_space<vmem>>, vector<16x1x8xbf16>
    tpu.vector_store %arg5[%c1_9, %c17_10, %c0_11], %6 {strides = array<i32>} : memref<18x18x8xbf16, #tpu.memory_space<vmem>>, vector<16x1x8xbf16>,
    %cst_12 = arith.constant 0.000000e+00 : bf16
    %8 = vector.broadcast %cst_12 : bf16 to vector<256x56xbf16>
    %c0_13 = arith.constant 0 : index
    %c72 = arith.constant 72 : index
    %9 = vector.load %arg6[%c0_13, %c72] : memref<256x128xbf16, #tpu.memory_space<vmem>>, vector<256x56xbf16>
    tpu.vector_store %arg6[%c0_13, %c72], %8 {strides = array<i32>} : memref<256x128xbf16, #tpu.memory_space<vmem>>, vector<256x56xbf16>,
    %cst_14 = arith.constant 0.000000e+00 : f32
    %10 = vector.broadcast %cst_14 : f32 to vector<1x128xf32>
    %cst_15 = arith.constant 0.000000e+00 : f32
    %11 = vector.broadcast %cst_15 : f32 to vector<1x128xf32>
    %c0_16 = arith.constant 0 : index
    %c0_17 = arith.constant 0 : index
    %c0_18 = arith.constant 0 : index
    %c0_19 = arith.constant 0 : index
    %12 = vector.load %arg1[%c0_16, %c0_17, %c0_18, %c0_19] : memref<1x16x16x8xbf16, #tpu.memory_space<vmem>>, vector<1x16x16x8xbf16>
    %13 = vector.shape_cast %12 : vector<1x16x16x8xbf16> to vector<16x16x8xbf16>
    %c1_20 = arith.constant 1 : index
    %c1_21 = arith.constant 1 : index
    %c0_22 = arith.constant 0 : index
    %14 = vector.load %arg5[%c1_20, %c1_21, %c0_22] : memref<18x18x8xbf16, #tpu.memory_space<vmem>>, vector<16x16x8xbf16>
    tpu.vector_store %arg5[%c1_20, %c1_21, %c0_22], %13 {strides = array<i32>} : memref<18x18x8xbf16, #tpu.memory_space<vmem>>, vector<16x16x8xbf16>,
    %c0_23 = arith.constant 0 : index
    %c0_24 = arith.constant 0 : index
    %c0_25 = arith.constant 0 : index
    %15 = vector.load %arg5[%c0_23, %c0_24, %c0_25] : memref<18x18x8xbf16, #tpu.memory_space<vmem>>, vector<16x16x8xbf16>
    %16 = vector.shape_cast %15 : vector<16x16x8xbf16> to vector<256x8xbf16>
    %c0_26 = arith.constant 0 : index
    %c0_27 = arith.constant 0 : index
    %17 = vector.load %arg6[%c0_26, %c0_27] : memref<256x128xbf16, #tpu.memory_space<vmem>>, vector<256x8xbf16>
    tpu.vector_store %arg6[%c0_26, %c0_27], %16 {strides = array<i32>} : memref<256x128xbf16, #tpu.memory_space<vmem>>, vector<256x8xbf16>,
    %c0_28 = arith.constant 0 : index
    %c1_29 = arith.constant 1 : index
    %c0_30 = arith.constant 0 : index
    %18 = vector.load %arg5[%c0_28, %c1_29, %c0_30] : memref<18x18x8xbf16, #tpu.memory_space<vmem>>, vector<16x16x8xbf16>
    %19 = vector.shape_cast %18 : vector<16x16x8xbf16> to vector<256x8xbf16>
    %c0_31 = arith.constant 0 : index
    %c8 = arith.constant 8 : index
    %20 = vector.load %arg6[%c0_31, %c8] : memref<256x128xbf16, #tpu.memory_space<vmem>>, vector<256x8xbf16>
    tpu.vector_store %arg6[%c0_31, %c8], %19 {strides = array<i32>} : memref<256x128xbf16, #tpu.memory_space<vmem>>, vector<256x8xbf16>,
    %c0_32 = arith.constant 0 : index
    %c2 = arith.constant 2 : index
    %c0_33 = arith.constant 0 : index
    %21 = vector.load %arg5[%c0_32, %c2, %c0_33] : memref<18x18x8xbf16, #tpu.memory_space<vmem>>, vector<16x16x8xbf16>
    %22 = vector.shape_cast %21 : vector<16x16x8xbf16> to vector<256x8xbf16>
    %c0_34 = arith.constant 0 : index
    %c16 = arith.constant 16 : index
    %23 = vector.load %arg6[%c0_34, %c16] : memref<256x128xbf16, #tpu.memory_space<vmem>>, vector<256x8xbf16>
    tpu.vector_store %arg6[%c0_34, %c16], %22 {strides = array<i32>} : memref<256x128xbf16, #tpu.memory_space<vmem>>, vector<256x8xbf16>,
    %c1_35 = arith.constant 1 : index
    %c0_36 = arith.constant 0 : index
    %c0_37 = arith.constant 0 : index
    %24 = vector.load %arg5[%c1_35, %c0_36, %c0_37] : memref<18x18x8xbf16, #tpu.memory_space<vmem>>, vector<16x16x8xbf16>
    %25 = vector.shape_cast %24 : vector<16x16x8xbf16> to vector<256x8xbf16>
    %c0_38 = arith.constant 0 : index
    %c24 = arith.constant 24 : index
    %26 = vector.load %arg6[%c0_38, %c24] : memref<256x128xbf16, #tpu.memory_space<vmem>>, vector<256x8xbf16>
    tpu.vector_store %arg6[%c0_38, %c24], %25 {strides = array<i32>} : memref<256x128xbf16, #tpu.memory_space<vmem>>, vector<256x8xbf16>,
    %c1_39 = arith.constant 1 : index
    %c1_40 = arith.constant 1 : index
    %c0_41 = arith.constant 0 : index
    %27 = vector.load %arg5[%c1_39, %c1_40, %c0_41] : memref<18x18x8xbf16, #tpu.memory_space<vmem>>, vector<16x16x8xbf16>
    %28 = vector.shape_cast %27 : vector<16x16x8xbf16> to vector<256x8xbf16>
    %c0_42 = arith.constant 0 : index
    %c32 = arith.constant 32 : index
    %29 = vector.load %arg6[%c0_42, %c32] : memref<256x128xbf16, #tpu.memory_space<vmem>>, vector<256x8xbf16>
    tpu.vector_store %arg6[%c0_42, %c32], %28 {strides = array<i32>} : memref<256x128xbf16, #tpu.memory_space<vmem>>, vector<256x8xbf16>,
    %c1_43 = arith.constant 1 : index
    %c2_44 = arith.constant 2 : index
    %c0_45 = arith.constant 0 : index
    %30 = vector.load %arg5[%c1_43, %c2_44, %c0_45] : memref<18x18x8xbf16, #tpu.memory_space<vmem>>, vector<16x16x8xbf16>
    %31 = vector.shape_cast %30 : vector<16x16x8xbf16> to vector<256x8xbf16>
    %c0_46 = arith.constant 0 : index
    %c40 = arith.constant 40 : index
    %32 = vector.load %arg6[%c0_46, %c40] : memref<256x128xbf16, #tpu.memory_space<vmem>>, vector<256x8xbf16>
    tpu.vector_store %arg6[%c0_46, %c40], %31 {strides = array<i32>} : memref<256x128xbf16, #tpu.memory_space<vmem>>, vector<256x8xbf16>,
    %c2_47 = arith.constant 2 : index
    %c0_48 = arith.constant 0 : index
    %c0_49 = arith.constant 0 : index
    %33 = vector.load %arg5[%c2_47, %c0_48, %c0_49] : memref<18x18x8xbf16, #tpu.memory_space<vmem>>, vector<16x16x8xbf16>
    %34 = vector.shape_cast %33 : vector<16x16x8xbf16> to vector<256x8xbf16>
    %c0_50 = arith.constant 0 : index
    %c48 = arith.constant 48 : index
    %35 = vector.load %arg6[%c0_50, %c48] : memref<256x128xbf16, #tpu.memory_space<vmem>>, vector<256x8xbf16>
    tpu.vector_store %arg6[%c0_50, %c48], %34 {strides = array<i32>} : memref<256x128xbf16, #tpu.memory_space<vmem>>, vector<256x8xbf16>,
    %c2_51 = arith.constant 2 : index
    %c1_52 = arith.constant 1 : index
    %c0_53 = arith.constant 0 : index
    %36 = vector.load %arg5[%c2_51, %c1_52, %c0_53] : memref<18x18x8xbf16, #tpu.memory_space<vmem>>, vector<16x16x8xbf16>
    %37 = vector.shape_cast %36 : vector<16x16x8xbf16> to vector<256x8xbf16>
    %c0_54 = arith.constant 0 : index
    %c56 = arith.constant 56 : index
    %38 = vector.load %arg6[%c0_54, %c56] : memref<256x128xbf16, #tpu.memory_space<vmem>>, vector<256x8xbf16>
    tpu.vector_store %arg6[%c0_54, %c56], %37 {strides = array<i32>} : memref<256x128xbf16, #tpu.memory_space<vmem>>, vector<256x8xbf16>,
    %c2_55 = arith.constant 2 : index
    %c2_56 = arith.constant 2 : index
    %c0_57 = arith.constant 0 : index
    %39 = vector.load %arg5[%c2_55, %c2_56, %c0_57] : memref<18x18x8xbf16, #tpu.memory_space<vmem>>, vector<16x16x8xbf16>
    %40 = vector.shape_cast %39 : vector<16x16x8xbf16> to vector<256x8xbf16>
    %c0_58 = arith.constant 0 : index
    %c64 = arith.constant 64 : index
    %41 = vector.load %arg6[%c0_58, %c64] : memref<256x128xbf16, #tpu.memory_space<vmem>>, vector<256x8xbf16>
    tpu.vector_store %arg6[%c0_58, %c64], %40 {strides = array<i32>} : memref<256x128xbf16, #tpu.memory_space<vmem>>, vector<256x8xbf16>,
    %c0_59 = arith.constant 0 : index
    %c0_60 = arith.constant 0 : index
    %42 = vector.load %arg6[%c0_59, %c0_60] : memref<256x128xbf16, #tpu.memory_space<vmem>>, vector<256x128xbf16>
    %c0_61 = arith.constant 0 : index
    %c0_62 = arith.constant 0 : index
    %43 = vector.load %arg2[%c0_61, %c0_62] : memref<128x128xbf16, #tpu.memory_space<vmem>>, vector<128x128xbf16>
    %cst_63 = arith.constant dense<0.000000e+00> : vector<256x128xf32>
    %44 = tpu.matmul %42, %43, %cst_63 {dimension_numbers = #tpu.dot_dimension_numbers<[1], [0], [0], [1], [0, 0, 1, 1], [], []>} : vector<256x128xbf16>, vector<128x128xbf16>, vector<256x128xf32> -> vector<256x128xf32>
    %45 = vector.shape_cast %44 : vector<256x128xf32> to vector<16x16x128xf32>
    %46 = arith.truncf %45 : vector<16x16x128xf32> to vector<16x16x128xbf16>
    %c0_64 = arith.constant 0 : index
    %c0_65 = arith.constant 0 : index
    %c0_66 = arith.constant 0 : index
    %c0_67 = arith.constant 0 : index
    %47 = vector.load %arg3[%c0_64, %c0_65, %c0_66, %c0_67] : memref<1x16x16x128xbf16, #tpu.memory_space<vmem>>, vector<1x16x16x128xbf16>
    %48 = vector.shape_cast %47 : vector<1x16x16x128xbf16> to vector<16x16x128xbf16>
    %49 = vector.shape_cast %46 : vector<16x16x128xbf16> to vector<1x16x16x128xbf16>
    tpu.vector_store %arg3[%c0_64, %c0_65, %c0_66, %c0_67], %49 {strides = array<i32>} : memref<1x16x16x128xbf16, #tpu.memory_space<vmem>>, vector<1x16x16x128xbf16>,
    %cst_68 = arith.constant dense<0.000000e+00> : vector<128xf32>
    %50 = vector.multi_reduction <add>, %44, %cst_68 [0] : vector<256x128xf32> to vector<128xf32>
    %51 = vector.shape_cast %50 : vector<128xf32> to vector<1x128xf32>
    %52 = arith.addf %10, %51 : vector<1x128xf32>
    %53 = arith.mulf %44, %44 : vector<256x128xf32>
    %cst_69 = arith.constant dense<0.000000e+00> : vector<128xf32>
    %54 = vector.multi_reduction <add>, %53, %cst_69 [0] : vector<256x128xf32> to vector<128xf32>
    %55 = vector.shape_cast %54 : vector<128xf32> to vector<1x128xf32>
    %56 = arith.addf %11, %55 : vector<1x128xf32>
    %57 = tpu.concatenate %52, %56 in 0 : vector<1x128xf32>, vector<1x128xf32> -> vector<2x128xf32>
    %c0_70 = arith.constant 0 : index
    %c0_71 = arith.constant 0 : index
    %c0_72 = arith.constant 0 : index
    %58 = vector.load %arg4[%c0_70, %c0_71, %c0_72] : memref<1x2x128xf32, #tpu.memory_space<vmem>>, vector<1x2x128xf32>
    %59 = vector.shape_cast %58 : vector<1x2x128xf32> to vector<2x128xf32>
    %60 = vector.shape_cast %57 : vector<2x128xf32> to vector<1x2x128xf32>
    tpu.vector_store %arg4[%c0_70, %c0_71, %c0_72], %60 {strides = array<i32>} : memref<1x2x128xf32, #tpu.memory_space<vmem>>, vector<1x2x128xf32>,
    return
  }
  func.func @transform_0(%arg0: i32) -> (i32, i32, i32, i32) {
    %c0_i32 = arith.constant 0 : i32
    %c0_i32_0 = arith.constant 0 : i32
    %c0_i32_1 = arith.constant 0 : i32
    %c0_i32_2 = arith.constant 0 : i32
    return %arg0, %c0_i32, %c0_i32_0, %c0_i32_1 : i32, i32, i32, i32
  }
  func.func @transform_1(%arg0: i32) -> (i32, i32) {
    %c0_i32 = arith.constant 0 : i32
    %c0_i32_0 = arith.constant 0 : i32
    %c0_i32_1 = arith.constant 0 : i32
    return %c0_i32, %c0_i32_0 : i32, i32
  }
  func.func @transform_2(%arg0: i32) -> (i32, i32, i32, i32) {
    %c0_i32 = arith.constant 0 : i32
    %c0_i32_0 = arith.constant 0 : i32
    %c0_i32_1 = arith.constant 0 : i32
    %c0_i32_2 = arith.constant 0 : i32
    return %arg0, %c0_i32, %c0_i32_0, %c0_i32_1 : i32, i32, i32, i32
  }
  func.func @transform_3(%arg0: i32) -> (i32, i32, i32) {
    %c0_i32 = arith.constant 0 : i32
    %c0_i32_0 = arith.constant 0 : i32
    %c0_i32_1 = arith.constant 0 : i32
    return %arg0, %c0_i32, %c0_i32_0 : i32, i32, i32
  }
}

module attributes {stable_mosaic.version = 11 : i64} {
  func.func @_bnrelu_conv2_stats_kernel(%arg0: i32, %arg1: memref<1x16x16x128xbf16, #tpu.memory_space<vmem>>, %arg2: memref<1x128xf32, #tpu.memory_space<vmem>>, %arg3: memref<1x128xf32, #tpu.memory_space<vmem>>, %arg4: memref<9x128x128xbf16, #tpu.memory_space<vmem>>, %arg5: memref<1x16x16x128xbf16, #tpu.memory_space<vmem>>, %arg6: memref<1x2x128xf32, #tpu.memory_space<vmem>>, %arg7: memref<18x18x128xbf16, #tpu.memory_space<vmem>>) attributes {dimension_semantics = [#tpu.dimension_semantics<parallel>], iteration_bounds = array<i64: 2>, scalar_prefetch = 0 : i64, scratch_operands = 1 : i64, tpu.core_type = #tpu.core_type<tc>, window_params = [{transform_indices = @transform_0, window_bounds = array<i64: 1, 16, 16, 128>}, {pipeline_mode = #tpu.pipeline_mode<synchronous>, transform_indices = @transform_1, window_bounds = array<i64: 1, 128>}, {pipeline_mode = #tpu.pipeline_mode<synchronous>, transform_indices = @transform_2, window_bounds = array<i64: 1, 128>}, {pipeline_mode = #tpu.pipeline_mode<synchronous>, transform_indices = @transform_3, window_bounds = array<i64: 9, 128, 128>}, {transform_indices = @transform_4, window_bounds = array<i64: 1, 16, 16, 128>}, {transform_indices = @transform_5, window_bounds = array<i64: 1, 2, 128>}]} {
    %c0 = arith.constant 0 : index
    %c0_0 = arith.constant 0 : index
    %0 = vector.load %arg2[%c0, %c0_0] : memref<1x128xf32, #tpu.memory_space<vmem>>, vector<1x128xf32>
    %1 = vector.shape_cast %0 : vector<1x128xf32> to vector<1x1x128xf32>
    %c0_1 = arith.constant 0 : index
    %c0_2 = arith.constant 0 : index
    %2 = vector.load %arg3[%c0_1, %c0_2] : memref<1x128xf32, #tpu.memory_space<vmem>>, vector<1x128xf32>
    %3 = vector.shape_cast %2 : vector<1x128xf32> to vector<1x1x128xf32>
    %cst = arith.constant 0.000000e+00 : bf16
    %4 = vector.broadcast %cst : bf16 to vector<1x18x128xbf16>
    %c0_3 = arith.constant 0 : index
    %c0_4 = arith.constant 0 : index
    %c0_5 = arith.constant 0 : index
    %5 = vector.load %arg7[%c0_3, %c0_4, %c0_5] : memref<18x18x128xbf16, #tpu.memory_space<vmem>>, vector<1x18x128xbf16>
    tpu.vector_store %arg7[%c0_3, %c0_4, %c0_5], %4 {strides = array<i32>} : memref<18x18x128xbf16, #tpu.memory_space<vmem>>, vector<1x18x128xbf16>,
    %cst_6 = arith.constant 0.000000e+00 : bf16
    %6 = vector.broadcast %cst_6 : bf16 to vector<1x18x128xbf16>
    %c17 = arith.constant 17 : index
    %c0_7 = arith.constant 0 : index
    %c0_8 = arith.constant 0 : index
    %7 = vector.load %arg7[%c17, %c0_7, %c0_8] : memref<18x18x128xbf16, #tpu.memory_space<vmem>>, vector<1x18x128xbf16>
    tpu.vector_store %arg7[%c17, %c0_7, %c0_8], %6 {strides = array<i32>} : memref<18x18x128xbf16, #tpu.memory_space<vmem>>, vector<1x18x128xbf16>,
    %cst_9 = arith.constant 0.000000e+00 : bf16
    %8 = vector.broadcast %cst_9 : bf16 to vector<16x1x128xbf16>
    %c1 = arith.constant 1 : index
    %c0_10 = arith.constant 0 : index
    %c0_11 = arith.constant 0 : index
    %9 = vector.load %arg7[%c1, %c0_10, %c0_11] : memref<18x18x128xbf16, #tpu.memory_space<vmem>>, vector<16x1x128xbf16>
    tpu.vector_store %arg7[%c1, %c0_10, %c0_11], %8 {strides = array<i32>} : memref<18x18x128xbf16, #tpu.memory_space<vmem>>, vector<16x1x128xbf16>,
    %cst_12 = arith.constant 0.000000e+00 : bf16
    %10 = vector.broadcast %cst_12 : bf16 to vector<16x1x128xbf16>
    %c1_13 = arith.constant 1 : index
    %c17_14 = arith.constant 17 : index
    %c0_15 = arith.constant 0 : index
    %11 = vector.load %arg7[%c1_13, %c17_14, %c0_15] : memref<18x18x128xbf16, #tpu.memory_space<vmem>>, vector<16x1x128xbf16>
    tpu.vector_store %arg7[%c1_13, %c17_14, %c0_15], %10 {strides = array<i32>} : memref<18x18x128xbf16, #tpu.memory_space<vmem>>, vector<16x1x128xbf16>,
    %cst_16 = arith.constant 0.000000e+00 : f32
    %12 = vector.broadcast %cst_16 : f32 to vector<1x128xf32>
    %cst_17 = arith.constant 0.000000e+00 : f32
    %13 = vector.broadcast %cst_17 : f32 to vector<1x128xf32>
    %c0_18 = arith.constant 0 : index
    %c0_19 = arith.constant 0 : index
    %c0_20 = arith.constant 0 : index
    %c0_21 = arith.constant 0 : index
    %14 = vector.load %arg1[%c0_18, %c0_19, %c0_20, %c0_21] : memref<1x16x16x128xbf16, #tpu.memory_space<vmem>>, vector<1x16x16x128xbf16>
    %15 = vector.shape_cast %14 : vector<1x16x16x128xbf16> to vector<16x16x128xbf16>
    %16 = arith.extf %15 : vector<16x16x128xbf16> to vector<16x16x128xf32>
    %17 = vector.broadcast %1 : vector<1x1x128xf32> to vector<16x16x128xf32>
    %18 = arith.mulf %16, %17 : vector<16x16x128xf32>
    %19 = vector.broadcast %3 : vector<1x1x128xf32> to vector<16x16x128xf32>
    %20 = arith.addf %18, %19 : vector<16x16x128xf32>
    %cst_22 = arith.constant 0.000000e+00 : f32
    %21 = vector.broadcast %cst_22 : f32 to vector<16x16x128xf32>
    %22 = arith.maximumf %20, %21 : vector<16x16x128xf32>
    %23 = arith.truncf %22 : vector<16x16x128xf32> to vector<16x16x128xbf16>
    %c1_23 = arith.constant 1 : index
    %c1_24 = arith.constant 1 : index
    %c0_25 = arith.constant 0 : index
    %24 = vector.load %arg7[%c1_23, %c1_24, %c0_25] : memref<18x18x128xbf16, #tpu.memory_space<vmem>>, vector<16x16x128xbf16>
    tpu.vector_store %arg7[%c1_23, %c1_24, %c0_25], %23 {strides = array<i32>} : memref<18x18x128xbf16, #tpu.memory_space<vmem>>, vector<16x16x128xbf16>,
    %cst_26 = arith.constant 0.000000e+00 : f32
    %25 = vector.broadcast %cst_26 : f32 to vector<256x128xf32>
    %c0_27 = arith.constant 0 : index
    %c0_28 = arith.constant 0 : index
    %c0_29 = arith.constant 0 : index
    %26 = vector.load %arg7[%c0_27, %c0_28, %c0_29] : memref<18x18x128xbf16, #tpu.memory_space<vmem>>, vector<16x16x128xbf16>
    %27 = vector.shape_cast %26 : vector<16x16x128xbf16> to vector<256x128xbf16>
    %c0_30 = arith.constant 0 : index
    %c0_31 = arith.constant 0 : index
    %c0_32 = arith.constant 0 : index
    %28 = vector.load %arg4[%c0_30, %c0_31, %c0_32] : memref<9x128x128xbf16, #tpu.memory_space<vmem>>, vector<1x128x128xbf16>
    %29 = vector.shape_cast %28 : vector<1x128x128xbf16> to vector<128x128xbf16>
    %cst_33 = arith.constant dense<0.000000e+00> : vector<256x128xf32>
    %30 = tpu.matmul %27, %29, %cst_33 {dimension_numbers = #tpu.dot_dimension_numbers<[1], [0], [0], [1], [0, 0, 1, 1], [], []>} : vector<256x128xbf16>, vector<128x128xbf16>, vector<256x128xf32> -> vector<256x128xf32>
    %31 = arith.addf %25, %30 : vector<256x128xf32>
    %c0_34 = arith.constant 0 : index
    %c1_35 = arith.constant 1 : index
    %c0_36 = arith.constant 0 : index
    %32 = vector.load %arg7[%c0_34, %c1_35, %c0_36] : memref<18x18x128xbf16, #tpu.memory_space<vmem>>, vector<16x16x128xbf16>
    %33 = vector.shape_cast %32 : vector<16x16x128xbf16> to vector<256x128xbf16>
    %c1_37 = arith.constant 1 : index
    %c0_38 = arith.constant 0 : index
    %c0_39 = arith.constant 0 : index
    %34 = vector.load %arg4[%c1_37, %c0_38, %c0_39] : memref<9x128x128xbf16, #tpu.memory_space<vmem>>, vector<1x128x128xbf16>
    %35 = vector.shape_cast %34 : vector<1x128x128xbf16> to vector<128x128xbf16>
    %cst_40 = arith.constant dense<0.000000e+00> : vector<256x128xf32>
    %36 = tpu.matmul %33, %35, %cst_40 {dimension_numbers = #tpu.dot_dimension_numbers<[1], [0], [0], [1], [0, 0, 1, 1], [], []>} : vector<256x128xbf16>, vector<128x128xbf16>, vector<256x128xf32> -> vector<256x128xf32>
    %37 = arith.addf %31, %36 : vector<256x128xf32>
    %c0_41 = arith.constant 0 : index
    %c2 = arith.constant 2 : index
    %c0_42 = arith.constant 0 : index
    %38 = vector.load %arg7[%c0_41, %c2, %c0_42] : memref<18x18x128xbf16, #tpu.memory_space<vmem>>, vector<16x16x128xbf16>
    %39 = vector.shape_cast %38 : vector<16x16x128xbf16> to vector<256x128xbf16>
    %c2_43 = arith.constant 2 : index
    %c0_44 = arith.constant 0 : index
    %c0_45 = arith.constant 0 : index
    %40 = vector.load %arg4[%c2_43, %c0_44, %c0_45] : memref<9x128x128xbf16, #tpu.memory_space<vmem>>, vector<1x128x128xbf16>
    %41 = vector.shape_cast %40 : vector<1x128x128xbf16> to vector<128x128xbf16>
    %cst_46 = arith.constant dense<0.000000e+00> : vector<256x128xf32>
    %42 = tpu.matmul %39, %41, %cst_46 {dimension_numbers = #tpu.dot_dimension_numbers<[1], [0], [0], [1], [0, 0, 1, 1], [], []>} : vector<256x128xbf16>, vector<128x128xbf16>, vector<256x128xf32> -> vector<256x128xf32>
    %43 = arith.addf %37, %42 : vector<256x128xf32>
    %c1_47 = arith.constant 1 : index
    %c0_48 = arith.constant 0 : index
    %c0_49 = arith.constant 0 : index
    %44 = vector.load %arg7[%c1_47, %c0_48, %c0_49] : memref<18x18x128xbf16, #tpu.memory_space<vmem>>, vector<16x16x128xbf16>
    %45 = vector.shape_cast %44 : vector<16x16x128xbf16> to vector<256x128xbf16>
    %c3 = arith.constant 3 : index
    %c0_50 = arith.constant 0 : index
    %c0_51 = arith.constant 0 : index
    %46 = vector.load %arg4[%c3, %c0_50, %c0_51] : memref<9x128x128xbf16, #tpu.memory_space<vmem>>, vector<1x128x128xbf16>
    %47 = vector.shape_cast %46 : vector<1x128x128xbf16> to vector<128x128xbf16>
    %cst_52 = arith.constant dense<0.000000e+00> : vector<256x128xf32>
    %48 = tpu.matmul %45, %47, %cst_52 {dimension_numbers = #tpu.dot_dimension_numbers<[1], [0], [0], [1], [0, 0, 1, 1], [], []>} : vector<256x128xbf16>, vector<128x128xbf16>, vector<256x128xf32> -> vector<256x128xf32>
    %49 = arith.addf %43, %48 : vector<256x128xf32>
    %c1_53 = arith.constant 1 : index
    %c1_54 = arith.constant 1 : index
    %c0_55 = arith.constant 0 : index
    %50 = vector.load %arg7[%c1_53, %c1_54, %c0_55] : memref<18x18x128xbf16, #tpu.memory_space<vmem>>, vector<16x16x128xbf16>
    %51 = vector.shape_cast %50 : vector<16x16x128xbf16> to vector<256x128xbf16>
    %c4 = arith.constant 4 : index
    %c0_56 = arith.constant 0 : index
    %c0_57 = arith.constant 0 : index
    %52 = vector.load %arg4[%c4, %c0_56, %c0_57] : memref<9x128x128xbf16, #tpu.memory_space<vmem>>, vector<1x128x128xbf16>
    %53 = vector.shape_cast %52 : vector<1x128x128xbf16> to vector<128x128xbf16>
    %cst_58 = arith.constant dense<0.000000e+00> : vector<256x128xf32>
    %54 = tpu.matmul %51, %53, %cst_58 {dimension_numbers = #tpu.dot_dimension_numbers<[1], [0], [0], [1], [0, 0, 1, 1], [], []>} : vector<256x128xbf16>, vector<128x128xbf16>, vector<256x128xf32> -> vector<256x128xf32>
    %55 = arith.addf %49, %54 : vector<256x128xf32>
    %c1_59 = arith.constant 1 : index
    %c2_60 = arith.constant 2 : index
    %c0_61 = arith.constant 0 : index
    %56 = vector.load %arg7[%c1_59, %c2_60, %c0_61] : memref<18x18x128xbf16, #tpu.memory_space<vmem>>, vector<16x16x128xbf16>
    %57 = vector.shape_cast %56 : vector<16x16x128xbf16> to vector<256x128xbf16>
    %c5 = arith.constant 5 : index
    %c0_62 = arith.constant 0 : index
    %c0_63 = arith.constant 0 : index
    %58 = vector.load %arg4[%c5, %c0_62, %c0_63] : memref<9x128x128xbf16, #tpu.memory_space<vmem>>, vector<1x128x128xbf16>
    %59 = vector.shape_cast %58 : vector<1x128x128xbf16> to vector<128x128xbf16>
    %cst_64 = arith.constant dense<0.000000e+00> : vector<256x128xf32>
    %60 = tpu.matmul %57, %59, %cst_64 {dimension_numbers = #tpu.dot_dimension_numbers<[1], [0], [0], [1], [0, 0, 1, 1], [], []>} : vector<256x128xbf16>, vector<128x128xbf16>, vector<256x128xf32> -> vector<256x128xf32>
    %61 = arith.addf %55, %60 : vector<256x128xf32>
    %c2_65 = arith.constant 2 : index
    %c0_66 = arith.constant 0 : index
    %c0_67 = arith.constant 0 : index
    %62 = vector.load %arg7[%c2_65, %c0_66, %c0_67] : memref<18x18x128xbf16, #tpu.memory_space<vmem>>, vector<16x16x128xbf16>
    %63 = vector.shape_cast %62 : vector<16x16x128xbf16> to vector<256x128xbf16>
    %c6 = arith.constant 6 : index
    %c0_68 = arith.constant 0 : index
    %c0_69 = arith.constant 0 : index
    %64 = vector.load %arg4[%c6, %c0_68, %c0_69] : memref<9x128x128xbf16, #tpu.memory_space<vmem>>, vector<1x128x128xbf16>
    %65 = vector.shape_cast %64 : vector<1x128x128xbf16> to vector<128x128xbf16>
    %cst_70 = arith.constant dense<0.000000e+00> : vector<256x128xf32>
    %66 = tpu.matmul %63, %65, %cst_70 {dimension_numbers = #tpu.dot_dimension_numbers<[1], [0], [0], [1], [0, 0, 1, 1], [], []>} : vector<256x128xbf16>, vector<128x128xbf16>, vector<256x128xf32> -> vector<256x128xf32>
    %67 = arith.addf %61, %66 : vector<256x128xf32>
    %c2_71 = arith.constant 2 : index
    %c1_72 = arith.constant 1 : index
    %c0_73 = arith.constant 0 : index
    %68 = vector.load %arg7[%c2_71, %c1_72, %c0_73] : memref<18x18x128xbf16, #tpu.memory_space<vmem>>, vector<16x16x128xbf16>
    %69 = vector.shape_cast %68 : vector<16x16x128xbf16> to vector<256x128xbf16>
    %c7 = arith.constant 7 : index
    %c0_74 = arith.constant 0 : index
    %c0_75 = arith.constant 0 : index
    %70 = vector.load %arg4[%c7, %c0_74, %c0_75] : memref<9x128x128xbf16, #tpu.memory_space<vmem>>, vector<1x128x128xbf16>
    %71 = vector.shape_cast %70 : vector<1x128x128xbf16> to vector<128x128xbf16>
    %cst_76 = arith.constant dense<0.000000e+00> : vector<256x128xf32>
    %72 = tpu.matmul %69, %71, %cst_76 {dimension_numbers = #tpu.dot_dimension_numbers<[1], [0], [0], [1], [0, 0, 1, 1], [], []>} : vector<256x128xbf16>, vector<128x128xbf16>, vector<256x128xf32> -> vector<256x128xf32>
    %73 = arith.addf %67, %72 : vector<256x128xf32>
    %c2_77 = arith.constant 2 : index
    %c2_78 = arith.constant 2 : index
    %c0_79 = arith.constant 0 : index
    %74 = vector.load %arg7[%c2_77, %c2_78, %c0_79] : memref<18x18x128xbf16, #tpu.memory_space<vmem>>, vector<16x16x128xbf16>
    %75 = vector.shape_cast %74 : vector<16x16x128xbf16> to vector<256x128xbf16>
    %c8 = arith.constant 8 : index
    %c0_80 = arith.constant 0 : index
    %c0_81 = arith.constant 0 : index
    %76 = vector.load %arg4[%c8, %c0_80, %c0_81] : memref<9x128x128xbf16, #tpu.memory_space<vmem>>, vector<1x128x128xbf16>
    %77 = vector.shape_cast %76 : vector<1x128x128xbf16> to vector<128x128xbf16>
    %cst_82 = arith.constant dense<0.000000e+00> : vector<256x128xf32>
    %78 = tpu.matmul %75, %77, %cst_82 {dimension_numbers = #tpu.dot_dimension_numbers<[1], [0], [0], [1], [0, 0, 1, 1], [], []>} : vector<256x128xbf16>, vector<128x128xbf16>, vector<256x128xf32> -> vector<256x128xf32>
    %79 = arith.addf %73, %78 : vector<256x128xf32>
    %80 = vector.shape_cast %79 : vector<256x128xf32> to vector<16x16x128xf32>
    %81 = arith.truncf %80 : vector<16x16x128xf32> to vector<16x16x128xbf16>
    %c0_83 = arith.constant 0 : index
    %c0_84 = arith.constant 0 : index
    %c0_85 = arith.constant 0 : index
    %c0_86 = arith.constant 0 : index
    %82 = vector.load %arg5[%c0_83, %c0_84, %c0_85, %c0_86] : memref<1x16x16x128xbf16, #tpu.memory_space<vmem>>, vector<1x16x16x128xbf16>
    %83 = vector.shape_cast %82 : vector<1x16x16x128xbf16> to vector<16x16x128xbf16>
    %84 = vector.shape_cast %81 : vector<16x16x128xbf16> to vector<1x16x16x128xbf16>
    tpu.vector_store %arg5[%c0_83, %c0_84, %c0_85, %c0_86], %84 {strides = array<i32>} : memref<1x16x16x128xbf16, #tpu.memory_space<vmem>>, vector<1x16x16x128xbf16>,
    %cst_87 = arith.constant dense<0.000000e+00> : vector<128xf32>
    %85 = vector.multi_reduction <add>, %79, %cst_87 [0] : vector<256x128xf32> to vector<128xf32>
    %86 = vector.shape_cast %85 : vector<128xf32> to vector<1x128xf32>
    %87 = arith.addf %12, %86 : vector<1x128xf32>
    %88 = arith.mulf %79, %79 : vector<256x128xf32>
    %cst_88 = arith.constant dense<0.000000e+00> : vector<128xf32>
    %89 = vector.multi_reduction <add>, %88, %cst_88 [0] : vector<256x128xf32> to vector<128xf32>
    %90 = vector.shape_cast %89 : vector<128xf32> to vector<1x128xf32>
    %91 = arith.addf %13, %90 : vector<1x128xf32>
    %92 = tpu.concatenate %87, %91 in 0 : vector<1x128xf32>, vector<1x128xf32> -> vector<2x128xf32>
    %c0_89 = arith.constant 0 : index
    %c0_90 = arith.constant 0 : index
    %c0_91 = arith.constant 0 : index
    %93 = vector.load %arg6[%c0_89, %c0_90, %c0_91] : memref<1x2x128xf32, #tpu.memory_space<vmem>>, vector<1x2x128xf32>
    %94 = vector.shape_cast %93 : vector<1x2x128xf32> to vector<2x128xf32>
    %95 = vector.shape_cast %92 : vector<2x128xf32> to vector<1x2x128xf32>
    tpu.vector_store %arg6[%c0_89, %c0_90, %c0_91], %95 {strides = array<i32>} : memref<1x2x128xf32, #tpu.memory_space<vmem>>, vector<1x2x128xf32>,
    return
  }
  func.func @transform_0(%arg0: i32) -> (i32, i32, i32, i32) {
    %c0_i32 = arith.constant 0 : i32
    %c0_i32_0 = arith.constant 0 : i32
    %c0_i32_1 = arith.constant 0 : i32
    %c0_i32_2 = arith.constant 0 : i32
    return %arg0, %c0_i32, %c0_i32_0, %c0_i32_1 : i32, i32, i32, i32
  }
  func.func @transform_1(%arg0: i32) -> (i32, i32) {
    %c0_i32 = arith.constant 0 : i32
    %c0_i32_0 = arith.constant 0 : i32
    %c0_i32_1 = arith.constant 0 : i32
    return %c0_i32, %c0_i32_0 : i32, i32
  }
  func.func @transform_2(%arg0: i32) -> (i32, i32) {
    %c0_i32 = arith.constant 0 : i32
    %c0_i32_0 = arith.constant 0 : i32
    %c0_i32_1 = arith.constant 0 : i32
    return %c0_i32, %c0_i32_0 : i32, i32
  }
  func.func @transform_3(%arg0: i32) -> (i32, i32, i32) {
    %c0_i32 = arith.constant 0 : i32
    %c0_i32_0 = arith.constant 0 : i32
    %c0_i32_1 = arith.constant 0 : i32
    %c0_i32_2 = arith.constant 0 : i32
    return %c0_i32, %c0_i32_0, %c0_i32_1 : i32, i32, i32
  }
  func.func @transform_4(%arg0: i32) -> (i32, i32, i32, i32) {
    %c0_i32 = arith.constant 0 : i32
    %c0_i32_0 = arith.constant 0 : i32
    %c0_i32_1 = arith.constant 0 : i32
    %c0_i32_2 = arith.constant 0 : i32
    return %arg0, %c0_i32, %c0_i32_0, %c0_i32_1 : i32, i32, i32, i32
  }
  func.func @transform_5(%arg0: i32) -> (i32, i32, i32) {
    %c0_i32 = arith.constant 0 : i32
    %c0_i32_0 = arith.constant 0 : i32
    %c0_i32_1 = arith.constant 0 : i32
    return %arg0, %c0_i32, %c0_i32_0 : i32, i32, i32
  }
}

</mosaic_0001>

<llo_original>
// kernel: double_conv.2
$region0: #{double_conv.2}
  #allocation0 [shape = 'u32[]', space=smem, size = 0x4, offset = 0x4, fixed_abs, tag = 'smem constant byte address 0x4 - core index']
  #allocation1 [shape = 'u32[144,128]{1,0:T(1,128)}', space=vmem, size = 0x12000, scoped, tag = 'internal scratch']
  #allocation2 [shape = 'bf16[18,18,8]{2,1,0:T(8,128)(2,1)}', space=vmem, size = 0x1b000, scoped, tag = 'scratch operand']
  #allocation3 [shape = 'bf16[256,128]{1,0:T(16,128)(2,1)}', space=vmem, size = 0x10000, scoped, tag = 'scratch operand']
  %s0 = inlined_call_operand.vmem [shape: bf16[2,16,16,8], index: 0, kind: input, shape index: {}]
  %s1 = inlined_call_operand.vmem [shape: bf16[128,128], index: 1, kind: input, shape index: {}]
  %s2 = inlined_call_operand.vmem [shape: bf16[2,16,16,128], index: 2, kind: output, shape index: {0}]
  %s3 = inlined_call_operand.vmem [shape: f32[2,2,128], index: 3, kind: output, shape index: {1}]
  %4 = xla_tuple %s2, %s3
  %s5 = sld [smem:[#allocation0]]
  $region49: #{double_conv.2} parent=0
    _
  %s7 = ssub.s32 1, %s5
  %s8 = scalar_select 0, %s7, %s5
  loop: start=0, step=1, limit=4
  $region2: #{double_conv.2} parent=0 // loop_pre_header
    _
  $region3: #{double_conv.2} parent=0 // loop_header
    %s10 = sphi 0, %s14
    %p11 = scmp.ge.s32.totalorder %s10, 4
    %s20 = sphi 0, %s22
    %s23 = sphi 0, %s20
    %s24 = sphi 0, %s23
    %s40 = sphi 0, %s24
    %s44 = sphi 0, %s44
    %s46 = sphi 0, %s44
    %s47 = sphi 0, %s46
    %s61 = sphi 0, %s47
    %s67 = sphi 0, %s69
    %s70 = sphi 0, %s67
    %s71 = sphi 0, %s70
    %s87 = sphi 0, %s71
    %s93 = sphi 0, %s95
    %s96 = sphi 0, %s93
    %s97 = sphi 0, %s96
    %s113 = sphi 0, %s97
  $region4: #{double_conv.2} parent=0 // loop_header_branch
    %13 = sbr.rel (%p11) target = $region8
  $region5: #{double_conv.2} parent=0 // loop_body
    %s15 = ssub.s32 %s10, 1
    %s16 = ssub.s32 %s10, 2
    %s17 = sadd.s32 %s10, 1
    %s18 = ssub.s32 %s10, %s17
    %p19 = scmp.eq.s32.totalorder %s18, 0
    %s21 = sadd.s32 %s20, 1
    %s22 = scalar_select %p19, %s20, %s21
    %p25 = pneg %p19
    %p26 = scmp.eq.s32.totalorder %s10, 1
    %p27 = por %p25, %p26
    %p28 = scmp.ne.s32.totalorder %s20, %s23
    %p29 = scmp.eq.s32.totalorder %s10, 0
    %p30 = por %p28, %p29
    %p31 = scmp.ne.s32.totalorder %s20, %s23
    %p32 = scmp.eq.s32.totalorder %s15, 1
    %p33 = por %p31, %p32
    %p34 = scmp.ne.s32.totalorder %s23, %s24
    %p35 = scmp.eq.s32.totalorder %s15, 0
    %p36 = por %p34, %p35
    %p37 = scmp.ne.s32.totalorder %s23, %s24
    %p38 = scmp.eq.s32.totalorder %s16, 1
    %p39 = por %p37, %p38
    %p41 = scmp.ne.s32.totalorder %s24, %s40
    %p42 = scmp.eq.s32.totalorder %s16, 0
    %p43 = por %p41, %p42
    %s45 = sadd.s32 %s44, 1
    %p48 = scmp.eq.s32.totalorder %s10, 1
    %p49 = scmp.ne.s32.totalorder %s44, %s46
    %p50 = scmp.eq.s32.totalorder %s10, 0
    %p51 = por %p49, %p50
    %p52 = scmp.ne.s32.totalorder %s44, %s46
    %p53 = scmp.eq.s32.totalorder %s15, 1
    %p54 = por %p52, %p53
    %p55 = scmp.ne.s32.totalorder %s46, %s47
    %p56 = scmp.eq.s32.totalorder %s15, 0
    %p57 = por %p55, %p56
    %p58 = scmp.ne.s32.totalorder %s46, %s47
    %p59 = scmp.eq.s32.totalorder %s16, 1
    %p60 = por %p58, %p59
    %p62 = scmp.ne.s32.totalorder %s47, %s61
    %p63 = scmp.eq.s32.totalorder %s16, 0
    %p64 = por %p62, %p63
    %s65 = ssub.s32 %s10, %s17
    %p66 = scmp.eq.s32.totalorder %s65, 0
    %s68 = sadd.s32 %s67, 1
    %s69 = scalar_select %p66, %s67, %s68
    %p72 = pneg %p66
    %p73 = scmp.eq.s32.totalorder %s10, 1
    %p74 = por %p72, %p73
    %p75 = scmp.ne.s32.totalorder %s67, %s70
    %p76 = scmp.eq.s32.totalorder %s10, 0
    %p77 = por %p75, %p76
    %p78 = scmp.ne.s32.totalorder %s67, %s70
    %p79 = scmp.eq.s32.totalorder %s15, 1
    %p80 = por %p78, %p79
    %p81 = scmp.ne.s32.totalorder %s70, %s71
    %p82 = scmp.eq.s32.totalorder %s15, 0
    %p83 = por %p81, %p82
    %p84 = scmp.ne.s32.totalorder %s70, %s71
    %p85 = scmp.eq.s32.totalorder %s16, 1
    %p86 = por %p84, %p85
    %p88 = scmp.ne.s32.totalorder %s71, %s87
    %p89 = scmp.eq.s32.totalorder %s16, 0
    %p90 = por %p88, %p89
    %s91 = ssub.s32 %s10, %s17
    %p92 = scmp.eq.s32.totalorder %s91, 0
    %s94 = sadd.s32 %s93, 1
    %s95 = scalar_select %p92, %s93, %s94
    %p98 = pneg %p92
    %p99 = scmp.eq.s32.totalorder %s10, 1
    %p100 = por %p98, %p99
    %p101 = scmp.ne.s32.totalorder %s93, %s96
    %p102 = scmp.eq.s32.totalorder %s10, 0
    %p103 = por %p101, %p102
    %p104 = scmp.ne.s32.totalorder %s93, %s96
    %p105 = scmp.eq.s32.totalorder %s15, 1
    %p106 = por %p104, %p105
    %p107 = scmp.ne.s32.totalorder %s96, %s97
    %p108 = scmp.eq.s32.totalorder %s15, 0
    %p109 = por %p107, %p108
    %p110 = scmp.ne.s32.totalorder %s96, %s97
    %p111 = scmp.eq.s32.totalorder %s16, 1
    %p112 = por %p110, %p111
    %p114 = scmp.ne.s32.totalorder %s97, %s113
    %p115 = scmp.eq.s32.totalorder %s16, 0
    %p116 = por %p114, %p115
    %p117 = scmp.le.s32.totalorder 1, %s10
    %p118 = scmp.lt.s32.totalorder %s10, 3
    %p119 = pnand %p117, %p118
    %p120 = pneg %p119
    // Predicated region
    $region9: #{double_conv.2} parent=5 // pred_check
      _
    $region10: #{double_conv.2} parent=5 // pred_check_branch
      %122 = sbr.rel (%p119) target = $region12
    $region11: #{double_conv.2} parent=5 // pred_region
      %s123 = ssub.s32 %s10, 1
      // Predicated region
      $region13: #{double_conv.2} parent=11 // pred_check
        %p124 = pneg %p57
      $region14: #{double_conv.2} parent=11 // pred_check_branch
        %126 = sbr.rel (%p124) target = $region16
      $region15: #{double_conv.2} parent=11 // pred_region
        _
      $region16: #{double_conv.2} parent=11 // pred_fallthru
        _
    $region12: #{double_conv.2} parent=5 // pred_fallthru
      _
    %p127 = scmp.lt.s32.totalorder %s10, 2
    // Predicated region
    $region17: #{double_conv.2} parent=5 // pred_check
      %p128 = pneg %p127
    $region18: #{double_conv.2} parent=5 // pred_check_branch
      %130 = sbr.rel (%p128) target = $region20
    $region19: #{double_conv.2} parent=5 // pred_region
      // Predicated region
      $region21: #{double_conv.2} parent=19 // pred_check
        %p131 = pneg %p30
      $region22: #{double_conv.2} parent=19 // pred_check_branch
        %133 = sbr.rel (%p131) target = $region24
      $region23: #{double_conv.2} parent=19 // pred_region
        %p134 = scmp.lt.s32.totalorder %s10, 1
        %s135 = scalar_select %p134, %s10, 1
        %s136 = smul.addr %s135, 32
        %s137 = smul.addr %s136, 4
        %s138 = scalar_lea.vmem %s0, %s137
      $region24: #{double_conv.2} parent=19 // pred_fallthru
        _
    $region20: #{double_conv.2} parent=5 // pred_fallthru
      _
    %p139 = scmp.le.s32.totalorder 1, %s10
    %p140 = scmp.lt.s32.totalorder %s10, 3
    %p141 = pnand %p139, %p140
    %p142 = pneg %p141
    // Predicated region
    $region25: #{double_conv.2} parent=5 // pred_check
      _
    $region26: #{double_conv.2} parent=5 // pred_check_branch
      %144 = sbr.rel (%p141) target = $region28
    $region27: #{double_conv.2} parent=5 // pred_region
      %s145 = ssub.s32 %s10, 1
      %p146 = scmp.lt.s32.totalorder %s15, 1
      %s147 = scalar_select %p146, %s15, 1
      %s148 = smul.addr %s147, 32
      %s149 = smul.addr %s148, 4
      %s150 = scalar_lea.vmem %s0, %s149
      %p151 = pneg %p36
      %p152 = pneg %p33
      %p153 = pneg %p57
      %p154 = pneg %p54
      %p155 = pneg %p83
      %p156 = pneg %p80
      %p157 = scmp.lt.s32.totalorder %s15, 1
      %s158 = scalar_select %p157, %s15, 1
      %s159 = smul.addr %s158, 32
      %s160 = smul.addr %s159, 4
      %s161 = scalar_lea.vmem %s2, %s160
      %p162 = pneg %p109
      %p163 = pneg %p106
      %p164 = scmp.lt.s32.totalorder %s15, 1
      %s165 = scalar_select %p164, %s15, 1
      %s166 = smul.addr %s165, 2
      %s167 = scalar_lea.vmem %s3, %s166
      %p168 = scmp.lt.s32.totalorder %s15, 1
      %s169 = scalar_select %p168, %s15, 1
      %s170 = smul.addr %s169, 32
      %s171 = smul.addr %s170, 4
      %s172 = scalar_lea.vmem %s0, %s171
      %p173 = scmp.lt.s32.totalorder %s15, 1
      %s174 = scalar_select %p173, %s15, 1
      %s175 = smul.addr %s174, 32
      %s176 = smul.addr %s175, 4
      %s177 = scalar_lea.vmem %s2, %s176
      %p178 = scmp.lt.s32.totalorder %s15, 1
      %s179 = scalar_select %p178, %s15, 1
      %s180 = smul.addr %s179, 2
      %s181 = scalar_lea.vmem %s3, %s180
      %vm183 = vcmask 60416
      %184 = vst.msk [vmem:[#allocation2] sm:$0xf] %vm183, 0
      %185 = vst.msk [vmem:[#allocation2 + $0x4] sm:$0xf] %vm183, 0
      %vm186 = vcmask 57344
      %187 = vst.msk [vmem:[#allocation2 + $0x8] sm:$0x1] %vm186, 0
      %s188 = scalar_lea.vmem [#allocation2], 204
      %189 = vst.msk [vmem:[%s188] sm:$0xf] %vm183, 0
      %190 = vst.msk [vmem:[%s188 + $0x4] sm:$0xf] %vm183, 0
      %191 = vst.msk [vmem:[%s188 + $0x8] sm:$0x1] %vm186, 0
      %s192 = scalar_lea.vmem [#allocation2], 12
      %vm193 = vcmask 57344
      %vm194 = vsmask.f32 256
      %vm195 = vmand %vm193, %vm194
      %v196 = vld [vmem:[%s192] sm:$0x1]
      %v197 = vsel %vm195, 0, %v196
      %198 = vst [vmem:[%s192] sm:$0x1] %v197
      %v199 = vld [vmem:[%s192 + $0xc] sm:$0x1]
      %v200 = vsel %vm195, 0, %v199
      %201 = vst [vmem:[%s192 + $0xc] sm:$0x1] %v200
      %v202 = vld [vmem:[%s192 + $0x18] sm:$0x1]
      %v203 = vsel %vm195, 0, %v202
      %204 = vst [vmem:[%s192 + $0x18] sm:$0x1] %v203
      %v205 = vld [vmem:[%s192 + $0x24] sm:$0x1]
      %v206 = vsel %vm195, 0, %v205
      %207 = vst [vmem:[%s192 + $0x24] sm:$0x1] %v206
      %v208 = vld [vmem:[%s192 + $0x30] sm:$0x1]
      %v209 = vsel %vm195, 0, %v208
      %210 = vst [vmem:[%s192 + $0x30] sm:$0x1] %v209
      %v211 = vld [vmem:[%s192 + $0x3c] sm:$0x1]
      %v212 = vsel %vm195, 0, %v211
      %213 = vst [vmem:[%s192 + $0x3c] sm:$0x1] %v212
      %v214 = vld [vmem:[%s192 + $0x48] sm:$0x1]
      %v215 = vsel %vm195, 0, %v214
      %216 = vst [vmem:[%s192 + $0x48] sm:$0x1] %v215
      %v217 = vld [vmem:[%s192 + $0x54] sm:$0x1]
      %v218 = vsel %vm195, 0, %v217
      %219 = vst [vmem:[%s192 + $0x54] sm:$0x1] %v218
      %v220 = vld [vmem:[%s192 + $0x60] sm:$0x1]
      %v221 = vsel %vm195, 0, %v220
      %222 = vst [vmem:[%s192 + $0x60] sm:$0x1] %v221
      %v223 = vld [vmem:[%s192 + $0x6c] sm:$0x1]
      %v224 = vsel %vm195, 0, %v223
      %225 = vst [vmem:[%s192 + $0x6c] sm:$0x1] %v224
      %v226 = vld [vmem:[%s192 + $0x78] sm:$0x1]
      %v227 = vsel %vm195, 0, %v226
      %228 = vst [vmem:[%s192 + $0x78] sm:$0x1] %v227
      %v229 = vld [vmem:[%s192 + $0x84] sm:$0x1]
      %v230 = vsel %vm195, 0, %v229
      %231 = vst [vmem:[%s192 + $0x84] sm:$0x1] %v230
      %v232 = vld [vmem:[%s192 + $0x90] sm:$0x1]
      %v233 = vsel %vm195, 0, %v232
      %234 = vst [vmem:[%s192 + $0x90] sm:$0x1] %v233
      %v235 = vld [vmem:[%s192 + $0x9c] sm:$0x1]
      %v236 = vsel %vm195, 0, %v235
      %237 = vst [vmem:[%s192 + $0x9c] sm:$0x1] %v236
      %v238 = vld [vmem:[%s192 + $0xa8] sm:$0x1]
      %v239 = vsel %vm195, 0, %v238
      %240 = vst [vmem:[%s192 + $0xa8] sm:$0x1] %v239
      %v241 = vld [vmem:[%s192 + $0xb4] sm:$0x1]
      %v242 = vsel %vm195, 0, %v241
      %243 = vst [vmem:[%s192 + $0xb4] sm:$0x1] %v242
      %vm244 = vsmask.f32 7938
      %vm245 = vmand %vm193, %vm244
      %v246 = vld [vmem:[%s192 + $0x8] sm:$0x1]
      %v247 = vsel %vm245, 0, %v246
      %248 = vst [vmem:[%s192 + $0x8] sm:$0x1] %v247
      %v249 = vld [vmem:[%s192 + $0x14] sm:$0x1]
      %v250 = vsel %vm245, 0, %v249
      %251 = vst [vmem:[%s192 + $0x14] sm:$0x1] %v250
      %v252 = vld [vmem:[%s192 + $0x20] sm:$0x1]
      %v253 = vsel %vm245, 0, %v252
      %254 = vst [vmem:[%s192 + $0x20] sm:$0x1] %v253
      %v255 = vld [vmem:[%s192 + $0x2c] sm:$0x1]
      %v256 = vsel %vm245, 0, %v255
      %257 = vst [vmem:[%s192 + $0x2c] sm:$0x1] %v256
      %v258 = vld [vmem:[%s192 + $0x38] sm:$0x1]
      %v259 = vsel %vm245, 0, %v258
      %260 = vst [vmem:[%s192 + $0x38] sm:$0x1] %v259
      %v261 = vld [vmem:[%s192 + $0x44] sm:$0x1]
      %v262 = vsel %vm245, 0, %v261
      %263 = vst [vmem:[%s192 + $0x44] sm:$0x1] %v262
      %v264 = vld [vmem:[%s192 + $0x50] sm:$0x1]
      %v265 = vsel %vm245, 0, %v264
      %266 = vst [vmem:[%s192 + $0x50] sm:$0x1] %v265
      %v267 = vld [vmem:[%s192 + $0x5c] sm:$0x1]
      %v268 = vsel %vm245, 0, %v267
      %269 = vst [vmem:[%s192 + $0x5c] sm:$0x1] %v268
      %v270 = vld [vmem:[%s192 + $0x68] sm:$0x1]
      %v271 = vsel %vm245, 0, %v270
      %272 = vst [vmem:[%s192 + $0x68] sm:$0x1] %v271
      %v273 = vld [vmem:[%s192 + $0x74] sm:$0x1]
      %v274 = vsel %vm245, 0, %v273
      %275 = vst [vmem:[%s192 + $0x74] sm:$0x1] %v274
      %v276 = vld [vmem:[%s192 + $0x80] sm:$0x1]
      %v277 = vsel %vm245, 0, %v276
      %278 = vst [vmem:[%s192 + $0x80] sm:$0x1] %v277
      %v279 = vld [vmem:[%s192 + $0x8c] sm:$0x1]
      %v280 = vsel %vm245, 0, %v279
      %281 = vst [vmem:[%s192 + $0x8c] sm:$0x1] %v280
      %v282 = vld [vmem:[%s192 + $0x98] sm:$0x1]
      %v283 = vsel %vm245, 0, %v282
      %284 = vst [vmem:[%s192 + $0x98] sm:$0x1] %v283
      %v285 = vld [vmem:[%s192 + $0xa4] sm:$0x1]
      %v286 = vsel %vm245, 0, %v285
      %287 = vst [vmem:[%s192 + $0xa4] sm:$0x1] %v286
      %v288 = vld [vmem:[%s192 + $0xb0] sm:$0x1]
      %v289 = vsel %vm245, 0, %v288
      %290 = vst [vmem:[%s192 + $0xb0] sm:$0x1] %v289
      %v291 = vld [vmem:[%s192 + $0xbc] sm:$0x1]
      %v292 = vsel %vm245, 0, %v291
      %293 = vst [vmem:[%s192 + $0xbc] sm:$0x1] %v292
      %vm294 = vcmask 1048128
      %295 = vst.msk [vmem:[#allocation3] sm:$0xff] %vm294, 0
      %296 = vst.msk [vmem:[#allocation3 + $0x8] sm:$0xff] %vm294, 0
      %297 = vst.msk [vmem:[#allocation3 + $0x10] sm:$0xff] %vm294, 0
      %298 = vst.msk [vmem:[#allocation3 + $0x18] sm:$0xff] %vm294, 0
      %299 = vst.msk [vmem:[#allocation3 + $0x20] sm:$0xff] %vm294, 0
      %300 = vst.msk [vmem:[#allocation3 + $0x28] sm:$0xff] %vm294, 0
      %301 = vst.msk [vmem:[#allocation3 + $0x30] sm:$0xff] %vm294, 0
      %302 = vst.msk [vmem:[#allocation3 + $0x38] sm:$0xff] %vm294, 0
      %303 = vst.msk [vmem:[#allocation3 + $0x40] sm:$0xff] %vm294, 0
      %304 = vst.msk [vmem:[#allocation3 + $0x48] sm:$0xff] %vm294, 0
      %305 = vst.msk [vmem:[#allocation3 + $0x50] sm:$0xff] %vm294, 0
      %306 = vst.msk [vmem:[#allocation3 + $0x58] sm:$0xff] %vm294, 0
      %307 = vst.msk [vmem:[#allocation3 + $0x60] sm:$0xff] %vm294, 0
      %308 = vst.msk [vmem:[#allocation3 + $0x68] sm:$0xff] %vm294, 0
      %309 = vst.msk [vmem:[#allocation3 + $0x70] sm:$0xff] %vm294, 0
      %310 = vst.msk [vmem:[#allocation3 + $0x78] sm:$0xff] %vm294, 0
      %v311 = vld [vmem:[%s172] sm:$0xf]
      %v312 = vld [vmem:[%s172 + $0x4] sm:$0xf]
      %v313 = vld [vmem:[%s172 + $0x8] sm:$0xf]
      %v314 = vld [vmem:[%s172 + $0xc] sm:$0xf]
      %v315 = vld [vmem:[%s172 + $0x10] sm:$0xf]
      %v316 = vld [vmem:[%s172 + $0x14] sm:$0xf]
      %v317 = vld [vmem:[%s172 + $0x18] sm:$0xf]
      %v318 = vld [vmem:[%s172 + $0x1c] sm:$0xf]
      %v319 = vld [vmem:[%s172 + $0x20] sm:$0xf]
      %v320 = vld [vmem:[%s172 + $0x24] sm:$0xf]
      %v321 = vld [vmem:[%s172 + $0x28] sm:$0xf]
      %v322 = vld [vmem:[%s172 + $0x2c] sm:$0xf]
      %v323 = vld [vmem:[%s172 + $0x30] sm:$0xf]
      %v324 = vld [vmem:[%s172 + $0x34] sm:$0xf]
      %v325 = vld [vmem:[%s172 + $0x38] sm:$0xf]
      %v326 = vld [vmem:[%s172 + $0x3c] sm:$0xf]
      %v327 = vld [vmem:[%s172 + $0x40] sm:$0xf]
      %v328 = vld [vmem:[%s172 + $0x44] sm:$0xf]
      %v329 = vld [vmem:[%s172 + $0x48] sm:$0xf]
      %v330 = vld [vmem:[%s172 + $0x4c] sm:$0xf]
      %v331 = vld [vmem:[%s172 + $0x50] sm:$0xf]
      %v332 = vld [vmem:[%s172 + $0x54] sm:$0xf]
      %v333 = vld [vmem:[%s172 + $0x58] sm:$0xf]
      %v334 = vld [vmem:[%s172 + $0x5c] sm:$0xf]
      %v335 = vld [vmem:[%s172 + $0x60] sm:$0xf]
      %v336 = vld [vmem:[%s172 + $0x64] sm:$0xf]
      %v337 = vld [vmem:[%s172 + $0x68] sm:$0xf]
      %v338 = vld [vmem:[%s172 + $0x6c] sm:$0xf]
      %v339 = vld [vmem:[%s172 + $0x70] sm:$0xf]
      %v340 = vld [vmem:[%s172 + $0x74] sm:$0xf]
      %v341 = vld [vmem:[%s172 + $0x78] sm:$0xf]
      %v342 = vld [vmem:[%s172 + $0x7c] sm:$0xf]
      %vm343 = vsmask.f32 4368
      %vm344 = vmor %vm194, %vm343
      %v346 = vshrl.u32 %v311, 16
      %v348 = vrot.slane %v346, 7
      %v349 = vshll.u32 %v311, 16
      %v351 = vor.u32 %v348, %v349
      %v352 = vrot.slane %v348, 4
      %v354 = vshrl.u32 %v312, 16
      %v356 = vrot.slane %v354, 7
      %v357 = vshll.u32 %v312, 16
      %v359 = vor.u32 %v356, %v357
      %v360 = vsel %vm344, %v352, %v359
      %v361 = vrot.slane %v356, 4
      %v363 = vshrl.u32 %v313, 16
      %v365 = vrot.slane %v363, 7
      %v366 = vshll.u32 %v313, 16
      %v368 = vor.u32 %v365, %v366
      %v369 = vrot.slane %v365, 4
      %v371 = vshrl.u32 %v314, 16
      %v373 = vrot.slane %v371, 7
      %v374 = vshll.u32 %v314, 16
      %v376 = vor.u32 %v373, %v374
      %v377 = vsel %vm344, %v369, %v376
      %v378 = vrot.slane %v373, 4
      %v380 = vshrl.u32 %v315, 16
      %v382 = vrot.slane %v380, 7
      %v383 = vshll.u32 %v315, 16
      %v385 = vor.u32 %v382, %v383
      %v386 = vrot.slane %v382, 4
      %v388 = vshrl.u32 %v316, 16
      %v390 = vrot.slane %v388, 7
      %v391 = vshll.u32 %v316, 16
      %v393 = vor.u32 %v390, %v391
      %v394 = vsel %vm344, %v386, %v393
      %v395 = vrot.slane %v390, 4
      %v397 = vshrl.u32 %v317, 16
      %v399 = vrot.slane %v397, 7
      %v400 = vshll.u32 %v317, 16
      %v402 = vor.u32 %v399, %v400
      %v403 = vrot.slane %v399, 4
      %v405 = vshrl.u32 %v318, 16
      %v407 = vrot.slane %v405, 7
      %v408 = vshll.u32 %v318, 16
      %v410 = vor.u32 %v407, %v408
      %v411 = vsel %vm344, %v403, %v410
      %v412 = vrot.slane %v407, 4
      %v414 = vshrl.u32 %v319, 16
      %v416 = vrot.slane %v414, 7
      %v417 = vshll.u32 %v319, 16
      %v419 = vor.u32 %v416, %v417
      %v420 = vrot.slane %v416, 4
      %v422 = vshrl.u32 %v320, 16
      %v424 = vrot.slane %v422, 7
      %v425 = vshll.u32 %v320, 16
      %v427 = vor.u32 %v424, %v425
      %v428 = vsel %vm344, %v420, %v427
      %v429 = vrot.slane %v424, 4
      %v431 = vshrl.u32 %v321, 16
      %v433 = vrot.slane %v431, 7
      %v434 = vshll.u32 %v321, 16
      %v436 = vor.u32 %v433, %v434
      %v437 = vrot.slane %v433, 4
      %v439 = vshrl.u32 %v322, 16
      %v441 = vrot.slane %v439, 7
      %v442 = vshll.u32 %v322, 16
      %v444 = vor.u32 %v441, %v442
      %v445 = vsel %vm344, %v437, %v444
      %v446 = vrot.slane %v441, 4
      %v448 = vshrl.u32 %v323, 16
      %v450 = vrot.slane %v448, 7
      %v451 = vshll.u32 %v323, 16
      %v453 = vor.u32 %v450, %v451
      %v454 = vrot.slane %v450, 4
      %v456 = vshrl.u32 %v324, 16
      %v458 = vrot.slane %v456, 7
      %v459 = vshll.u32 %v324, 16
      %v461 = vor.u32 %v458, %v459
      %v462 = vsel %vm344, %v454, %v461
      %v463 = vrot.slane %v458, 4
      %v465 = vshrl.u32 %v325, 16
      %v467 = vrot.slane %v465, 7
      %v468 = vshll.u32 %v325, 16
      %v470 = vor.u32 %v467, %v468
      %v471 = vrot.slane %v467, 4
      %v473 = vshrl.u32 %v326, 16
      %v475 = vrot.slane %v473, 7
      %v476 = vshll.u32 %v326, 16
      %v478 = vor.u32 %v475, %v476
      %v479 = vsel %vm344, %v471, %v478
      %v480 = vrot.slane %v475, 4
      %v482 = vshrl.u32 %v327, 16
      %v484 = vrot.slane %v482, 7
      %v485 = vshll.u32 %v327, 16
      %v487 = vor.u32 %v484, %v485
      %v488 = vrot.slane %v484, 4
      %v490 = vshrl.u32 %v328, 16
      %v492 = vrot.slane %v490, 7
      %v493 = vshll.u32 %v328, 16
      %v495 = vor.u32 %v492, %v493
      %v496 = vsel %vm344, %v488, %v495
      %v497 = vrot.slane %v492, 4
      %v499 = vshrl.u32 %v329, 16
      %v501 = vrot.slane %v499, 7
      %v502 = vshll.u32 %v329, 16
      %v504 = vor.u32 %v501, %v502
      %v505 = vrot.slane %v501, 4
      %v507 = vshrl.u32 %v330, 16
      %v509 = vrot.slane %v507, 7
      %v510 = vshll.u32 %v330, 16
      %v512 = vor.u32 %v509, %v510
      %v513 = vsel %vm344, %v505, %v512
      %v514 = vrot.slane %v509, 4
      %v516 = vshrl.u32 %v331, 16
      %v518 = vrot.slane %v516, 7
      %v519 = vshll.u32 %v331, 16
      %v521 = vor.u32 %v518, %v519
      %v522 = vrot.slane %v518, 4
      %v524 = vshrl.u32 %v332, 16
      %v526 = vrot.slane %v524, 7
      %v527 = vshll.u32 %v332, 16
      %v529 = vor.u32 %v526, %v527
      %v530 = vsel %vm344, %v522, %v529
      %v531 = vrot.slane %v526, 4
      %v533 = vshrl.u32 %v333, 16
      %v535 = vrot.slane %v533, 7
      %v536 = vshll.u32 %v333, 16
      %v538 = vor.u32 %v535, %v536
      %v539 = vrot.slane %v535, 4
      %v541 = vshrl.u32 %v334, 16
      %v543 = vrot.slane %v541, 7
      %v544 = vshll.u32 %v334, 16
      %v546 = vor.u32 %v543, %v544
      %v547 = vsel %vm344, %v539, %v546
      %v548 = vrot.slane %v543, 4
      %v550 = vshrl.u32 %v335, 16
      %v552 = vrot.slane %v550, 7
      %v553 = vshll.u32 %v335, 16
      %v555 = vor.u32 %v552, %v553
      %v556 = vrot.slane %v552, 4
      %v558 = vshrl.u32 %v336, 16
      %v560 = vrot.slane %v558, 7
      %v561 = vshll.u32 %v336, 16
      %v563 = vor.u32 %v560, %v561
      %v564 = vsel %vm344, %v556, %v563
      %v565 = vrot.slane %v560, 4
      %v567 = vshrl.u32 %v337, 16
      %v569 = vrot.slane %v567, 7
      %v570 = vshll.u32 %v337, 16
      %v572 = vor.u32 %v569, %v570
      %v573 = vrot.slane %v569, 4
      %v575 = vshrl.u32 %v338, 16
      %v577 = vrot.slane %v575, 7
      %v578 = vshll.u32 %v338, 16
      %v580 = vor.u32 %v577, %v578
      %v581 = vsel %vm344, %v573, %v580
      %v582 = vrot.slane %v577, 4
      %v584 = vshrl.u32 %v339, 16
      %v586 = vrot.slane %v584, 7
      %v587 = vshll.u32 %v339, 16
      %v589 = vor.u32 %v586, %v587
      %v590 = vrot.slane %v586, 4
      %v592 = vshrl.u32 %v340, 16
      %v594 = vrot.slane %v592, 7
      %v595 = vshll.u32 %v340, 16
      %v597 = vor.u32 %v594, %v595
      %v598 = vsel %vm344, %v590, %v597
      %v599 = vrot.slane %v594, 4
      %v601 = vshrl.u32 %v341, 16
      %v603 = vrot.slane %v601, 7
      %v604 = vshll.u32 %v341, 16
      %v606 = vor.u32 %v603, %v604
      %v607 = vrot.slane %v603, 4
      %v609 = vshrl.u32 %v342, 16
      %v611 = vrot.slane %v609, 7
      %v612 = vshll.u32 %v342, 16
      %v614 = vor.u32 %v611, %v612
      %v615 = vsel %vm344, %v607, %v614
      %v616 = vrot.slane %v611, 4
      %vm665 = vcmask 60416
      %vm666 = vmand %vm665, %vm244
      %v667 = vld [vmem:[%s192] sm:$0xf]
      %v668 = vsel %vm666, %v351, %v667
      %669 = vst [vmem:[%s192] sm:$0xf] %v668
      %670 = vst.msk [vmem:[%s192 + $0x4] sm:$0xf] %vm183, %v360
      %v671 = vld [vmem:[%s192 + $0x8] sm:$0x1]
      %v672 = vsel %vm195, %v361, %v671
      %673 = vst [vmem:[%s192 + $0x8] sm:$0x1] %v672
      %v674 = vld [vmem:[%s192 + $0xc] sm:$0xf]
      %v675 = vsel %vm666, %v368, %v674
      %676 = vst [vmem:[%s192 + $0xc] sm:$0xf] %v675
      %677 = vst.msk [vmem:[%s192 + $0x10] sm:$0xf] %vm183, %v377
      %v678 = vld [vmem:[%s192 + $0x14] sm:$0x1]
      %v679 = vsel %vm195, %v378, %v678
      %680 = vst [vmem:[%s192 + $0x14] sm:$0x1] %v679
      %v681 = vld [vmem:[%s192 + $0x18] sm:$0xf]
      %v682 = vsel %vm666, %v385, %v681
      %683 = vst [vmem:[%s192 + $0x18] sm:$0xf] %v682
      %684 = vst.msk [vmem:[%s192 + $0x1c] sm:$0xf] %vm183, %v394
      %v685 = vld [vmem:[%s192 + $0x20] sm:$0x1]
      %v686 = vsel %vm195, %v395, %v685
      %687 = vst [vmem:[%s192 + $0x20] sm:$0x1] %v686
      %v688 = vld [vmem:[%s192 + $0x24] sm:$0xf]
      %v689 = vsel %vm666, %v402, %v688
      %690 = vst [vmem:[%s192 + $0x24] sm:$0xf] %v689
      %691 = vst.msk [vmem:[%s192 + $0x28] sm:$0xf] %vm183, %v411
      %v692 = vld [vmem:[%s192 + $0x2c] sm:$0x1]
      %v693 = vsel %vm195, %v412, %v692
      %694 = vst [vmem:[%s192 + $0x2c] sm:$0x1] %v693
      %v695 = vld [vmem:[%s192 + $0x30] sm:$0xf]
      %v696 = vsel %vm666, %v419, %v695
      %697 = vst [vmem:[%s192 + $0x30] sm:$0xf] %v696
      %698 = vst.msk [vmem:[%s192 + $0x34] sm:$0xf] %vm183, %v428
      %v699 = vld [vmem:[%s192 + $0x38] sm:$0x1]
      %v700 = vsel %vm195, %v429, %v699
      %701 = vst [vmem:[%s192 + $0x38] sm:$0x1] %v700
      %v702 = vld [vmem:[%s192 + $0x3c] sm:$0xf]
      %v703 = vsel %vm666, %v436, %v702
      %704 = vst [vmem:[%s192 + $0x3c] sm:$0xf] %v703
      %705 = vst.msk [vmem:[%s192 + $0x40] sm:$0xf] %vm183, %v445
      %v706 = vld [vmem:[%s192 + $0x44] sm:$0x1]
      %v707 = vsel %vm195, %v446, %v706
      %708 = vst [vmem:[%s192 + $0x44] sm:$0x1] %v707
      %v709 = vld [vmem:[%s192 + $0x48] sm:$0xf]
      %v710 = vsel %vm666, %v453, %v709
      %711 = vst [vmem:[%s192 + $0x48] sm:$0xf] %v710
      %712 = vst.msk [vmem:[%s192 + $0x4c] sm:$0xf] %vm183, %v462
      %v713 = vld [vmem:[%s192 + $0x50] sm:$0x1]
      %v714 = vsel %vm195, %v463, %v713
      %715 = vst [vmem:[%s192 + $0x50] sm:$0x1] %v714
      %v716 = vld [vmem:[%s192 + $0x54] sm:$0xf]
      %v717 = vsel %vm666, %v470, %v716
      %718 = vst [vmem:[%s192 + $0x54] sm:$0xf] %v717
      %719 = vst.msk [vmem:[%s192 + $0x58] sm:$0xf] %vm183, %v479
      %v720 = vld [vmem:[%s192 + $0x5c] sm:$0x1]
      %v721 = vsel %vm195, %v480, %v720
      %722 = vst [vmem:[%s192 + $0x5c] sm:$0x1] %v721
      %v723 = vld [vmem:[%s192 + $0x60] sm:$0xf]
      %v724 = vsel %vm666, %v487, %v723
      %725 = vst [vmem:[%s192 + $0x60] sm:$0xf] %v724
      %726 = vst.msk [vmem:[%s192 + $0x64] sm:$0xf] %vm183, %v496
      %v727 = vld [vmem:[%s192 + $0x68] sm:$0x1]
      %v728 = vsel %vm195, %v497, %v727
      %729 = vst [vmem:[%s192 + $0x68] sm:$0x1] %v728
      %v730 = vld [vmem:[%s192 + $0x6c] sm:$0xf]
      %v731 = vsel %vm666, %v504, %v730
      %732 = vst [vmem:[%s192 + $0x6c] sm:$0xf] %v731
      %733 = vst.msk [vmem:[%s192 + $0x70] sm:$0xf] %vm183, %v513
      %v734 = vld [vmem:[%s192 + $0x74] sm:$0x1]
      %v735 = vsel %vm195, %v514, %v734
      %736 = vst [vmem:[%s192 + $0x74] sm:$0x1] %v735
      %v737 = vld [vmem:[%s192 + $0x78] sm:$0xf]
      %v738 = vsel %vm666, %v521, %v737
      %739 = vst [vmem:[%s192 + $0x78] sm:$0xf] %v738
      %740 = vst.msk [vmem:[%s192 + $0x7c] sm:$0xf] %vm183, %v530
      %v741 = vld [vmem:[%s192 + $0x80] sm:$0x1]
      %v742 = vsel %vm195, %v531, %v741
      %743 = vst [vmem:[%s192 + $0x80] sm:$0x1] %v742
      %v744 = vld [vmem:[%s192 + $0x84] sm:$0xf]
      %v745 = vsel %vm666, %v538, %v744
      %746 = vst [vmem:[%s192 + $0x84] sm:$0xf] %v745
      %747 = vst.msk [vmem:[%s192 + $0x88] sm:$0xf] %vm183, %v547
      %v748 = vld [vmem:[%s192 + $0x8c] sm:$0x1]
      %v749 = vsel %vm195, %v548, %v748
      %750 = vst [vmem:[%s192 + $0x8c] sm:$0x1] %v749
      %v751 = vld [vmem:[%s192 + $0x90] sm:$0xf]
      %v752 = vsel %vm666, %v555, %v751
      %753 = vst [vmem:[%s192 + $0x90] sm:$0xf] %v752
      %754 = vst.msk [vmem:[%s192 + $0x94] sm:$0xf] %vm183, %v564
      %v755 = vld [vmem:[%s192 + $0x98] sm:$0x1]
      %v756 = vsel %vm195, %v565, %v755
      %757 = vst [vmem:[%s192 + $0x98] sm:$0x1] %v756
      %v758 = vld [vmem:[%s192 + $0x9c] sm:$0xf]
      %v759 = vsel %vm666, %v572, %v758
      %760 = vst [vmem:[%s192 + $0x9c] sm:$0xf] %v759
      %761 = vst.msk [vmem:[%s192 + $0xa0] sm:$0xf] %vm183, %v581
      %v762 = vld [vmem:[%s192 + $0xa4] sm:$0x1]
      %v763 = vsel %vm195, %v582, %v762
      %764 = vst [vmem:[%s192 + $0xa4] sm:$0x1] %v763
      %v765 = vld [vmem:[%s192 + $0xa8] sm:$0xf]
      %v766 = vsel %vm666, %v589, %v765
      %767 = vst [vmem:[%s192 + $0xa8] sm:$0xf] %v766
      %768 = vst.msk [vmem:[%s192 + $0xac] sm:$0xf] %vm183, %v598
      %v769 = vld [vmem:[%s192 + $0xb0] sm:$0x1]
      %v770 = vsel %vm195, %v599, %v769
      %771 = vst [vmem:[%s192 + $0xb0] sm:$0x1] %v770
      %v772 = vld [vmem:[%s192 + $0xb4] sm:$0xf]
      %v773 = vsel %vm666, %v606, %v772
      %774 = vst [vmem:[%s192 + $0xb4] sm:$0xf] %v773
      %775 = vst.msk [vmem:[%s192 + $0xb8] sm:$0xf] %vm183, %v615
      %v776 = vld [vmem:[%s192 + $0xbc] sm:$0x1]
      %v777 = vsel %vm195, %v616, %v776
      %778 = vst [vmem:[%s192 + $0xbc] sm:$0x1] %v777
      %v779 = vld [vmem:[#allocation2] sm:$0xf]
      %v780 = vld [vmem:[#allocation2 + $0x4] sm:$0xf]
      %v781 = vld [vmem:[#allocation2 + $0xc] sm:$0xf]
      %v782 = vld [vmem:[#allocation2 + $0x10] sm:$0xf]
      %v783 = vld [vmem:[#allocation2 + $0x18] sm:$0xf]
      %v784 = vld [vmem:[#allocation2 + $0x1c] sm:$0xf]
      %v785 = vld [vmem:[#allocation2 + $0x24] sm:$0xf]
      %v786 = vld [vmem:[#allocation2 + $0x28] sm:$0xf]
      %v787 = vld [vmem:[#allocation2 + $0x30] sm:$0xf]
      %v788 = vld [vmem:[#allocation2 + $0x34] sm:$0xf]
      %v789 = vld [vmem:[#allocation2 + $0x3c] sm:$0xf]
      %v790 = vld [vmem:[#allocation2 + $0x40] sm:$0xf]
      %v791 = vld [vmem:[#allocation2 + $0x48] sm:$0xf]
      %v792 = vld [vmem:[#allocation2 + $0x4c] sm:$0xf]
      %v793 = vld [vmem:[#allocation2 + $0x54] sm:$0xf]
      %v794 = vld [vmem:[#allocation2 + $0x58] sm:$0xf]
      %v795 = vld [vmem:[#allocation2 + $0x60] sm:$0xf]
      %v796 = vld [vmem:[#allocation2 + $0x64] sm:$0xf]
      %v797 = vld [vmem:[#allocation2 + $0x6c] sm:$0xf]
      %v798 = vld [vmem:[#allocation2 + $0x70] sm:$0xf]
      %v799 = vld [vmem:[#allocation2 + $0x78] sm:$0xf]
      %v800 = vld [vmem:[#allocation2 + $0x7c] sm:$0xf]
      %v801 = vld [vmem:[#allocation2 + $0x84] sm:$0xf]
      %v802 = vld [vmem:[#allocation2 + $0x88] sm:$0xf]
      %v803 = vld [vmem:[#allocation2 + $0x90] sm:$0xf]
      %v804 = vld [vmem:[#allocation2 + $0x94] sm:$0xf]
      %v805 = vld [vmem:[#allocation2 + $0x9c] sm:$0xf]
      %v806 = vld [vmem:[#allocation2 + $0xa0] sm:$0xf]
      %v807 = vld [vmem:[#allocation2 + $0xa8] sm:$0xf]
      %v808 = vld [vmem:[#allocation2 + $0xac] sm:$0xf]
      %v809 = vld [vmem:[#allocation2 + $0xb4] sm:$0xf]
      %v810 = vld [vmem:[#allocation2 + $0xb8] sm:$0xf]
      %v843 = vunpack.c.l.b16 %v779
      %v844 = vunpack.c.l.b16 %v780
      %v845 = vunpack.c.l.b16 %v781
      %v846 = vunpack.c.l.b16 %v782
      %v847 = vunpack.c.l.b16 %v783
      %v848 = vunpack.c.l.b16 %v784
      %v849 = vunpack.c.l.b16 %v785
      %v850 = vunpack.c.l.b16 %v786
      %v851 = vunpack.c.l.b16 %v787
      %v852 = vunpack.c.l.b16 %v788
      %v853 = vunpack.c.l.b16 %v789
      %v854 = vunpack.c.l.b16 %v790
      %v855 = vunpack.c.l.b16 %v791
      %v856 = vunpack.c.l.b16 %v792
      %v857 = vunpack.c.l.b16 %v793
      %v858 = vunpack.c.l.b16 %v794
      %v859 = vunpack.c.l.b16 %v795
      %v860 = vunpack.c.l.b16 %v796
      %v861 = vunpack.c.l.b16 %v797
      %v862 = vunpack.c.l.b16 %v798
      %v863 = vunpack.c.l.b16 %v799
      %v864 = vunpack.c.l.b16 %v800
      %v865 = vunpack.c.l.b16 %v801
      %v866 = vunpack.c.l.b16 %v802
      %v867 = vunpack.c.l.b16 %v803
      %v868 = vunpack.c.l.b16 %v804
      %v869 = vunpack.c.l.b16 %v805
      %v870 = vunpack.c.l.b16 %v806
      %v871 = vunpack.c.l.b16 %v807
      %v872 = vunpack.c.l.b16 %v808
      %v873 = vunpack.c.l.b16 %v809
      %v874 = vunpack.c.l.b16 %v810
      %v875 = vpack.c.b16 %v844, %v843
      %v876 = vpack.c.b16 %v846, %v845
      %v877 = vpack.c.b16 %v848, %v847
      %v878 = vpack.c.b16 %v850, %v849
      %v879 = vpack.c.b16 %v852, %v851
      %v880 = vpack.c.b16 %v854, %v853
      %v881 = vpack.c.b16 %v856, %v855
      %v882 = vpack.c.b16 %v858, %v857
      %v883 = vpack.c.b16 %v860, %v859
      %v884 = vpack.c.b16 %v862, %v861
      %v885 = vpack.c.b16 %v864, %v863
      %v886 = vpack.c.b16 %v866, %v865
      %v887 = vpack.c.b16 %v868, %v867
      %v888 = vpack.c.b16 %v870, %v869
      %v889 = vpack.c.b16 %v872, %v871
      %v890 = vpack.c.b16 %v874, %v873
      %vm907 = vcmask 64512
      %908 = vst.msk [vmem:[#allocation3] sm:$0xff] %vm907, %v875
      %909 = vst.msk [vmem:[#allocation3 + $0x8] sm:$0xff] %vm907, %v876
      %910 = vst.msk [vmem:[#allocation3 + $0x10] sm:$0xff] %vm907, %v877
      %911 = vst.msk [vmem:[#allocation3 + $0x18] sm:$0xff] %vm907, %v878
      %912 = vst.msk [vmem:[#allocation3 + $0x20] sm:$0xff] %vm907, %v879
      %913 = vst.msk [vmem:[#allocation3 + $0x28] sm:$0xff] %vm907, %v880
      %914 = vst.msk [vmem:[#allocation3 + $0x30] sm:$0xff] %vm907, %v881
      %915 = vst.msk [vmem:[#allocation3 + $0x38] sm:$0xff] %vm907, %v882
      %916 = vst.msk [vmem:[#allocation3 + $0x40] sm:$0xff] %vm907, %v883
      %917 = vst.msk [vmem:[#allocation3 + $0x48] sm:$0xff] %vm907, %v884
      %918 = vst.msk [vmem:[#allocation3 + $0x50] sm:$0xff] %vm907, %v885
      %919 = vst.msk [vmem:[#allocation3 + $0x58] sm:$0xff] %vm907, %v886
      %920 = vst.msk [vmem:[#allocation3 + $0x60] sm:$0xff] %vm907, %v887
      %921 = vst.msk [vmem:[#allocation3 + $0x68] sm:$0xff] %vm907, %v888
      %922 = vst.msk [vmem:[#allocation3 + $0x70] sm:$0xff] %vm907, %v889
      %923 = vst.msk [vmem:[#allocation3 + $0x78] sm:$0xff] %vm907, %v890
      %v924 = vld [vmem:[#allocation2] sm:$0xf]
      %v925 = vld [vmem:[#allocation2 + $0x4] sm:$0xf]
      %v926 = vld [vmem:[#allocation2 + $0x8] sm:$0x1]
      %v927 = vld [vmem:[#allocation2 + $0xc] sm:$0xf]
      %v928 = vld [vmem:[#allocation2 + $0x10] sm:$0xf]
      %v929 = vld [vmem:[#allocation2 + $0x14] sm:$0x1]
      %v930 = vld [vmem:[#allocation2 + $0x18] sm:$0xf]
      %v931 = vld [vmem:[#allocation2 + $0x1c] sm:$0xf]
      %v932 = vld [vmem:[#allocation2 + $0x20] sm:$0x1]
      %v933 = vld [vmem:[#allocation2 + $0x24] sm:$0xf]
      %v934 = vld [vmem:[#allocation2 + $0x28] sm:$0xf]
      %v935 = vld [vmem:[#allocation2 + $0x2c] sm:$0x1]
      %v936 = vld [vmem:[#allocation2 + $0x30] sm:$0xf]
      %v937 = vld [vmem:[#allocation2 + $0x34] sm:$0xf]
      %v938 = vld [vmem:[#allocation2 + $0x38] sm:$0x1]
      %v939 = vld [vmem:[#allocation2 + $0x3c] sm:$0xf]
      %v940 = vld [vmem:[#allocation2 + $0x40] sm:$0xf]
      %v941 = vld [vmem:[#allocation2 + $0x44] sm:$0x1]
      %v942 = vld [vmem:[#allocation2 + $0x48] sm:$0xf]
      %v943 = vld [vmem:[#allocation2 + $0x4c] sm:$0xf]
      %v944 = vld [vmem:[#allocation2 + $0x50] sm:$0x1]
      %v945 = vld [vmem:[#allocation2 + $0x54] sm:$0xf]
      %v946 = vld [vmem:[#allocation2 + $0x58] sm:$0xf]
      %v947 = vld [vmem:[#allocation2 + $0x5c] sm:$0x1]
      %v948 = vld [vmem:[#allocation2 + $0x60] sm:$0xf]
      %v949 = vld [vmem:[#allocation2 + $0x64] sm:$0xf]
      %v950 = vld [vmem:[#allocation2 + $0x68] sm:$0x1]
      %v951 = vld [vmem:[#allocation2 + $0x6c] sm:$0xf]
      %v952 = vld [vmem:[#allocation2 + $0x70] sm:$0xf]
      %v953 = vld [vmem:[#allocation2 + $0x74] sm:$0x1]
      %v954 = vld [vmem:[#allocation2 + $0x78] sm:$0xf]
      %v955 = vld [vmem:[#allocation2 + $0x7c] sm:$0xf]
      %v956 = vld [vmem:[#allocation2 + $0x80] sm:$0x1]
      %v957 = vld [vmem:[#allocation2 + $0x84] sm:$0xf]
      %v958 = vld [vmem:[#allocation2 + $0x88] sm:$0xf]
      %v959 = vld [vmem:[#allocation2 + $0x8c] sm:$0x1]
      %v960 = vld [vmem:[#allocation2 + $0x90] sm:$0xf]
      %v961 = vld [vmem:[#allocation2 + $0x94] sm:$0xf]
      %v962 = vld [vmem:[#allocation2 + $0x98] sm:$0x1]
      %v963 = vld [vmem:[#allocation2 + $0x9c] sm:$0xf]
      %v964 = vld [vmem:[#allocation2 + $0xa0] sm:$0xf]
      %v965 = vld [vmem:[#allocation2 + $0xa4] sm:$0x1]
      %v966 = vld [vmem:[#allocation2 + $0xa8] sm:$0xf]
      %v967 = vld [vmem:[#allocation2 + $0xac] sm:$0xf]
      %v968 = vld [vmem:[#allocation2 + $0xb0] sm:$0x1]
      %v969 = vld [vmem:[#allocation2 + $0xb4] sm:$0xf]
      %v970 = vld [vmem:[#allocation2 + $0xb8] sm:$0xf]
      %v971 = vld [vmem:[#allocation2 + $0xbc] sm:$0x1]
      %vm972 = vsmask.f32 3328
      %vm973 = vsmask.f32 7440
      %vm974 = vmor %vm972, %vm973
      %v976 = vshrl.u32 %v924, 16
      %v978 = vrot.slane %v976, 4
      %v979 = vshll.u32 %v924, 16
      %v981 = vrot.slane %v979, 5
      %v982 = vor.u32 %v978, %v981
      %v983 = vrot.slane %v982, 4
      %v985 = vshll.u32 %v925, 16
      %v987 = vrot.slane %v985, 5
      %v988 = vsel %vm974, %v983, %v987
      %v989 = vshrl.u32 %v925, 16
      %v991 = vrot.slane %v989, 4
      %v992 = vor.u32 %v991, %v987
      %v993 = vrot.slane %v992, 4
      %v995 = vshll.u32 %v926, 16
      %v997 = vrot.slane %v995, 5
      %v998 = vsel %vm974, %v993, %v997
      %v1000 = vshrl.u32 %v927, 16
      %v1002 = vrot.slane %v1000, 4
      %v1003 = vshll.u32 %v927, 16
      %v1005 = vrot.slane %v1003, 5
      %v1006 = vor.u32 %v1002, %v1005
      %v1007 = vrot.slane %v1006, 4
      %v1009 = vshll.u32 %v928, 16
      %v1011 = vrot.slane %v1009, 5
      %v1012 = vsel %vm974, %v1007, %v1011
      %v1013 = vshrl.u32 %v928, 16
      %v1015 = vrot.slane %v1013, 4
      %v1016 = vor.u32 %v1015, %v1011
      %v1017 = vrot.slane %v1016, 4
      %v1019 = vshll.u32 %v929, 16
      %v1021 = vrot.slane %v1019, 5
      %v1022 = vsel %vm974, %v1017, %v1021
      %v1024 = vshrl.u32 %v930, 16
      %v1026 = vrot.slane %v1024, 4
      %v1027 = vshll.u32 %v930, 16
      %v1029 = vrot.slane %v1027, 5
      %v1030 = vor.u32 %v1026, %v1029
      %v1031 = vrot.slane %v1030, 4
      %v1033 = vshll.u32 %v931, 16
      %v1035 = vrot.slane %v1033, 5
      %v1036 = vsel %vm974, %v1031, %v1035
      %v1037 = vshrl.u32 %v931, 16
      %v1039 = vrot.slane %v1037, 4
      %v1040 = vor.u32 %v1039, %v1035
      %v1041 = vrot.slane %v1040, 4
      %v1043 = vshll.u32 %v932, 16
      %v1045 = vrot.slane %v1043, 5
      %v1046 = vsel %vm974, %v1041, %v1045
      %v1048 = vshrl.u32 %v933, 16
      %v1050 = vrot.slane %v1048, 4
      %v1051 = vshll.u32 %v933, 16
      %v1053 = vrot.slane %v1051, 5
      %v1054 = vor.u32 %v1050, %v1053
      %v1055 = vrot.slane %v1054, 4
      %v1057 = vshll.u32 %v934, 16
      %v1059 = vrot.slane %v1057, 5
      %v1060 = vsel %vm974, %v1055, %v1059
      %v1061 = vshrl.u32 %v934, 16
      %v1063 = vrot.slane %v1061, 4
      %v1064 = vor.u32 %v1063, %v1059
      %v1065 = vrot.slane %v1064, 4
      %v1067 = vshll.u32 %v935, 16
      %v1069 = vrot.slane %v1067, 5
      %v1070 = vsel %vm974, %v1065, %v1069
      %v1072 = vshrl.u32 %v936, 16
      %v1074 = vrot.slane %v1072, 4
      %v1075 = vshll.u32 %v936, 16
      %v1077 = vrot.slane %v1075, 5
      %v1078 = vor.u32 %v1074, %v1077
      %v1079 = vrot.slane %v1078, 4
      %v1081 = vshll.u32 %v937, 16
      %v1083 = vrot.slane %v1081, 5
      %v1084 = vsel %vm974, %v1079, %v1083
      %v1085 = vshrl.u32 %v937, 16
      %v1087 = vrot.slane %v1085, 4
      %v1088 = vor.u32 %v1087, %v1083
      %v1089 = vrot.slane %v1088, 4
      %v1091 = vshll.u32 %v938, 16
      %v1093 = vrot.slane %v1091, 5
      %v1094 = vsel %vm974, %v1089, %v1093
      %v1096 = vshrl.u32 %v939, 16
      %v1098 = vrot.slane %v1096, 4
      %v1099 = vshll.u32 %v939, 16
      %v1101 = vrot.slane %v1099, 5
      %v1102 = vor.u32 %v1098, %v1101
      %v1103 = vrot.slane %v1102, 4
      %v1105 = vshll.u32 %v940, 16
      %v1107 = vrot.slane %v1105, 5
      %v1108 = vsel %vm974, %v1103, %v1107
      %v1109 = vshrl.u32 %v940, 16
      %v1111 = vrot.slane %v1109, 4
      %v1112 = vor.u32 %v1111, %v1107
      %v1113 = vrot.slane %v1112, 4
      %v1115 = vshll.u32 %v941, 16
      %v1117 = vrot.slane %v1115, 5
      %v1118 = vsel %vm974, %v1113, %v1117
      %v1120 = vshrl.u32 %v942, 16
      %v1122 = vrot.slane %v1120, 4
      %v1123 = vshll.u32 %v942, 16
      %v1125 = vrot.slane %v1123, 5
      %v1126 = vor.u32 %v1122, %v1125
      %v1127 = vrot.slane %v1126, 4
      %v1129 = vshll.u32 %v943, 16
      %v1131 = vrot.slane %v1129, 5
      %v1132 = vsel %vm974, %v1127, %v1131
      %v1133 = vshrl.u32 %v943, 16
      %v1135 = vrot.slane %v1133, 4
      %v1136 = vor.u32 %v1135, %v1131
      %v1137 = vrot.slane %v1136, 4
      %v1139 = vshll.u32 %v944, 16
      %v1141 = vrot.slane %v1139, 5
      %v1142 = vsel %vm974, %v1137, %v1141
      %v1144 = vshrl.u32 %v945, 16
      %v1146 = vrot.slane %v1144, 4
      %v1147 = vshll.u32 %v945, 16
      %v1149 = vrot.slane %v1147, 5
      %v1150 = vor.u32 %v1146, %v1149
      %v1151 = vrot.slane %v1150, 4
      %v1153 = vshll.u32 %v946, 16
      %v1155 = vrot.slane %v1153, 5
      %v1156 = vsel %vm974, %v1151, %v1155
      %v1157 = vshrl.u32 %v946, 16
      %v1159 = vrot.slane %v1157, 4
      %v1160 = vor.u32 %v1159, %v1155
      %v1161 = vrot.slane %v1160, 4
      %v1163 = vshll.u32 %v947, 16
      %v1165 = vrot.slane %v1163, 5
      %v1166 = vsel %vm974, %v1161, %v1165
      %v1168 = vshrl.u32 %v948, 16
      %v1170 = vrot.slane %v1168, 4
      %v1171 = vshll.u32 %v948, 16
      %v1173 = vrot.slane %v1171, 5
      %v1174 = vor.u32 %v1170, %v1173
      %v1175 = vrot.slane %v1174, 4
      %v1177 = vshll.u32 %v949, 16
      %v1179 = vrot.slane %v1177, 5
      %v1180 = vsel %vm974, %v1175, %v1179
      %v1181 = vshrl.u32 %v949, 16
      %v1183 = vrot.slane %v1181, 4
      %v1184 = vor.u32 %v1183, %v1179
      %v1185 = vrot.slane %v1184, 4
      %v1187 = vshll.u32 %v950, 16
      %v1189 = vrot.slane %v1187, 5
      %v1190 = vsel %vm974, %v1185, %v1189
      %v1192 = vshrl.u32 %v951, 16
      %v1194 = vrot.slane %v1192, 4
      %v1195 = vshll.u32 %v951, 16
      %v1197 = vrot.slane %v1195, 5
      %v1198 = vor.u32 %v1194, %v1197
      %v1199 = vrot.slane %v1198, 4
      %v1201 = vshll.u32 %v952, 16
      %v1203 = vrot.slane %v1201, 5
      %v1204 = vsel %vm974, %v1199, %v1203
      %v1205 = vshrl.u32 %v952, 16
      %v1207 = vrot.slane %v1205, 4
      %v1208 = vor.u32 %v1207, %v1203
      %v1209 = vrot.slane %v1208, 4
      %v1211 = vshll.u32 %v953, 16
      %v1213 = vrot.slane %v1211, 5
      %v1214 = vsel %vm974, %v1209, %v1213
      %v1216 = vshrl.u32 %v954, 16
      %v1218 = vrot.slane %v1216, 4
      %v1219 = vshll.u32 %v954, 16
      %v1221 = vrot.slane %v1219, 5
      %v1222 = vor.u32 %v1218, %v1221
      %v1223 = vrot.slane %v1222, 4
      %v1225 = vshll.u32 %v955, 16
      %v1227 = vrot.slane %v1225, 5
      %v1228 = vsel %vm974, %v1223, %v1227
      %v1229 = vshrl.u32 %v955, 16
      %v1231 = vrot.slane %v1229, 4
      %v1232 = vor.u32 %v1231, %v1227
      %v1233 = vrot.slane %v1232, 4
      %v1235 = vshll.u32 %v956, 16
      %v1237 = vrot.slane %v1235, 5
      %v1238 = vsel %vm974, %v1233, %v1237
      %v1240 = vshrl.u32 %v957, 16
      %v1242 = vrot.slane %v1240, 4
      %v1243 = vshll.u32 %v957, 16
      %v1245 = vrot.slane %v1243, 5
      %v1246 = vor.u32 %v1242, %v1245
      %v1247 = vrot.slane %v1246, 4
      %v1249 = vshll.u32 %v958, 16
      %v1251 = vrot.slane %v1249, 5
      %v1252 = vsel %vm974, %v1247, %v1251
      %v1253 = vshrl.u32 %v958, 16
      %v1255 = vrot.slane %v1253, 4
      %v1256 = vor.u32 %v1255, %v1251
      %v1257 = vrot.slane %v1256, 4
      %v1259 = vshll.u32 %v959, 16
      %v1261 = vrot.slane %v1259, 5
      %v1262 = vsel %vm974, %v1257, %v1261
      %v1264 = vshrl.u32 %v960, 16
      %v1266 = vrot.slane %v1264, 4
      %v1267 = vshll.u32 %v960, 16
      %v1269 = vrot.slane %v1267, 5
      %v1270 = vor.u32 %v1266, %v1269
      %v1271 = vrot.slane %v1270, 4
      %v1273 = vshll.u32 %v961, 16
      %v1275 = vrot.slane %v1273, 5
      %v1276 = vsel %vm974, %v1271, %v1275
      %v1277 = vshrl.u32 %v961, 16
      %v1279 = vrot.slane %v1277, 4
      %v1280 = vor.u32 %v1279, %v1275
      %v1281 = vrot.slane %v1280, 4
      %v1283 = vshll.u32 %v962, 16
      %v1285 = vrot.slane %v1283, 5
      %v1286 = vsel %vm974, %v1281, %v1285
      %v1288 = vshrl.u32 %v963, 16
      %v1290 = vrot.slane %v1288, 4
      %v1291 = vshll.u32 %v963, 16
      %v1293 = vrot.slane %v1291, 5
      %v1294 = vor.u32 %v1290, %v1293
      %v1295 = vrot.slane %v1294, 4
      %v1297 = vshll.u32 %v964, 16
      %v1299 = vrot.slane %v1297, 5
      %v1300 = vsel %vm974, %v1295, %v1299
      %v1301 = vshrl.u32 %v964, 16
      %v1303 = vrot.slane %v1301, 4
      %v1304 = vor.u32 %v1303, %v1299
      %v1305 = vrot.slane %v1304, 4
      %v1307 = vshll.u32 %v965, 16
      %v1309 = vrot.slane %v1307, 5
      %v1310 = vsel %vm974, %v1305, %v1309
      %v1312 = vshrl.u32 %v966, 16
      %v1314 = vrot.slane %v1312, 4
      %v1315 = vshll.u32 %v966, 16
      %v1317 = vrot.slane %v1315, 5
      %v1318 = vor.u32 %v1314, %v1317
      %v1319 = vrot.slane %v1318, 4
      %v1321 = vshll.u32 %v967, 16
      %v1323 = vrot.slane %v1321, 5
      %v1324 = vsel %vm974, %v1319, %v1323
      %v1325 = vshrl.u32 %v967, 16
      %v1327 = vrot.slane %v1325, 4
      %v1328 = vor.u32 %v1327, %v1323
      %v1329 = vrot.slane %v1328, 4
      %v1331 = vshll.u32 %v968, 16
      %v1333 = vrot.slane %v1331, 5
      %v1334 = vsel %vm974, %v1329, %v1333
      %v1336 = vshrl.u32 %v969, 16
      %v1338 = vrot.slane %v1336, 4
      %v1339 = vshll.u32 %v969, 16
      %v1341 = vrot.slane %v1339, 5
      %v1342 = vor.u32 %v1338, %v1341
      %v1343 = vrot.slane %v1342, 4
      %v1345 = vshll.u32 %v970, 16
      %v1347 = vrot.slane %v1345, 5
      %v1348 = vsel %vm974, %v1343, %v1347
      %v1349 = vshrl.u32 %v970, 16
      %v1351 = vrot.slane %v1349, 4
      %v1352 = vor.u32 %v1351, %v1347
      %v1353 = vrot.slane %v1352, 4
      %v1355 = vshll.u32 %v971, 16
      %v1357 = vrot.slane %v1355, 5
      %v1358 = vsel %vm974, %v1353, %v1357
      %v1359 = vunpack.c.l.b16 %v988
      %v1360 = vunpack.c.l.b16 %v998
      %v1361 = vunpack.c.l.b16 %v1012
      %v1362 = vunpack.c.l.b16 %v1022
      %v1363 = vunpack.c.l.b16 %v1036
      %v1364 = vunpack.c.l.b16 %v1046
      %v1365 = vunpack.c.l.b16 %v1060
      %v1366 = vunpack.c.l.b16 %v1070
      %v1367 = vunpack.c.l.b16 %v1084
      %v1368 = vunpack.c.l.b16 %v1094
      %v1369 = vunpack.c.l.b16 %v1108
      %v1370 = vunpack.c.l.b16 %v1118
      %v1371 = vunpack.c.l.b16 %v1132
      %v1372 = vunpack.c.l.b16 %v1142
      %v1373 = vunpack.c.l.b16 %v1156
      %v1374 = vunpack.c.l.b16 %v1166
      %v1375 = vunpack.c.l.b16 %v1180
      %v1376 = vunpack.c.l.b16 %v1190
      %v1377 = vunpack.c.l.b16 %v1204
      %v1378 = vunpack.c.l.b16 %v1214
      %v1379 = vunpack.c.l.b16 %v1228
      %v1380 = vunpack.c.l.b16 %v1238
      %v1381 = vunpack.c.l.b16 %v1252
      %v1382 = vunpack.c.l.b16 %v1262
      %v1383 = vunpack.c.l.b16 %v1276
      %v1384 = vunpack.c.l.b16 %v1286
      %v1385 = vunpack.c.l.b16 %v1300
      %v1386 = vunpack.c.l.b16 %v1310
      %v1387 = vunpack.c.l.b16 %v1324
      %v1388 = vunpack.c.l.b16 %v1334
      %v1389 = vunpack.c.l.b16 %v1348
      %v1390 = vunpack.c.l.b16 %v1358
      %v1391 = vpack.c.b16 %v1360, %v1359
      %v1392 = vpack.c.b16 %v1362, %v1361
      %v1393 = vpack.c.b16 %v1364, %v1363
      %v1394 = vpack.c.b16 %v1366, %v1365
      %v1395 = vpack.c.b16 %v1368, %v1367
      %v1396 = vpack.c.b16 %v1370, %v1369
      %v1397 = vpack.c.b16 %v1372, %v1371
      %v1398 = vpack.c.b16 %v1374, %v1373
      %v1399 = vpack.c.b16 %v1376, %v1375
      %v1400 = vpack.c.b16 %v1378, %v1377
      %v1401 = vpack.c.b16 %v1380, %v1379
      %v1402 = vpack.c.b16 %v1382, %v1381
      %v1403 = vpack.c.b16 %v1384, %v1383
      %v1404 = vpack.c.b16 %v1386, %v1385
      %v1405 = vpack.c.b16 %v1388, %v1387
      %v1406 = vpack.c.b16 %v1390, %v1389
      %1407 = vrot.lane.b32.xlu0 %v1391, 8
      %v1408 = vpop.permute.xlu0 %1407
      %1409 = vrot.lane.b32.xlu0 %v1392, 8
      %v1410 = vpop.permute.xlu0 %1409
      %1411 = vrot.lane.b32.xlu0 %v1393, 8
      %v1412 = vpop.permute.xlu0 %1411
      %1413 = vrot.lane.b32.xlu0 %v1394, 8
      %v1414 = vpop.permute.xlu0 %1413
      %1415 = vrot.lane.b32.xlu0 %v1395, 8
      %v1416 = vpop.permute.xlu0 %1415
      %1417 = vrot.lane.b32.xlu0 %v1396, 8
      %v1418 = vpop.permute.xlu0 %1417
      %1419 = vrot.lane.b32.xlu0 %v1397, 8
      %v1420 = vpop.permute.xlu0 %1419
      %1421 = vrot.lane.b32.xlu0 %v1398, 8
      %v1422 = vpop.permute.xlu0 %1421
      %1423 = vrot.lane.b32.xlu0 %v1399, 8
      %v1424 = vpop.permute.xlu0 %1423
      %1425 = vrot.lane.b32.xlu0 %v1400, 8
      %v1426 = vpop.permute.xlu0 %1425
      %1427 = vrot.lane.b32.xlu0 %v1401, 8
      %v1428 = vpop.permute.xlu0 %1427
      %1429 = vrot.lane.b32.xlu0 %v1402, 8
      %v1430 = vpop.permute.xlu0 %1429
      %1431 = vrot.lane.b32.xlu0 %v1403, 8
      %v1432 = vpop.permute.xlu0 %1431
      %1433 = vrot.lane.b32.xlu0 %v1404, 8
      %v1434 = vpop.permute.xlu0 %1433
      %1435 = vrot.lane.b32.xlu0 %v1405, 8
      %v1436 = vpop.permute.xlu0 %1435
      %1437 = vrot.lane.b32.xlu0 %v1406, 8
      %v1438 = vpop.permute.xlu0 %1437
      %vm1455 = vcmask 130112
      %1456 = vst.msk [vmem:[#allocation3] sm:$0xff] %vm1455, %v1408
      %1457 = vst.msk [vmem:[#allocation3 + $0x8] sm:$0xff] %vm1455, %v1410
      %1458 = vst.msk [vmem:[#allocation3 + $0x10] sm:$0xff] %vm1455, %v1412
      %1459 = vst.msk [vmem:[#allocation3 + $0x18] sm:$0xff] %vm1455, %v1414
      %1460 = vst.msk [vmem:[#allocation3 + $0x20] sm:$0xff] %vm1455, %v1416
      %1461 = vst.msk [vmem:[#allocation3 + $0x28] sm:$0xff] %vm1455, %v1418
      %1462 = vst.msk [vmem:[#allocation3 + $0x30] sm:$0xff] %vm1455, %v1420
      %1463 = vst.msk [vmem:[#allocation3 + $0x38] sm:$0xff] %vm1455, %v1422
      %1464 = vst.msk [vmem:[#allocation3 + $0x40] sm:$0xff] %vm1455, %v1424
      %1465 = vst.msk [vmem:[#allocation3 + $0x48] sm:$0xff] %vm1455, %v1426
      %1466 = vst.msk [vmem:[#allocation3 + $0x50] sm:$0xff] %vm1455, %v1428
      %1467 = vst.msk [vmem:[#allocation3 + $0x58] sm:$0xff] %vm1455, %v1430
      %1468 = vst.msk [vmem:[#allocation3 + $0x60] sm:$0xff] %vm1455, %v1432
      %1469 = vst.msk [vmem:[#allocation3 + $0x68] sm:$0xff] %vm1455, %v1434
      %1470 = vst.msk [vmem:[#allocation3 + $0x70] sm:$0xff] %vm1455, %v1436
      %1471 = vst.msk [vmem:[#allocation3 + $0x78] sm:$0xff] %vm1455, %v1438
      %v1472 = vld [vmem:[#allocation2] sm:$0xe]
      %v1473 = vld [vmem:[#allocation2 + $0x4] sm:$0xf]
      %v1474 = vld [vmem:[#allocation2 + $0x8] sm:$0x1]
      %v1475 = vld [vmem:[#allocation2 + $0xc] sm:$0xe]
      %v1476 = vld [vmem:[#allocation2 + $0x10] sm:$0xf]
      %v1477 = vld [vmem:[#allocation2 + $0x14] sm:$0x1]
      %v1478 = vld [vmem:[#allocation2 + $0x18] sm:$0xe]
      %v1479 = vld [vmem:[#allocation2 + $0x1c] sm:$0xf]
      %v1480 = vld [vmem:[#allocation2 + $0x20] sm:$0x1]
      %v1481 = vld [vmem:[#allocation2 + $0x24] sm:$0xe]
      %v1482 = vld [vmem:[#allocation2 + $0x28] sm:$0xf]
      %v1483 = vld [vmem:[#allocation2 + $0x2c] sm:$0x1]
      %v1484 = vld [vmem:[#allocation2 + $0x30] sm:$0xe]
      %v1485 = vld [vmem:[#allocation2 + $0x34] sm:$0xf]
      %v1486 = vld [vmem:[#allocation2 + $0x38] sm:$0x1]
      %v1487 = vld [vmem:[#allocation2 + $0x3c] sm:$0xe]
      %v1488 = vld [vmem:[#allocation2 + $0x40] sm:$0xf]
      %v1489 = vld [vmem:[#allocation2 + $0x44] sm:$0x1]
      %v1490 = vld [vmem:[#allocation2 + $0x48] sm:$0xe]
      %v1491 = vld [vmem:[#allocation2 + $0x4c] sm:$0xf]
      %v1492 = vld [vmem:[#allocation2 + $0x50] sm:$0x1]
      %v1493 = vld [vmem:[#allocation2 + $0x54] sm:$0xe]
      %v1494 = vld [vmem:[#allocation2 + $0x58] sm:$0xf]
      %v1495 = vld [vmem:[#allocation2 + $0x5c] sm:$0x1]
      %v1496 = vld [vmem:[#allocation2 + $0x60] sm:$0xe]
      %v1497 = vld [vmem:[#allocation2 + $0x64] sm:$0xf]
      %v1498 = vld [vmem:[#allocation2 + $0x68] sm:$0x1]
      %v1499 = vld [vmem:[#allocation2 + $0x6c] sm:$0xe]
      %v1500 = vld [vmem:[#allocation2 + $0x70] sm:$0xf]
      %v1501 = vld [vmem:[#allocation2 + $0x74] sm:$0x1]
      %v1502 = vld [vmem:[#allocation2 + $0x78] sm:$0xe]
      %v1503 = vld [vmem:[#allocation2 + $0x7c] sm:$0xf]
      %v1504 = vld [vmem:[#allocation2 + $0x80] sm:$0x1]
      %v1505 = vld [vmem:[#allocation2 + $0x84] sm:$0xe]
      %v1506 = vld [vmem:[#allocation2 + $0x88] sm:$0xf]
      %v1507 = vld [vmem:[#allocation2 + $0x8c] sm:$0x1]
      %v1508 = vld [vmem:[#allocation2 + $0x90] sm:$0xe]
      %v1509 = vld [vmem:[#allocation2 + $0x94] sm:$0xf]
      %v1510 = vld [vmem:[#allocation2 + $0x98] sm:$0x1]
      %v1511 = vld [vmem:[#allocation2 + $0x9c] sm:$0xe]
      %v1512 = vld [vmem:[#allocation2 + $0xa0] sm:$0xf]
      %v1513 = vld [vmem:[#allocation2 + $0xa4] sm:$0x1]
      %v1514 = vld [vmem:[#allocation2 + $0xa8] sm:$0xe]
      %v1515 = vld [vmem:[#allocation2 + $0xac] sm:$0xf]
      %v1516 = vld [vmem:[#allocation2 + $0xb0] sm:$0x1]
      %v1517 = vld [vmem:[#allocation2 + $0xb4] sm:$0xe]
      %v1518 = vld [vmem:[#allocation2 + $0xb8] sm:$0xf]
      %v1519 = vld [vmem:[#allocation2 + $0xbc] sm:$0x1]
      %vm1568 = vcmask 1042432
      %vm1569 = vcmask 1046532
      %vm1570 = vmor %vm1568, %vm1569
      %v1571 = vrot.slane %v1472, 5
      %v1572 = vrot.slane %v1571, 4
      %v1573 = vrot.slane %v1473, 5
      %v1574 = vsel %vm1570, %v1572, %v1573
      %v1575 = vrot.slane %v1573, 4
      %v1576 = vrot.slane %v1474, 5
      %v1577 = vsel %vm1570, %v1575, %v1576
      %v1578 = vrot.slane %v1475, 5
      %v1579 = vrot.slane %v1578, 4
      %v1580 = vrot.slane %v1476, 5
      %v1581 = vsel %vm1570, %v1579, %v1580
      %v1582 = vrot.slane %v1580, 4
      %v1583 = vrot.slane %v1477, 5
      %v1584 = vsel %vm1570, %v1582, %v1583
      %v1585 = vrot.slane %v1478, 5
      %v1586 = vrot.slane %v1585, 4
      %v1587 = vrot.slane %v1479, 5
      %v1588 = vsel %vm1570, %v1586, %v1587
      %v1589 = vrot.slane %v1587, 4
      %v1590 = vrot.slane %v1480, 5
      %v1591 = vsel %vm1570, %v1589, %v1590
      %v1592 = vrot.slane %v1481, 5
      %v1593 = vrot.slane %v1592, 4
      %v1594 = vrot.slane %v1482, 5
      %v1595 = vsel %vm1570, %v1593, %v1594
      %v1596 = vrot.slane %v1594, 4
      %v1597 = vrot.slane %v1483, 5
      %v1598 = vsel %vm1570, %v1596, %v1597
      %v1599 = vrot.slane %v1484, 5
      %v1600 = vrot.slane %v1599, 4
      %v1601 = vrot.slane %v1485, 5
      %v1602 = vsel %vm1570, %v1600, %v1601
      %v1603 = vrot.slane %v1601, 4
      %v1604 = vrot.slane %v1486, 5
      %v1605 = vsel %vm1570, %v1603, %v1604
      %v1606 = vrot.slane %v1487, 5
      %v1607 = vrot.slane %v1606, 4
      %v1608 = vrot.slane %v1488, 5
      %v1609 = vsel %vm1570, %v1607, %v1608
      %v1610 = vrot.slane %v1608, 4
      %v1611 = vrot.slane %v1489, 5
      %v1612 = vsel %vm1570, %v1610, %v1611
      %v1613 = vrot.slane %v1490, 5
      %v1614 = vrot.slane %v1613, 4
      %v1615 = vrot.slane %v1491, 5
      %v1616 = vsel %vm1570, %v1614, %v1615
      %v1617 = vrot.slane %v1615, 4
      %v1618 = vrot.slane %v1492, 5
      %v1619 = vsel %vm1570, %v1617, %v1618
      %v1620 = vrot.slane %v1493, 5
      %v1621 = vrot.slane %v1620, 4
      %v1622 = vrot.slane %v1494, 5
      %v1623 = vsel %vm1570, %v1621, %v1622
      %v1624 = vrot.slane %v1622, 4
      %v1625 = vrot.slane %v1495, 5
      %v1626 = vsel %vm1570, %v1624, %v1625
      %v1627 = vrot.slane %v1496, 5
      %v1628 = vrot.slane %v1627, 4
      %v1629 = vrot.slane %v1497, 5
      %v1630 = vsel %vm1570, %v1628, %v1629
      %v1631 = vrot.slane %v1629, 4
      %v1632 = vrot.slane %v1498, 5
      %v1633 = vsel %vm1570, %v1631, %v1632
      %v1634 = vrot.slane %v1499, 5
      %v1635 = vrot.slane %v1634, 4
      %v1636 = vrot.slane %v1500, 5
      %v1637 = vsel %vm1570, %v1635, %v1636
      %v1638 = vrot.slane %v1636, 4
      %v1639 = vrot.slane %v1501, 5
      %v1640 = vsel %vm1570, %v1638, %v1639
      %v1641 = vrot.slane %v1502, 5
      %v1642 = vrot.slane %v1641, 4
      %v1643 = vrot.slane %v1503, 5
      %v1644 = vsel %vm1570, %v1642, %v1643
      %v1645 = vrot.slane %v1643, 4
      %v1646 = vrot.slane %v1504, 5
      %v1647 = vsel %vm1570, %v1645, %v1646
      %v1648 = vrot.slane %v1505, 5
      %v1649 = vrot.slane %v1648, 4
      %v1650 = vrot.slane %v1506, 5
      %v1651 = vsel %vm1570, %v1649, %v1650
      %v1652 = vrot.slane %v1650, 4
      %v1653 = vrot.slane %v1507, 5
      %v1654 = vsel %vm1570, %v1652, %v1653
      %v1655 = vrot.slane %v1508, 5
      %v1656 = vrot.slane %v1655, 4
      %v1657 = vrot.slane %v1509, 5
      %v1658 = vsel %vm1570, %v1656, %v1657
      %v1659 = vrot.slane %v1657, 4
      %v1660 = vrot.slane %v1510, 5
      %v1661 = vsel %vm1570, %v1659, %v1660
      %v1662 = vrot.slane %v1511, 5
      %v1663 = vrot.slane %v1662, 4
      %v1664 = vrot.slane %v1512, 5
      %v1665 = vsel %vm1570, %v1663, %v1664
      %v1666 = vrot.slane %v1664, 4
      %v1667 = vrot.slane %v1513, 5
      %v1668 = vsel %vm1570, %v1666, %v1667
      %v1669 = vrot.slane %v1514, 5
      %v1670 = vrot.slane %v1669, 4
      %v1671 = vrot.slane %v1515, 5
      %v1672 = vsel %vm1570, %v1670, %v1671
      %v1673 = vrot.slane %v1671, 4
      %v1674 = vrot.slane %v1516, 5
      %v1675 = vsel %vm1570, %v1673, %v1674
      %v1676 = vrot.slane %v1517, 5
      %v1677 = vrot.slane %v1676, 4
      %v1678 = vrot.slane %v1518, 5
      %v1679 = vsel %vm1570, %v1677, %v1678
      %v1680 = vrot.slane %v1678, 4
      %v1681 = vrot.slane %v1519, 5
      %v1682 = vsel %vm1570, %v1680, %v1681
      %v1683 = vunpack.c.l.b16 %v1574
      %v1684 = vunpack.c.l.b16 %v1577
      %v1685 = vunpack.c.l.b16 %v1581
      %v1686 = vunpack.c.l.b16 %v1584
      %v1687 = vunpack.c.l.b16 %v1588
      %v1688 = vunpack.c.l.b16 %v1591
      %v1689 = vunpack.c.l.b16 %v1595
      %v1690 = vunpack.c.l.b16 %v1598
      %v1691 = vunpack.c.l.b16 %v1602
      %v1692 = vunpack.c.l.b16 %v1605
      %v1693 = vunpack.c.l.b16 %v1609
      %v1694 = vunpack.c.l.b16 %v1612
      %v1695 = vunpack.c.l.b16 %v1616
      %v1696 = vunpack.c.l.b16 %v1619
      %v1697 = vunpack.c.l.b16 %v1623
      %v1698 = vunpack.c.l.b16 %v1626
      %v1699 = vunpack.c.l.b16 %v1630
      %v1700 = vunpack.c.l.b16 %v1633
      %v1701 = vunpack.c.l.b16 %v1637
      %v1702 = vunpack.c.l.b16 %v1640
      %v1703 = vunpack.c.l.b16 %v1644
      %v1704 = vunpack.c.l.b16 %v1647
      %v1705 = vunpack.c.l.b16 %v1651
      %v1706 = vunpack.c.l.b16 %v1654
      %v1707 = vunpack.c.l.b16 %v1658
      %v1708 = vunpack.c.l.b16 %v1661
      %v1709 = vunpack.c.l.b16 %v1665
      %v1710 = vunpack.c.l.b16 %v1668
      %v1711 = vunpack.c.l.b16 %v1672
      %v1712 = vunpack.c.l.b16 %v1675
      %v1713 = vunpack.c.l.b16 %v1679
      %v1714 = vunpack.c.l.b16 %v1682
      %v1715 = vpack.c.b16 %v1684, %v1683
      %v1716 = vpack.c.b16 %v1686, %v1685
      %v1717 = vpack.c.b16 %v1688, %v1687
      %v1718 = vpack.c.b16 %v1690, %v1689
      %v1719 = vpack.c.b16 %v1692, %v1691
      %v1720 = vpack.c.b16 %v1694, %v1693
      %v1721 = vpack.c.b16 %v1696, %v1695
      %v1722 = vpack.c.b16 %v1698, %v1697
      %v1723 = vpack.c.b16 %v1700, %v1699
      %v1724 = vpack.c.b16 %v1702, %v1701
      %v1725 = vpack.c.b16 %v1704, %v1703
      %v1726 = vpack.c.b16 %v1706, %v1705
      %v1727 = vpack.c.b16 %v1708, %v1707
      %v1728 = vpack.c.b16 %v1710, %v1709
      %v1729 = vpack.c.b16 %v1712, %v1711
      %v1730 = vpack.c.b16 %v1714, %v1713
      %1731 = vrot.lane.b32.xlu0 %v1715, 16
      %v1732 = vpop.permute.xlu0 %1731
      %1733 = vrot.lane.b32.xlu0 %v1716, 16
      %v1734 = vpop.permute.xlu0 %1733
      %1735 = vrot.lane.b32.xlu0 %v1717, 16
      %v1736 = vpop.permute.xlu0 %1735
      %1737 = vrot.lane.b32.xlu0 %v1718, 16
      %v1738 = vpop.permute.xlu0 %1737
      %1739 = vrot.lane.b32.xlu0 %v1719, 16
      %v1740 = vpop.permute.xlu0 %1739
      %1741 = vrot.lane.b32.xlu0 %v1720, 16
      %v1742 = vpop.permute.xlu0 %1741
      %1743 = vrot.lane.b32.xlu0 %v1721, 16
      %v1744 = vpop.permute.xlu0 %1743
      %1745 = vrot.lane.b32.xlu0 %v1722, 16
      %v1746 = vpop.permute.xlu0 %1745
      %1747 = vrot.lane.b32.xlu0 %v1723, 16
      %v1748 = vpop.permute.xlu0 %1747
      %1749 = vrot.lane.b32.xlu0 %v1724, 16
      %v1750 = vpop.permute.xlu0 %1749
      %1751 = vrot.lane.b32.xlu0 %v1725, 16
      %v1752 = vpop.permute.xlu0 %1751
      %1753 = vrot.lane.b32.xlu0 %v1726, 16
      %v1754 = vpop.permute.xlu0 %1753
      %1755 = vrot.lane.b32.xlu0 %v1727, 16
      %v1756 = vpop.permute.xlu0 %1755
      %1757 = vrot.lane.b32.xlu0 %v1728, 16
      %v1758 = vpop.permute.xlu0 %1757
      %1759 = vrot.lane.b32.xlu0 %v1729, 16
      %v1760 = vpop.permute.xlu0 %1759
      %1761 = vrot.lane.b32.xlu0 %v1730, 16
      %v1762 = vpop.permute.xlu0 %1761
      %vm1779 = vcmask 195712
      %1780 = vst.msk [vmem:[#allocation3] sm:$0xff] %vm1779, %v1732
      %1781 = vst.msk [vmem:[#allocation3 + $0x8] sm:$0xff] %vm1779, %v1734
      %1782 = vst.msk [vmem:[#allocation3 + $0x10] sm:$0xff] %vm1779, %v1736
      %1783 = vst.msk [vmem:[#allocation3 + $0x18] sm:$0xff] %vm1779, %v1738
      %1784 = vst.msk [vmem:[#allocation3 + $0x20] sm:$0xff] %vm1779, %v1740
      %1785 = vst.msk [vmem:[#allocation3 + $0x28] sm:$0xff] %vm1779, %v1742
      %1786 = vst.msk [vmem:[#allocation3 + $0x30] sm:$0xff] %vm1779, %v1744
      %1787 = vst.msk [vmem:[#allocation3 + $0x38] sm:$0xff] %vm1779, %v1746
      %1788 = vst.msk [vmem:[#allocation3 + $0x40] sm:$0xff] %vm1779, %v1748
      %1789 = vst.msk [vmem:[#allocation3 + $0x48] sm:$0xff] %vm1779, %v1750
      %1790 = vst.msk [vmem:[#allocation3 + $0x50] sm:$0xff] %vm1779, %v1752
      %1791 = vst.msk [vmem:[#allocation3 + $0x58] sm:$0xff] %vm1779, %v1754
      %1792 = vst.msk [vmem:[#allocation3 + $0x60] sm:$0xff] %vm1779, %v1756
      %1793 = vst.msk [vmem:[#allocation3 + $0x68] sm:$0xff] %vm1779, %v1758
      %1794 = vst.msk [vmem:[#allocation3 + $0x70] sm:$0xff] %vm1779, %v1760
      %1795 = vst.msk [vmem:[#allocation3 + $0x78] sm:$0xff] %vm1779, %v1762
      %v1796 = vld [vmem:[%s192] sm:$0xf]
      %v1797 = vld [vmem:[%s192 + $0x4] sm:$0xf]
      %v1798 = vld [vmem:[%s192 + $0xc] sm:$0xf]
      %v1799 = vld [vmem:[%s192 + $0x10] sm:$0xf]
      %v1800 = vld [vmem:[%s192 + $0x18] sm:$0xf]
      %v1801 = vld [vmem:[%s192 + $0x1c] sm:$0xf]
      %v1802 = vld [vmem:[%s192 + $0x24] sm:$0xf]
      %v1803 = vld [vmem:[%s192 + $0x28] sm:$0xf]
      %v1804 = vld [vmem:[%s192 + $0x30] sm:$0xf]
      %v1805 = vld [vmem:[%s192 + $0x34] sm:$0xf]
      %v1806 = vld [vmem:[%s192 + $0x3c] sm:$0xf]
      %v1807 = vld [vmem:[%s192 + $0x40] sm:$0xf]
      %v1808 = vld [vmem:[%s192 + $0x48] sm:$0xf]
      %v1809 = vld [vmem:[%s192 + $0x4c] sm:$0xf]
      %v1810 = vld [vmem:[%s192 + $0x54] sm:$0xf]
      %v1811 = vld [vmem:[%s192 + $0x58] sm:$0xf]
      %v1812 = vld [vmem:[%s192 + $0x60] sm:$0xf]
      %v1813 = vld [vmem:[%s192 + $0x64] sm:$0xf]
      %v1814 = vld [vmem:[%s192 + $0x6c] sm:$0xf]
      %v1815 = vld [vmem:[%s192 + $0x70] sm:$0xf]
      %v1816 = vld [vmem:[%s192 + $0x78] sm:$0xf]
      %v1817 = vld [vmem:[%s192 + $0x7c] sm:$0xf]
      %v1818 = vld [vmem:[%s192 + $0x84] sm:$0xf]
      %v1819 = vld [vmem:[%s192 + $0x88] sm:$0xf]
      %v1820 = vld [vmem:[%s192 + $0x90] sm:$0xf]
      %v1821 = vld [vmem:[%s192 + $0x94] sm:$0xf]
      %v1822 = vld [vmem:[%s192 + $0x9c] sm:$0xf]
      %v1823 = vld [vmem:[%s192 + $0xa0] sm:$0xf]
      %v1824 = vld [vmem:[%s192 + $0xa8] sm:$0xf]
      %v1825 = vld [vmem:[%s192 + $0xac] sm:$0xf]
      %v1826 = vld [vmem:[%s192 + $0xb4] sm:$0xf]
      %v1827 = vld [vmem:[%s192 + $0xb8] sm:$0xf]
      %v1860 = vunpack.c.l.b16 %v1796
      %v1861 = vunpack.c.l.b16 %v1797
      %v1862 = vunpack.c.l.b16 %v1798
      %v1863 = vunpack.c.l.b16 %v1799
      %v1864 = vunpack.c.l.b16 %v1800
      %v1865 = vunpack.c.l.b16 %v1801
      %v1866 = vunpack.c.l.b16 %v1802
      %v1867 = vunpack.c.l.b16 %v1803
      %v1868 = vunpack.c.l.b16 %v1804
      %v1869 = vunpack.c.l.b16 %v1805
      %v1870 = vunpack.c.l.b16 %v1806
      %v1871 = vunpack.c.l.b16 %v1807
      %v1872 = vunpack.c.l.b16 %v1808
      %v1873 = vunpack.c.l.b16 %v1809
      %v1874 = vunpack.c.l.b16 %v1810
      %v1875 = vunpack.c.l.b16 %v1811
      %v1876 = vunpack.c.l.b16 %v1812
      %v1877 = vunpack.c.l.b16 %v1813
      %v1878 = vunpack.c.l.b16 %v1814
      %v1879 = vunpack.c.l.b16 %v1815
      %v1880 = vunpack.c.l.b16 %v1816
      %v1881 = vunpack.c.l.b16 %v1817
      %v1882 = vunpack.c.l.b16 %v1818
      %v1883 = vunpack.c.l.b16 %v1819
      %v1884 = vunpack.c.l.b16 %v1820
      %v1885 = vunpack.c.l.b16 %v1821
      %v1886 = vunpack.c.l.b16 %v1822
      %v1887 = vunpack.c.l.b16 %v1823
      %v1888 = vunpack.c.l.b16 %v1824
      %v1889 = vunpack.c.l.b16 %v1825
      %v1890 = vunpack.c.l.b16 %v1826
      %v1891 = vunpack.c.l.b16 %v1827
      %v1892 = vpack.c.b16 %v1861, %v1860
      %v1893 = vpack.c.b16 %v1863, %v1862
      %v1894 = vpack.c.b16 %v1865, %v1864
      %v1895 = vpack.c.b16 %v1867, %v1866
      %v1896 = vpack.c.b16 %v1869, %v1868
      %v1897 = vpack.c.b16 %v1871, %v1870
      %v1898 = vpack.c.b16 %v1873, %v1872
      %v1899 = vpack.c.b16 %v1875, %v1874
      %v1900 = vpack.c.b16 %v1877, %v1876
      %v1901 = vpack.c.b16 %v1879, %v1878
      %v1902 = vpack.c.b16 %v1881, %v1880
      %v1903 = vpack.c.b16 %v1883, %v1882
      %v1904 = vpack.c.b16 %v1885, %v1884
      %v1905 = vpack.c.b16 %v1887, %v1886
      %v1906 = vpack.c.b16 %v1889, %v1888
      %v1907 = vpack.c.b16 %v1891, %v1890
      %1908 = vrot.lane.b32.xlu0 %v1892, 24
      %v1909 = vpop.permute.xlu0 %1908
      %1910 = vrot.lane.b32.xlu0 %v1893, 24
      %v1911 = vpop.permute.xlu0 %1910
      %1912 = vrot.lane.b32.xlu0 %v1894, 24
      %v1913 = vpop.permute.xlu0 %1912
      %1914 = vrot.lane.b32.xlu0 %v1895, 24
      %v1915 = vpop.permute.xlu0 %1914
      %1916 = vrot.lane.b32.xlu0 %v1896, 24
      %v1917 = vpop.permute.xlu0 %1916
      %1918 = vrot.lane.b32.xlu0 %v1897, 24
      %v1919 = vpop.permute.xlu0 %1918
      %1920 = vrot.lane.b32.xlu0 %v1898, 24
      %v1921 = vpop.permute.xlu0 %1920
      %1922 = vrot.lane.b32.xlu0 %v1899, 24
      %v1923 = vpop.permute.xlu0 %1922
      %1924 = vrot.lane.b32.xlu0 %v1900, 24
      %v1925 = vpop.permute.xlu0 %1924
      %1926 = vrot.lane.b32.xlu0 %v1901, 24
      %v1927 = vpop.permute.xlu0 %1926
      %1928 = vrot.lane.b32.xlu0 %v1902, 24
      %v1929 = vpop.permute.xlu0 %1928
      %1930 = vrot.lane.b32.xlu0 %v1903, 24
      %v1931 = vpop.permute.xlu0 %1930
      %1932 = vrot.lane.b32.xlu0 %v1904, 24
      %v1933 = vpop.permute.xlu0 %1932
      %1934 = vrot.lane.b32.xlu0 %v1905, 24
      %v1935 = vpop.permute.xlu0 %1934
      %1936 = vrot.lane.b32.xlu0 %v1906, 24
      %v1937 = vpop.permute.xlu0 %1936
      %1938 = vrot.lane.b32.xlu0 %v1907, 24
      %v1939 = vpop.permute.xlu0 %1938
      %vm1956 = vcmask 261312
      %1957 = vst.msk [vmem:[#allocation3] sm:$0xff] %vm1956, %v1909
      %1958 = vst.msk [vmem:[#allocation3 + $0x8] sm:$0xff] %vm1956, %v1911
      %1959 = vst.msk [vmem:[#allocation3 + $0x10] sm:$0xff] %vm1956, %v1913
      %1960 = vst.msk [vmem:[#allocation3 + $0x18] sm:$0xff] %vm1956, %v1915
      %1961 = vst.msk [vmem:[#allocation3 + $0x20] sm:$0xff] %vm1956, %v1917
      %1962 = vst.msk [vmem:[#allocation3 + $0x28] sm:$0xff] %vm1956, %v1919
      %1963 = vst.msk [vmem:[#allocation3 + $0x30] sm:$0xff] %vm1956, %v1921
      %1964 = vst.msk [vmem:[#allocation3 + $0x38] sm:$0xff] %vm1956, %v1923
      %1965 = vst.msk [vmem:[#allocation3 + $0x40] sm:$0xff] %vm1956, %v1925
      %1966 = vst.msk [vmem:[#allocation3 + $0x48] sm:$0xff] %vm1956, %v1927
      %1967 = vst.msk [vmem:[#allocation3 + $0x50] sm:$0xff] %vm1956, %v1929
      %1968 = vst.msk [vmem:[#allocation3 + $0x58] sm:$0xff] %vm1956, %v1931
      %1969 = vst.msk [vmem:[#allocation3 + $0x60] sm:$0xff] %vm1956, %v1933
      %1970 = vst.msk [vmem:[#allocation3 + $0x68] sm:$0xff] %vm1956, %v1935
      %1971 = vst.msk [vmem:[#allocation3 + $0x70] sm:$0xff] %vm1956, %v1937
      %1972 = vst.msk [vmem:[#allocation3 + $0x78] sm:$0xff] %vm1956, %v1939
      %v1973 = vld [vmem:[%s192] sm:$0xf]
      %v1974 = vld [vmem:[%s192 + $0x4] sm:$0xf]
      %v1975 = vld [vmem:[%s192 + $0x8] sm:$0x1]
      %v1976 = vld [vmem:[%s192 + $0xc] sm:$0xf]
      %v1977 = vld [vmem:[%s192 + $0x10] sm:$0xf]
      %v1978 = vld [vmem:[%s192 + $0x14] sm:$0x1]
      %v1979 = vld [vmem:[%s192 + $0x18] sm:$0xf]
      %v1980 = vld [vmem:[%s192 + $0x1c] sm:$0xf]
      %v1981 = vld [vmem:[%s192 + $0x20] sm:$0x1]
      %v1982 = vld [vmem:[%s192 + $0x24] sm:$0xf]
      %v1983 = vld [vmem:[%s192 + $0x28] sm:$0xf]
      %v1984 = vld [vmem:[%s192 + $0x2c] sm:$0x1]
      %v1985 = vld [vmem:[%s192 + $0x30] sm:$0xf]
      %v1986 = vld [vmem:[%s192 + $0x34] sm:$0xf]
      %v1987 = vld [vmem:[%s192 + $0x38] sm:$0x1]
      %v1988 = vld [vmem:[%s192 + $0x3c] sm:$0xf]
      %v1989 = vld [vmem:[%s192 + $0x40] sm:$0xf]
      %v1990 = vld [vmem:[%s192 + $0x44] sm:$0x1]
      %v1991 = vld [vmem:[%s192 + $0x48] sm:$0xf]
      %v1992 = vld [vmem:[%s192 + $0x4c] sm:$0xf]
      %v1993 = vld [vmem:[%s192 + $0x50] sm:$0x1]
      %v1994 = vld [vmem:[%s192 + $0x54] sm:$0xf]
      %v1995 = vld [vmem:[%s192 + $0x58] sm:$0xf]
      %v1996 = vld [vmem:[%s192 + $0x5c] sm:$0x1]
      %v1997 = vld [vmem:[%s192 + $0x60] sm:$0xf]
      %v1998 = vld [vmem:[%s192 + $0x64] sm:$0xf]
      %v1999 = vld [vmem:[%s192 + $0x68] sm:$0x1]
      %v2000 = vld [vmem:[%s192 + $0x6c] sm:$0xf]
      %v2001 = vld [vmem:[%s192 + $0x70] sm:$0xf]
      %v2002 = vld [vmem:[%s192 + $0x74] sm:$0x1]
      %v2003 = vld [vmem:[%s192 + $0x78] sm:$0xf]
      %v2004 = vld [vmem:[%s192 + $0x7c] sm:$0xf]
      %v2005 = vld [vmem:[%s192 + $0x80] sm:$0x1]
      %v2006 = vld [vmem:[%s192 + $0x84] sm:$0xf]
      %v2007 = vld [vmem:[%s192 + $0x88] sm:$0xf]
      %v2008 = vld [vmem:[%s192 + $0x8c] sm:$0x1]
      %v2009 = vld [vmem:[%s192 + $0x90] sm:$0xf]
      %v2010 = vld [vmem:[%s192 + $0x94] sm:$0xf]
      %v2011 = vld [vmem:[%s192 + $0x98] sm:$0x1]
      %v2012 = vld [vmem:[%s192 + $0x9c] sm:$0xf]
      %v2013 = vld [vmem:[%s192 + $0xa0] sm:$0xf]
      %v2014 = vld [vmem:[%s192 + $0xa4] sm:$0x1]
      %v2015 = vld [vmem:[%s192 + $0xa8] sm:$0xf]
      %v2016 = vld [vmem:[%s192 + $0xac] sm:$0xf]
      %v2017 = vld [vmem:[%s192 + $0xb0] sm:$0x1]
      %v2018 = vld [vmem:[%s192 + $0xb4] sm:$0xf]
      %v2019 = vld [vmem:[%s192 + $0xb8] sm:$0xf]
      %v2020 = vld [vmem:[%s192 + $0xbc] sm:$0x1]
      %v2022 = vshrl.u32 %v1973, 16
      %v2024 = vrot.slane %v2022, 4
      %v2025 = vshll.u32 %v1973, 16
      %v2027 = vrot.slane %v2025, 5
      %v2028 = vor.u32 %v2024, %v2027
      %v2029 = vrot.slane %v2028, 4
      %v2031 = vshll.u32 %v1974, 16
      %v2033 = vrot.slane %v2031, 5
      %v2034 = vsel %vm974, %v2029, %v2033
      %v2035 = vshrl.u32 %v1974, 16
      %v2037 = vrot.slane %v2035, 4
      %v2038 = vor.u32 %v2037, %v2033
      %v2039 = vrot.slane %v2038, 4
      %v2041 = vshll.u32 %v1975, 16
      %v2043 = vrot.slane %v2041, 5
      %v2044 = vsel %vm974, %v2039, %v2043
      %v2046 = vshrl.u32 %v1976, 16
      %v2048 = vrot.slane %v2046, 4
      %v2049 = vshll.u32 %v1976, 16
      %v2051 = vrot.slane %v2049, 5
      %v2052 = vor.u32 %v2048, %v2051
      %v2053 = vrot.slane %v2052, 4
      %v2055 = vshll.u32 %v1977, 16
      %v2057 = vrot.slane %v2055, 5
      %v2058 = vsel %vm974, %v2053, %v2057
      %v2059 = vshrl.u32 %v1977, 16
      %v2061 = vrot.slane %v2059, 4
      %v2062 = vor.u32 %v2061, %v2057
      %v2063 = vrot.slane %v2062, 4
      %v2065 = vshll.u32 %v1978, 16
      %v2067 = vrot.slane %v2065, 5
      %v2068 = vsel %vm974, %v2063, %v2067
      %v2070 = vshrl.u32 %v1979, 16
      %v2072 = vrot.slane %v2070, 4
      %v2073 = vshll.u32 %v1979, 16
      %v2075 = vrot.slane %v2073, 5
      %v2076 = vor.u32 %v2072, %v2075
      %v2077 = vrot.slane %v2076, 4
      %v2079 = vshll.u32 %v1980, 16
      %v2081 = vrot.slane %v2079, 5
      %v2082 = vsel %vm974, %v2077, %v2081
      %v2083 = vshrl.u32 %v1980, 16
      %v2085 = vrot.slane %v2083, 4
      %v2086 = vor.u32 %v2085, %v2081
      %v2087 = vrot.slane %v2086, 4
      %v2089 = vshll.u32 %v1981, 16
      %v2091 = vrot.slane %v2089, 5
      %v2092 = vsel %vm974, %v2087, %v2091
      %v2094 = vshrl.u32 %v1982, 16
      %v2096 = vrot.slane %v2094, 4
      %v2097 = vshll.u32 %v1982, 16
      %v2099 = vrot.slane %v2097, 5
      %v2100 = vor.u32 %v2096, %v2099
      %v2101 = vrot.slane %v2100, 4
      %v2103 = vshll.u32 %v1983, 16
      %v2105 = vrot.slane %v2103, 5
      %v2106 = vsel %vm974, %v2101, %v2105
      %v2107 = vshrl.u32 %v1983, 16
      %v2109 = vrot.slane %v2107, 4
      %v2110 = vor.u32 %v2109, %v2105
      %v2111 = vrot.slane %v2110, 4
      %v2113 = vshll.u32 %v1984, 16
      %v2115 = vrot.slane %v2113, 5
      %v2116 = vsel %vm974, %v2111, %v2115
      %v2118 = vshrl.u32 %v1985, 16
      %v2120 = vrot.slane %v2118, 4
      %v2121 = vshll.u32 %v1985, 16
      %v2123 = vrot.slane %v2121, 5
      %v2124 = vor.u32 %v2120, %v2123
      %v2125 = vrot.slane %v2124, 4
      %v2127 = vshll.u32 %v1986, 16
      %v2129 = vrot.slane %v2127, 5
      %v2130 = vsel %vm974, %v2125, %v2129
      %v2131 = vshrl.u32 %v1986, 16
      %v2133 = vrot.slane %v2131, 4
      %v2134 = vor.u32 %v2133, %v2129
      %v2135 = vrot.slane %v2134, 4
      %v2137 = vshll.u32 %v1987, 16
      %v2139 = vrot.slane %v2137, 5
      %v2140 = vsel %vm974, %v2135, %v2139
      %v2142 = vshrl.u32 %v1988, 16
      %v2144 = vrot.slane %v2142, 4
      %v2145 = vshll.u32 %v1988, 16
      %v2147 = vrot.slane %v2145, 5
      %v2148 = vor.u32 %v2144, %v2147
      %v2149 = vrot.slane %v2148, 4
      %v2151 = vshll.u32 %v1989, 16
      %v2153 = vrot.slane %v2151, 5
      %v2154 = vsel %vm974, %v2149, %v2153
      %v2155 = vshrl.u32 %v1989, 16
      %v2157 = vrot.slane %v2155, 4
      %v2158 = vor.u32 %v2157, %v2153
      %v2159 = vrot.slane %v2158, 4
      %v2161 = vshll.u32 %v1990, 16
      %v2163 = vrot.slane %v2161, 5
      %v2164 = vsel %vm974, %v2159, %v2163
      %v2166 = vshrl.u32 %v1991, 16
      %v2168 = vrot.slane %v2166, 4
      %v2169 = vshll.u32 %v1991, 16
      %v2171 = vrot.slane %v2169, 5
      %v2172 = vor.u32 %v2168, %v2171
      %v2173 = vrot.slane %v2172, 4
      %v2175 = vshll.u32 %v1992, 16
      %v2177 = vrot.slane %v2175, 5
      %v2178 = vsel %vm974, %v2173, %v2177
      %v2179 = vshrl.u32 %v1992, 16
      %v2181 = vrot.slane %v2179, 4
      %v2182 = vor.u32 %v2181, %v2177
      %v2183 = vrot.slane %v2182, 4
      %v2185 = vshll.u32 %v1993, 16
      %v2187 = vrot.slane %v2185, 5
      %v2188 = vsel %vm974, %v2183, %v2187
      %v2190 = vshrl.u32 %v1994, 16
      %v2192 = vrot.slane %v2190, 4
      %v2193 = vshll.u32 %v1994, 16
      %v2195 = vrot.slane %v2193, 5
      %v2196 = vor.u32 %v2192, %v2195
      %v2197 = vrot.slane %v2196, 4
      %v2199 = vshll.u32 %v1995, 16
      %v2201 = vrot.slane %v2199, 5
      %v2202 = vsel %vm974, %v2197, %v2201
      %v2203 = vshrl.u32 %v1995, 16
      %v2205 = vrot.slane %v2203, 4
      %v2206 = vor.u32 %v2205, %v2201
      %v2207 = vrot.slane %v2206, 4
      %v2209 = vshll.u32 %v1996, 16
      %v2211 = vrot.slane %v2209, 5
      %v2212 = vsel %vm974, %v2207, %v2211
      %v2214 = vshrl.u32 %v1997, 16
      %v2216 = vrot.slane %v2214, 4
      %v2217 = vshll.u32 %v1997, 16
      %v2219 = vrot.slane %v2217, 5
      %v2220 = vor.u32 %v2216, %v2219
      %v2221 = vrot.slane %v2220, 4
      %v2223 = vshll.u32 %v1998, 16
      %v2225 = vrot.slane %v2223, 5
      %v2226 = vsel %vm974, %v2221, %v2225
      %v2227 = vshrl.u32 %v1998, 16
      %v2229 = vrot.slane %v2227, 4
      %v2230 = vor.u32 %v2229, %v2225
      %v2231 = vrot.slane %v2230, 4
      %v2233 = vshll.u32 %v1999, 16
      %v2235 = vrot.slane %v2233, 5
      %v2236 = vsel %vm974, %v2231, %v2235
      %v2238 = vshrl.u32 %v2000, 16
      %v2240 = vrot.slane %v2238, 4
      %v2241 = vshll.u32 %v2000, 16
      %v2243 = vrot.slane %v2241, 5
      %v2244 = vor.u32 %v2240, %v2243
      %v2245 = vrot.slane %v2244, 4
      %v2247 = vshll.u32 %v2001, 16
      %v2249 = vrot.slane %v2247, 5
      %v2250 = vsel %vm974, %v2245, %v2249
      %v2251 = vshrl.u32 %v2001, 16
      %v2253 = vrot.slane %v2251, 4
      %v2254 = vor.u32 %v2253, %v2249
      %v2255 = vrot.slane %v2254, 4
      %v2257 = vshll.u32 %v2002, 16
      %v2259 = vrot.slane %v2257, 5
      %v2260 = vsel %vm974, %v2255, %v2259
      %v2262 = vshrl.u32 %v2003, 16
      %v2264 = vrot.slane %v2262, 4
      %v2265 = vshll.u32 %v2003, 16
      %v2267 = vrot.slane %v2265, 5
      %v2268 = vor.u32 %v2264, %v2267
      %v2269 = vrot.slane %v2268, 4
      %v2271 = vshll.u32 %v2004, 16
      %v2273 = vrot.slane %v2271, 5
      %v2274 = vsel %vm974, %v2269, %v2273
      %v2275 = vshrl.u32 %v2004, 16
      %v2277 = vrot.slane %v2275, 4
      %v2278 = vor.u32 %v2277, %v2273
      %v2279 = vrot.slane %v2278, 4
      %v2281 = vshll.u32 %v2005, 16
      %v2283 = vrot.slane %v2281, 5
      %v2284 = vsel %vm974, %v2279, %v2283
      %v2286 = vshrl.u32 %v2006, 16
      %v2288 = vrot.slane %v2286, 4
      %v2289 = vshll.u32 %v2006, 16
      %v2291 = vrot.slane %v2289, 5
      %v2292 = vor.u32 %v2288, %v2291
      %v2293 = vrot.slane %v2292, 4
      %v2295 = vshll.u32 %v2007, 16
      %v2297 = vrot.slane %v2295, 5
      %v2298 = vsel %vm974, %v2293, %v2297
      %v2299 = vshrl.u32 %v2007, 16
      %v2301 = vrot.slane %v2299, 4
      %v2302 = vor.u32 %v2301, %v2297
      %v2303 = vrot.slane %v2302, 4
      %v2305 = vshll.u32 %v2008, 16
      %v2307 = vrot.slane %v2305, 5
      %v2308 = vsel %vm974, %v2303, %v2307
      %v2310 = vshrl.u32 %v2009, 16
      %v2312 = vrot.slane %v2310, 4
      %v2313 = vshll.u32 %v2009, 16
      %v2315 = vrot.slane %v2313, 5
      %v2316 = vor.u32 %v2312, %v2315
      %v2317 = vrot.slane %v2316, 4
      %v2319 = vshll.u32 %v2010, 16
      %v2321 = vrot.slane %v2319, 5
      %v2322 = vsel %vm974, %v2317, %v2321
      %v2323 = vshrl.u32 %v2010, 16
      %v2325 = vrot.slane %v2323, 4
      %v2326 = vor.u32 %v2325, %v2321
      %v2327 = vrot.slane %v2326, 4
      %v2329 = vshll.u32 %v2011, 16
      %v2331 = vrot.slane %v2329, 5
      %v2332 = vsel %vm974, %v2327, %v2331
      %v2334 = vshrl.u32 %v2012, 16
      %v2336 = vrot.slane %v2334, 4
      %v2337 = vshll.u32 %v2012, 16
      %v2339 = vrot.slane %v2337, 5
      %v2340 = vor.u32 %v2336, %v2339
      %v2341 = vrot.slane %v2340, 4
      %v2343 = vshll.u32 %v2013, 16
      %v2345 = vrot.slane %v2343, 5
      %v2346 = vsel %vm974, %v2341, %v2345
      %v2347 = vshrl.u32 %v2013, 16
      %v2349 = vrot.slane %v2347, 4
      %v2350 = vor.u32 %v2349, %v2345
      %v2351 = vrot.slane %v2350, 4
      %v2353 = vshll.u32 %v2014, 16
      %v2355 = vrot.slane %v2353, 5
      %v2356 = vsel %vm974, %v2351, %v2355
      %v2358 = vshrl.u32 %v2015, 16
      %v2360 = vrot.slane %v2358, 4
      %v2361 = vshll.u32 %v2015, 16
      %v2363 = vrot.slane %v2361, 5
      %v2364 = vor.u32 %v2360, %v2363
      %v2365 = vrot.slane %v2364, 4
      %v2367 = vshll.u32 %v2016, 16
      %v2369 = vrot.slane %v2367, 5
      %v2370 = vsel %vm974, %v2365, %v2369
      %v2371 = vshrl.u32 %v2016, 16
      %v2373 = vrot.slane %v2371, 4
      %v2374 = vor.u32 %v2373, %v2369
      %v2375 = vrot.slane %v2374, 4
      %v2377 = vshll.u32 %v2017, 16
      %v2379 = vrot.slane %v2377, 5
      %v2380 = vsel %vm974, %v2375, %v2379
      %v2382 = vshrl.u32 %v2018, 16
      %v2384 = vrot.slane %v2382, 4
      %v2385 = vshll.u32 %v2018, 16
      %v2387 = vrot.slane %v2385, 5
      %v2388 = vor.u32 %v2384, %v2387
      %v2389 = vrot.slane %v2388, 4
      %v2391 = vshll.u32 %v2019, 16
      %v2393 = vrot.slane %v2391, 5
      %v2394 = vsel %vm974, %v2389, %v2393
      %v2395 = vshrl.u32 %v2019, 16
      %v2397 = vrot.slane %v2395, 4
      %v2398 = vor.u32 %v2397, %v2393
      %v2399 = vrot.slane %v2398, 4
      %v2401 = vshll.u32 %v2020, 16
      %v2403 = vrot.slane %v2401, 5
      %v2404 = vsel %vm974, %v2399, %v2403
      %v2405 = vunpack.c.l.b16 %v2034
      %v2406 = vunpack.c.l.b16 %v2044
      %v2407 = vunpack.c.l.b16 %v2058
      %v2408 = vunpack.c.l.b16 %v2068
      %v2409 = vunpack.c.l.b16 %v2082
      %v2410 = vunpack.c.l.b16 %v2092
      %v2411 = vunpack.c.l.b16 %v2106
      %v2412 = vunpack.c.l.b16 %v2116
      %v2413 = vunpack.c.l.b16 %v2130
      %v2414 = vunpack.c.l.b16 %v2140
      %v2415 = vunpack.c.l.b16 %v2154
      %v2416 = vunpack.c.l.b16 %v2164
      %v2417 = vunpack.c.l.b16 %v2178
      %v2418 = vunpack.c.l.b16 %v2188
      %v2419 = vunpack.c.l.b16 %v2202
      %v2420 = vunpack.c.l.b16 %v2212
      %v2421 = vunpack.c.l.b16 %v2226
      %v2422 = vunpack.c.l.b16 %v2236
      %v2423 = vunpack.c.l.b16 %v2250
      %v2424 = vunpack.c.l.b16 %v2260
      %v2425 = vunpack.c.l.b16 %v2274
      %v2426 = vunpack.c.l.b16 %v2284
      %v2427 = vunpack.c.l.b16 %v2298
      %v2428 = vunpack.c.l.b16 %v2308
      %v2429 = vunpack.c.l.b16 %v2322
      %v2430 = vunpack.c.l.b16 %v2332
      %v2431 = vunpack.c.l.b16 %v2346
      %v2432 = vunpack.c.l.b16 %v2356
      %v2433 = vunpack.c.l.b16 %v2370
      %v2434 = vunpack.c.l.b16 %v2380
      %v2435 = vunpack.c.l.b16 %v2394
      %v2436 = vunpack.c.l.b16 %v2404
      %v2437 = vpack.c.b16 %v2406, %v2405
      %v2438 = vpack.c.b16 %v2408, %v2407
      %v2439 = vpack.c.b16 %v2410, %v2409
      %v2440 = vpack.c.b16 %v2412, %v2411
      %v2441 = vpack.c.b16 %v2414, %v2413
      %v2442 = vpack.c.b16 %v2416, %v2415
      %v2443 = vpack.c.b16 %v2418, %v2417
      %v2444 = vpack.c.b16 %v2420, %v2419
      %v2445 = vpack.c.b16 %v2422, %v2421
      %v2446 = vpack.c.b16 %v2424, %v2423
      %v2447 = vpack.c.b16 %v2426, %v2425
      %v2448 = vpack.c.b16 %v2428, %v2427
      %v2449 = vpack.c.b16 %v2430, %v2429
      %v2450 = vpack.c.b16 %v2432, %v2431
      %v2451 = vpack.c.b16 %v2434, %v2433
      %v2452 = vpack.c.b16 %v2436, %v2435
      %2453 = vrot.lane.b32.xlu0 %v2437, 32
      %v2454 = vpop.permute.xlu0 %2453
      %2455 = vrot.lane.b32.xlu0 %v2438, 32
      %v2456 = vpop.permute.xlu0 %2455
      %2457 = vrot.lane.b32.xlu0 %v2439, 32
      %v2458 = vpop.permute.xlu0 %2457
      %2459 = vrot.lane.b32.xlu0 %v2440, 32
      %v2460 = vpop.permute.xlu0 %2459
      %2461 = vrot.lane.b32.xlu0 %v2441, 32
      %v2462 = vpop.permute.xlu0 %2461
      %2463 = vrot.lane.b32.xlu0 %v2442, 32
      %v2464 = vpop.permute.xlu0 %2463
      %2465 = vrot.lane.b32.xlu0 %v2443, 32
      %v2466 = vpop.permute.xlu0 %2465
      %2467 = vrot.lane.b32.xlu0 %v2444, 32
      %v2468 = vpop.permute.xlu0 %2467
      %2469 = vrot.lane.b32.xlu0 %v2445, 32
      %v2470 = vpop.permute.xlu0 %2469
      %2471 = vrot.lane.b32.xlu0 %v2446, 32
      %v2472 = vpop.permute.xlu0 %2471
      %2473 = vrot.lane.b32.xlu0 %v2447, 32
      %v2474 = vpop.permute.xlu0 %2473
      %2475 = vrot.lane.b32.xlu0 %v2448, 32
      %v2476 = vpop.permute.xlu0 %2475
      %2477 = vrot.lane.b32.xlu0 %v2449, 32
      %v2478 = vpop.permute.xlu0 %2477
      %2479 = vrot.lane.b32.xlu0 %v2450, 32
      %v2480 = vpop.permute.xlu0 %2479
      %2481 = vrot.lane.b32.xlu0 %v2451, 32
      %v2482 = vpop.permute.xlu0 %2481
      %2483 = vrot.lane.b32.xlu0 %v2452, 32
      %v2484 = vpop.permute.xlu0 %2483
      %vm2501 = vcmask 326912
      %2502 = vst.msk [vmem:[#allocation3] sm:$0xff] %vm2501, %v2454
      %2503 = vst.msk [vmem:[#allocation3 + $0x8] sm:$0xff] %vm2501, %v2456
      %2504 = vst.msk [vmem:[#allocation3 + $0x10] sm:$0xff] %vm2501, %v2458
      %2505 = vst.msk [vmem:[#allocation3 + $0x18] sm:$0xff] %vm2501, %v2460
      %2506 = vst.msk [vmem:[#allocation3 + $0x20] sm:$0xff] %vm2501, %v2462
      %2507 = vst.msk [vmem:[#allocation3 + $0x28] sm:$0xff] %vm2501, %v2464
      %2508 = vst.msk [vmem:[#allocation3 + $0x30] sm:$0xff] %vm2501, %v2466
      %2509 = vst.msk [vmem:[#allocation3 + $0x38] sm:$0xff] %vm2501, %v2468
      %2510 = vst.msk [vmem:[#allocation3 + $0x40] sm:$0xff] %vm2501, %v2470
      %2511 = vst.msk [vmem:[#allocation3 + $0x48] sm:$0xff] %vm2501, %v2472
      %2512 = vst.msk [vmem:[#allocation3 + $0x50] sm:$0xff] %vm2501, %v2474
      %2513 = vst.msk [vmem:[#allocation3 + $0x58] sm:$0xff] %vm2501, %v2476
      %2514 = vst.msk [vmem:[#allocation3 + $0x60] sm:$0xff] %vm2501, %v2478
      %2515 = vst.msk [vmem:[#allocation3 + $0x68] sm:$0xff] %vm2501, %v2480
      %2516 = vst.msk [vmem:[#allocation3 + $0x70] sm:$0xff] %vm2501, %v2482
      %2517 = vst.msk [vmem:[#allocation3 + $0x78] sm:$0xff] %vm2501, %v2484
      %v2518 = vld [vmem:[%s192] sm:$0xe]
      %v2519 = vld [vmem:[%s192 + $0x4] sm:$0xf]
      %v2520 = vld [vmem:[%s192 + $0x8] sm:$0x1]
      %v2521 = vld [vmem:[%s192 + $0xc] sm:$0xe]
      %v2522 = vld [vmem:[%s192 + $0x10] sm:$0xf]
      %v2523 = vld [vmem:[%s192 + $0x14] sm:$0x1]
      %v2524 = vld [vmem:[%s192 + $0x18] sm:$0xe]
      %v2525 = vld [vmem:[%s192 + $0x1c] sm:$0xf]
      %v2526 = vld [vmem:[%s192 + $0x20] sm:$0x1]
      %v2527 = vld [vmem:[%s192 + $0x24] sm:$0xe]
      %v2528 = vld [vmem:[%s192 + $0x28] sm:$0xf]
      %v2529 = vld [vmem:[%s192 + $0x2c] sm:$0x1]
      %v2530 = vld [vmem:[%s192 + $0x30] sm:$0xe]
      %v2531 = vld [vmem:[%s192 + $0x34] sm:$0xf]
      %v2532 = vld [vmem:[%s192 + $0x38] sm:$0x1]
      %v2533 = vld [vmem:[%s192 + $0x3c] sm:$0xe]
      %v2534 = vld [vmem:[%s192 + $0x40] sm:$0xf]
      %v2535 = vld [vmem:[%s192 + $0x44] sm:$0x1]
      %v2536 = vld [vmem:[%s192 + $0x48] sm:$0xe]
      %v2537 = vld [vmem:[%s192 + $0x4c] sm:$0xf]
      %v2538 = vld [vmem:[%s192 + $0x50] sm:$0x1]
      %v2539 = vld [vmem:[%s192 + $0x54] sm:$0xe]
      %v2540 = vld [vmem:[%s192 + $0x58] sm:$0xf]
      %v2541 = vld [vmem:[%s192 + $0x5c] sm:$0x1]
      %v2542 = vld [vmem:[%s192 + $0x60] sm:$0xe]
      %v2543 = vld [vmem:[%s192 + $0x64] sm:$0xf]
      %v2544 = vld [vmem:[%s192 + $0x68] sm:$0x1]
      %v2545 = vld [vmem:[%s192 + $0x6c] sm:$0xe]
      %v2546 = vld [vmem:[%s192 + $0x70] sm:$0xf]
      %v2547 = vld [vmem:[%s192 + $0x74] sm:$0x1]
      %v2548 = vld [vmem:[%s192 + $0x78] sm:$0xe]
      %v2549 = vld [vmem:[%s192 + $0x7c] sm:$0xf]
      %v2550 = vld [vmem:[%s192 + $0x80] sm:$0x1]
      %v2551 = vld [vmem:[%s192 + $0x84] sm:$0xe]
      %v2552 = vld [vmem:[%s192 + $0x88] sm:$0xf]
      %v2553 = vld [vmem:[%s192 + $0x8c] sm:$0x1]
      %v2554 = vld [vmem:[%s192 + $0x90] sm:$0xe]
      %v2555 = vld [vmem:[%s192 + $0x94] sm:$0xf]
      %v2556 = vld [vmem:[%s192 + $0x98] sm:$0x1]
      %v2557 = vld [vmem:[%s192 + $0x9c] sm:$0xe]
      %v2558 = vld [vmem:[%s192 + $0xa0] sm:$0xf]
      %v2559 = vld [vmem:[%s192 + $0xa4] sm:$0x1]
      %v2560 = vld [vmem:[%s192 + $0xa8] sm:$0xe]
      %v2561 = vld [vmem:[%s192 + $0xac] sm:$0xf]
      %v2562 = vld [vmem:[%s192 + $0xb0] sm:$0x1]
      %v2563 = vld [vmem:[%s192 + $0xb4] sm:$0xe]
      %v2564 = vld [vmem:[%s192 + $0xb8] sm:$0xf]
      %v2565 = vld [vmem:[%s192 + $0xbc] sm:$0x1]
      %v2614 = vrot.slane %v2518, 5
      %v2615 = vrot.slane %v2614, 4
      %v2616 = vrot.slane %v2519, 5
      %v2617 = vsel %vm1570, %v2615, %v2616
      %v2618 = vrot.slane %v2616, 4
      %v2619 = vrot.slane %v2520, 5
      %v2620 = vsel %vm1570, %v2618, %v2619
      %v2621 = vrot.slane %v2521, 5
      %v2622 = vrot.slane %v2621, 4
      %v2623 = vrot.slane %v2522, 5
      %v2624 = vsel %vm1570, %v2622, %v2623
      %v2625 = vrot.slane %v2623, 4
      %v2626 = vrot.slane %v2523, 5
      %v2627 = vsel %vm1570, %v2625, %v2626
      %v2628 = vrot.slane %v2524, 5
      %v2629 = vrot.slane %v2628, 4
      %v2630 = vrot.slane %v2525, 5
      %v2631 = vsel %vm1570, %v2629, %v2630
      %v2632 = vrot.slane %v2630, 4
      %v2633 = vrot.slane %v2526, 5
      %v2634 = vsel %vm1570, %v2632, %v2633
      %v2635 = vrot.slane %v2527, 5
      %v2636 = vrot.slane %v2635, 4
      %v2637 = vrot.slane %v2528, 5
      %v2638 = vsel %vm1570, %v2636, %v2637
      %v2639 = vrot.slane %v2637, 4
      %v2640 = vrot.slane %v2529, 5
      %v2641 = vsel %vm1570, %v2639, %v2640
      %v2642 = vrot.slane %v2530, 5
      %v2643 = vrot.slane %v2642, 4
      %v2644 = vrot.slane %v2531, 5
      %v2645 = vsel %vm1570, %v2643, %v2644
      %v2646 = vrot.slane %v2644, 4
      %v2647 = vrot.slane %v2532, 5
      %v2648 = vsel %vm1570, %v2646, %v2647
      %v2649 = vrot.slane %v2533, 5
      %v2650 = vrot.slane %v2649, 4
      %v2651 = vrot.slane %v2534, 5
      %v2652 = vsel %vm1570, %v2650, %v2651
      %v2653 = vrot.slane %v2651, 4
      %v2654 = vrot.slane %v2535, 5
      %v2655 = vsel %vm1570, %v2653, %v2654
      %v2656 = vrot.slane %v2536, 5
      %v2657 = vrot.slane %v2656, 4
      %v2658 = vrot.slane %v2537, 5
      %v2659 = vsel %vm1570, %v2657, %v2658
      %v2660 = vrot.slane %v2658, 4
      %v2661 = vrot.slane %v2538, 5
      %v2662 = vsel %vm1570, %v2660, %v2661
      %v2663 = vrot.slane %v2539, 5
      %v2664 = vrot.slane %v2663, 4
      %v2665 = vrot.slane %v2540, 5
      %v2666 = vsel %vm1570, %v2664, %v2665
      %v2667 = vrot.slane %v2665, 4
      %v2668 = vrot.slane %v2541, 5
      %v2669 = vsel %vm1570, %v2667, %v2668
      %v2670 = vrot.slane %v2542, 5
      %v2671 = vrot.slane %v2670, 4
      %v2672 = vrot.slane %v2543, 5
      %v2673 = vsel %vm1570, %v2671, %v2672
      %v2674 = vrot.slane %v2672, 4
      %v2675 = vrot.slane %v2544, 5
      %v2676 = vsel %vm1570, %v2674, %v2675
      %v2677 = vrot.slane %v2545, 5
      %v2678 = vrot.slane %v2677, 4
      %v2679 = vrot.slane %v2546, 5
      %v2680 = vsel %vm1570, %v2678, %v2679
      %v2681 = vrot.slane %v2679, 4
      %v2682 = vrot.slane %v2547, 5
      %v2683 = vsel %vm1570, %v2681, %v2682
      %v2684 = vrot.slane %v2548, 5
      %v2685 = vrot.slane %v2684, 4
      %v2686 = vrot.slane %v2549, 5
      %v2687 = vsel %vm1570, %v2685, %v2686
      %v2688 = vrot.slane %v2686, 4
      %v2689 = vrot.slane %v2550, 5
      %v2690 = vsel %vm1570, %v2688, %v2689
      %v2691 = vrot.slane %v2551, 5
      %v2692 = vrot.slane %v2691, 4
      %v2693 = vrot.slane %v2552, 5
      %v2694 = vsel %vm1570, %v2692, %v2693
      %v2695 = vrot.slane %v2693, 4
      %v2696 = vrot.slane %v2553, 5
      %v2697 = vsel %vm1570, %v2695, %v2696
      %v2698 = vrot.slane %v2554, 5
      %v2699 = vrot.slane %v2698, 4
      %v2700 = vrot.slane %v2555, 5
      %v2701 = vsel %vm1570, %v2699, %v2700
      %v2702 = vrot.slane %v2700, 4
      %v2703 = vrot.slane %v2556, 5
      %v2704 = vsel %vm1570, %v2702, %v2703
      %v2705 = vrot.slane %v2557, 5
      %v2706 = vrot.slane %v2705, 4
      %v2707 = vrot.slane %v2558, 5
      %v2708 = vsel %vm1570, %v2706, %v2707
      %v2709 = vrot.slane %v2707, 4
      %v2710 = vrot.slane %v2559, 5
      %v2711 = vsel %vm1570, %v2709, %v2710
      %v2712 = vrot.slane %v2560, 5
      %v2713 = vrot.slane %v2712, 4
      %v2714 = vrot.slane %v2561, 5
      %v2715 = vsel %vm1570, %v2713, %v2714
      %v2716 = vrot.slane %v2714, 4
      %v2717 = vrot.slane %v2562, 5
      %v2718 = vsel %vm1570, %v2716, %v2717
      %v2719 = vrot.slane %v2563, 5
      %v2720 = vrot.slane %v2719, 4
      %v2721 = vrot.slane %v2564, 5
      %v2722 = vsel %vm1570, %v2720, %v2721
      %v2723 = vrot.slane %v2721, 4
      %v2724 = vrot.slane %v2565, 5
      %v2725 = vsel %vm1570, %v2723, %v2724
      %v2726 = vunpack.c.l.b16 %v2617
      %v2727 = vunpack.c.l.b16 %v2620
      %v2728 = vunpack.c.l.b16 %v2624
      %v2729 = vunpack.c.l.b16 %v2627
      %v2730 = vunpack.c.l.b16 %v2631
      %v2731 = vunpack.c.l.b16 %v2634
      %v2732 = vunpack.c.l.b16 %v2638
      %v2733 = vunpack.c.l.b16 %v2641
      %v2734 = vunpack.c.l.b16 %v2645
      %v2735 = vunpack.c.l.b16 %v2648
      %v2736 = vunpack.c.l.b16 %v2652
      %v2737 = vunpack.c.l.b16 %v2655
      %v2738 = vunpack.c.l.b16 %v2659
      %v2739 = vunpack.c.l.b16 %v2662
      %v2740 = vunpack.c.l.b16 %v2666
      %v2741 = vunpack.c.l.b16 %v2669
      %v2742 = vunpack.c.l.b16 %v2673
      %v2743 = vunpack.c.l.b16 %v2676
      %v2744 = vunpack.c.l.b16 %v2680
      %v2745 = vunpack.c.l.b16 %v2683
      %v2746 = vunpack.c.l.b16 %v2687
      %v2747 = vunpack.c.l.b16 %v2690
      %v2748 = vunpack.c.l.b16 %v2694
      %v2749 = vunpack.c.l.b16 %v2697
      %v2750 = vunpack.c.l.b16 %v2701
      %v2751 = vunpack.c.l.b16 %v2704
      %v2752 = vunpack.c.l.b16 %v2708
      %v2753 = vunpack.c.l.b16 %v2711
      %v2754 = vunpack.c.l.b16 %v2715
      %v2755 = vunpack.c.l.b16 %v2718
      %v2756 = vunpack.c.l.b16 %v2722
      %v2757 = vunpack.c.l.b16 %v2725
      %v2758 = vpack.c.b16 %v2727, %v2726
      %v2759 = vpack.c.b16 %v2729, %v2728
      %v2760 = vpack.c.b16 %v2731, %v2730
      %v2761 = vpack.c.b16 %v2733, %v2732
      %v2762 = vpack.c.b16 %v2735, %v2734
      %v2763 = vpack.c.b16 %v2737, %v2736
      %v2764 = vpack.c.b16 %v2739, %v2738
      %v2765 = vpack.c.b16 %v2741, %v2740
      %v2766 = vpack.c.b16 %v2743, %v2742
      %v2767 = vpack.c.b16 %v2745, %v2744
      %v2768 = vpack.c.b16 %v2747, %v2746
      %v2769 = vpack.c.b16 %v2749, %v2748
      %v2770 = vpack.c.b16 %v2751, %v2750
      %v2771 = vpack.c.b16 %v2753, %v2752
      %v2772 = vpack.c.b16 %v2755, %v2754
      %v2773 = vpack.c.b16 %v2757, %v2756
      %2774 = vrot.lane.b32.xlu0 %v2758, 40
      %v2775 = vpop.permute.xlu0 %2774
      %2776 = vrot.lane.b32.xlu0 %v2759, 40
      %v2777 = vpop.permute.xlu0 %2776
      %2778 = vrot.lane.b32.xlu0 %v2760, 40
      %v2779 = vpop.permute.xlu0 %2778
      %2780 = vrot.lane.b32.xlu0 %v2761, 40
      %v2781 = vpop.permute.xlu0 %2780
      %2782 = vrot.lane.b32.xlu0 %v2762, 40
      %v2783 = vpop.permute.xlu0 %2782
      %2784 = vrot.lane.b32.xlu0 %v2763, 40
      %v2785 = vpop.permute.xlu0 %2784
      %2786 = vrot.lane.b32.xlu0 %v2764, 40
      %v2787 = vpop.permute.xlu0 %2786
      %2788 = vrot.lane.b32.xlu0 %v2765, 40
      %v2789 = vpop.permute.xlu0 %2788
      %2790 = vrot.lane.b32.xlu0 %v2766, 40
      %v2791 = vpop.permute.xlu0 %2790
      %2792 = vrot.lane.b32.xlu0 %v2767, 40
      %v2793 = vpop.permute.xlu0 %2792
      %2794 = vrot.lane.b32.xlu0 %v2768, 40
      %v2795 = vpop.permute.xlu0 %2794
      %2796 = vrot.lane.b32.xlu0 %v2769, 40
      %v2797 = vpop.permute.xlu0 %2796
      %2798 = vrot.lane.b32.xlu0 %v2770, 40
      %v2799 = vpop.permute.xlu0 %2798
      %2800 = vrot.lane.b32.xlu0 %v2771, 40
      %v2801 = vpop.permute.xlu0 %2800
      %2802 = vrot.lane.b32.xlu0 %v2772, 40
      %v2803 = vpop.permute.xlu0 %2802
      %2804 = vrot.lane.b32.xlu0 %v2773, 40
      %v2805 = vpop.permute.xlu0 %2804
      %vm2822 = vcmask 392512
      %2823 = vst.msk [vmem:[#allocation3] sm:$0xff] %vm2822, %v2775
      %2824 = vst.msk [vmem:[#allocation3 + $0x8] sm:$0xff] %vm2822, %v2777
      %2825 = vst.msk [vmem:[#allocation3 + $0x10] sm:$0xff] %vm2822, %v2779
      %2826 = vst.msk [vmem:[#allocation3 + $0x18] sm:$0xff] %vm2822, %v2781
      %2827 = vst.msk [vmem:[#allocation3 + $0x20] sm:$0xff] %vm2822, %v2783
      %2828 = vst.msk [vmem:[#allocation3 + $0x28] sm:$0xff] %vm2822, %v2785
      %2829 = vst.msk [vmem:[#allocation3 + $0x30] sm:$0xff] %vm2822, %v2787
      %2830 = vst.msk [vmem:[#allocation3 + $0x38] sm:$0xff] %vm2822, %v2789
      %2831 = vst.msk [vmem:[#allocation3 + $0x40] sm:$0xff] %vm2822, %v2791
      %2832 = vst.msk [vmem:[#allocation3 + $0x48] sm:$0xff] %vm2822, %v2793
      %2833 = vst.msk [vmem:[#allocation3 + $0x50] sm:$0xff] %vm2822, %v2795
      %2834 = vst.msk [vmem:[#allocation3 + $0x58] sm:$0xff] %vm2822, %v2797
      %2835 = vst.msk [vmem:[#allocation3 + $0x60] sm:$0xff] %vm2822, %v2799
      %2836 = vst.msk [vmem:[#allocation3 + $0x68] sm:$0xff] %vm2822, %v2801
      %2837 = vst.msk [vmem:[#allocation3 + $0x70] sm:$0xff] %vm2822, %v2803
      %2838 = vst.msk [vmem:[#allocation3 + $0x78] sm:$0xff] %vm2822, %v2805
      %s2839 = scalar_lea.vmem [#allocation2], 24
      %v2840 = vld [vmem:[%s2839] sm:$0xf]
      %v2841 = vld [vmem:[%s2839 + $0x4] sm:$0xf]
      %v2842 = vld [vmem:[%s2839 + $0xc] sm:$0xf]
      %v2843 = vld [vmem:[%s2839 + $0x10] sm:$0xf]
      %v2844 = vld [vmem:[%s2839 + $0x18] sm:$0xf]
      %v2845 = vld [vmem:[%s2839 + $0x1c] sm:$0xf]
      %v2846 = vld [vmem:[%s2839 + $0x24] sm:$0xf]
      %v2847 = vld [vmem:[%s2839 + $0x28] sm:$0xf]
      %v2848 = vld [vmem:[%s2839 + $0x30] sm:$0xf]
      %v2849 = vld [vmem:[%s2839 + $0x34] sm:$0xf]
      %v2850 = vld [vmem:[%s2839 + $0x3c] sm:$0xf]
      %v2851 = vld [vmem:[%s2839 + $0x40] sm:$0xf]
      %v2852 = vld [vmem:[%s2839 + $0x48] sm:$0xf]
      %v2853 = vld [vmem:[%s2839 + $0x4c] sm:$0xf]
      %v2854 = vld [vmem:[%s2839 + $0x54] sm:$0xf]
      %v2855 = vld [vmem:[%s2839 + $0x58] sm:$0xf]
      %v2856 = vld [vmem:[%s2839 + $0x60] sm:$0xf]
      %v2857 = vld [vmem:[%s2839 + $0x64] sm:$0xf]
      %v2858 = vld [vmem:[%s2839 + $0x6c] sm:$0xf]
      %v2859 = vld [vmem:[%s2839 + $0x70] sm:$0xf]
      %v2860 = vld [vmem:[%s2839 + $0x78] sm:$0xf]
      %v2861 = vld [vmem:[%s2839 + $0x7c] sm:$0xf]
      %v2862 = vld [vmem:[%s2839 + $0x84] sm:$0xf]
      %v2863 = vld [vmem:[%s2839 + $0x88] sm:$0xf]
      %v2864 = vld [vmem:[%s2839 + $0x90] sm:$0xf]
      %v2865 = vld [vmem:[%s2839 + $0x94] sm:$0xf]
      %v2866 = vld [vmem:[%s2839 + $0x9c] sm:$0xf]
      %v2867 = vld [vmem:[%s2839 + $0xa0] sm:$0xf]
      %v2868 = vld [vmem:[%s2839 + $0xa8] sm:$0xf]
      %v2869 = vld [vmem:[%s2839 + $0xac] sm:$0xf]
      %v2870 = vld [vmem:[%s2839 + $0xb4] sm:$0xf]
      %v2871 = vld [vmem:[%s2839 + $0xb8] sm:$0xf]
      %v2904 = vunpack.c.l.b16 %v2840
      %v2905 = vunpack.c.l.b16 %v2841
      %v2906 = vunpack.c.l.b16 %v2842
      %v2907 = vunpack.c.l.b16 %v2843
      %v2908 = vunpack.c.l.b16 %v2844
      %v2909 = vunpack.c.l.b16 %v2845
      %v2910 = vunpack.c.l.b16 %v2846
      %v2911 = vunpack.c.l.b16 %v2847
      %v2912 = vunpack.c.l.b16 %v2848
      %v2913 = vunpack.c.l.b16 %v2849
      %v2914 = vunpack.c.l.b16 %v2850
      %v2915 = vunpack.c.l.b16 %v2851
      %v2916 = vunpack.c.l.b16 %v2852
      %v2917 = vunpack.c.l.b16 %v2853
      %v2918 = vunpack.c.l.b16 %v2854
      %v2919 = vunpack.c.l.b16 %v2855
      %v2920 = vunpack.c.l.b16 %v2856
      %v2921 = vunpack.c.l.b16 %v2857
      %v2922 = vunpack.c.l.b16 %v2858
      %v2923 = vunpack.c.l.b16 %v2859
      %v2924 = vunpack.c.l.b16 %v2860
      %v2925 = vunpack.c.l.b16 %v2861
      %v2926 = vunpack.c.l.b16 %v2862
      %v2927 = vunpack.c.l.b16 %v2863
      %v2928 = vunpack.c.l.b16 %v2864
      %v2929 = vunpack.c.l.b16 %v2865
      %v2930 = vunpack.c.l.b16 %v2866
      %v2931 = vunpack.c.l.b16 %v2867
      %v2932 = vunpack.c.l.b16 %v2868
      %v2933 = vunpack.c.l.b16 %v2869
      %v2934 = vunpack.c.l.b16 %v2870
      %v2935 = vunpack.c.l.b16 %v2871
      %v2936 = vpack.c.b16 %v2905, %v2904
      %v2937 = vpack.c.b16 %v2907, %v2906
      %v2938 = vpack.c.b16 %v2909, %v2908
      %v2939 = vpack.c.b16 %v2911, %v2910
      %v2940 = vpack.c.b16 %v2913, %v2912
      %v2941 = vpack.c.b16 %v2915, %v2914
      %v2942 = vpack.c.b16 %v2917, %v2916
      %v2943 = vpack.c.b16 %v2919, %v2918
      %v2944 = vpack.c.b16 %v2921, %v2920
      %v2945 = vpack.c.b16 %v2923, %v2922
      %v2946 = vpack.c.b16 %v2925, %v2924
      %v2947 = vpack.c.b16 %v2927, %v2926
      %v2948 = vpack.c.b16 %v2929, %v2928
      %v2949 = vpack.c.b16 %v2931, %v2930
      %v2950 = vpack.c.b16 %v2933, %v2932
      %v2951 = vpack.c.b16 %v2935, %v2934
      %2952 = vrot.lane.b32.xlu0 %v2936, 48
      %v2953 = vpop.permute.xlu0 %2952
      %2954 = vrot.lane.b32.xlu0 %v2937, 48
      %v2955 = vpop.permute.xlu0 %2954
      %2956 = vrot.lane.b32.xlu0 %v2938, 48
      %v2957 = vpop.permute.xlu0 %2956
      %2958 = vrot.lane.b32.xlu0 %v2939, 48
      %v2959 = vpop.permute.xlu0 %2958
      %2960 = vrot.lane.b32.xlu0 %v2940, 48
      %v2961 = vpop.permute.xlu0 %2960
      %2962 = vrot.lane.b32.xlu0 %v2941, 48
      %v2963 = vpop.permute.xlu0 %2962
      %2964 = vrot.lane.b32.xlu0 %v2942, 48
      %v2965 = vpop.permute.xlu0 %2964
      %2966 = vrot.lane.b32.xlu0 %v2943, 48
      %v2967 = vpop.permute.xlu0 %2966
      %2968 = vrot.lane.b32.xlu0 %v2944, 48
      %v2969 = vpop.permute.xlu0 %2968
      %2970 = vrot.lane.b32.xlu0 %v2945, 48
      %v2971 = vpop.permute.xlu0 %2970
      %2972 = vrot.lane.b32.xlu0 %v2946, 48
      %v2973 = vpop.permute.xlu0 %2972
      %2974 = vrot.lane.b32.xlu0 %v2947, 48
      %v2975 = vpop.permute.xlu0 %2974
      %2976 = vrot.lane.b32.xlu0 %v2948, 48
      %v2977 = vpop.permute.xlu0 %2976
      %2978 = vrot.lane.b32.xlu0 %v2949, 48
      %v2979 = vpop.permute.xlu0 %2978
      %2980 = vrot.lane.b32.xlu0 %v2950, 48
      %v2981 = vpop.permute.xlu0 %2980
      %2982 = vrot.lane.b32.xlu0 %v2951, 48
      %v2983 = vpop.permute.xlu0 %2982
      %vm3000 = vcmask 458112
      %3001 = vst.msk [vmem:[#allocation3] sm:$0xff] %vm3000, %v2953
      %3002 = vst.msk [vmem:[#allocation3 + $0x8] sm:$0xff] %vm3000, %v2955
      %3003 = vst.msk [vmem:[#allocation3 + $0x10] sm:$0xff] %vm3000, %v2957
      %3004 = vst.msk [vmem:[#allocation3 + $0x18] sm:$0xff] %vm3000, %v2959
      %3005 = vst.msk [vmem:[#allocation3 + $0x20] sm:$0xff] %vm3000, %v2961
      %3006 = vst.msk [vmem:[#allocation3 + $0x28] sm:$0xff] %vm3000, %v2963
      %3007 = vst.msk [vmem:[#allocation3 + $0x30] sm:$0xff] %vm3000, %v2965
      %3008 = vst.msk [vmem:[#allocation3 + $0x38] sm:$0xff] %vm3000, %v2967
      %3009 = vst.msk [vmem:[#allocation3 + $0x40] sm:$0xff] %vm3000, %v2969
      %3010 = vst.msk [vmem:[#allocation3 + $0x48] sm:$0xff] %vm3000, %v2971
      %3011 = vst.msk [vmem:[#allocation3 + $0x50] sm:$0xff] %vm3000, %v2973
      %3012 = vst.msk [vmem:[#allocation3 + $0x58] sm:$0xff] %vm3000, %v2975
      %3013 = vst.msk [vmem:[#allocation3 + $0x60] sm:$0xff] %vm3000, %v2977
      %3014 = vst.msk [vmem:[#allocation3 + $0x68] sm:$0xff] %vm3000, %v2979
      %3015 = vst.msk [vmem:[#allocation3 + $0x70] sm:$0xff] %vm3000, %v2981
      %3016 = vst.msk [vmem:[#allocation3 + $0x78] sm:$0xff] %vm3000, %v2983
      %v3017 = vld [vmem:[%s2839] sm:$0xf]
      %v3018 = vld [vmem:[%s2839 + $0x4] sm:$0xf]
      %v3019 = vld [vmem:[%s2839 + $0x8] sm:$0x1]
      %v3020 = vld [vmem:[%s2839 + $0xc] sm:$0xf]
      %v3021 = vld [vmem:[%s2839 + $0x10] sm:$0xf]
      %v3022 = vld [vmem:[%s2839 + $0x14] sm:$0x1]
      %v3023 = vld [vmem:[%s2839 + $0x18] sm:$0xf]
      %v3024 = vld [vmem:[%s2839 + $0x1c] sm:$0xf]
      %v3025 = vld [vmem:[%s2839 + $0x20] sm:$0x1]
      %v3026 = vld [vmem:[%s2839 + $0x24] sm:$0xf]
      %v3027 = vld [vmem:[%s2839 + $0x28] sm:$0xf]
      %v3028 = vld [vmem:[%s2839 + $0x2c] sm:$0x1]
      %v3029 = vld [vmem:[%s2839 + $0x30] sm:$0xf]
      %v3030 = vld [vmem:[%s2839 + $0x34] sm:$0xf]
      %v3031 = vld [vmem:[%s2839 + $0x38] sm:$0x1]
      %v3032 = vld [vmem:[%s2839 + $0x3c] sm:$0xf]
      %v3033 = vld [vmem:[%s2839 + $0x40] sm:$0xf]
      %v3034 = vld [vmem:[%s2839 + $0x44] sm:$0x1]
      %v3035 = vld [vmem:[%s2839 + $0x48] sm:$0xf]
      %v3036 = vld [vmem:[%s2839 + $0x4c] sm:$0xf]
      %v3037 = vld [vmem:[%s2839 + $0x50] sm:$0x1]
      %v3038 = vld [vmem:[%s2839 + $0x54] sm:$0xf]
      %v3039 = vld [vmem:[%s2839 + $0x58] sm:$0xf]
      %v3040 = vld [vmem:[%s2839 + $0x5c] sm:$0x1]
      %v3041 = vld [vmem:[%s2839 + $0x60] sm:$0xf]
      %v3042 = vld [vmem:[%s2839 + $0x64] sm:$0xf]
      %v3043 = vld [vmem:[%s2839 + $0x68] sm:$0x1]
      %v3044 = vld [vmem:[%s2839 + $0x6c] sm:$0xf]
      %v3045 = vld [vmem:[%s2839 + $0x70] sm:$0xf]
      %v3046 = vld [vmem:[%s2839 + $0x74] sm:$0x1]
      %v3047 = vld [vmem:[%s2839 + $0x78] sm:$0xf]
      %v3048 = vld [vmem:[%s2839 + $0x7c] sm:$0xf]
      %v3049 = vld [vmem:[%s2839 + $0x80] sm:$0x1]
      %v3050 = vld [vmem:[%s2839 + $0x84] sm:$0xf]
      %v3051 = vld [vmem:[%s2839 + $0x88] sm:$0xf]
      %v3052 = vld [vmem:[%s2839 + $0x8c] sm:$0x1]
      %v3053 = vld [vmem:[%s2839 + $0x90] sm:$0xf]
      %v3054 = vld [vmem:[%s2839 + $0x94] sm:$0xf]
      %v3055 = vld [vmem:[%s2839 + $0x98] sm:$0x1]
      %v3056 = vld [vmem:[%s2839 + $0x9c] sm:$0xf]
      %v3057 = vld [vmem:[%s2839 + $0xa0] sm:$0xf]
      %v3058 = vld [vmem:[%s2839 + $0xa4] sm:$0x1]
      %v3059 = vld [vmem:[%s2839 + $0xa8] sm:$0xf]
      %v3060 = vld [vmem:[%s2839 + $0xac] sm:$0xf]
      %v3061 = vld [vmem:[%s2839 + $0xb0] sm:$0x1]
      %v3062 = vld [vmem:[%s2839 + $0xb4] sm:$0xf]
      %v3063 = vld [vmem:[%s2839 + $0xb8] sm:$0xf]
      %v3064 = vld [vmem:[%s2839 + $0xbc] sm:$0x1]
      %v3066 = vshrl.u32 %v3017, 16
      %v3068 = vrot.slane %v3066, 4
      %v3069 = vshll.u32 %v3017, 16
      %v3071 = vrot.slane %v3069, 5
      %v3072 = vor.u32 %v3068, %v3071
      %v3073 = vrot.slane %v3072, 4
      %v3075 = vshll.u32 %v3018, 16
      %v3077 = vrot.slane %v3075, 5
      %v3078 = vsel %vm974, %v3073, %v3077
      %v3079 = vshrl.u32 %v3018, 16
      %v3081 = vrot.slane %v3079, 4
      %v3082 = vor.u32 %v3081, %v3077
      %v3083 = vrot.slane %v3082, 4
      %v3085 = vshll.u32 %v3019, 16
      %v3087 = vrot.slane %v3085, 5
      %v3088 = vsel %vm974, %v3083, %v3087
      %v3090 = vshrl.u32 %v3020, 16
      %v3092 = vrot.slane %v3090, 4
      %v3093 = vshll.u32 %v3020, 16
      %v3095 = vrot.slane %v3093, 5
      %v3096 = vor.u32 %v3092, %v3095
      %v3097 = vrot.slane %v3096, 4
      %v3099 = vshll.u32 %v3021, 16
      %v3101 = vrot.slane %v3099, 5
      %v3102 = vsel %vm974, %v3097, %v3101
      %v3103 = vshrl.u32 %v3021, 16
      %v3105 = vrot.slane %v3103, 4
      %v3106 = vor.u32 %v3105, %v3101
      %v3107 = vrot.slane %v3106, 4
      %v3109 = vshll.u32 %v3022, 16
      %v3111 = vrot.slane %v3109, 5
      %v3112 = vsel %vm974, %v3107, %v3111
      %v3114 = vshrl.u32 %v3023, 16
      %v3116 = vrot.slane %v3114, 4
      %v3117 = vshll.u32 %v3023, 16
      %v3119 = vrot.slane %v3117, 5
      %v3120 = vor.u32 %v3116, %v3119
      %v3121 = vrot.slane %v3120, 4
      %v3123 = vshll.u32 %v3024, 16
      %v3125 = vrot.slane %v3123, 5
      %v3126 = vsel %vm974, %v3121, %v3125
      %v3127 = vshrl.u32 %v3024, 16
      %v3129 = vrot.slane %v3127, 4
      %v3130 = vor.u32 %v3129, %v3125
      %v3131 = vrot.slane %v3130, 4
      %v3133 = vshll.u32 %v3025, 16
      %v3135 = vrot.slane %v3133, 5
      %v3136 = vsel %vm974, %v3131, %v3135
      %v3138 = vshrl.u32 %v3026, 16
      %v3140 = vrot.slane %v3138, 4
      %v3141 = vshll.u32 %v3026, 16
      %v3143 = vrot.slane %v3141, 5
      %v3144 = vor.u32 %v3140, %v3143
      %v3145 = vrot.slane %v3144, 4
      %v3147 = vshll.u32 %v3027, 16
      %v3149 = vrot.slane %v3147, 5
      %v3150 = vsel %vm974, %v3145, %v3149
      %v3151 = vshrl.u32 %v3027, 16
      %v3153 = vrot.slane %v3151, 4
      %v3154 = vor.u32 %v3153, %v3149
      %v3155 = vrot.slane %v3154, 4
      %v3157 = vshll.u32 %v3028, 16
      %v3159 = vrot.slane %v3157, 5
      %v3160 = vsel %vm974, %v3155, %v3159
      %v3162 = vshrl.u32 %v3029, 16
      %v3164 = vrot.slane %v3162, 4
      %v3165 = vshll.u32 %v3029, 16
      %v3167 = vrot.slane %v3165, 5
      %v3168 = vor.u32 %v3164, %v3167
      %v3169 = vrot.slane %v3168, 4
      %v3171 = vshll.u32 %v3030, 16
      %v3173 = vrot.slane %v3171, 5
      %v3174 = vsel %vm974, %v3169, %v3173
      %v3175 = vshrl.u32 %v3030, 16
      %v3177 = vrot.slane %v3175, 4
      %v3178 = vor.u32 %v3177, %v3173
      %v3179 = vrot.slane %v3178, 4
      %v3181 = vshll.u32 %v3031, 16
      %v3183 = vrot.slane %v3181, 5
      %v3184 = vsel %vm974, %v3179, %v3183
      %v3186 = vshrl.u32 %v3032, 16
      %v3188 = vrot.slane %v3186, 4
      %v3189 = vshll.u32 %v3032, 16
      %v3191 = vrot.slane %v3189, 5
      %v3192 = vor.u32 %v3188, %v3191
      %v3193 = vrot.slane %v3192, 4
      %v3195 = vshll.u32 %v3033, 16
      %v3197 = vrot.slane %v3195, 5
      %v3198 = vsel %vm974, %v3193, %v3197
      %v3199 = vshrl.u32 %v3033, 16
      %v3201 = vrot.slane %v3199, 4
      %v3202 = vor.u32 %v3201, %v3197
      %v3203 = vrot.slane %v3202, 4
      %v3205 = vshll.u32 %v3034, 16
      %v3207 = vrot.slane %v3205, 5
      %v3208 = vsel %vm974, %v3203, %v3207
      %v3210 = vshrl.u32 %v3035, 16
      %v3212 = vrot.slane %v3210, 4
      %v3213 = vshll.u32 %v3035, 16
      %v3215 = vrot.slane %v3213, 5
      %v3216 = vor.u32 %v3212, %v3215
      %v3217 = vrot.slane %v3216, 4
      %v3219 = vshll.u32 %v3036, 16
      %v3221 = vrot.slane %v3219, 5
      %v3222 = vsel %vm974, %v3217, %v3221
      %v3223 = vshrl.u32 %v3036, 16
      %v3225 = vrot.slane %v3223, 4
      %v3226 = vor.u32 %v3225, %v3221
      %v3227 = vrot.slane %v3226, 4
      %v3229 = vshll.u32 %v3037, 16
      %v3231 = vrot.slane %v3229, 5
      %v3232 = vsel %vm974, %v3227, %v3231
      %v3234 = vshrl.u32 %v3038, 16
      %v3236 = vrot.slane %v3234, 4
      %v3237 = vshll.u32 %v3038, 16
      %v3239 = vrot.slane %v3237, 5
      %v3240 = vor.u32 %v3236, %v3239
      %v3241 = vrot.slane %v3240, 4
      %v3243 = vshll.u32 %v3039, 16
      %v3245 = vrot.slane %v3243, 5
      %v3246 = vsel %vm974, %v3241, %v3245
      %v3247 = vshrl.u32 %v3039, 16
      %v3249 = vrot.slane %v3247, 4
      %v3250 = vor.u32 %v3249, %v3245
      %v3251 = vrot.slane %v3250, 4
      %v3253 = vshll.u32 %v3040, 16
      %v3255 = vrot.slane %v3253, 5
      %v3256 = vsel %vm974, %v3251, %v3255
      %v3258 = vshrl.u32 %v3041, 16
      %v3260 = vrot.slane %v3258, 4
      %v3261 = vshll.u32 %v3041, 16
      %v3263 = vrot.slane %v3261, 5
      %v3264 = vor.u32 %v3260, %v3263
      %v3265 = vrot.slane %v3264, 4
      %v3267 = vshll.u32 %v3042, 16
      %v3269 = vrot.slane %v3267, 5
      %v3270 = vsel %vm974, %v3265, %v3269
      %v3271 = vshrl.u32 %v3042, 16
      %v3273 = vrot.slane %v3271, 4
      %v3274 = vor.u32 %v3273, %v3269
      %v3275 = vrot.slane %v3274, 4
      %v3277 = vshll.u32 %v3043, 16
      %v3279 = vrot.slane %v3277, 5
      %v3280 = vsel %vm974, %v3275, %v3279
      %v3282 = vshrl.u32 %v3044, 16
      %v3284 = vrot.slane %v3282, 4
      %v3285 = vshll.u32 %v3044, 16
      %v3287 = vrot.slane %v3285, 5
      %v3288 = vor.u32 %v3284, %v3287
      %v3289 = vrot.slane %v3288, 4
      %v3291 = vshll.u32 %v3045, 16
      %v3293 = vrot.slane %v3291, 5
      %v3294 = vsel %vm974, %v3289, %v3293
      %v3295 = vshrl.u32 %v3045, 16
      %v3297 = vrot.slane %v3295, 4
      %v3298 = vor.u32 %v3297, %v3293
      %v3299 = vrot.slane %v3298, 4
      %v3301 = vshll.u32 %v3046, 16
      %v3303 = vrot.slane %v3301, 5
      %v3304 = vsel %vm974, %v3299, %v3303
      %v3306 = vshrl.u32 %v3047, 16
      %v3308 = vrot.slane %v3306, 4
      %v3309 = vshll.u32 %v3047, 16
      %v3311 = vrot.slane %v3309, 5
      %v3312 = vor.u32 %v3308, %v3311
      %v3313 = vrot.slane %v3312, 4
      %v3315 = vshll.u32 %v3048, 16
      %v3317 = vrot.slane %v3315, 5
      %v3318 = vsel %vm974, %v3313, %v3317
      %v3319 = vshrl.u32 %v3048, 16
      %v3321 = vrot.slane %v3319, 4
      %v3322 = vor.u32 %v3321, %v3317
      %v3323 = vrot.slane %v3322, 4
      %v3325 = vshll.u32 %v3049, 16
      %v3327 = vrot.slane %v3325, 5
      %v3328 = vsel %vm974, %v3323, %v3327
      %v3330 = vshrl.u32 %v3050, 16
      %v3332 = vrot.slane %v3330, 4
      %v3333 = vshll.u32 %v3050, 16
      %v3335 = vrot.slane %v3333, 5
      %v3336 = vor.u32 %v3332, %v3335
      %v3337 = vrot.slane %v3336, 4
      %v3339 = vshll.u32 %v3051, 16
      %v3341 = vrot.slane %v3339, 5
      %v3342 = vsel %vm974, %v3337, %v3341
      %v3343 = vshrl.u32 %v3051, 16
      %v3345 = vrot.slane %v3343, 4
      %v3346 = vor.u32 %v3345, %v3341
      %v3347 = vrot.slane %v3346, 4
      %v3349 = vshll.u32 %v3052, 16
      %v3351 = vrot.slane %v3349, 5
      %v3352 = vsel %vm974, %v3347, %v3351
      %v3354 = vshrl.u32 %v3053, 16
      %v3356 = vrot.slane %v3354, 4
      %v3357 = vshll.u32 %v3053, 16
      %v3359 = vrot.slane %v3357, 5
      %v3360 = vor.u32 %v3356, %v3359
      %v3361 = vrot.slane %v3360, 4
      %v3363 = vshll.u32 %v3054, 16
      %v3365 = vrot.slane %v3363, 5
      %v3366 = vsel %vm974, %v3361, %v3365
      %v3367 = vshrl.u32 %v3054, 16
      %v3369 = vrot.slane %v3367, 4
      %v3370 = vor.u32 %v3369, %v3365
      %v3371 = vrot.slane %v3370, 4
      %v3373 = vshll.u32 %v3055, 16
      %v3375 = vrot.slane %v3373, 5
      %v3376 = vsel %vm974, %v3371, %v3375
      %v3378 = vshrl.u32 %v3056, 16
      %v3380 = vrot.slane %v3378, 4
      %v3381 = vshll.u32 %v3056, 16
      %v3383 = vrot.slane %v3381, 5
      %v3384 = vor.u32 %v3380, %v3383
      %v3385 = vrot.slane %v3384, 4
      %v3387 = vshll.u32 %v3057, 16
      %v3389 = vrot.slane %v3387, 5
      %v3390 = vsel %vm974, %v3385, %v3389
      %v3391 = vshrl.u32 %v3057, 16
      %v3393 = vrot.slane %v3391, 4
      %v3394 = vor.u32 %v3393, %v3389
      %v3395 = vrot.slane %v3394, 4
      %v3397 = vshll.u32 %v3058, 16
      %v3399 = vrot.slane %v3397, 5
      %v3400 = vsel %vm974, %v3395, %v3399
      %v3402 = vshrl.u32 %v3059, 16
      %v3404 = vrot.slane %v3402, 4
      %v3405 = vshll.u32 %v3059, 16
      %v3407 = vrot.slane %v3405, 5
      %v3408 = vor.u32 %v3404, %v3407
      %v3409 = vrot.slane %v3408, 4
      %v3411 = vshll.u32 %v3060, 16
      %v3413 = vrot.slane %v3411, 5
      %v3414 = vsel %vm974, %v3409, %v3413
      %v3415 = vshrl.u32 %v3060, 16
      %v3417 = vrot.slane %v3415, 4
      %v3418 = vor.u32 %v3417, %v3413
      %v3419 = vrot.slane %v3418, 4
      %v3421 = vshll.u32 %v3061, 16
      %v3423 = vrot.slane %v3421, 5
      %v3424 = vsel %vm974, %v3419, %v3423
      %v3426 = vshrl.u32 %v3062, 16
      %v3428 = vrot.slane %v3426, 4
      %v3429 = vshll.u32 %v3062, 16
      %v3431 = vrot.slane %v3429, 5
      %v3432 = vor.u32 %v3428, %v3431
      %v3433 = vrot.slane %v3432, 4
      %v3435 = vshll.u32 %v3063, 16
      %v3437 = vrot.slane %v3435, 5
      %v3438 = vsel %vm974, %v3433, %v3437
      %v3439 = vshrl.u32 %v3063, 16
      %v3441 = vrot.slane %v3439, 4
      %v3442 = vor.u32 %v3441, %v3437
      %v3443 = vrot.slane %v3442, 4
      %v3445 = vshll.u32 %v3064, 16
      %v3447 = vrot.slane %v3445, 5
      %v3448 = vsel %vm974, %v3443, %v3447
      %v3449 = vunpack.c.l.b16 %v3078
      %v3450 = vunpack.c.l.b16 %v3088
      %v3451 = vunpack.c.l.b16 %v3102
      %v3452 = vunpack.c.l.b16 %v3112
      %v3453 = vunpack.c.l.b16 %v3126
      %v3454 = vunpack.c.l.b16 %v3136
      %v3455 = vunpack.c.l.b16 %v3150
      %v3456 = vunpack.c.l.b16 %v3160
      %v3457 = vunpack.c.l.b16 %v3174
      %v3458 = vunpack.c.l.b16 %v3184
      %v3459 = vunpack.c.l.b16 %v3198
      %v3460 = vunpack.c.l.b16 %v3208
      %v3461 = vunpack.c.l.b16 %v3222
      %v3462 = vunpack.c.l.b16 %v3232
      %v3463 = vunpack.c.l.b16 %v3246
      %v3464 = vunpack.c.l.b16 %v3256
      %v3465 = vunpack.c.l.b16 %v3270
      %v3466 = vunpack.c.l.b16 %v3280
      %v3467 = vunpack.c.l.b16 %v3294
      %v3468 = vunpack.c.l.b16 %v3304
      %v3469 = vunpack.c.l.b16 %v3318
      %v3470 = vunpack.c.l.b16 %v3328
      %v3471 = vunpack.c.l.b16 %v3342
      %v3472 = vunpack.c.l.b16 %v3352
      %v3473 = vunpack.c.l.b16 %v3366
      %v3474 = vunpack.c.l.b16 %v3376
      %v3475 = vunpack.c.l.b16 %v3390
      %v3476 = vunpack.c.l.b16 %v3400
      %v3477 = vunpack.c.l.b16 %v3414
      %v3478 = vunpack.c.l.b16 %v3424
      %v3479 = vunpack.c.l.b16 %v3438
      %v3480 = vunpack.c.l.b16 %v3448
      %v3481 = vpack.c.b16 %v3450, %v3449
      %v3482 = vpack.c.b16 %v3452, %v3451
      %v3483 = vpack.c.b16 %v3454, %v3453
      %v3484 = vpack.c.b16 %v3456, %v3455
      %v3485 = vpack.c.b16 %v3458, %v3457
      %v3486 = vpack.c.b16 %v3460, %v3459
      %v3487 = vpack.c.b16 %v3462, %v3461
      %v3488 = vpack.c.b16 %v3464, %v3463
      %v3489 = vpack.c.b16 %v3466, %v3465
      %v3490 = vpack.c.b16 %v3468, %v3467
      %v3491 = vpack.c.b16 %v3470, %v3469
      %v3492 = vpack.c.b16 %v3472, %v3471
      %v3493 = vpack.c.b16 %v3474, %v3473
      %v3494 = vpack.c.b16 %v3476, %v3475
      %v3495 = vpack.c.b16 %v3478, %v3477
      %v3496 = vpack.c.b16 %v3480, %v3479
      %3497 = vrot.lane.b32.xlu0 %v3481, 56
      %v3498 = vpop.permute.xlu0 %3497
      %3499 = vrot.lane.b32.xlu0 %v3482, 56
      %v3500 = vpop.permute.xlu0 %3499
      %3501 = vrot.lane.b32.xlu0 %v3483, 56
      %v3502 = vpop.permute.xlu0 %3501
      %3503 = vrot.lane.b32.xlu0 %v3484, 56
      %v3504 = vpop.permute.xlu0 %3503
      %3505 = vrot.lane.b32.xlu0 %v3485, 56
      %v3506 = vpop.permute.xlu0 %3505
      %3507 = vrot.lane.b32.xlu0 %v3486, 56
      %v3508 = vpop.permute.xlu0 %3507
      %3509 = vrot.lane.b32.xlu0 %v3487, 56
      %v3510 = vpop.permute.xlu0 %3509
      %3511 = vrot.lane.b32.xlu0 %v3488, 56
      %v3512 = vpop.permute.xlu0 %3511
      %3513 = vrot.lane.b32.xlu0 %v3489, 56
      %v3514 = vpop.permute.xlu0 %3513
      %3515 = vrot.lane.b32.xlu0 %v3490, 56
      %v3516 = vpop.permute.xlu0 %3515
      %3517 = vrot.lane.b32.xlu0 %v3491, 56
      %v3518 = vpop.permute.xlu0 %3517
      %3519 = vrot.lane.b32.xlu0 %v3492, 56
      %v3520 = vpop.permute.xlu0 %3519
      %3521 = vrot.lane.b32.xlu0 %v3493, 56
      %v3522 = vpop.permute.xlu0 %3521
      %3523 = vrot.lane.b32.xlu0 %v3494, 56
      %v3524 = vpop.permute.xlu0 %3523
      %3525 = vrot.lane.b32.xlu0 %v3495, 56
      %v3526 = vpop.permute.xlu0 %3525
      %3527 = vrot.lane.b32.xlu0 %v3496, 56
      %v3528 = vpop.permute.xlu0 %3527
      %vm3545 = vcmask 523712
      %3546 = vst.msk [vmem:[#allocation3] sm:$0xff] %vm3545, %v3498
      %3547 = vst.msk [vmem:[#allocation3 + $0x8] sm:$0xff] %vm3545, %v3500
      %3548 = vst.msk [vmem:[#allocation3 + $0x10] sm:$0xff] %vm3545, %v3502
      %3549 = vst.msk [vmem:[#allocation3 + $0x18] sm:$0xff] %vm3545, %v3504
      %3550 = vst.msk [vmem:[#allocation3 + $0x20] sm:$0xff] %vm3545, %v3506
      %3551 = vst.msk [vmem:[#allocation3 + $0x28] sm:$0xff] %vm3545, %v3508
      %3552 = vst.msk [vmem:[#allocation3 + $0x30] sm:$0xff] %vm3545, %v3510
      %3553 = vst.msk [vmem:[#allocation3 + $0x38] sm:$0xff] %vm3545, %v3512
      %3554 = vst.msk [vmem:[#allocation3 + $0x40] sm:$0xff] %vm3545, %v3514
      %3555 = vst.msk [vmem:[#allocation3 + $0x48] sm:$0xff] %vm3545, %v3516
      %3556 = vst.msk [vmem:[#allocation3 + $0x50] sm:$0xff] %vm3545, %v3518
      %3557 = vst.msk [vmem:[#allocation3 + $0x58] sm:$0xff] %vm3545, %v3520
      %3558 = vst.msk [vmem:[#allocation3 + $0x60] sm:$0xff] %vm3545, %v3522
      %3559 = vst.msk [vmem:[#allocation3 + $0x68] sm:$0xff] %vm3545, %v3524
      %3560 = vst.msk [vmem:[#allocation3 + $0x70] sm:$0xff] %vm3545, %v3526
      %3561 = vst.msk [vmem:[#allocation3 + $0x78] sm:$0xff] %vm3545, %v3528
      %v3562 = vld [vmem:[%s2839] sm:$0xe]
      %v3563 = vld [vmem:[%s2839 + $0x4] sm:$0xf]
      %v3564 = vld [vmem:[%s2839 + $0x8] sm:$0x1]
      %v3565 = vld [vmem:[%s2839 + $0xc] sm:$0xe]
      %v3566 = vld [vmem:[%s2839 + $0x10] sm:$0xf]
      %v3567 = vld [vmem:[%s2839 + $0x14] sm:$0x1]
      %v3568 = vld [vmem:[%s2839 + $0x18] sm:$0xe]
      %v3569 = vld [vmem:[%s2839 + $0x1c] sm:$0xf]
      %v3570 = vld [vmem:[%s2839 + $0x20] sm:$0x1]
      %v3571 = vld [vmem:[%s2839 + $0x24] sm:$0xe]
      %v3572 = vld [vmem:[%s2839 + $0x28] sm:$0xf]
      %v3573 = vld [vmem:[%s2839 + $0x2c] sm:$0x1]
      %v3574 = vld [vmem:[%s2839 + $0x30] sm:$0xe]
      %v3575 = vld [vmem:[%s2839 + $0x34] sm:$0xf]
      %v3576 = vld [vmem:[%s2839 + $0x38] sm:$0x1]
      %v3577 = vld [vmem:[%s2839 + $0x3c] sm:$0xe]
      %v3578 = vld [vmem:[%s2839 + $0x40] sm:$0xf]
      %v3579 = vld [vmem:[%s2839 + $0x44] sm:$0x1]
      %v3580 = vld [vmem:[%s2839 + $0x48] sm:$0xe]
      %v3581 = vld [vmem:[%s2839 + $0x4c] sm:$0xf]
      %v3582 = vld [vmem:[%s2839 + $0x50] sm:$0x1]
      %v3583 = vld [vmem:[%s2839 + $0x54] sm:$0xe]
      %v3584 = vld [vmem:[%s2839 + $0x58] sm:$0xf]
      %v3585 = vld [vmem:[%s2839 + $0x5c] sm:$0x1]
      %v3586 = vld [vmem:[%s2839 + $0x60] sm:$0xe]
      %v3587 = vld [vmem:[%s2839 + $0x64] sm:$0xf]
      %v3588 = vld [vmem:[%s2839 + $0x68] sm:$0x1]
      %v3589 = vld [vmem:[%s2839 + $0x6c] sm:$0xe]
      %v3590 = vld [vmem:[%s2839 + $0x70] sm:$0xf]
      %v3591 = vld [vmem:[%s2839 + $0x74] sm:$0x1]
      %v3592 = vld [vmem:[%s2839 + $0x78] sm:$0xe]
      %v3593 = vld [vmem:[%s2839 + $0x7c] sm:$0xf]
      %v3594 = vld [vmem:[%s2839 + $0x80] sm:$0x1]
      %v3595 = vld [vmem:[%s2839 + $0x84] sm:$0xe]
      %v3596 = vld [vmem:[%s2839 + $0x88] sm:$0xf]
      %v3597 = vld [vmem:[%s2839 + $0x8c] sm:$0x1]
      %v3598 = vld [vmem:[%s2839 + $0x90] sm:$0xe]
      %v3599 = vld [vmem:[%s2839 + $0x94] sm:$0xf]
      %v3600 = vld [vmem:[%s2839 + $0x98] sm:$0x1]
      %v3601 = vld [vmem:[%s2839 + $0x9c] sm:$0xe]
      %v3602 = vld [vmem:[%s2839 + $0xa0] sm:$0xf]
      %v3603 = vld [vmem:[%s2839 + $0xa4] sm:$0x1]
      %v3604 = vld [vmem:[%s2839 + $0xa8] sm:$0xe]
      %v3605 = vld [vmem:[%s2839 + $0xac] sm:$0xf]
      %v3606 = vld [vmem:[%s2839 + $0xb0] sm:$0x1]
      %v3607 = vld [vmem:[%s2839 + $0xb4] sm:$0xe]
      %v3608 = vld [vmem:[%s2839 + $0xb8] sm:$0xf]
      %v3609 = vld [vmem:[%s2839 + $0xbc] sm:$0x1]
      %v3658 = vrot.slane %v3562, 5
      %v3659 = vrot.slane %v3658, 4
      %v3660 = vrot.slane %v3563, 5
      %v3661 = vsel %vm1570, %v3659, %v3660
      %v3662 = vrot.slane %v3660, 4
      %v3663 = vrot.slane %v3564, 5
      %v3664 = vsel %vm1570, %v3662, %v3663
      %v3665 = vrot.slane %v3565, 5
      %v3666 = vrot.slane %v3665, 4
      %v3667 = vrot.slane %v3566, 5
      %v3668 = vsel %vm1570, %v3666, %v3667
      %v3669 = vrot.slane %v3667, 4
      %v3670 = vrot.slane %v3567, 5
      %v3671 = vsel %vm1570, %v3669, %v3670
      %v3672 = vrot.slane %v3568, 5
      %v3673 = vrot.slane %v3672, 4
      %v3674 = vrot.slane %v3569, 5
      %v3675 = vsel %vm1570, %v3673, %v3674
      %v3676 = vrot.slane %v3674, 4
      %v3677 = vrot.slane %v3570, 5
      %v3678 = vsel %vm1570, %v3676, %v3677
      %v3679 = vrot.slane %v3571, 5
      %v3680 = vrot.slane %v3679, 4
      %v3681 = vrot.slane %v3572, 5
      %v3682 = vsel %vm1570, %v3680, %v3681
      %v3683 = vrot.slane %v3681, 4
      %v3684 = vrot.slane %v3573, 5
      %v3685 = vsel %vm1570, %v3683, %v3684
      %v3686 = vrot.slane %v3574, 5
      %v3687 = vrot.slane %v3686, 4
      %v3688 = vrot.slane %v3575, 5
      %v3689 = vsel %vm1570, %v3687, %v3688
      %v3690 = vrot.slane %v3688, 4
      %v3691 = vrot.slane %v3576, 5
      %v3692 = vsel %vm1570, %v3690, %v3691
      %v3693 = vrot.slane %v3577, 5
      %v3694 = vrot.slane %v3693, 4
      %v3695 = vrot.slane %v3578, 5
      %v3696 = vsel %vm1570, %v3694, %v3695
      %v3697 = vrot.slane %v3695, 4
      %v3698 = vrot.slane %v3579, 5
      %v3699 = vsel %vm1570, %v3697, %v3698
      %v3700 = vrot.slane %v3580, 5
      %v3701 = vrot.slane %v3700, 4
      %v3702 = vrot.slane %v3581, 5
      %v3703 = vsel %vm1570, %v3701, %v3702
      %v3704 = vrot.slane %v3702, 4
      %v3705 = vrot.slane %v3582, 5
      %v3706 = vsel %vm1570, %v3704, %v3705
      %v3707 = vrot.slane %v3583, 5
      %v3708 = vrot.slane %v3707, 4
      %v3709 = vrot.slane %v3584, 5
      %v3710 = vsel %vm1570, %v3708, %v3709
      %v3711 = vrot.slane %v3709, 4
      %v3712 = vrot.slane %v3585, 5
      %v3713 = vsel %vm1570, %v3711, %v3712
      %v3714 = vrot.slane %v3586, 5
      %v3715 = vrot.slane %v3714, 4
      %v3716 = vrot.slane %v3587, 5
      %v3717 = vsel %vm1570, %v3715, %v3716
      %v3718 = vrot.slane %v3716, 4
      %v3719 = vrot.slane %v3588, 5
      %v3720 = vsel %vm1570, %v3718, %v3719
      %v3721 = vrot.slane %v3589, 5
      %v3722 = vrot.slane %v3721, 4
      %v3723 = vrot.slane %v3590, 5
      %v3724 = vsel %vm1570, %v3722, %v3723
      %v3725 = vrot.slane %v3723, 4
      %v3726 = vrot.slane %v3591, 5
      %v3727 = vsel %vm1570, %v3725, %v3726
      %v3728 = vrot.slane %v3592, 5
      %v3729 = vrot.slane %v3728, 4
      %v3730 = vrot.slane %v3593, 5
      %v3731 = vsel %vm1570, %v3729, %v3730
      %v3732 = vrot.slane %v3730, 4
      %v3733 = vrot.slane %v3594, 5
      %v3734 = vsel %vm1570, %v3732, %v3733
      %v3735 = vrot.slane %v3595, 5
      %v3736 = vrot.slane %v3735, 4
      %v3737 = vrot.slane %v3596, 5
      %v3738 = vsel %vm1570, %v3736, %v3737
      %v3739 = vrot.slane %v3737, 4
      %v3740 = vrot.slane %v3597, 5
      %v3741 = vsel %vm1570, %v3739, %v3740
      %v3742 = vrot.slane %v3598, 5
      %v3743 = vrot.slane %v3742, 4
      %v3744 = vrot.slane %v3599, 5
      %v3745 = vsel %vm1570, %v3743, %v3744
      %v3746 = vrot.slane %v3744, 4
      %v3747 = vrot.slane %v3600, 5
      %v3748 = vsel %vm1570, %v3746, %v3747
      %v3749 = vrot.slane %v3601, 5
      %v3750 = vrot.slane %v3749, 4
      %v3751 = vrot.slane %v3602, 5
      %v3752 = vsel %vm1570, %v3750, %v3751
      %v3753 = vrot.slane %v3751, 4
      %v3754 = vrot.slane %v3603, 5
      %v3755 = vsel %vm1570, %v3753, %v3754
      %v3756 = vrot.slane %v3604, 5
      %v3757 = vrot.slane %v3756, 4
      %v3758 = vrot.slane %v3605, 5
      %v3759 = vsel %vm1570, %v3757, %v3758
      %v3760 = vrot.slane %v3758, 4
      %v3761 = vrot.slane %v3606, 5
      %v3762 = vsel %vm1570, %v3760, %v3761
      %v3763 = vrot.slane %v3607, 5
      %v3764 = vrot.slane %v3763, 4
      %v3765 = vrot.slane %v3608, 5
      %v3766 = vsel %vm1570, %v3764, %v3765
      %v3767 = vrot.slane %v3765, 4
      %v3768 = vrot.slane %v3609, 5
      %v3769 = vsel %vm1570, %v3767, %v3768
      %v3770 = vunpack.c.l.b16 %v3661
      %v3771 = vunpack.c.l.b16 %v3664
      %v3772 = vunpack.c.l.b16 %v3668
      %v3773 = vunpack.c.l.b16 %v3671
      %v3774 = vunpack.c.l.b16 %v3675
      %v3775 = vunpack.c.l.b16 %v3678
      %v3776 = vunpack.c.l.b16 %v3682
      %v3777 = vunpack.c.l.b16 %v3685
      %v3778 = vunpack.c.l.b16 %v3689
      %v3779 = vunpack.c.l.b16 %v3692
      %v3780 = vunpack.c.l.b16 %v3696
      %v3781 = vunpack.c.l.b16 %v3699
      %v3782 = vunpack.c.l.b16 %v3703
      %v3783 = vunpack.c.l.b16 %v3706
      %v3784 = vunpack.c.l.b16 %v3710
      %v3785 = vunpack.c.l.b16 %v3713
      %v3786 = vunpack.c.l.b16 %v3717
      %v3787 = vunpack.c.l.b16 %v3720
      %v3788 = vunpack.c.l.b16 %v3724
      %v3789 = vunpack.c.l.b16 %v3727
      %v3790 = vunpack.c.l.b16 %v3731
      %v3791 = vunpack.c.l.b16 %v3734
      %v3792 = vunpack.c.l.b16 %v3738
      %v3793 = vunpack.c.l.b16 %v3741
      %v3794 = vunpack.c.l.b16 %v3745
      %v3795 = vunpack.c.l.b16 %v3748
      %v3796 = vunpack.c.l.b16 %v3752
      %v3797 = vunpack.c.l.b16 %v3755
      %v3798 = vunpack.c.l.b16 %v3759
      %v3799 = vunpack.c.l.b16 %v3762
      %v3800 = vunpack.c.l.b16 %v3766
      %v3801 = vunpack.c.l.b16 %v3769
      %v3802 = vpack.c.b16 %v3771, %v3770
      %v3803 = vpack.c.b16 %v3773, %v3772
      %v3804 = vpack.c.b16 %v3775, %v3774
      %v3805 = vpack.c.b16 %v3777, %v3776
      %v3806 = vpack.c.b16 %v3779, %v3778
      %v3807 = vpack.c.b16 %v3781, %v3780
      %v3808 = vpack.c.b16 %v3783, %v3782
      %v3809 = vpack.c.b16 %v3785, %v3784
      %v3810 = vpack.c.b16 %v3787, %v3786
      %v3811 = vpack.c.b16 %v3789, %v3788
      %v3812 = vpack.c.b16 %v3791, %v3790
      %v3813 = vpack.c.b16 %v3793, %v3792
      %v3814 = vpack.c.b16 %v3795, %v3794
      %v3815 = vpack.c.b16 %v3797, %v3796
      %v3816 = vpack.c.b16 %v3799, %v3798
      %v3817 = vpack.c.b16 %v3801, %v3800
      %3818 = vrot.lane.b32.xlu0 %v3802, 64
      %v3819 = vpop.permute.xlu0 %3818
      %3820 = vrot.lane.b32.xlu0 %v3803, 64
      %v3821 = vpop.permute.xlu0 %3820
      %3822 = vrot.lane.b32.xlu0 %v3804, 64
      %v3823 = vpop.permute.xlu0 %3822
      %3824 = vrot.lane.b32.xlu0 %v3805, 64
      %v3825 = vpop.permute.xlu0 %3824
      %3826 = vrot.lane.b32.xlu0 %v3806, 64
      %v3827 = vpop.permute.xlu0 %3826
      %3828 = vrot.lane.b32.xlu0 %v3807, 64
      %v3829 = vpop.permute.xlu0 %3828
      %3830 = vrot.lane.b32.xlu0 %v3808, 64
      %v3831 = vpop.permute.xlu0 %3830
      %3832 = vrot.lane.b32.xlu0 %v3809, 64
      %v3833 = vpop.permute.xlu0 %3832
      %3834 = vrot.lane.b32.xlu0 %v3810, 64
      %v3835 = vpop.permute.xlu0 %3834
      %3836 = vrot.lane.b32.xlu0 %v3811, 64
      %v3837 = vpop.permute.xlu0 %3836
      %3838 = vrot.lane.b32.xlu0 %v3812, 64
      %v3839 = vpop.permute.xlu0 %3838
      %3840 = vrot.lane.b32.xlu0 %v3813, 64
      %v3841 = vpop.permute.xlu0 %3840
      %3842 = vrot.lane.b32.xlu0 %v3814, 64
      %v3843 = vpop.permute.xlu0 %3842
      %3844 = vrot.lane.b32.xlu0 %v3815, 64
      %v3845 = vpop.permute.xlu0 %3844
      %3846 = vrot.lane.b32.xlu0 %v3816, 64
      %v3847 = vpop.permute.xlu0 %3846
      %3848 = vrot.lane.b32.xlu0 %v3817, 64
      %v3849 = vpop.permute.xlu0 %3848
      %vm3866 = vcmask 589312
      %3867 = vst.msk [vmem:[#allocation3] sm:$0xff] %vm3866, %v3819
      %3868 = vst.msk [vmem:[#allocation3 + $0x8] sm:$0xff] %vm3866, %v3821
      %3869 = vst.msk [vmem:[#allocation3 + $0x10] sm:$0xff] %vm3866, %v3823
      %3870 = vst.msk [vmem:[#allocation3 + $0x18] sm:$0xff] %vm3866, %v3825
      %3871 = vst.msk [vmem:[#allocation3 + $0x20] sm:$0xff] %vm3866, %v3827
      %3872 = vst.msk [vmem:[#allocation3 + $0x28] sm:$0xff] %vm3866, %v3829
      %3873 = vst.msk [vmem:[#allocation3 + $0x30] sm:$0xff] %vm3866, %v3831
      %3874 = vst.msk [vmem:[#allocation3 + $0x38] sm:$0xff] %vm3866, %v3833
      %3875 = vst.msk [vmem:[#allocation3 + $0x40] sm:$0xff] %vm3866, %v3835
      %3876 = vst.msk [vmem:[#allocation3 + $0x48] sm:$0xff] %vm3866, %v3837
      %3877 = vst.msk [vmem:[#allocation3 + $0x50] sm:$0xff] %vm3866, %v3839
      %3878 = vst.msk [vmem:[#allocation3 + $0x58] sm:$0xff] %vm3866, %v3841
      %3879 = vst.msk [vmem:[#allocation3 + $0x60] sm:$0xff] %vm3866, %v3843
      %3880 = vst.msk [vmem:[#allocation3 + $0x68] sm:$0xff] %vm3866, %v3845
      %3881 = vst.msk [vmem:[#allocation3 + $0x70] sm:$0xff] %vm3866, %v3847
      %3882 = vst.msk [vmem:[#allocation3 + $0x78] sm:$0xff] %vm3866, %v3849
      %v3883 = vld [vmem:[#allocation3] sm:$0xff]
      %v3884 = vld [vmem:[#allocation3 + $0x8] sm:$0xff]
      %v3885 = vld [vmem:[#allocation3 + $0x10] sm:$0xff]
      %v3886 = vld [vmem:[#allocation3 + $0x18] sm:$0xff]
      %v3887 = vld [vmem:[#allocation3 + $0x20] sm:$0xff]
      %v3888 = vld [vmem:[#allocation3 + $0x28] sm:$0xff]
      %v3889 = vld [vmem:[#allocation3 + $0x30] sm:$0xff]
      %v3890 = vld [vmem:[#allocation3 + $0x38] sm:$0xff]
      %v3891 = vld [vmem:[#allocation3 + $0x40] sm:$0xff]
      %v3892 = vld [vmem:[#allocation3 + $0x48] sm:$0xff]
      %v3893 = vld [vmem:[#allocation3 + $0x50] sm:$0xff]
      %v3894 = vld [vmem:[#allocation3 + $0x58] sm:$0xff]
      %v3895 = vld [vmem:[#allocation3 + $0x60] sm:$0xff]
      %v3896 = vld [vmem:[#allocation3 + $0x68] sm:$0xff]
      %v3897 = vld [vmem:[#allocation3 + $0x70] sm:$0xff]
      %v3898 = vld [vmem:[#allocation3 + $0x78] sm:$0xff]
      %v3899 = vld [vmem:[%s1] sm:$0xf]
      %v3900 = vld [vmem:[%s1 + $0x4] sm:$0xf]
      %v3901 = vld [vmem:[%s1 + $0x8] sm:$0xf]
      %v3902 = vld [vmem:[%s1 + $0xc] sm:$0xf]
      %v3903 = vld [vmem:[%s1 + $0x10] sm:$0xf]
      %v3904 = vld [vmem:[%s1 + $0x14] sm:$0xf]
      %v3905 = vld [vmem:[%s1 + $0x18] sm:$0xf]
      %v3906 = vld [vmem:[%s1 + $0x1c] sm:$0xf]
      %v3907 = vld [vmem:[%s1 + $0x20] sm:$0xf]
      %v3908 = vld [vmem:[%s1 + $0x24] sm:$0xf]
      %v3909 = vld [vmem:[%s1 + $0x28] sm:$0xf]
      %v3910 = vld [vmem:[%s1 + $0x2c] sm:$0xf]
      %v3911 = vld [vmem:[%s1 + $0x30] sm:$0xf]
      %v3912 = vld [vmem:[%s1 + $0x34] sm:$0xf]
      %v3913 = vld [vmem:[%s1 + $0x38] sm:$0xf]
      %v3914 = vld [vmem:[%s1 + $0x3c] sm:$0xf]
      %v3931 = vunpack.c.l.b16 %v3899
      %v3932 = vunpack.c.l.b16 %v3900
      %v3933 = vunpack.c.l.b16 %v3901
      %v3934 = vunpack.c.l.b16 %v3902
      %v3935 = vunpack.c.l.b16 %v3903
      %v3936 = vunpack.c.l.b16 %v3904
      %v3937 = vunpack.c.l.b16 %v3905
      %v3938 = vunpack.c.l.b16 %v3906
      %v3939 = vunpack.c.l.b16 %v3907
      %v3940 = vunpack.c.l.b16 %v3908
      %v3941 = vunpack.c.l.b16 %v3909
      %v3942 = vunpack.c.l.b16 %v3910
      %v3943 = vunpack.c.l.b16 %v3911
      %v3944 = vunpack.c.l.b16 %v3912
      %v3945 = vunpack.c.l.b16 %v3913
      %v3946 = vunpack.c.l.b16 %v3914
      %v3947 = vpack.c.b16 %v3932, %v3931
      %v3948 = vpack.c.b16 %v3934, %v3933
      %v3949 = vpack.c.b16 %v3936, %v3935
      %v3950 = vpack.c.b16 %v3938, %v3937
      %v3951 = vpack.c.b16 %v3940, %v3939
      %v3952 = vpack.c.b16 %v3942, %v3941
      %v3953 = vpack.c.b16 %v3944, %v3943
      %v3954 = vpack.c.b16 %v3946, %v3945
      %3963 = vmatprep.subr.bf16.mxu0 0
      %3964 = vmatpush1.bf16.msra.mxu0 %v3947
      %3965 = vmatprep.subr.bf16.mxu0 0
      %3966 = vmatpush1.bf16.msra.mxu0 %v3948
      %3967 = vmatprep.subr.bf16.mxu0 0
      %3968 = vmatpush1.bf16.msra.mxu0 %v3949
      %3969 = vmatprep.subr.bf16.mxu0 0
      %3970 = vmatpush1.bf16.msra.mxu0 %v3950
      %3971 = vmatprep.subr.bf16.mxu0 0
      %3972 = vmatpush1.bf16.msra.mxu0 %v3951
      %3973 = vmatprep.subr.bf16.mxu0 0
      %3974 = vmatpush1.bf16.msra.mxu0 %v3952
      %3975 = vmatprep.subr.bf16.mxu0 0
      %3976 = vmatpush1.bf16.msra.mxu0 %v3953
      %3977 = vmatprep.subr.bf16.mxu0 0
      %3978 = vmatpush1.bf16.msra.mxu0 %v3954
      %3979 = vmatprep.subr.bf16.mxu0 0
      %3980 = vmatpush1.bf16.msra.mxu0 0
      %3981 = vmatprep.subr.bf16.mxu0 0
      %3982 = vmatpush1.bf16.msra.mxu0 0
      %3983 = vmatprep.subr.bf16.mxu0 0
      %3984 = vmatpush1.bf16.msra.mxu0 0
      %3985 = vmatprep.subr.bf16.mxu0 0
      %3986 = vmatpush1.bf16.msra.mxu0 0
      %3987 = vmatprep.subr.bf16.mxu0 0
      %3988 = vmatpush1.bf16.msra.mxu0 0
      %3989 = vmatprep.subr.bf16.mxu0 0
      %3990 = vmatpush1.bf16.msra.mxu0 0
      %3991 = vmatprep.subr.bf16.mxu0 0
      %3992 = vmatpush1.bf16.msra.mxu0 0
      %3993 = vmatprep.subr.bf16.mxu0 0
      %3994 = vmatpush1.bf16.msra.mxu0 0
      %3995 = vmatprep.mubr.bf16.mxu0 0
      %3996 = vmatmul.mubr.bf16.gmra.mrb[0].mxu0 %v3883
      %v3997 = vpop.f32.mrb[0].mxu0
      %v3998 = vadd.f32 0.0, %v3997
      %v3999 = vpop.f32.mrb[0].mxu0
      %v4000 = vpop.f32.mrb[0].mxu0
      %v4001 = vadd.f32 0.0, %v4000
      %v4002 = vpop.f32.mrb[0].mxu0
      %4003 = vmatprep.mubr.bf16.mxu0 0
      %4004 = vmatmul.mubr.bf16.gmra.mrb[0].mxu0 %v3884
      %v4005 = vpop.f32.mrb[0].mxu0
      %v4006 = vadd.f32 0.0, %v4005
      %v4007 = vpop.f32.mrb[0].mxu0
      %v4008 = vpop.f32.mrb[0].mxu0
      %v4009 = vadd.f32 0.0, %v4008
      %v4010 = vpop.f32.mrb[0].mxu0
      %4011 = vmatprep.mubr.bf16.mxu0 0
      %4012 = vmatmul.mubr.bf16.gmra.mrb[0].mxu0 %v3885
      %v4013 = vpop.f32.mrb[0].mxu0
      %v4014 = vadd.f32 0.0, %v4013
      %v4015 = vpop.f32.mrb[0].mxu0
      %v4016 = vpop.f32.mrb[0].mxu0
      %v4017 = vadd.f32 0.0, %v4016
      %v4018 = vpop.f32.mrb[0].mxu0
      %4019 = vmatprep.mubr.bf16.mxu0 0
      %4020 = vmatmul.mubr.bf16.gmra.mrb[0].mxu0 %v3886
      %v4021 = vpop.f32.mrb[0].mxu0
      %v4022 = vadd.f32 0.0, %v4021
      %v4023 = vpop.f32.mrb[0].mxu0
      %v4024 = vpop.f32.mrb[0].mxu0
      %v4025 = vadd.f32 0.0, %v4024
      %v4026 = vpop.f32.mrb[0].mxu0
      %4027 = vmatprep.mubr.bf16.mxu0 0
      %4028 = vmatmul.mubr.bf16.gmra.mrb[0].mxu0 %v3887
      %v4029 = vpop.f32.mrb[0].mxu0
      %v4030 = vadd.f32 0.0, %v4029
      %v4031 = vpop.f32.mrb[0].mxu0
      %v4032 = vpop.f32.mrb[0].mxu0
      %v4033 = vadd.f32 0.0, %v4032
      %v4034 = vpop.f32.mrb[0].mxu0
      %4035 = vmatprep.mubr.bf16.mxu0 0
      %4036 = vmatmul.mubr.bf16.gmra.mrb[0].mxu0 %v3888
      %v4037 = vpop.f32.mrb[0].mxu0
      %v4038 = vadd.f32 0.0, %v4037
      %v4039 = vpop.f32.mrb[0].mxu0
      %v4040 = vpop.f32.mrb[0].mxu0
      %v4041 = vadd.f32 0.0, %v4040
      %v4042 = vpop.f32.mrb[0].mxu0
      %4043 = vmatprep.mubr.bf16.mxu0 0
      %4044 = vmatmul.mubr.bf16.gmra.mrb[0].mxu0 %v3889
      %v4045 = vpop.f32.mrb[0].mxu0
      %v4046 = vadd.f32 0.0, %v4045
      %v4047 = vpop.f32.mrb[0].mxu0
      %v4048 = vpop.f32.mrb[0].mxu0
      %v4049 = vadd.f32 0.0, %v4048
      %v4050 = vpop.f32.mrb[0].mxu0
      %4051 = vmatprep.mubr.bf16.mxu0 0
      %4052 = vmatmul.mubr.bf16.gmra.mrb[0].mxu0 %v3890
      %v4053 = vpop.f32.mrb[0].mxu0
      %v4054 = vadd.f32 0.0, %v4053
      %v4055 = vpop.f32.mrb[0].mxu0
      %v4056 = vpop.f32.mrb[0].mxu0
      %v4057 = vadd.f32 0.0, %v4056
      %v4058 = vpop.f32.mrb[0].mxu0
      %4059 = vmatprep.mubr.bf16.mxu0 0
      %4060 = vmatmul.mubr.bf16.gmra.mrb[0].mxu0 %v3891
      %v4061 = vpop.f32.mrb[0].mxu0
      %v4062 = vadd.f32 0.0, %v4061
      %v4063 = vpop.f32.mrb[0].mxu0
      %v4064 = vpop.f32.mrb[0].mxu0
      %v4065 = vadd.f32 0.0, %v4064
      %v4066 = vpop.f32.mrb[0].mxu0
      %4067 = vmatprep.mubr.bf16.mxu0 0
      %4068 = vmatmul.mubr.bf16.gmra.mrb[0].mxu0 %v3892
      %v4069 = vpop.f32.mrb[0].mxu0
      %v4070 = vadd.f32 0.0, %v4069
      %v4071 = vpop.f32.mrb[0].mxu0
      %v4072 = vpop.f32.mrb[0].mxu0
      %v4073 = vadd.f32 0.0, %v4072
      %v4074 = vpop.f32.mrb[0].mxu0
      %4075 = vmatprep.mubr.bf16.mxu0 0
      %4076 = vmatmul.mubr.bf16.gmra.mrb[0].mxu0 %v3893
      %v4077 = vpop.f32.mrb[0].mxu0
      %v4078 = vadd.f32 0.0, %v4077
      %v4079 = vpop.f32.mrb[0].mxu0
      %v4080 = vpop.f32.mrb[0].mxu0
      %v4081 = vadd.f32 0.0, %v4080
      %v4082 = vpop.f32.mrb[0].mxu0
      %4083 = vmatprep.mubr.bf16.mxu0 0
      %4084 = vmatmul.mubr.bf16.gmra.mrb[0].mxu0 %v3894
      %v4085 = vpop.f32.mrb[0].mxu0
      %v4086 = vadd.f32 0.0, %v4085
      %v4087 = vpop.f32.mrb[0].mxu0
      %v4088 = vpop.f32.mrb[0].mxu0
      %v4089 = vadd.f32 0.0, %v4088
      %v4090 = vpop.f32.mrb[0].mxu0
      %4091 = vmatprep.mubr.bf16.mxu0 0
      %4092 = vmatmul.mubr.bf16.gmra.mrb[0].mxu0 %v3895
      %v4093 = vpop.f32.mrb[0].mxu0
      %v4094 = vadd.f32 0.0, %v4093
      %v4095 = vpop.f32.mrb[0].mxu0
      %v4096 = vpop.f32.mrb[0].mxu0
      %v4097 = vadd.f32 0.0, %v4096
      %v4098 = vpop.f32.mrb[0].mxu0
      %4099 = vmatprep.mubr.bf16.mxu0 0
      %4100 = vmatmul.mubr.bf16.gmra.mrb[0].mxu0 %v3896
      %v4101 = vpop.f32.mrb[0].mxu0
      %v4102 = vadd.f32 0.0, %v4101
      %v4103 = vpop.f32.mrb[0].mxu0
      %v4104 = vpop.f32.mrb[0].mxu0
      %v4105 = vadd.f32 0.0, %v4104
      %v4106 = vpop.f32.mrb[0].mxu0
      %4107 = vmatprep.mubr.bf16.mxu0 0
      %4108 = vmatmul.mubr.bf16.gmra.mrb[0].mxu0 %v3897
      %v4109 = vpop.f32.mrb[0].mxu0
      %v4110 = vadd.f32 0.0, %v4109
      %v4111 = vpop.f32.mrb[0].mxu0
      %v4112 = vpop.f32.mrb[0].mxu0
      %v4113 = vadd.f32 0.0, %v4112
      %v4114 = vpop.f32.mrb[0].mxu0
      %4115 = vmatprep.mubr.bf16.mxu0 0
      %4116 = vmatmul.mubr.bf16.gmra.mrb[0].mxu0 %v3898
      %v4117 = vpop.f32.mrb[0].mxu0
      %v4118 = vadd.f32 0.0, %v4117
      %v4119 = vpop.f32.mrb[0].mxu0
      %v4120 = vpop.f32.mrb[0].mxu0
      %v4121 = vadd.f32 0.0, %v4120
      %v4122 = vpop.f32.mrb[0].mxu0
      %4123 = vdwg.mxu0
      %v4124 = vpack.c.bf16 %v4001, %v3998
      %v4125 = vpack.c.bf16 %v4009, %v4006
      %v4126 = vpack.c.bf16 %v4017, %v4014
      %v4127 = vpack.c.bf16 %v4025, %v4022
      %v4128 = vpack.c.bf16 %v4033, %v4030
      %v4129 = vpack.c.bf16 %v4041, %v4038
      %v4130 = vpack.c.bf16 %v4049, %v4046
      %v4131 = vpack.c.bf16 %v4057, %v4054
      %v4132 = vpack.c.bf16 %v4065, %v4062
      %v4133 = vpack.c.bf16 %v4073, %v4070
      %v4134 = vpack.c.bf16 %v4081, %v4078
      %v4135 = vpack.c.bf16 %v4089, %v4086
      %v4136 = vpack.c.bf16 %v4097, %v4094
      %v4137 = vpack.c.bf16 %v4105, %v4102
      %v4138 = vpack.c.bf16 %v4113, %v4110
      %v4139 = vpack.c.bf16 %v4121, %v4118
      %v4156 = vunpack.c.l.b16 %v4124
      %v4157 = vunpack.c.h.b16 %v4124
      %v4158 = vunpack.c.l.b16 %v4125
      %v4159 = vunpack.c.h.b16 %v4125
      %v4160 = vunpack.c.l.b16 %v4126
      %v4161 = vunpack.c.h.b16 %v4126
      %v4162 = vunpack.c.l.b16 %v4127
      %v4163 = vunpack.c.h.b16 %v4127
      %v4164 = vunpack.c.l.b16 %v4128
      %v4165 = vunpack.c.h.b16 %v4128
      %v4166 = vunpack.c.l.b16 %v4129
      %v4167 = vunpack.c.h.b16 %v4129
      %v4168 = vunpack.c.l.b16 %v4130
      %v4169 = vunpack.c.h.b16 %v4130
      %v4170 = vunpack.c.l.b16 %v4131
      %v4171 = vunpack.c.h.b16 %v4131
      %v4172 = vunpack.c.l.b16 %v4132
      %v4173 = vunpack.c.h.b16 %v4132
      %v4174 = vunpack.c.l.b16 %v4133
      %v4175 = vunpack.c.h.b16 %v4133
      %v4176 = vunpack.c.l.b16 %v4134
      %v4177 = vunpack.c.h.b16 %v4134
      %v4178 = vunpack.c.l.b16 %v4135
      %v4179 = vunpack.c.h.b16 %v4135
      %v4180 = vunpack.c.l.b16 %v4136
      %v4181 = vunpack.c.h.b16 %v4136
      %v4182 = vunpack.c.l.b16 %v4137
      %v4183 = vunpack.c.h.b16 %v4137
      %v4184 = vunpack.c.l.b16 %v4138
      %v4185 = vunpack.c.h.b16 %v4138
      %v4186 = vunpack.c.l.b16 %v4139
      %v4187 = vunpack.c.h.b16 %v4139
      %v4188 = vpack.c.b16 %v4156, %v4156
      %v4189 = vpack.c.b16 %v4157, %v4157
      %v4190 = vpack.c.b16 %v4158, %v4158
      %v4191 = vpack.c.b16 %v4159, %v4159
      %v4192 = vpack.c.b16 %v4160, %v4160
      %v4193 = vpack.c.b16 %v4161, %v4161
      %v4194 = vpack.c.b16 %v4162, %v4162
      %v4195 = vpack.c.b16 %v4163, %v4163
      %v4196 = vpack.c.b16 %v4164, %v4164
      %v4197 = vpack.c.b16 %v4165, %v4165
      %v4198 = vpack.c.b16 %v4166, %v4166
      %v4199 = vpack.c.b16 %v4167, %v4167
      %v4200 = vpack.c.b16 %v4168, %v4168
      %v4201 = vpack.c.b16 %v4169, %v4169
      %v4202 = vpack.c.b16 %v4170, %v4170
      %v4203 = vpack.c.b16 %v4171, %v4171
      %v4204 = vpack.c.b16 %v4172, %v4172
      %v4205 = vpack.c.b16 %v4173, %v4173
      %v4206 = vpack.c.b16 %v4174, %v4174
      %v4207 = vpack.c.b16 %v4175, %v4175
      %v4208 = vpack.c.b16 %v4176, %v4176
      %v4209 = vpack.c.b16 %v4177, %v4177
      %v4210 = vpack.c.b16 %v4178, %v4178
      %v4211 = vpack.c.b16 %v4179, %v4179
      %v4212 = vpack.c.b16 %v4180, %v4180
      %v4213 = vpack.c.b16 %v4181, %v4181
      %v4214 = vpack.c.b16 %v4182, %v4182
      %v4215 = vpack.c.b16 %v4183, %v4183
      %v4216 = vpack.c.b16 %v4184, %v4184
      %v4217 = vpack.c.b16 %v4185, %v4185
      %v4218 = vpack.c.b16 %v4186, %v4186
      %v4219 = vpack.c.b16 %v4187, %v4187
      %4252 = vst [vmem:[%s177] sm:$0xf] %v4188
      %4253 = vst [vmem:[%s177 + $0x4] sm:$0xf] %v4189
      %4254 = vst [vmem:[%s177 + $0x8] sm:$0xf] %v4190
      %4255 = vst [vmem:[%s177 + $0xc] sm:$0xf] %v4191
      %4256 = vst [vmem:[%s177 + $0x10] sm:$0xf] %v4192
      %4257 = vst [vmem:[%s177 + $0x14] sm:$0xf] %v4193
      %4258 = vst [vmem:[%s177 + $0x18] sm:$0xf] %v4194
      %4259 = vst [vmem:[%s177 + $0x1c] sm:$0xf] %v4195
      %4260 = vst [vmem:[%s177 + $0x20] sm:$0xf] %v4196
      %4261 = vst [vmem:[%s177 + $0x24] sm:$0xf] %v4197
      %4262 = vst [vmem:[%s177 + $0x28] sm:$0xf] %v4198
      %4263 = vst [vmem:[%s177 + $0x2c] sm:$0xf] %v4199
      %4264 = vst [vmem:[%s177 + $0x30] sm:$0xf] %v4200
      %4265 = vst [vmem:[%s177 + $0x34] sm:$0xf] %v4201
      %4266 = vst [vmem:[%s177 + $0x38] sm:$0xf] %v4202
      %4267 = vst [vmem:[%s177 + $0x3c] sm:$0xf] %v4203
      %4268 = vst [vmem:[%s177 + $0x40] sm:$0xf] %v4204
      %4269 = vst [vmem:[%s177 + $0x44] sm:$0xf] %v4205
      %4270 = vst [vmem:[%s177 + $0x48] sm:$0xf] %v4206
      %4271 = vst [vmem:[%s177 + $0x4c] sm:$0xf] %v4207
      %4272 = vst [vmem:[%s177 + $0x50] sm:$0xf] %v4208
      %4273 = vst [vmem:[%s177 + $0x54] sm:$0xf] %v4209
      %4274 = vst [vmem:[%s177 + $0x58] sm:$0xf] %v4210
      %4275 = vst [vmem:[%s177 + $0x5c] sm:$0xf] %v4211
      %4276 = vst [vmem:[%s177 + $0x60] sm:$0xf] %v4212
      %4277 = vst [vmem:[%s177 + $0x64] sm:$0xf] %v4213
      %4278 = vst [vmem:[%s177 + $0x68] sm:$0xf] %v4214
      %4279 = vst [vmem:[%s177 + $0x6c] sm:$0xf] %v4215
      %4280 = vst [vmem:[%s177 + $0x70] sm:$0xf] %v4216
      %4281 = vst [vmem:[%s177 + $0x74] sm:$0xf] %v4217
      %4282 = vst [vmem:[%s177 + $0x78] sm:$0xf] %v4218
      %4283 = vst [vmem:[%s177 + $0x7c] sm:$0xf] %v4219
      %v4284 = vadd.f32 %v3998, %v4001
      %v4285 = vadd.f32 %v4284, %v4006
      %v4286 = vadd.f32 %v4285, %v4009
      %v4287 = vadd.f32 %v4286, %v4014
      %v4288 = vadd.f32 %v4287, %v4017
      %v4289 = vadd.f32 %v4288, %v4022
      %v4290 = vadd.f32 %v4289, %v4025
      %v4291 = vadd.f32 %v4290, %v4030
      %v4292 = vadd.f32 %v4291, %v4033
      %v4293 = vadd.f32 %v4292, %v4038
      %v4294 = vadd.f32 %v4293, %v4041
      %v4295 = vadd.f32 %v4294, %v4046
      %v4296 = vadd.f32 %v4295, %v4049
      %v4297 = vadd.f32 %v4296, %v4054
      %v4298 = vadd.f32 %v4297, %v4057
      %v4299 = vadd.f32 %v4298, %v4062
      %v4300 = vadd.f32 %v4299, %v4065
      %v4301 = vadd.f32 %v4300, %v4070
      %v4302 = vadd.f32 %v4301, %v4073
      %v4303 = vadd.f32 %v4302, %v4078
      %v4304 = vadd.f32 %v4303, %v4081
      %v4305 = vadd.f32 %v4304, %v4086
      %v4306 = vadd.f32 %v4305, %v4089
      %v4307 = vadd.f32 %v4306, %v4094
      %v4308 = vadd.f32 %v4307, %v4097
      %v4309 = vadd.f32 %v4308, %v4102
      %v4310 = vadd.f32 %v4309, %v4105
      %v4311 = vadd.f32 %v4310, %v4110
      %v4312 = vadd.f32 %v4311, %v4113
      %v4313 = vadd.f32 %v4312, %v4118
      %v4314 = vadd.f32 %v4313, %v4121
      %v4315 = vrot.slane %v4314, 4
      %v4316 = vadd.f32 %v4314, %v4315
      %v4317 = vrot.slane %v4316, 2
      %v4318 = vadd.f32 %v4316, %v4317
      %v4319 = vrot.slane %v4318, 1
      %v4320 = vadd.f32 %v4318, %v4319
      %v4321 = vadd.f32 %v4320, 0.0
      %v4322 = vmul.f32 %v3998, %v3998
      %v4323 = vmul.f32 %v4001, %v4001
      %v4324 = vmul.f32 %v4006, %v4006
      %v4325 = vmul.f32 %v4009, %v4009
      %v4326 = vmul.f32 %v4014, %v4014
      %v4327 = vmul.f32 %v4017, %v4017
      %v4328 = vmul.f32 %v4022, %v4022
      %v4329 = vmul.f32 %v4025, %v4025
      %v4330 = vmul.f32 %v4030, %v4030
      %v4331 = vmul.f32 %v4033, %v4033
      %v4332 = vmul.f32 %v4038, %v4038
      %v4333 = vmul.f32 %v4041, %v4041
      %v4334 = vmul.f32 %v4046, %v4046
      %v4335 = vmul.f32 %v4049, %v4049
      %v4336 = vmul.f32 %v4054, %v4054
      %v4337 = vmul.f32 %v4057, %v4057
      %v4338 = vmul.f32 %v4062, %v4062
      %v4339 = vmul.f32 %v4065, %v4065
      %v4340 = vmul.f32 %v4070, %v4070
      %v4341 = vmul.f32 %v4073, %v4073
      %v4342 = vmul.f32 %v4078, %v4078
      %v4343 = vmul.f32 %v4081, %v4081
      %v4344 = vmul.f32 %v4086, %v4086
      %v4345 = vmul.f32 %v4089, %v4089
      %v4346 = vmul.f32 %v4094, %v4094
      %v4347 = vmul.f32 %v4097, %v4097
      %v4348 = vmul.f32 %v4102, %v4102
      %v4349 = vmul.f32 %v4105, %v4105
      %v4350 = vmul.f32 %v4110, %v4110
      %v4351 = vmul.f32 %v4113, %v4113
      %v4352 = vmul.f32 %v4118, %v4118
      %v4353 = vmul.f32 %v4121, %v4121
      %v4354 = vadd.f32 %v4322, %v4323
      %v4355 = vadd.f32 %v4354, %v4324
      %v4356 = vadd.f32 %v4355, %v4325
      %v4357 = vadd.f32 %v4356, %v4326
      %v4358 = vadd.f32 %v4357, %v4327
      %v4359 = vadd.f32 %v4358, %v4328
      %v4360 = vadd.f32 %v4359, %v4329
      %v4361 = vadd.f32 %v4360, %v4330
      %v4362 = vadd.f32 %v4361, %v4331
      %v4363 = vadd.f32 %v4362, %v4332
      %v4364 = vadd.f32 %v4363, %v4333
      %v4365 = vadd.f32 %v4364, %v4334
      %v4366 = vadd.f32 %v4365, %v4335
      %v4367 = vadd.f32 %v4366, %v4336
      %v4368 = vadd.f32 %v4367, %v4337
      %v4369 = vadd.f32 %v4368, %v4338
      %v4370 = vadd.f32 %v4369, %v4339
      %v4371 = vadd.f32 %v4370, %v4340
      %v4372 = vadd.f32 %v4371, %v4341
      %v4373 = vadd.f32 %v4372, %v4342
      %v4374 = vadd.f32 %v4373, %v4343
      %v4375 = vadd.f32 %v4374, %v4344
      %v4376 = vadd.f32 %v4375, %v4345
      %v4377 = vadd.f32 %v4376, %v4346
      %v4378 = vadd.f32 %v4377, %v4347
      %v4379 = vadd.f32 %v4378, %v4348
      %v4380 = vadd.f32 %v4379, %v4349
      %v4381 = vadd.f32 %v4380, %v4350
      %v4382 = vadd.f32 %v4381, %v4351
      %v4383 = vadd.f32 %v4382, %v4352
      %v4384 = vadd.f32 %v4383, %v4353
      %v4385 = vrot.slane %v4384, 4
      %v4386 = vadd.f32 %v4384, %v4385
      %v4387 = vrot.slane %v4386, 2
      %v4388 = vadd.f32 %v4386, %v4387
      %v4389 = vrot.slane %v4388, 1
      %v4390 = vadd.f32 %v4388, %v4389
      %v4391 = vadd.f32 %v4390, 0.0
      %vm4392 = vcmask 1040384
      %v4393 = vsel %vm4392, %v4321, %v4391
      %4394 = vst [vmem:[%s181] sm:$0x3] %v4393
      %p4395 = scmp.lt.s32.totalorder %s15, 1
      %s4396 = scalar_select %p4395, %s15, 1
      %s4397 = smul.addr %s4396, 32
      %s4398 = smul.addr %s4397, 4
      %s4399 = scalar_lea.vmem %s2, %s4398
      %p4400 = scmp.lt.s32.totalorder %s15, 1
      %s4401 = scalar_select %p4400, %s15, 1
      %s4402 = smul.addr %s4401, 2
      %s4403 = scalar_lea.vmem %s3, %s4402
      // Predicated region
      $region29: #{double_conv.2} parent=27 // pred_check
        %p4404 = pneg %p80
      $region30: #{double_conv.2} parent=27 // pred_check_branch
        %4406 = sbr.rel (%p4404) target = $region32
      $region31: #{double_conv.2} parent=27 // pred_region
        _
      $region32: #{double_conv.2} parent=27 // pred_fallthru
        _
      // Predicated region
      $region33: #{double_conv.2} parent=27 // pred_check
        %p4407 = pneg %p106
      $region34: #{double_conv.2} parent=27 // pred_check_branch
        %4409 = sbr.rel (%p4407) target = $region36
      $region35: #{double_conv.2} parent=27 // pred_region
        _
      $region36: #{double_conv.2} parent=27 // pred_fallthru
        _
    $region28: #{double_conv.2} parent=5 // pred_fallthru
      _
    %p4410 = scmp.le.s32.totalorder 2, %s10
    // Predicated region
    $region37: #{double_conv.2} parent=5 // pred_check
      %p4411 = pneg %p4410
    $region38: #{double_conv.2} parent=5 // pred_check_branch
      %4413 = sbr.rel (%p4411) target = $region40
    $region39: #{double_conv.2} parent=5 // pred_region
      %s4414 = ssub.s32 %s10, 2
      // Predicated region
      $region41: #{double_conv.2} parent=39 // pred_check
        %p4415 = pneg %p86
      $region42: #{double_conv.2} parent=39 // pred_check_branch
        %4417 = sbr.rel (%p4415) target = $region44
      $region43: #{double_conv.2} parent=39 // pred_region
        %p4418 = scmp.lt.s32.totalorder %s16, 1
        %s4419 = scalar_select %p4418, %s16, 1
        %s4420 = smul.addr %s4419, 32
        %s4421 = smul.addr %s4420, 4
        %s4422 = scalar_lea.vmem %s2, %s4421
      $region44: #{double_conv.2} parent=39 // pred_fallthru
        _
      // Predicated region
      $region45: #{double_conv.2} parent=39 // pred_check
        %p4423 = pneg %p112
      $region46: #{double_conv.2} parent=39 // pred_check_branch
        %4425 = sbr.rel (%p4423) target = $region48
      $region47: #{double_conv.2} parent=39 // pred_region
        %p4426 = scmp.lt.s32.totalorder %s16, 1
        %s4427 = scalar_select %p4426, %s16, 1
        %s4428 = smul.addr %s4427, 2
        %s4429 = scalar_lea.vmem %s3, %s4428
      $region48: #{double_conv.2} parent=39 // pred_fallthru
        _
    $region40: #{double_conv.2} parent=5 // pred_fallthru
      _
  $region6: #{double_conv.2} parent=0 // loop_footer
    %s14 = sadd.s32 1, %s10
  $region7: #{double_conv.2} parent=0 // loop_footer_branch
    %9 = sbr.rel target = $region3
  $region8: #{double_conv.2} parent=0 // loop_exit
    _

// kernel: double_conv.3
$region0: #{double_conv.3}
  #allocation0 [shape = 'u32[]', space=smem, size = 0x4, offset = 0x4, fixed_abs, tag = 'smem constant byte address 0x4 - core index']
  #allocation1 [shape = 'u32[144,128]{1,0:T(1,128)}', space=vmem, size = 0x12000, scoped, tag = 'internal scratch']
  #allocation2 [shape = 'bf16[18,18,128]{2,1,0:T(8,128)(2,1)}', space=vmem, size = 0x1b000, scoped, tag = 'scratch operand']
  %s0 = inlined_call_operand.vmem [shape: bf16[2,16,16,128], index: 0, kind: input, shape index: {}]
  %s1 = inlined_call_operand.vmem [shape: f32[1,128], index: 1, kind: input, shape index: {}]
  %s2 = inlined_call_operand.vmem [shape: f32[1,128], index: 2, kind: input, shape index: {}]
  %s3 = inlined_call_operand.vmem [shape: bf16[9,128,128], index: 3, kind: input, shape index: {}]
  %s4 = inlined_call_operand.vmem [shape: bf16[2,16,16,128], index: 4, kind: output, shape index: {0}]
  %s5 = inlined_call_operand.vmem [shape: f32[2,2,128], index: 5, kind: output, shape index: {1}]
  %6 = xla_tuple %s4, %s5
  %s7 = sld [smem:[#allocation0]]
  $region57: #{double_conv.3} parent=0
    _
  %s9 = ssub.s32 1, %s7
  %s10 = scalar_select 0, %s9, %s7
  loop: start=0, step=1, limit=4
  $region2: #{double_conv.3} parent=0 // loop_pre_header
    _
  $region3: #{double_conv.3} parent=0 // loop_header
    %s12 = sphi 0, %s16
    %p13 = scmp.ge.s32.totalorder %s12, 4
    %s22 = sphi 0, %s24
    %s25 = sphi 0, %s22
    %s26 = sphi 0, %s25
    %s42 = sphi 0, %s26
    %s46 = sphi 0, %s46
    %s48 = sphi 0, %s46
    %s49 = sphi 0, %s48
    %s63 = sphi 0, %s49
    %s67 = sphi 0, %s67
    %s69 = sphi 0, %s67
    %s70 = sphi 0, %s69
    %s84 = sphi 0, %s70
    %s88 = sphi 0, %s88
    %s90 = sphi 0, %s88
    %s91 = sphi 0, %s90
    %s105 = sphi 0, %s91
    %s111 = sphi 0, %s113
    %s114 = sphi 0, %s111
    %s115 = sphi 0, %s114
    %s131 = sphi 0, %s115
    %s137 = sphi 0, %s139
    %s140 = sphi 0, %s137
    %s141 = sphi 0, %s140
    %s157 = sphi 0, %s141
  $region4: #{double_conv.3} parent=0 // loop_header_branch
    %15 = sbr.rel (%p13) target = $region8
  $region5: #{double_conv.3} parent=0 // loop_body
    %s17 = ssub.s32 %s12, 1
    %s18 = ssub.s32 %s12, 2
    %s19 = sadd.s32 %s12, 1
    %s20 = ssub.s32 %s12, %s19
    %p21 = scmp.eq.s32.totalorder %s20, 0
    %s23 = sadd.s32 %s22, 1
    %s24 = scalar_select %p21, %s22, %s23
    %p27 = pneg %p21
    %p28 = scmp.eq.s32.totalorder %s12, 1
    %p29 = por %p27, %p28
    %p30 = scmp.ne.s32.totalorder %s22, %s25
    %p31 = scmp.eq.s32.totalorder %s12, 0
    %p32 = por %p30, %p31
    %p33 = scmp.ne.s32.totalorder %s22, %s25
    %p34 = scmp.eq.s32.totalorder %s17, 1
    %p35 = por %p33, %p34
    %p36 = scmp.ne.s32.totalorder %s25, %s26
    %p37 = scmp.eq.s32.totalorder %s17, 0
    %p38 = por %p36, %p37
    %p39 = scmp.ne.s32.totalorder %s25, %s26
    %p40 = scmp.eq.s32.totalorder %s18, 1
    %p41 = por %p39, %p40
    %p43 = scmp.ne.s32.totalorder %s26, %s42
    %p44 = scmp.eq.s32.totalorder %s18, 0
    %p45 = por %p43, %p44
    %s47 = sadd.s32 %s46, 1
    %p50 = scmp.eq.s32.totalorder %s12, 1
    %p51 = scmp.ne.s32.totalorder %s46, %s48
    %p52 = scmp.eq.s32.totalorder %s12, 0
    %p53 = por %p51, %p52
    %p54 = scmp.ne.s32.totalorder %s46, %s48
    %p55 = scmp.eq.s32.totalorder %s17, 1
    %p56 = por %p54, %p55
    %p57 = scmp.ne.s32.totalorder %s48, %s49
    %p58 = scmp.eq.s32.totalorder %s17, 0
    %p59 = por %p57, %p58
    %p60 = scmp.ne.s32.totalorder %s48, %s49
    %p61 = scmp.eq.s32.totalorder %s18, 1
    %p62 = por %p60, %p61
    %p64 = scmp.ne.s32.totalorder %s49, %s63
    %p65 = scmp.eq.s32.totalorder %s18, 0
    %p66 = por %p64, %p65
    %s68 = sadd.s32 %s67, 1
    %p71 = scmp.eq.s32.totalorder %s12, 1
    %p72 = scmp.ne.s32.totalorder %s67, %s69
    %p73 = scmp.eq.s32.totalorder %s12, 0
    %p74 = por %p72, %p73
    %p75 = scmp.ne.s32.totalorder %s67, %s69
    %p76 = scmp.eq.s32.totalorder %s17, 1
    %p77 = por %p75, %p76
    %p78 = scmp.ne.s32.totalorder %s69, %s70
    %p79 = scmp.eq.s32.totalorder %s17, 0
    %p80 = por %p78, %p79
    %p81 = scmp.ne.s32.totalorder %s69, %s70
    %p82 = scmp.eq.s32.totalorder %s18, 1
    %p83 = por %p81, %p82
    %p85 = scmp.ne.s32.totalorder %s70, %s84
    %p86 = scmp.eq.s32.totalorder %s18, 0
    %p87 = por %p85, %p86
    %s89 = sadd.s32 %s88, 1
    %p92 = scmp.eq.s32.totalorder %s12, 1
    %p93 = scmp.ne.s32.totalorder %s88, %s90
    %p94 = scmp.eq.s32.totalorder %s12, 0
    %p95 = por %p93, %p94
    %p96 = scmp.ne.s32.totalorder %s88, %s90
    %p97 = scmp.eq.s32.totalorder %s17, 1
    %p98 = por %p96, %p97
    %p99 = scmp.ne.s32.totalorder %s90, %s91
    %p100 = scmp.eq.s32.totalorder %s17, 0
    %p101 = por %p99, %p100
    %p102 = scmp.ne.s32.totalorder %s90, %s91
    %p103 = scmp.eq.s32.totalorder %s18, 1
    %p104 = por %p102, %p103
    %p106 = scmp.ne.s32.totalorder %s91, %s105
    %p107 = scmp.eq.s32.totalorder %s18, 0
    %p108 = por %p106, %p107
    %s109 = ssub.s32 %s12, %s19
    %p110 = scmp.eq.s32.totalorder %s109, 0
    %s112 = sadd.s32 %s111, 1
    %s113 = scalar_select %p110, %s111, %s112
    %p116 = pneg %p110
    %p117 = scmp.eq.s32.totalorder %s12, 1
    %p118 = por %p116, %p117
    %p119 = scmp.ne.s32.totalorder %s111, %s114
    %p120 = scmp.eq.s32.totalorder %s12, 0
    %p121 = por %p119, %p120
    %p122 = scmp.ne.s32.totalorder %s111, %s114
    %p123 = scmp.eq.s32.totalorder %s17, 1
    %p124 = por %p122, %p123
    %p125 = scmp.ne.s32.totalorder %s114, %s115
    %p126 = scmp.eq.s32.totalorder %s17, 0
    %p127 = por %p125, %p126
    %p128 = scmp.ne.s32.totalorder %s114, %s115
    %p129 = scmp.eq.s32.totalorder %s18, 1
    %p130 = por %p128, %p129
    %p132 = scmp.ne.s32.totalorder %s115, %s131
    %p133 = scmp.eq.s32.totalorder %s18, 0
    %p134 = por %p132, %p133
    %s135 = ssub.s32 %s12, %s19
    %p136 = scmp.eq.s32.totalorder %s135, 0
    %s138 = sadd.s32 %s137, 1
    %s139 = scalar_select %p136, %s137, %s138
    %p142 = pneg %p136
    %p143 = scmp.eq.s32.totalorder %s12, 1
    %p144 = por %p142, %p143
    %p145 = scmp.ne.s32.totalorder %s137, %s140
    %p146 = scmp.eq.s32.totalorder %s12, 0
    %p147 = por %p145, %p146
    %p148 = scmp.ne.s32.totalorder %s137, %s140
    %p149 = scmp.eq.s32.totalorder %s17, 1
    %p150 = por %p148, %p149
    %p151 = scmp.ne.s32.totalorder %s140, %s141
    %p152 = scmp.eq.s32.totalorder %s17, 0
    %p153 = por %p151, %p152
    %p154 = scmp.ne.s32.totalorder %s140, %s141
    %p155 = scmp.eq.s32.totalorder %s18, 1
    %p156 = por %p154, %p155
    %p158 = scmp.ne.s32.totalorder %s141, %s157
    %p159 = scmp.eq.s32.totalorder %s18, 0
    %p160 = por %p158, %p159
    %p161 = scmp.le.s32.totalorder 1, %s12
    %p162 = scmp.lt.s32.totalorder %s12, 3
    %p163 = pnand %p161, %p162
    %p164 = pneg %p163
    // Predicated region
    $region9: #{double_conv.3} parent=5 // pred_check
      _
    $region10: #{double_conv.3} parent=5 // pred_check_branch
      %166 = sbr.rel (%p163) target = $region12
    $region11: #{double_conv.3} parent=5 // pred_region
      %s167 = ssub.s32 %s12, 1
      // Predicated region
      $region13: #{double_conv.3} parent=11 // pred_check
        %p168 = pneg %p59
      $region14: #{double_conv.3} parent=11 // pred_check_branch
        %170 = sbr.rel (%p168) target = $region16
      $region15: #{double_conv.3} parent=11 // pred_region
        _
      $region16: #{double_conv.3} parent=11 // pred_fallthru
        _
      // Predicated region
      $region17: #{double_conv.3} parent=11 // pred_check
        %p171 = pneg %p80
      $region18: #{double_conv.3} parent=11 // pred_check_branch
        %173 = sbr.rel (%p171) target = $region20
      $region19: #{double_conv.3} parent=11 // pred_region
        _
      $region20: #{double_conv.3} parent=11 // pred_fallthru
        _
      // Predicated region
      $region21: #{double_conv.3} parent=11 // pred_check
        %p174 = pneg %p101
      $region22: #{double_conv.3} parent=11 // pred_check_branch
        %176 = sbr.rel (%p174) target = $region24
      $region23: #{double_conv.3} parent=11 // pred_region
        _
      $region24: #{double_conv.3} parent=11 // pred_fallthru
        _
    $region12: #{double_conv.3} parent=5 // pred_fallthru
      _
    %p177 = scmp.lt.s32.totalorder %s12, 2
    // Predicated region
    $region25: #{double_conv.3} parent=5 // pred_check
      %p178 = pneg %p177
    $region26: #{double_conv.3} parent=5 // pred_check_branch
      %180 = sbr.rel (%p178) target = $region28
    $region27: #{double_conv.3} parent=5 // pred_region
      // Predicated region
      $region29: #{double_conv.3} parent=27 // pred_check
        %p181 = pneg %p32
      $region30: #{double_conv.3} parent=27 // pred_check_branch
        %183 = sbr.rel (%p181) target = $region32
      $region31: #{double_conv.3} parent=27 // pred_region
        %p184 = scmp.lt.s32.totalorder %s12, 1
        %s185 = scalar_select %p184, %s12, 1
        %s186 = smul.addr %s185, 32
        %s187 = smul.addr %s186, 4
        %s188 = scalar_lea.vmem %s0, %s187
      $region32: #{double_conv.3} parent=27 // pred_fallthru
        _
    $region28: #{double_conv.3} parent=5 // pred_fallthru
      _
    %p189 = scmp.le.s32.totalorder 1, %s12
    %p190 = scmp.lt.s32.totalorder %s12, 3
    %p191 = pnand %p189, %p190
    %p192 = pneg %p191
    // Predicated region
    $region33: #{double_conv.3} parent=5 // pred_check
      _
    $region34: #{double_conv.3} parent=5 // pred_check_branch
      %194 = sbr.rel (%p191) target = $region36
    $region35: #{double_conv.3} parent=5 // pred_region
      %s195 = ssub.s32 %s12, 1
      %p196 = scmp.lt.s32.totalorder %s17, 1
      %s197 = scalar_select %p196, %s17, 1
      %s198 = smul.addr %s197, 32
      %s199 = smul.addr %s198, 4
      %s200 = scalar_lea.vmem %s0, %s199
      %p201 = pneg %p38
      %p202 = pneg %p35
      %p203 = pneg %p59
      %p204 = pneg %p56
      %p205 = pneg %p80
      %p206 = pneg %p77
      %p207 = pneg %p101
      %p208 = pneg %p98
      %p209 = pneg %p127
      %p210 = pneg %p124
      %p211 = scmp.lt.s32.totalorder %s17, 1
      %s212 = scalar_select %p211, %s17, 1
      %s213 = smul.addr %s212, 32
      %s214 = smul.addr %s213, 4
      %s215 = scalar_lea.vmem %s4, %s214
      %p216 = pneg %p153
      %p217 = pneg %p150
      %p218 = scmp.lt.s32.totalorder %s17, 1
      %s219 = scalar_select %p218, %s17, 1
      %s220 = smul.addr %s219, 2
      %s221 = scalar_lea.vmem %s5, %s220
      %p222 = scmp.lt.s32.totalorder %s17, 1
      %s223 = scalar_select %p222, %s17, 1
      %s224 = smul.addr %s223, 32
      %s225 = smul.addr %s224, 4
      %s226 = scalar_lea.vmem %s0, %s225
      %p227 = scmp.lt.s32.totalorder %s17, 1
      %s228 = scalar_select %p227, %s17, 1
      %s229 = smul.addr %s228, 32
      %s230 = smul.addr %s229, 4
      %s231 = scalar_lea.vmem %s4, %s230
      %p232 = scmp.lt.s32.totalorder %s17, 1
      %s233 = scalar_select %p232, %s17, 1
      %s234 = smul.addr %s233, 2
      %s235 = scalar_lea.vmem %s5, %s234
      %v237 = vld [vmem:[%s1] sm:$0x1]
      %v238 = vld [vmem:[%s2] sm:$0x1]
      %239 = vst [vmem:[#allocation2] sm:$0xf] 0
      %240 = vst [vmem:[#allocation2 + $0x4] sm:$0xf] 0
      %241 = vst [vmem:[#allocation2 + $0x8] sm:$0x1] 0
      %s242 = scalar_lea.vmem [#allocation2], 204
      %243 = vst [vmem:[%s242] sm:$0xf] 0
      %244 = vst [vmem:[%s242 + $0x4] sm:$0xf] 0
      %245 = vst [vmem:[%s242 + $0x8] sm:$0x1] 0
      %s246 = scalar_lea.vmem [#allocation2], 12
      %vm247 = vcmask 1040384
      %vm248 = vsmask.f32 256
      %vm249 = vmand %vm247, %vm248
      %v250 = vld [vmem:[%s246] sm:$0x1]
      %v251 = vsel %vm249, 0, %v250
      %252 = vst [vmem:[%s246] sm:$0x1] %v251
      %v253 = vld [vmem:[%s246 + $0xc] sm:$0x1]
      %v254 = vsel %vm249, 0, %v253
      %255 = vst [vmem:[%s246 + $0xc] sm:$0x1] %v254
      %v256 = vld [vmem:[%s246 + $0x18] sm:$0x1]
      %v257 = vsel %vm249, 0, %v256
      %258 = vst [vmem:[%s246 + $0x18] sm:$0x1] %v257
      %v259 = vld [vmem:[%s246 + $0x24] sm:$0x1]
      %v260 = vsel %vm249, 0, %v259
      %261 = vst [vmem:[%s246 + $0x24] sm:$0x1] %v260
      %v262 = vld [vmem:[%s246 + $0x30] sm:$0x1]
      %v263 = vsel %vm249, 0, %v262
      %264 = vst [vmem:[%s246 + $0x30] sm:$0x1] %v263
      %v265 = vld [vmem:[%s246 + $0x3c] sm:$0x1]
      %v266 = vsel %vm249, 0, %v265
      %267 = vst [vmem:[%s246 + $0x3c] sm:$0x1] %v266
      %v268 = vld [vmem:[%s246 + $0x48] sm:$0x1]
      %v269 = vsel %vm249, 0, %v268
      %270 = vst [vmem:[%s246 + $0x48] sm:$0x1] %v269
      %v271 = vld [vmem:[%s246 + $0x54] sm:$0x1]
      %v272 = vsel %vm249, 0, %v271
      %273 = vst [vmem:[%s246 + $0x54] sm:$0x1] %v272
      %v274 = vld [vmem:[%s246 + $0x60] sm:$0x1]
      %v275 = vsel %vm249, 0, %v274
      %276 = vst [vmem:[%s246 + $0x60] sm:$0x1] %v275
      %v277 = vld [vmem:[%s246 + $0x6c] sm:$0x1]
      %v278 = vsel %vm249, 0, %v277
      %279 = vst [vmem:[%s246 + $0x6c] sm:$0x1] %v278
      %v280 = vld [vmem:[%s246 + $0x78] sm:$0x1]
      %v281 = vsel %vm249, 0, %v280
      %282 = vst [vmem:[%s246 + $0x78] sm:$0x1] %v281
      %v283 = vld [vmem:[%s246 + $0x84] sm:$0x1]
      %v284 = vsel %vm249, 0, %v283
      %285 = vst [vmem:[%s246 + $0x84] sm:$0x1] %v284
      %v286 = vld [vmem:[%s246 + $0x90] sm:$0x1]
      %v287 = vsel %vm249, 0, %v286
      %288 = vst [vmem:[%s246 + $0x90] sm:$0x1] %v287
      %v289 = vld [vmem:[%s246 + $0x9c] sm:$0x1]
      %v290 = vsel %vm249, 0, %v289
      %291 = vst [vmem:[%s246 + $0x9c] sm:$0x1] %v290
      %v292 = vld [vmem:[%s246 + $0xa8] sm:$0x1]
      %v293 = vsel %vm249, 0, %v292
      %294 = vst [vmem:[%s246 + $0xa8] sm:$0x1] %v293
      %v295 = vld [vmem:[%s246 + $0xb4] sm:$0x1]
      %v296 = vsel %vm249, 0, %v295
      %297 = vst [vmem:[%s246 + $0xb4] sm:$0x1] %v296
      %vm298 = vsmask.f32 7938
      %vm299 = vmand %vm247, %vm298
      %v300 = vld [vmem:[%s246 + $0x8] sm:$0x1]
      %v301 = vsel %vm299, 0, %v300
      %302 = vst [vmem:[%s246 + $0x8] sm:$0x1] %v301
      %v303 = vld [vmem:[%s246 + $0x14] sm:$0x1]
      %v304 = vsel %vm299, 0, %v303
      %305 = vst [vmem:[%s246 + $0x14] sm:$0x1] %v304
      %v306 = vld [vmem:[%s246 + $0x20] sm:$0x1]
      %v307 = vsel %vm299, 0, %v306
      %308 = vst [vmem:[%s246 + $0x20] sm:$0x1] %v307
      %v309 = vld [vmem:[%s246 + $0x2c] sm:$0x1]
      %v310 = vsel %vm299, 0, %v309
      %311 = vst [vmem:[%s246 + $0x2c] sm:$0x1] %v310
      %v312 = vld [vmem:[%s246 + $0x38] sm:$0x1]
      %v313 = vsel %vm299, 0, %v312
      %314 = vst [vmem:[%s246 + $0x38] sm:$0x1] %v313
      %v315 = vld [vmem:[%s246 + $0x44] sm:$0x1]
      %v316 = vsel %vm299, 0, %v315
      %317 = vst [vmem:[%s246 + $0x44] sm:$0x1] %v316
      %v318 = vld [vmem:[%s246 + $0x50] sm:$0x1]
      %v319 = vsel %vm299, 0, %v318
      %320 = vst [vmem:[%s246 + $0x50] sm:$0x1] %v319
      %v321 = vld [vmem:[%s246 + $0x5c] sm:$0x1]
      %v322 = vsel %vm299, 0, %v321
      %323 = vst [vmem:[%s246 + $0x5c] sm:$0x1] %v322
      %v324 = vld [vmem:[%s246 + $0x68] sm:$0x1]
      %v325 = vsel %vm299, 0, %v324
      %326 = vst [vmem:[%s246 + $0x68] sm:$0x1] %v325
      %v327 = vld [vmem:[%s246 + $0x74] sm:$0x1]
      %v328 = vsel %vm299, 0, %v327
      %329 = vst [vmem:[%s246 + $0x74] sm:$0x1] %v328
      %v330 = vld [vmem:[%s246 + $0x80] sm:$0x1]
      %v331 = vsel %vm299, 0, %v330
      %332 = vst [vmem:[%s246 + $0x80] sm:$0x1] %v331
      %v333 = vld [vmem:[%s246 + $0x8c] sm:$0x1]
      %v334 = vsel %vm299, 0, %v333
      %335 = vst [vmem:[%s246 + $0x8c] sm:$0x1] %v334
      %v336 = vld [vmem:[%s246 + $0x98] sm:$0x1]
      %v337 = vsel %vm299, 0, %v336
      %338 = vst [vmem:[%s246 + $0x98] sm:$0x1] %v337
      %v339 = vld [vmem:[%s246 + $0xa4] sm:$0x1]
      %v340 = vsel %vm299, 0, %v339
      %341 = vst [vmem:[%s246 + $0xa4] sm:$0x1] %v340
      %v342 = vld [vmem:[%s246 + $0xb0] sm:$0x1]
      %v343 = vsel %vm299, 0, %v342
      %344 = vst [vmem:[%s246 + $0xb0] sm:$0x1] %v343
      %v345 = vld [vmem:[%s246 + $0xbc] sm:$0x1]
      %v346 = vsel %vm299, 0, %v345
      %347 = vst [vmem:[%s246 + $0xbc] sm:$0x1] %v346
      %v348 = vld [vmem:[%s226] sm:$0xf]
      %v349 = vld [vmem:[%s226 + $0x4] sm:$0xf]
      %v350 = vld [vmem:[%s226 + $0x8] sm:$0xf]
      %v351 = vld [vmem:[%s226 + $0xc] sm:$0xf]
      %v352 = vld [vmem:[%s226 + $0x10] sm:$0xf]
      %v353 = vld [vmem:[%s226 + $0x14] sm:$0xf]
      %v354 = vld [vmem:[%s226 + $0x18] sm:$0xf]
      %v355 = vld [vmem:[%s226 + $0x1c] sm:$0xf]
      %v356 = vld [vmem:[%s226 + $0x20] sm:$0xf]
      %v357 = vld [vmem:[%s226 + $0x24] sm:$0xf]
      %v358 = vld [vmem:[%s226 + $0x28] sm:$0xf]
      %v359 = vld [vmem:[%s226 + $0x2c] sm:$0xf]
      %v360 = vld [vmem:[%s226 + $0x30] sm:$0xf]
      %v361 = vld [vmem:[%s226 + $0x34] sm:$0xf]
      %v362 = vld [vmem:[%s226 + $0x38] sm:$0xf]
      %v363 = vld [vmem:[%s226 + $0x3c] sm:$0xf]
      %v364 = vld [vmem:[%s226 + $0x40] sm:$0xf]
      %v365 = vld [vmem:[%s226 + $0x44] sm:$0xf]
      %v366 = vld [vmem:[%s226 + $0x48] sm:$0xf]
      %v367 = vld [vmem:[%s226 + $0x4c] sm:$0xf]
      %v368 = vld [vmem:[%s226 + $0x50] sm:$0xf]
      %v369 = vld [vmem:[%s226 + $0x54] sm:$0xf]
      %v370 = vld [vmem:[%s226 + $0x58] sm:$0xf]
      %v371 = vld [vmem:[%s226 + $0x5c] sm:$0xf]
      %v372 = vld [vmem:[%s226 + $0x60] sm:$0xf]
      %v373 = vld [vmem:[%s226 + $0x64] sm:$0xf]
      %v374 = vld [vmem:[%s226 + $0x68] sm:$0xf]
      %v375 = vld [vmem:[%s226 + $0x6c] sm:$0xf]
      %v376 = vld [vmem:[%s226 + $0x70] sm:$0xf]
      %v377 = vld [vmem:[%s226 + $0x74] sm:$0xf]
      %v378 = vld [vmem:[%s226 + $0x78] sm:$0xf]
      %v379 = vld [vmem:[%s226 + $0x7c] sm:$0xf]
      %v380 = vunpack.c.l.bf16 %v348
      %v381 = vunpack.c.l.bf16 %v349
      %v382 = vunpack.c.l.bf16 %v350
      %v383 = vunpack.c.l.bf16 %v351
      %v384 = vunpack.c.l.bf16 %v352
      %v385 = vunpack.c.l.bf16 %v353
      %v386 = vunpack.c.l.bf16 %v354
      %v387 = vunpack.c.l.bf16 %v355
      %v388 = vunpack.c.l.bf16 %v356
      %v389 = vunpack.c.l.bf16 %v357
      %v390 = vunpack.c.l.bf16 %v358
      %v391 = vunpack.c.l.bf16 %v359
      %v392 = vunpack.c.l.bf16 %v360
      %v393 = vunpack.c.l.bf16 %v361
      %v394 = vunpack.c.l.bf16 %v362
      %v395 = vunpack.c.l.bf16 %v363
      %v396 = vunpack.c.l.bf16 %v364
      %v397 = vunpack.c.l.bf16 %v365
      %v398 = vunpack.c.l.bf16 %v366
      %v399 = vunpack.c.l.bf16 %v367
      %v400 = vunpack.c.l.bf16 %v368
      %v401 = vunpack.c.l.bf16 %v369
      %v402 = vunpack.c.l.bf16 %v370
      %v403 = vunpack.c.l.bf16 %v371
      %v404 = vunpack.c.l.bf16 %v372
      %v405 = vunpack.c.l.bf16 %v373
      %v406 = vunpack.c.l.bf16 %v374
      %v407 = vunpack.c.l.bf16 %v375
      %v408 = vunpack.c.l.bf16 %v376
      %v409 = vunpack.c.l.bf16 %v377
      %v410 = vunpack.c.l.bf16 %v378
      %v411 = vunpack.c.l.bf16 %v379
      %v413 = vlaneseq
      %v414 = vshrl.u32 %v413, 7
      %v415 = vsub.s32 0, %v414
      %v416 = vrot.slane %v237, %v415
      %v418 = vmul.f32 %v380, %v416
      %v419 = vmul.f32 %v381, %v416
      %v420 = vmul.f32 %v382, %v416
      %v421 = vmul.f32 %v383, %v416
      %v422 = vmul.f32 %v384, %v416
      %v423 = vmul.f32 %v385, %v416
      %v424 = vmul.f32 %v386, %v416
      %v425 = vmul.f32 %v387, %v416
      %v426 = vmul.f32 %v388, %v416
      %v427 = vmul.f32 %v389, %v416
      %v428 = vmul.f32 %v390, %v416
      %v429 = vmul.f32 %v391, %v416
      %v430 = vmul.f32 %v392, %v416
      %v431 = vmul.f32 %v393, %v416
      %v432 = vmul.f32 %v394, %v416
      %v433 = vmul.f32 %v395, %v416
      %v434 = vmul.f32 %v396, %v416
      %v435 = vmul.f32 %v397, %v416
      %v436 = vmul.f32 %v398, %v416
      %v437 = vmul.f32 %v399, %v416
      %v438 = vmul.f32 %v400, %v416
      %v439 = vmul.f32 %v401, %v416
      %v440 = vmul.f32 %v402, %v416
      %v441 = vmul.f32 %v403, %v416
      %v442 = vmul.f32 %v404, %v416
      %v443 = vmul.f32 %v405, %v416
      %v444 = vmul.f32 %v406, %v416
      %v445 = vmul.f32 %v407, %v416
      %v446 = vmul.f32 %v408, %v416
      %v447 = vmul.f32 %v409, %v416
      %v448 = vmul.f32 %v410, %v416
      %v449 = vmul.f32 %v411, %v416
      %v451 = vlaneseq
      %v452 = vshrl.u32 %v451, 7
      %v453 = vsub.s32 0, %v452
      %v454 = vrot.slane %v238, %v453
      %v456 = vadd.f32 %v418, %v454
      %v457 = vadd.f32 %v419, %v454
      %v458 = vadd.f32 %v420, %v454
      %v459 = vadd.f32 %v421, %v454
      %v460 = vadd.f32 %v422, %v454
      %v461 = vadd.f32 %v423, %v454
      %v462 = vadd.f32 %v424, %v454
      %v463 = vadd.f32 %v425, %v454
      %v464 = vadd.f32 %v426, %v454
      %v465 = vadd.f32 %v427, %v454
      %v466 = vadd.f32 %v428, %v454
      %v467 = vadd.f32 %v429, %v454
      %v468 = vadd.f32 %v430, %v454
      %v469 = vadd.f32 %v431, %v454
      %v470 = vadd.f32 %v432, %v454
      %v471 = vadd.f32 %v433, %v454
      %v472 = vadd.f32 %v434, %v454
      %v473 = vadd.f32 %v435, %v454
      %v474 = vadd.f32 %v436, %v454
      %v475 = vadd.f32 %v437, %v454
      %v476 = vadd.f32 %v438, %v454
      %v477 = vadd.f32 %v439, %v454
      %v478 = vadd.f32 %v440, %v454
      %v479 = vadd.f32 %v441, %v454
      %v480 = vadd.f32 %v442, %v454
      %v481 = vadd.f32 %v443, %v454
      %v482 = vadd.f32 %v444, %v454
      %v483 = vadd.f32 %v445, %v454
      %v484 = vadd.f32 %v446, %v454
      %v485 = vadd.f32 %v447, %v454
      %v486 = vadd.f32 %v448, %v454
      %v487 = vadd.f32 %v449, %v454
      %v488 = vmax.f32 %v456, 0.0
      %v489 = vmax.f32 %v457, 0.0
      %v490 = vmax.f32 %v458, 0.0
      %v491 = vmax.f32 %v459, 0.0
      %v492 = vmax.f32 %v460, 0.0
      %v493 = vmax.f32 %v461, 0.0
      %v494 = vmax.f32 %v462, 0.0
      %v495 = vmax.f32 %v463, 0.0
      %v496 = vmax.f32 %v464, 0.0
      %v497 = vmax.f32 %v465, 0.0
      %v498 = vmax.f32 %v466, 0.0
      %v499 = vmax.f32 %v467, 0.0
      %v500 = vmax.f32 %v468, 0.0
      %v501 = vmax.f32 %v469, 0.0
      %v502 = vmax.f32 %v470, 0.0
      %v503 = vmax.f32 %v471, 0.0
      %v504 = vmax.f32 %v472, 0.0
      %v505 = vmax.f32 %v473, 0.0
      %v506 = vmax.f32 %v474, 0.0
      %v507 = vmax.f32 %v475, 0.0
      %v508 = vmax.f32 %v476, 0.0
      %v509 = vmax.f32 %v477, 0.0
      %v510 = vmax.f32 %v478, 0.0
      %v511 = vmax.f32 %v479, 0.0
      %v512 = vmax.f32 %v480, 0.0
      %v513 = vmax.f32 %v481, 0.0
      %v514 = vmax.f32 %v482, 0.0
      %v515 = vmax.f32 %v483, 0.0
      %v516 = vmax.f32 %v484, 0.0
      %v517 = vmax.f32 %v485, 0.0
      %v518 = vmax.f32 %v486, 0.0
      %v519 = vmax.f32 %v487, 0.0
      %v520 = vpack.c.bf16 %v489, %v488
      %v521 = vpack.c.bf16 %v491, %v490
      %v522 = vpack.c.bf16 %v493, %v492
      %v523 = vpack.c.bf16 %v495, %v494
      %v524 = vpack.c.bf16 %v497, %v496
      %v525 = vpack.c.bf16 %v499, %v498
      %v526 = vpack.c.bf16 %v501, %v500
      %v527 = vpack.c.bf16 %v503, %v502
      %v528 = vpack.c.bf16 %v505, %v504
      %v529 = vpack.c.bf16 %v507, %v506
      %v530 = vpack.c.bf16 %v509, %v508
      %v531 = vpack.c.bf16 %v511, %v510
      %v532 = vpack.c.bf16 %v513, %v512
      %v533 = vpack.c.bf16 %v515, %v514
      %v534 = vpack.c.bf16 %v517, %v516
      %v535 = vpack.c.bf16 %v519, %v518
      %v552 = vunpack.c.l.b16 %v520
      %v553 = vunpack.c.h.b16 %v520
      %v554 = vunpack.c.l.b16 %v521
      %v555 = vunpack.c.h.b16 %v521
      %v556 = vunpack.c.l.b16 %v522
      %v557 = vunpack.c.h.b16 %v522
      %v558 = vunpack.c.l.b16 %v523
      %v559 = vunpack.c.h.b16 %v523
      %v560 = vunpack.c.l.b16 %v524
      %v561 = vunpack.c.h.b16 %v524
      %v562 = vunpack.c.l.b16 %v525
      %v563 = vunpack.c.h.b16 %v525
      %v564 = vunpack.c.l.b16 %v526
      %v565 = vunpack.c.h.b16 %v526
      %v566 = vunpack.c.l.b16 %v527
      %v567 = vunpack.c.h.b16 %v527
      %v568 = vunpack.c.l.b16 %v528
      %v569 = vunpack.c.h.b16 %v528
      %v570 = vunpack.c.l.b16 %v529
      %v571 = vunpack.c.h.b16 %v529
      %v572 = vunpack.c.l.b16 %v530
      %v573 = vunpack.c.h.b16 %v530
      %v574 = vunpack.c.l.b16 %v531
      %v575 = vunpack.c.h.b16 %v531
      %v576 = vunpack.c.l.b16 %v532
      %v577 = vunpack.c.h.b16 %v532
      %v578 = vunpack.c.l.b16 %v533
      %v579 = vunpack.c.h.b16 %v533
      %v580 = vunpack.c.l.b16 %v534
      %v581 = vunpack.c.h.b16 %v534
      %v582 = vunpack.c.l.b16 %v535
      %v583 = vunpack.c.h.b16 %v535
      %v584 = vpack.c.b16 %v552, %v552
      %v585 = vpack.c.b16 %v553, %v553
      %v586 = vpack.c.b16 %v554, %v554
      %v587 = vpack.c.b16 %v555, %v555
      %v588 = vpack.c.b16 %v556, %v556
      %v589 = vpack.c.b16 %v557, %v557
      %v590 = vpack.c.b16 %v558, %v558
      %v591 = vpack.c.b16 %v559, %v559
      %v592 = vpack.c.b16 %v560, %v560
      %v593 = vpack.c.b16 %v561, %v561
      %v594 = vpack.c.b16 %v562, %v562
      %v595 = vpack.c.b16 %v563, %v563
      %v596 = vpack.c.b16 %v564, %v564
      %v597 = vpack.c.b16 %v565, %v565
      %v598 = vpack.c.b16 %v566, %v566
      %v599 = vpack.c.b16 %v567, %v567
      %v600 = vpack.c.b16 %v568, %v568
      %v601 = vpack.c.b16 %v569, %v569
      %v602 = vpack.c.b16 %v570, %v570
      %v603 = vpack.c.b16 %v571, %v571
      %v604 = vpack.c.b16 %v572, %v572
      %v605 = vpack.c.b16 %v573, %v573
      %v606 = vpack.c.b16 %v574, %v574
      %v607 = vpack.c.b16 %v575, %v575
      %v608 = vpack.c.b16 %v576, %v576
      %v609 = vpack.c.b16 %v577, %v577
      %v610 = vpack.c.b16 %v578, %v578
      %v611 = vpack.c.b16 %v579, %v579
      %v612 = vpack.c.b16 %v580, %v580
      %v613 = vpack.c.b16 %v581, %v581
      %v614 = vpack.c.b16 %v582, %v582
      %v615 = vpack.c.b16 %v583, %v583
      %vm616 = vsmask.f32 4368
      %vm617 = vmor %vm248, %vm616
      %v619 = vshrl.u32 %v584, 16
      %v621 = vrot.slane %v619, 7
      %v622 = vshll.u32 %v584, 16
      %v624 = vor.u32 %v621, %v622
      %v625 = vrot.slane %v621, 4
      %v627 = vshrl.u32 %v585, 16
      %v629 = vrot.slane %v627, 7
      %v630 = vshll.u32 %v585, 16
      %v632 = vor.u32 %v629, %v630
      %v633 = vsel %vm617, %v625, %v632
      %v634 = vrot.slane %v629, 4
      %v636 = vshrl.u32 %v586, 16
      %v638 = vrot.slane %v636, 7
      %v639 = vshll.u32 %v586, 16
      %v641 = vor.u32 %v638, %v639
      %v642 = vrot.slane %v638, 4
      %v644 = vshrl.u32 %v587, 16
      %v646 = vrot.slane %v644, 7
      %v647 = vshll.u32 %v587, 16
      %v649 = vor.u32 %v646, %v647
      %v650 = vsel %vm617, %v642, %v649
      %v651 = vrot.slane %v646, 4
      %v653 = vshrl.u32 %v588, 16
      %v655 = vrot.slane %v653, 7
      %v656 = vshll.u32 %v588, 16
      %v658 = vor.u32 %v655, %v656
      %v659 = vrot.slane %v655, 4
      %v661 = vshrl.u32 %v589, 16
      %v663 = vrot.slane %v661, 7
      %v664 = vshll.u32 %v589, 16
      %v666 = vor.u32 %v663, %v664
      %v667 = vsel %vm617, %v659, %v666
      %v668 = vrot.slane %v663, 4
      %v670 = vshrl.u32 %v590, 16
      %v672 = vrot.slane %v670, 7
      %v673 = vshll.u32 %v590, 16
      %v675 = vor.u32 %v672, %v673
      %v676 = vrot.slane %v672, 4
      %v678 = vshrl.u32 %v591, 16
      %v680 = vrot.slane %v678, 7
      %v681 = vshll.u32 %v591, 16
      %v683 = vor.u32 %v680, %v681
      %v684 = vsel %vm617, %v676, %v683
      %v685 = vrot.slane %v680, 4
      %v687 = vshrl.u32 %v592, 16
      %v689 = vrot.slane %v687, 7
      %v690 = vshll.u32 %v592, 16
      %v692 = vor.u32 %v689, %v690
      %v693 = vrot.slane %v689, 4
      %v695 = vshrl.u32 %v593, 16
      %v697 = vrot.slane %v695, 7
      %v698 = vshll.u32 %v593, 16
      %v700 = vor.u32 %v697, %v698
      %v701 = vsel %vm617, %v693, %v700
      %v702 = vrot.slane %v697, 4
      %v704 = vshrl.u32 %v594, 16
      %v706 = vrot.slane %v704, 7
      %v707 = vshll.u32 %v594, 16
      %v709 = vor.u32 %v706, %v707
      %v710 = vrot.slane %v706, 4
      %v712 = vshrl.u32 %v595, 16
      %v714 = vrot.slane %v712, 7
      %v715 = vshll.u32 %v595, 16
      %v717 = vor.u32 %v714, %v715
      %v718 = vsel %vm617, %v710, %v717
      %v719 = vrot.slane %v714, 4
      %v721 = vshrl.u32 %v596, 16
      %v723 = vrot.slane %v721, 7
      %v724 = vshll.u32 %v596, 16
      %v726 = vor.u32 %v723, %v724
      %v727 = vrot.slane %v723, 4
      %v729 = vshrl.u32 %v597, 16
      %v731 = vrot.slane %v729, 7
      %v732 = vshll.u32 %v597, 16
      %v734 = vor.u32 %v731, %v732
      %v735 = vsel %vm617, %v727, %v734
      %v736 = vrot.slane %v731, 4
      %v738 = vshrl.u32 %v598, 16
      %v740 = vrot.slane %v738, 7
      %v741 = vshll.u32 %v598, 16
      %v743 = vor.u32 %v740, %v741
      %v744 = vrot.slane %v740, 4
      %v746 = vshrl.u32 %v599, 16
      %v748 = vrot.slane %v746, 7
      %v749 = vshll.u32 %v599, 16
      %v751 = vor.u32 %v748, %v749
      %v752 = vsel %vm617, %v744, %v751
      %v753 = vrot.slane %v748, 4
      %v755 = vshrl.u32 %v600, 16
      %v757 = vrot.slane %v755, 7
      %v758 = vshll.u32 %v600, 16
      %v760 = vor.u32 %v757, %v758
      %v761 = vrot.slane %v757, 4
      %v763 = vshrl.u32 %v601, 16
      %v765 = vrot.slane %v763, 7
      %v766 = vshll.u32 %v601, 16
      %v768 = vor.u32 %v765, %v766
      %v769 = vsel %vm617, %v761, %v768
      %v770 = vrot.slane %v765, 4
      %v772 = vshrl.u32 %v602, 16
      %v774 = vrot.slane %v772, 7
      %v775 = vshll.u32 %v602, 16
      %v777 = vor.u32 %v774, %v775
      %v778 = vrot.slane %v774, 4
      %v780 = vshrl.u32 %v603, 16
      %v782 = vrot.slane %v780, 7
      %v783 = vshll.u32 %v603, 16
      %v785 = vor.u32 %v782, %v783
      %v786 = vsel %vm617, %v778, %v785
      %v787 = vrot.slane %v782, 4
      %v789 = vshrl.u32 %v604, 16
      %v791 = vrot.slane %v789, 7
      %v792 = vshll.u32 %v604, 16
      %v794 = vor.u32 %v791, %v792
      %v795 = vrot.slane %v791, 4
      %v797 = vshrl.u32 %v605, 16
      %v799 = vrot.slane %v797, 7
      %v800 = vshll.u32 %v605, 16
      %v802 = vor.u32 %v799, %v800
      %v803 = vsel %vm617, %v795, %v802
      %v804 = vrot.slane %v799, 4
      %v806 = vshrl.u32 %v606, 16
      %v808 = vrot.slane %v806, 7
      %v809 = vshll.u32 %v606, 16
      %v811 = vor.u32 %v808, %v809
      %v812 = vrot.slane %v808, 4
      %v814 = vshrl.u32 %v607, 16
      %v816 = vrot.slane %v814, 7
      %v817 = vshll.u32 %v607, 16
      %v819 = vor.u32 %v816, %v817
      %v820 = vsel %vm617, %v812, %v819
      %v821 = vrot.slane %v816, 4
      %v823 = vshrl.u32 %v608, 16
      %v825 = vrot.slane %v823, 7
      %v826 = vshll.u32 %v608, 16
      %v828 = vor.u32 %v825, %v826
      %v829 = vrot.slane %v825, 4
      %v831 = vshrl.u32 %v609, 16
      %v833 = vrot.slane %v831, 7
      %v834 = vshll.u32 %v609, 16
      %v836 = vor.u32 %v833, %v834
      %v837 = vsel %vm617, %v829, %v836
      %v838 = vrot.slane %v833, 4
      %v840 = vshrl.u32 %v610, 16
      %v842 = vrot.slane %v840, 7
      %v843 = vshll.u32 %v610, 16
      %v845 = vor.u32 %v842, %v843
      %v846 = vrot.slane %v842, 4
      %v848 = vshrl.u32 %v611, 16
      %v850 = vrot.slane %v848, 7
      %v851 = vshll.u32 %v611, 16
      %v853 = vor.u32 %v850, %v851
      %v854 = vsel %vm617, %v846, %v853
      %v855 = vrot.slane %v850, 4
      %v857 = vshrl.u32 %v612, 16
      %v859 = vrot.slane %v857, 7
      %v860 = vshll.u32 %v612, 16
      %v862 = vor.u32 %v859, %v860
      %v863 = vrot.slane %v859, 4
      %v865 = vshrl.u32 %v613, 16
      %v867 = vrot.slane %v865, 7
      %v868 = vshll.u32 %v613, 16
      %v870 = vor.u32 %v867, %v868
      %v871 = vsel %vm617, %v863, %v870
      %v872 = vrot.slane %v867, 4
      %v874 = vshrl.u32 %v614, 16
      %v876 = vrot.slane %v874, 7
      %v877 = vshll.u32 %v614, 16
      %v879 = vor.u32 %v876, %v877
      %v880 = vrot.slane %v876, 4
      %v882 = vshrl.u32 %v615, 16
      %v884 = vrot.slane %v882, 7
      %v885 = vshll.u32 %v615, 16
      %v887 = vor.u32 %v884, %v885
      %v888 = vsel %vm617, %v880, %v887
      %v889 = vrot.slane %v884, 4
      %vm938 = vcmask 1043456
      %vm939 = vmand %vm938, %vm298
      %v940 = vld [vmem:[%s246] sm:$0xf]
      %v941 = vsel %vm939, %v624, %v940
      %942 = vst [vmem:[%s246] sm:$0xf] %v941
      %943 = vst [vmem:[%s246 + $0x4] sm:$0xf] %v633
      %v944 = vld [vmem:[%s246 + $0x8] sm:$0x1]
      %v945 = vsel %vm249, %v634, %v944
      %946 = vst [vmem:[%s246 + $0x8] sm:$0x1] %v945
      %v947 = vld [vmem:[%s246 + $0xc] sm:$0xf]
      %v948 = vsel %vm939, %v641, %v947
      %949 = vst [vmem:[%s246 + $0xc] sm:$0xf] %v948
      %950 = vst [vmem:[%s246 + $0x10] sm:$0xf] %v650
      %v951 = vld [vmem:[%s246 + $0x14] sm:$0x1]
      %v952 = vsel %vm249, %v651, %v951
      %953 = vst [vmem:[%s246 + $0x14] sm:$0x1] %v952
      %v954 = vld [vmem:[%s246 + $0x18] sm:$0xf]
      %v955 = vsel %vm939, %v658, %v954
      %956 = vst [vmem:[%s246 + $0x18] sm:$0xf] %v955
      %957 = vst [vmem:[%s246 + $0x1c] sm:$0xf] %v667
      %v958 = vld [vmem:[%s246 + $0x20] sm:$0x1]
      %v959 = vsel %vm249, %v668, %v958
      %960 = vst [vmem:[%s246 + $0x20] sm:$0x1] %v959
      %v961 = vld [vmem:[%s246 + $0x24] sm:$0xf]
      %v962 = vsel %vm939, %v675, %v961
      %963 = vst [vmem:[%s246 + $0x24] sm:$0xf] %v962
      %964 = vst [vmem:[%s246 + $0x28] sm:$0xf] %v684
      %v965 = vld [vmem:[%s246 + $0x2c] sm:$0x1]
      %v966 = vsel %vm249, %v685, %v965
      %967 = vst [vmem:[%s246 + $0x2c] sm:$0x1] %v966
      %v968 = vld [vmem:[%s246 + $0x30] sm:$0xf]
      %v969 = vsel %vm939, %v692, %v968
      %970 = vst [vmem:[%s246 + $0x30] sm:$0xf] %v969
      %971 = vst [vmem:[%s246 + $0x34] sm:$0xf] %v701
      %v972 = vld [vmem:[%s246 + $0x38] sm:$0x1]
      %v973 = vsel %vm249, %v702, %v972
      %974 = vst [vmem:[%s246 + $0x38] sm:$0x1] %v973
      %v975 = vld [vmem:[%s246 + $0x3c] sm:$0xf]
      %v976 = vsel %vm939, %v709, %v975
      %977 = vst [vmem:[%s246 + $0x3c] sm:$0xf] %v976
      %978 = vst [vmem:[%s246 + $0x40] sm:$0xf] %v718
      %v979 = vld [vmem:[%s246 + $0x44] sm:$0x1]
      %v980 = vsel %vm249, %v719, %v979
      %981 = vst [vmem:[%s246 + $0x44] sm:$0x1] %v980
      %v982 = vld [vmem:[%s246 + $0x48] sm:$0xf]
      %v983 = vsel %vm939, %v726, %v982
      %984 = vst [vmem:[%s246 + $0x48] sm:$0xf] %v983
      %985 = vst [vmem:[%s246 + $0x4c] sm:$0xf] %v735
      %v986 = vld [vmem:[%s246 + $0x50] sm:$0x1]
      %v987 = vsel %vm249, %v736, %v986
      %988 = vst [vmem:[%s246 + $0x50] sm:$0x1] %v987
      %v989 = vld [vmem:[%s246 + $0x54] sm:$0xf]
      %v990 = vsel %vm939, %v743, %v989
      %991 = vst [vmem:[%s246 + $0x54] sm:$0xf] %v990
      %992 = vst [vmem:[%s246 + $0x58] sm:$0xf] %v752
      %v993 = vld [vmem:[%s246 + $0x5c] sm:$0x1]
      %v994 = vsel %vm249, %v753, %v993
      %995 = vst [vmem:[%s246 + $0x5c] sm:$0x1] %v994
      %v996 = vld [vmem:[%s246 + $0x60] sm:$0xf]
      %v997 = vsel %vm939, %v760, %v996
      %998 = vst [vmem:[%s246 + $0x60] sm:$0xf] %v997
      %999 = vst [vmem:[%s246 + $0x64] sm:$0xf] %v769
      %v1000 = vld [vmem:[%s246 + $0x68] sm:$0x1]
      %v1001 = vsel %vm249, %v770, %v1000
      %1002 = vst [vmem:[%s246 + $0x68] sm:$0x1] %v1001
      %v1003 = vld [vmem:[%s246 + $0x6c] sm:$0xf]
      %v1004 = vsel %vm939, %v777, %v1003
      %1005 = vst [vmem:[%s246 + $0x6c] sm:$0xf] %v1004
      %1006 = vst [vmem:[%s246 + $0x70] sm:$0xf] %v786
      %v1007 = vld [vmem:[%s246 + $0x74] sm:$0x1]
      %v1008 = vsel %vm249, %v787, %v1007
      %1009 = vst [vmem:[%s246 + $0x74] sm:$0x1] %v1008
      %v1010 = vld [vmem:[%s246 + $0x78] sm:$0xf]
      %v1011 = vsel %vm939, %v794, %v1010
      %1012 = vst [vmem:[%s246 + $0x78] sm:$0xf] %v1011
      %1013 = vst [vmem:[%s246 + $0x7c] sm:$0xf] %v803
      %v1014 = vld [vmem:[%s246 + $0x80] sm:$0x1]
      %v1015 = vsel %vm249, %v804, %v1014
      %1016 = vst [vmem:[%s246 + $0x80] sm:$0x1] %v1015
      %v1017 = vld [vmem:[%s246 + $0x84] sm:$0xf]
      %v1018 = vsel %vm939, %v811, %v1017
      %1019 = vst [vmem:[%s246 + $0x84] sm:$0xf] %v1018
      %1020 = vst [vmem:[%s246 + $0x88] sm:$0xf] %v820
      %v1021 = vld [vmem:[%s246 + $0x8c] sm:$0x1]
      %v1022 = vsel %vm249, %v821, %v1021
      %1023 = vst [vmem:[%s246 + $0x8c] sm:$0x1] %v1022
      %v1024 = vld [vmem:[%s246 + $0x90] sm:$0xf]
      %v1025 = vsel %vm939, %v828, %v1024
      %1026 = vst [vmem:[%s246 + $0x90] sm:$0xf] %v1025
      %1027 = vst [vmem:[%s246 + $0x94] sm:$0xf] %v837
      %v1028 = vld [vmem:[%s246 + $0x98] sm:$0x1]
      %v1029 = vsel %vm249, %v838, %v1028
      %1030 = vst [vmem:[%s246 + $0x98] sm:$0x1] %v1029
      %v1031 = vld [vmem:[%s246 + $0x9c] sm:$0xf]
      %v1032 = vsel %vm939, %v845, %v1031
      %1033 = vst [vmem:[%s246 + $0x9c] sm:$0xf] %v1032
      %1034 = vst [vmem:[%s246 + $0xa0] sm:$0xf] %v854
      %v1035 = vld [vmem:[%s246 + $0xa4] sm:$0x1]
      %v1036 = vsel %vm249, %v855, %v1035
      %1037 = vst [vmem:[%s246 + $0xa4] sm:$0x1] %v1036
      %v1038 = vld [vmem:[%s246 + $0xa8] sm:$0xf]
      %v1039 = vsel %vm939, %v862, %v1038
      %1040 = vst [vmem:[%s246 + $0xa8] sm:$0xf] %v1039
      %1041 = vst [vmem:[%s246 + $0xac] sm:$0xf] %v871
      %v1042 = vld [vmem:[%s246 + $0xb0] sm:$0x1]
      %v1043 = vsel %vm249, %v872, %v1042
      %1044 = vst [vmem:[%s246 + $0xb0] sm:$0x1] %v1043
      %v1045 = vld [vmem:[%s246 + $0xb4] sm:$0xf]
      %v1046 = vsel %vm939, %v879, %v1045
      %1047 = vst [vmem:[%s246 + $0xb4] sm:$0xf] %v1046
      %1048 = vst [vmem:[%s246 + $0xb8] sm:$0xf] %v888
      %v1049 = vld [vmem:[%s246 + $0xbc] sm:$0x1]
      %v1050 = vsel %vm249, %v889, %v1049
      %1051 = vst [vmem:[%s246 + $0xbc] sm:$0x1] %v1050
      %v1052 = vld [vmem:[#allocation2] sm:$0xf]
      %v1053 = vld [vmem:[#allocation2 + $0x4] sm:$0xf]
      %v1054 = vld [vmem:[#allocation2 + $0xc] sm:$0xf]
      %v1055 = vld [vmem:[#allocation2 + $0x10] sm:$0xf]
      %v1056 = vld [vmem:[#allocation2 + $0x18] sm:$0xf]
      %v1057 = vld [vmem:[#allocation2 + $0x1c] sm:$0xf]
      %v1058 = vld [vmem:[#allocation2 + $0x24] sm:$0xf]
      %v1059 = vld [vmem:[#allocation2 + $0x28] sm:$0xf]
      %v1060 = vld [vmem:[#allocation2 + $0x30] sm:$0xf]
      %v1061 = vld [vmem:[#allocation2 + $0x34] sm:$0xf]
      %v1062 = vld [vmem:[#allocation2 + $0x3c] sm:$0xf]
      %v1063 = vld [vmem:[#allocation2 + $0x40] sm:$0xf]
      %v1064 = vld [vmem:[#allocation2 + $0x48] sm:$0xf]
      %v1065 = vld [vmem:[#allocation2 + $0x4c] sm:$0xf]
      %v1066 = vld [vmem:[#allocation2 + $0x54] sm:$0xf]
      %v1067 = vld [vmem:[#allocation2 + $0x58] sm:$0xf]
      %v1068 = vld [vmem:[#allocation2 + $0x60] sm:$0xf]
      %v1069 = vld [vmem:[#allocation2 + $0x64] sm:$0xf]
      %v1070 = vld [vmem:[#allocation2 + $0x6c] sm:$0xf]
      %v1071 = vld [vmem:[#allocation2 + $0x70] sm:$0xf]
      %v1072 = vld [vmem:[#allocation2 + $0x78] sm:$0xf]
      %v1073 = vld [vmem:[#allocation2 + $0x7c] sm:$0xf]
      %v1074 = vld [vmem:[#allocation2 + $0x84] sm:$0xf]
      %v1075 = vld [vmem:[#allocation2 + $0x88] sm:$0xf]
      %v1076 = vld [vmem:[#allocation2 + $0x90] sm:$0xf]
      %v1077 = vld [vmem:[#allocation2 + $0x94] sm:$0xf]
      %v1078 = vld [vmem:[#allocation2 + $0x9c] sm:$0xf]
      %v1079 = vld [vmem:[#allocation2 + $0xa0] sm:$0xf]
      %v1080 = vld [vmem:[#allocation2 + $0xa8] sm:$0xf]
      %v1081 = vld [vmem:[#allocation2 + $0xac] sm:$0xf]
      %v1082 = vld [vmem:[#allocation2 + $0xb4] sm:$0xf]
      %v1083 = vld [vmem:[#allocation2 + $0xb8] sm:$0xf]
      %v1084 = vld [vmem:[%s3] sm:$0xf]
      %v1085 = vld [vmem:[%s3 + $0x4] sm:$0xf]
      %v1086 = vld [vmem:[%s3 + $0x8] sm:$0xf]
      %v1087 = vld [vmem:[%s3 + $0xc] sm:$0xf]
      %v1088 = vld [vmem:[%s3 + $0x10] sm:$0xf]
      %v1089 = vld [vmem:[%s3 + $0x14] sm:$0xf]
      %v1090 = vld [vmem:[%s3 + $0x18] sm:$0xf]
      %v1091 = vld [vmem:[%s3 + $0x1c] sm:$0xf]
      %v1092 = vld [vmem:[%s3 + $0x20] sm:$0xf]
      %v1093 = vld [vmem:[%s3 + $0x24] sm:$0xf]
      %v1094 = vld [vmem:[%s3 + $0x28] sm:$0xf]
      %v1095 = vld [vmem:[%s3 + $0x2c] sm:$0xf]
      %v1096 = vld [vmem:[%s3 + $0x30] sm:$0xf]
      %v1097 = vld [vmem:[%s3 + $0x34] sm:$0xf]
      %v1098 = vld [vmem:[%s3 + $0x38] sm:$0xf]
      %v1099 = vld [vmem:[%s3 + $0x3c] sm:$0xf]
      %v1100 = vld [vmem:[#allocation2 + $0x8] sm:$0x1]
      %v1101 = vld [vmem:[#allocation2 + $0x14] sm:$0x1]
      %v1102 = vld [vmem:[#allocation2 + $0x20] sm:$0x1]
      %v1103 = vld [vmem:[#allocation2 + $0x2c] sm:$0x1]
      %v1104 = vld [vmem:[#allocation2 + $0x38] sm:$0x1]
      %v1105 = vld [vmem:[#allocation2 + $0x44] sm:$0x1]
      %v1106 = vld [vmem:[#allocation2 + $0x50] sm:$0x1]
      %v1107 = vld [vmem:[#allocation2 + $0x5c] sm:$0x1]
      %v1108 = vld [vmem:[#allocation2 + $0x68] sm:$0x1]
      %v1109 = vld [vmem:[#allocation2 + $0x74] sm:$0x1]
      %v1110 = vld [vmem:[#allocation2 + $0x80] sm:$0x1]
      %v1111 = vld [vmem:[#allocation2 + $0x8c] sm:$0x1]
      %v1112 = vld [vmem:[#allocation2 + $0x98] sm:$0x1]
      %v1113 = vld [vmem:[#allocation2 + $0xa4] sm:$0x1]
      %v1114 = vld [vmem:[#allocation2 + $0xb0] sm:$0x1]
      %v1115 = vld [vmem:[#allocation2 + $0xbc] sm:$0x1]
      %vm1116 = vsmask.f32 3328
      %vm1117 = vsmask.f32 7440
      %vm1118 = vmor %vm1116, %vm1117
      %v1120 = vshrl.u32 %v1052, 16
      %v1122 = vrot.slane %v1120, 4
      %v1123 = vshll.u32 %v1052, 16
      %v1125 = vrot.slane %v1123, 5
      %v1126 = vor.u32 %v1122, %v1125
      %v1127 = vrot.slane %v1126, 4
      %v1129 = vshll.u32 %v1053, 16
      %v1131 = vrot.slane %v1129, 5
      %v1132 = vsel %vm1118, %v1127, %v1131
      %v1133 = vshrl.u32 %v1053, 16
      %v1135 = vrot.slane %v1133, 4
      %v1136 = vor.u32 %v1135, %v1131
      %v1137 = vrot.slane %v1136, 4
      %v1139 = vshll.u32 %v1100, 16
      %v1141 = vrot.slane %v1139, 5
      %v1142 = vsel %vm1118, %v1137, %v1141
      %v1144 = vshrl.u32 %v1054, 16
      %v1146 = vrot.slane %v1144, 4
      %v1147 = vshll.u32 %v1054, 16
      %v1149 = vrot.slane %v1147, 5
      %v1150 = vor.u32 %v1146, %v1149
      %v1151 = vrot.slane %v1150, 4
      %v1153 = vshll.u32 %v1055, 16
      %v1155 = vrot.slane %v1153, 5
      %v1156 = vsel %vm1118, %v1151, %v1155
      %v1157 = vshrl.u32 %v1055, 16
      %v1159 = vrot.slane %v1157, 4
      %v1160 = vor.u32 %v1159, %v1155
      %v1161 = vrot.slane %v1160, 4
      %v1163 = vshll.u32 %v1101, 16
      %v1165 = vrot.slane %v1163, 5
      %v1166 = vsel %vm1118, %v1161, %v1165
      %v1168 = vshrl.u32 %v1056, 16
      %v1170 = vrot.slane %v1168, 4
      %v1171 = vshll.u32 %v1056, 16
      %v1173 = vrot.slane %v1171, 5
      %v1174 = vor.u32 %v1170, %v1173
      %v1175 = vrot.slane %v1174, 4
      %v1177 = vshll.u32 %v1057, 16
      %v1179 = vrot.slane %v1177, 5
      %v1180 = vsel %vm1118, %v1175, %v1179
      %v1181 = vshrl.u32 %v1057, 16
      %v1183 = vrot.slane %v1181, 4
      %v1184 = vor.u32 %v1183, %v1179
      %v1185 = vrot.slane %v1184, 4
      %v1187 = vshll.u32 %v1102, 16
      %v1189 = vrot.slane %v1187, 5
      %v1190 = vsel %vm1118, %v1185, %v1189
      %v1192 = vshrl.u32 %v1058, 16
      %v1194 = vrot.slane %v1192, 4
      %v1195 = vshll.u32 %v1058, 16
      %v1197 = vrot.slane %v1195, 5
      %v1198 = vor.u32 %v1194, %v1197
      %v1199 = vrot.slane %v1198, 4
      %v1201 = vshll.u32 %v1059, 16
      %v1203 = vrot.slane %v1201, 5
      %v1204 = vsel %vm1118, %v1199, %v1203
      %v1205 = vshrl.u32 %v1059, 16
      %v1207 = vrot.slane %v1205, 4
      %v1208 = vor.u32 %v1207, %v1203
      %v1209 = vrot.slane %v1208, 4
      %v1211 = vshll.u32 %v1103, 16
      %v1213 = vrot.slane %v1211, 5
      %v1214 = vsel %vm1118, %v1209, %v1213
      %v1216 = vshrl.u32 %v1060, 16
      %v1218 = vrot.slane %v1216, 4
      %v1219 = vshll.u32 %v1060, 16
      %v1221 = vrot.slane %v1219, 5
      %v1222 = vor.u32 %v1218, %v1221
      %v1223 = vrot.slane %v1222, 4
      %v1225 = vshll.u32 %v1061, 16
      %v1227 = vrot.slane %v1225, 5
      %v1228 = vsel %vm1118, %v1223, %v1227
      %v1229 = vshrl.u32 %v1061, 16
      %v1231 = vrot.slane %v1229, 4
      %v1232 = vor.u32 %v1231, %v1227
      %v1233 = vrot.slane %v1232, 4
      %v1235 = vshll.u32 %v1104, 16
      %v1237 = vrot.slane %v1235, 5
      %v1238 = vsel %vm1118, %v1233, %v1237
      %v1240 = vshrl.u32 %v1062, 16
      %v1242 = vrot.slane %v1240, 4
      %v1243 = vshll.u32 %v1062, 16
      %v1245 = vrot.slane %v1243, 5
      %v1246 = vor.u32 %v1242, %v1245
      %v1247 = vrot.slane %v1246, 4
      %v1249 = vshll.u32 %v1063, 16
      %v1251 = vrot.slane %v1249, 5
      %v1252 = vsel %vm1118, %v1247, %v1251
      %v1253 = vshrl.u32 %v1063, 16
      %v1255 = vrot.slane %v1253, 4
      %v1256 = vor.u32 %v1255, %v1251
      %v1257 = vrot.slane %v1256, 4
      %v1259 = vshll.u32 %v1105, 16
      %v1261 = vrot.slane %v1259, 5
      %v1262 = vsel %vm1118, %v1257, %v1261
      %v1264 = vshrl.u32 %v1064, 16
      %v1266 = vrot.slane %v1264, 4
      %v1267 = vshll.u32 %v1064, 16
      %v1269 = vrot.slane %v1267, 5
      %v1270 = vor.u32 %v1266, %v1269
      %v1271 = vrot.slane %v1270, 4
      %v1273 = vshll.u32 %v1065, 16
      %v1275 = vrot.slane %v1273, 5
      %v1276 = vsel %vm1118, %v1271, %v1275
      %v1277 = vshrl.u32 %v1065, 16
      %v1279 = vrot.slane %v1277, 4
      %v1280 = vor.u32 %v1279, %v1275
      %v1281 = vrot.slane %v1280, 4
      %v1283 = vshll.u32 %v1106, 16
      %v1285 = vrot.slane %v1283, 5
      %v1286 = vsel %vm1118, %v1281, %v1285
      %v1288 = vshrl.u32 %v1066, 16
      %v1290 = vrot.slane %v1288, 4
      %v1291 = vshll.u32 %v1066, 16
      %v1293 = vrot.slane %v1291, 5
      %v1294 = vor.u32 %v1290, %v1293
      %v1295 = vrot.slane %v1294, 4
      %v1297 = vshll.u32 %v1067, 16
      %v1299 = vrot.slane %v1297, 5
      %v1300 = vsel %vm1118, %v1295, %v1299
      %v1301 = vshrl.u32 %v1067, 16
      %v1303 = vrot.slane %v1301, 4
      %v1304 = vor.u32 %v1303, %v1299
      %v1305 = vrot.slane %v1304, 4
      %v1307 = vshll.u32 %v1107, 16
      %v1309 = vrot.slane %v1307, 5
      %v1310 = vsel %vm1118, %v1305, %v1309
      %v1312 = vshrl.u32 %v1068, 16
      %v1314 = vrot.slane %v1312, 4
      %v1315 = vshll.u32 %v1068, 16
      %v1317 = vrot.slane %v1315, 5
      %v1318 = vor.u32 %v1314, %v1317
      %v1319 = vrot.slane %v1318, 4
      %v1321 = vshll.u32 %v1069, 16
      %v1323 = vrot.slane %v1321, 5
      %v1324 = vsel %vm1118, %v1319, %v1323
      %v1325 = vshrl.u32 %v1069, 16
      %v1327 = vrot.slane %v1325, 4
      %v1328 = vor.u32 %v1327, %v1323
      %v1329 = vrot.slane %v1328, 4
      %v1331 = vshll.u32 %v1108, 16
      %v1333 = vrot.slane %v1331, 5
      %v1334 = vsel %vm1118, %v1329, %v1333
      %v1336 = vshrl.u32 %v1070, 16
      %v1338 = vrot.slane %v1336, 4
      %v1339 = vshll.u32 %v1070, 16
      %v1341 = vrot.slane %v1339, 5
      %v1342 = vor.u32 %v1338, %v1341
      %v1343 = vrot.slane %v1342, 4
      %v1345 = vshll.u32 %v1071, 16
      %v1347 = vrot.slane %v1345, 5
      %v1348 = vsel %vm1118, %v1343, %v1347
      %v1349 = vshrl.u32 %v1071, 16
      %v1351 = vrot.slane %v1349, 4
      %v1352 = vor.u32 %v1351, %v1347
      %v1353 = vrot.slane %v1352, 4
      %v1355 = vshll.u32 %v1109, 16
      %v1357 = vrot.slane %v1355, 5
      %v1358 = vsel %vm1118, %v1353, %v1357
      %v1360 = vshrl.u32 %v1072, 16
      %v1362 = vrot.slane %v1360, 4
      %v1363 = vshll.u32 %v1072, 16
      %v1365 = vrot.slane %v1363, 5
      %v1366 = vor.u32 %v1362, %v1365
      %v1367 = vrot.slane %v1366, 4
      %v1369 = vshll.u32 %v1073, 16
      %v1371 = vrot.slane %v1369, 5
      %v1372 = vsel %vm1118, %v1367, %v1371
      %v1373 = vshrl.u32 %v1073, 16
      %v1375 = vrot.slane %v1373, 4
      %v1376 = vor.u32 %v1375, %v1371
      %v1377 = vrot.slane %v1376, 4
      %v1379 = vshll.u32 %v1110, 16
      %v1381 = vrot.slane %v1379, 5
      %v1382 = vsel %vm1118, %v1377, %v1381
      %v1384 = vshrl.u32 %v1074, 16
      %v1386 = vrot.slane %v1384, 4
      %v1387 = vshll.u32 %v1074, 16
      %v1389 = vrot.slane %v1387, 5
      %v1390 = vor.u32 %v1386, %v1389
      %v1391 = vrot.slane %v1390, 4
      %v1393 = vshll.u32 %v1075, 16
      %v1395 = vrot.slane %v1393, 5
      %v1396 = vsel %vm1118, %v1391, %v1395
      %v1397 = vshrl.u32 %v1075, 16
      %v1399 = vrot.slane %v1397, 4
      %v1400 = vor.u32 %v1399, %v1395
      %v1401 = vrot.slane %v1400, 4
      %v1403 = vshll.u32 %v1111, 16
      %v1405 = vrot.slane %v1403, 5
      %v1406 = vsel %vm1118, %v1401, %v1405
      %v1408 = vshrl.u32 %v1076, 16
      %v1410 = vrot.slane %v1408, 4
      %v1411 = vshll.u32 %v1076, 16
      %v1413 = vrot.slane %v1411, 5
      %v1414 = vor.u32 %v1410, %v1413
      %v1415 = vrot.slane %v1414, 4
      %v1417 = vshll.u32 %v1077, 16
      %v1419 = vrot.slane %v1417, 5
      %v1420 = vsel %vm1118, %v1415, %v1419
      %v1421 = vshrl.u32 %v1077, 16
      %v1423 = vrot.slane %v1421, 4
      %v1424 = vor.u32 %v1423, %v1419
      %v1425 = vrot.slane %v1424, 4
      %v1427 = vshll.u32 %v1112, 16
      %v1429 = vrot.slane %v1427, 5
      %v1430 = vsel %vm1118, %v1425, %v1429
      %v1432 = vshrl.u32 %v1078, 16
      %v1434 = vrot.slane %v1432, 4
      %v1435 = vshll.u32 %v1078, 16
      %v1437 = vrot.slane %v1435, 5
      %v1438 = vor.u32 %v1434, %v1437
      %v1439 = vrot.slane %v1438, 4
      %v1441 = vshll.u32 %v1079, 16
      %v1443 = vrot.slane %v1441, 5
      %v1444 = vsel %vm1118, %v1439, %v1443
      %v1445 = vshrl.u32 %v1079, 16
      %v1447 = vrot.slane %v1445, 4
      %v1448 = vor.u32 %v1447, %v1443
      %v1449 = vrot.slane %v1448, 4
      %v1451 = vshll.u32 %v1113, 16
      %v1453 = vrot.slane %v1451, 5
      %v1454 = vsel %vm1118, %v1449, %v1453
      %v1456 = vshrl.u32 %v1080, 16
      %v1458 = vrot.slane %v1456, 4
      %v1459 = vshll.u32 %v1080, 16
      %v1461 = vrot.slane %v1459, 5
      %v1462 = vor.u32 %v1458, %v1461
      %v1463 = vrot.slane %v1462, 4
      %v1465 = vshll.u32 %v1081, 16
      %v1467 = vrot.slane %v1465, 5
      %v1468 = vsel %vm1118, %v1463, %v1467
      %v1469 = vshrl.u32 %v1081, 16
      %v1471 = vrot.slane %v1469, 4
      %v1472 = vor.u32 %v1471, %v1467
      %v1473 = vrot.slane %v1472, 4
      %v1475 = vshll.u32 %v1114, 16
      %v1477 = vrot.slane %v1475, 5
      %v1478 = vsel %vm1118, %v1473, %v1477
      %v1480 = vshrl.u32 %v1082, 16
      %v1482 = vrot.slane %v1480, 4
      %v1483 = vshll.u32 %v1082, 16
      %v1485 = vrot.slane %v1483, 5
      %v1486 = vor.u32 %v1482, %v1485
      %v1487 = vrot.slane %v1486, 4
      %v1489 = vshll.u32 %v1083, 16
      %v1491 = vrot.slane %v1489, 5
      %v1492 = vsel %vm1118, %v1487, %v1491
      %v1493 = vshrl.u32 %v1083, 16
      %v1495 = vrot.slane %v1493, 4
      %v1496 = vor.u32 %v1495, %v1491
      %v1497 = vrot.slane %v1496, 4
      %v1499 = vshll.u32 %v1115, 16
      %v1501 = vrot.slane %v1499, 5
      %v1502 = vsel %vm1118, %v1497, %v1501
      %s1503 = scalar_lea.vmem %s3, 64
      %v1504 = vld [vmem:[%s1503] sm:$0xf]
      %v1505 = vld [vmem:[%s1503 + $0x4] sm:$0xf]
      %v1506 = vld [vmem:[%s1503 + $0x8] sm:$0xf]
      %v1507 = vld [vmem:[%s1503 + $0xc] sm:$0xf]
      %v1508 = vld [vmem:[%s1503 + $0x10] sm:$0xf]
      %v1509 = vld [vmem:[%s1503 + $0x14] sm:$0xf]
      %v1510 = vld [vmem:[%s1503 + $0x18] sm:$0xf]
      %v1511 = vld [vmem:[%s1503 + $0x1c] sm:$0xf]
      %v1512 = vld [vmem:[%s1503 + $0x20] sm:$0xf]
      %v1513 = vld [vmem:[%s1503 + $0x24] sm:$0xf]
      %v1514 = vld [vmem:[%s1503 + $0x28] sm:$0xf]
      %v1515 = vld [vmem:[%s1503 + $0x2c] sm:$0xf]
      %v1516 = vld [vmem:[%s1503 + $0x30] sm:$0xf]
      %v1517 = vld [vmem:[%s1503 + $0x34] sm:$0xf]
      %v1518 = vld [vmem:[%s1503 + $0x38] sm:$0xf]
      %v1519 = vld [vmem:[%s1503 + $0x3c] sm:$0xf]
      %v1520 = vunpack.c.l.b16 %v1132
      %v1521 = vunpack.c.l.b16 %v1142
      %v1522 = vunpack.c.l.b16 %v1156
      %v1523 = vunpack.c.l.b16 %v1166
      %v1524 = vunpack.c.l.b16 %v1180
      %v1525 = vunpack.c.l.b16 %v1190
      %v1526 = vunpack.c.l.b16 %v1204
      %v1527 = vunpack.c.l.b16 %v1214
      %v1528 = vunpack.c.l.b16 %v1228
      %v1529 = vunpack.c.l.b16 %v1238
      %v1530 = vunpack.c.l.b16 %v1252
      %v1531 = vunpack.c.l.b16 %v1262
      %v1532 = vunpack.c.l.b16 %v1276
      %v1533 = vunpack.c.l.b16 %v1286
      %v1534 = vunpack.c.l.b16 %v1300
      %v1535 = vunpack.c.l.b16 %v1310
      %v1536 = vunpack.c.l.b16 %v1324
      %v1537 = vunpack.c.l.b16 %v1334
      %v1538 = vunpack.c.l.b16 %v1348
      %v1539 = vunpack.c.l.b16 %v1358
      %v1540 = vunpack.c.l.b16 %v1372
      %v1541 = vunpack.c.l.b16 %v1382
      %v1542 = vunpack.c.l.b16 %v1396
      %v1543 = vunpack.c.l.b16 %v1406
      %v1544 = vunpack.c.l.b16 %v1420
      %v1545 = vunpack.c.l.b16 %v1430
      %v1546 = vunpack.c.l.b16 %v1444
      %v1547 = vunpack.c.l.b16 %v1454
      %v1548 = vunpack.c.l.b16 %v1468
      %v1549 = vunpack.c.l.b16 %v1478
      %v1550 = vunpack.c.l.b16 %v1492
      %v1551 = vunpack.c.l.b16 %v1502
      %v1552 = vpack.c.b16 %v1521, %v1520
      %v1553 = vpack.c.b16 %v1523, %v1522
      %v1554 = vpack.c.b16 %v1525, %v1524
      %v1555 = vpack.c.b16 %v1527, %v1526
      %v1556 = vpack.c.b16 %v1529, %v1528
      %v1557 = vpack.c.b16 %v1531, %v1530
      %v1558 = vpack.c.b16 %v1533, %v1532
      %v1559 = vpack.c.b16 %v1535, %v1534
      %v1560 = vpack.c.b16 %v1537, %v1536
      %v1561 = vpack.c.b16 %v1539, %v1538
      %v1562 = vpack.c.b16 %v1541, %v1540
      %v1563 = vpack.c.b16 %v1543, %v1542
      %v1564 = vpack.c.b16 %v1545, %v1544
      %v1565 = vpack.c.b16 %v1547, %v1546
      %v1566 = vpack.c.b16 %v1549, %v1548
      %v1567 = vpack.c.b16 %v1551, %v1550
      %v1600 = vunpack.c.l.b16 %v1504
      %v1601 = vunpack.c.l.b16 %v1505
      %v1602 = vunpack.c.l.b16 %v1506
      %v1603 = vunpack.c.l.b16 %v1507
      %v1604 = vunpack.c.l.b16 %v1508
      %v1605 = vunpack.c.l.b16 %v1509
      %v1606 = vunpack.c.l.b16 %v1510
      %v1607 = vunpack.c.l.b16 %v1511
      %v1608 = vunpack.c.l.b16 %v1512
      %v1609 = vunpack.c.l.b16 %v1513
      %v1610 = vunpack.c.l.b16 %v1514
      %v1611 = vunpack.c.l.b16 %v1515
      %v1612 = vunpack.c.l.b16 %v1516
      %v1613 = vunpack.c.l.b16 %v1517
      %v1614 = vunpack.c.l.b16 %v1518
      %v1615 = vunpack.c.l.b16 %v1519
      %v1616 = vpack.c.b16 %v1601, %v1600
      %v1617 = vpack.c.b16 %v1603, %v1602
      %v1618 = vpack.c.b16 %v1605, %v1604
      %v1619 = vpack.c.b16 %v1607, %v1606
      %v1620 = vpack.c.b16 %v1609, %v1608
      %v1621 = vpack.c.b16 %v1611, %v1610
      %v1622 = vpack.c.b16 %v1613, %v1612
      %v1623 = vpack.c.b16 %v1615, %v1614
      %1632 = vmatprep.subr.bf16.mxu0 0
      %1633 = vmatpush1.bf16.msra.mxu0 %v1616
      %1634 = vmatprep.subr.bf16.mxu0 0
      %1635 = vmatpush1.bf16.msra.mxu0 %v1617
      %1636 = vmatprep.subr.bf16.mxu0 0
      %1637 = vmatpush1.bf16.msra.mxu0 %v1618
      %1638 = vmatprep.subr.bf16.mxu0 0
      %1639 = vmatpush1.bf16.msra.mxu0 %v1619
      %1640 = vmatprep.subr.bf16.mxu0 0
      %1641 = vmatpush1.bf16.msra.mxu0 %v1620
      %1642 = vmatprep.subr.bf16.mxu0 0
      %1643 = vmatpush1.bf16.msra.mxu0 %v1621
      %1644 = vmatprep.subr.bf16.mxu0 0
      %1645 = vmatpush1.bf16.msra.mxu0 %v1622
      %1646 = vmatprep.subr.bf16.mxu0 0
      %1647 = vmatpush1.bf16.msra.mxu0 %v1623
      %1648 = vmatprep.subr.bf16.mxu0 0
      %1649 = vmatpush1.bf16.msra.mxu0 0
      %1650 = vmatprep.subr.bf16.mxu0 0
      %1651 = vmatpush1.bf16.msra.mxu0 0
      %1652 = vmatprep.subr.bf16.mxu0 0
      %1653 = vmatpush1.bf16.msra.mxu0 0
      %1654 = vmatprep.subr.bf16.mxu0 0
      %1655 = vmatpush1.bf16.msra.mxu0 0
      %1656 = vmatprep.subr.bf16.mxu0 0
      %1657 = vmatpush1.bf16.msra.mxu0 0
      %1658 = vmatprep.subr.bf16.mxu0 0
      %1659 = vmatpush1.bf16.msra.mxu0 0
      %1660 = vmatprep.subr.bf16.mxu0 0
      %1661 = vmatpush1.bf16.msra.mxu0 0
      %1662 = vmatprep.subr.bf16.mxu0 0
      %1663 = vmatpush1.bf16.msra.mxu0 0
      %1664 = vmatprep.mubr.bf16.mxu0 0
      %1665 = vmatmul.mubr.bf16.gmra.mrb[0].mxu0 %v1552
      %v1666 = vpop.f32.mrb[0].mxu0
      %v1667 = vadd.f32 0.0, %v1666
      %v1668 = vpop.f32.mrb[0].mxu0
      %v1669 = vpop.f32.mrb[0].mxu0
      %v1670 = vadd.f32 0.0, %v1669
      %v1671 = vpop.f32.mrb[0].mxu0
      %1672 = vmatprep.mubr.bf16.mxu0 0
      %1673 = vmatmul.mubr.bf16.gmra.mrb[0].mxu0 %v1553
      %v1674 = vpop.f32.mrb[0].mxu0
      %v1675 = vadd.f32 0.0, %v1674
      %v1676 = vpop.f32.mrb[0].mxu0
      %v1677 = vpop.f32.mrb[0].mxu0
      %v1678 = vadd.f32 0.0, %v1677
      %v1679 = vpop.f32.mrb[0].mxu0
      %1680 = vmatprep.mubr.bf16.mxu0 0
      %1681 = vmatmul.mubr.bf16.gmra.mrb[0].mxu0 %v1554
      %v1682 = vpop.f32.mrb[0].mxu0
      %v1683 = vadd.f32 0.0, %v1682
      %v1684 = vpop.f32.mrb[0].mxu0
      %v1685 = vpop.f32.mrb[0].mxu0
      %v1686 = vadd.f32 0.0, %v1685
      %v1687 = vpop.f32.mrb[0].mxu0
      %1688 = vmatprep.mubr.bf16.mxu0 0
      %1689 = vmatmul.mubr.bf16.gmra.mrb[0].mxu0 %v1555
      %v1690 = vpop.f32.mrb[0].mxu0
      %v1691 = vadd.f32 0.0, %v1690
      %v1692 = vpop.f32.mrb[0].mxu0
      %v1693 = vpop.f32.mrb[0].mxu0
      %v1694 = vadd.f32 0.0, %v1693
      %v1695 = vpop.f32.mrb[0].mxu0
      %1696 = vmatprep.mubr.bf16.mxu0 0
      %1697 = vmatmul.mubr.bf16.gmra.mrb[0].mxu0 %v1556
      %v1698 = vpop.f32.mrb[0].mxu0
      %v1699 = vadd.f32 0.0, %v1698
      %v1700 = vpop.f32.mrb[0].mxu0
      %v1701 = vpop.f32.mrb[0].mxu0
      %v1702 = vadd.f32 0.0, %v1701
      %v1703 = vpop.f32.mrb[0].mxu0
      %1704 = vmatprep.mubr.bf16.mxu0 0
      %1705 = vmatmul.mubr.bf16.gmra.mrb[0].mxu0 %v1557
      %v1706 = vpop.f32.mrb[0].mxu0
      %v1707 = vadd.f32 0.0, %v1706
      %v1708 = vpop.f32.mrb[0].mxu0
      %v1709 = vpop.f32.mrb[0].mxu0
      %v1710 = vadd.f32 0.0, %v1709
      %v1711 = vpop.f32.mrb[0].mxu0
      %1712 = vmatprep.mubr.bf16.mxu0 0
      %1713 = vmatmul.mubr.bf16.gmra.mrb[0].mxu0 %v1558
      %v1714 = vpop.f32.mrb[0].mxu0
      %v1715 = vadd.f32 0.0, %v1714
      %v1716 = vpop.f32.mrb[0].mxu0
      %v1717 = vpop.f32.mrb[0].mxu0
      %v1718 = vadd.f32 0.0, %v1717
      %v1719 = vpop.f32.mrb[0].mxu0
      %1720 = vmatprep.mubr.bf16.mxu0 0
      %1721 = vmatmul.mubr.bf16.gmra.mrb[0].mxu0 %v1559
      %v1722 = vpop.f32.mrb[0].mxu0
      %v1723 = vadd.f32 0.0, %v1722
      %v1724 = vpop.f32.mrb[0].mxu0
      %v1725 = vpop.f32.mrb[0].mxu0
      %v1726 = vadd.f32 0.0, %v1725
      %v1727 = vpop.f32.mrb[0].mxu0
      %1728 = vmatprep.mubr.bf16.mxu0 0
      %1729 = vmatmul.mubr.bf16.gmra.mrb[0].mxu0 %v1560
      %v1730 = vpop.f32.mrb[0].mxu0
      %v1731 = vadd.f32 0.0, %v1730
      %v1732 = vpop.f32.mrb[0].mxu0
      %v1733 = vpop.f32.mrb[0].mxu0
      %v1734 = vadd.f32 0.0, %v1733
      %v1735 = vpop.f32.mrb[0].mxu0
      %1736 = vmatprep.mubr.bf16.mxu0 0
      %1737 = vmatmul.mubr.bf16.gmra.mrb[0].mxu0 %v1561
      %v1738 = vpop.f32.mrb[0].mxu0
      %v1739 = vadd.f32 0.0, %v1738
      %v1740 = vpop.f32.mrb[0].mxu0
      %v1741 = vpop.f32.mrb[0].mxu0
      %v1742 = vadd.f32 0.0, %v1741
      %v1743 = vpop.f32.mrb[0].mxu0
      %1744 = vmatprep.mubr.bf16.mxu0 0
      %1745 = vmatmul.mubr.bf16.gmra.mrb[0].mxu0 %v1562
      %v1746 = vpop.f32.mrb[0].mxu0
      %v1747 = vadd.f32 0.0, %v1746
      %v1748 = vpop.f32.mrb[0].mxu0
      %v1749 = vpop.f32.mrb[0].mxu0
      %v1750 = vadd.f32 0.0, %v1749
      %v1751 = vpop.f32.mrb[0].mxu0
      %1752 = vmatprep.mubr.bf16.mxu0 0
      %1753 = vmatmul.mubr.bf16.gmra.mrb[0].mxu0 %v1563
      %v1754 = vpop.f32.mrb[0].mxu0
      %v1755 = vadd.f32 0.0, %v1754
      %v1756 = vpop.f32.mrb[0].mxu0
      %v1757 = vpop.f32.mrb[0].mxu0
      %v1758 = vadd.f32 0.0, %v1757
      %v1759 = vpop.f32.mrb[0].mxu0
      %1760 = vmatprep.mubr.bf16.mxu0 0
      %1761 = vmatmul.mubr.bf16.gmra.mrb[0].mxu0 %v1564
      %v1762 = vpop.f32.mrb[0].mxu0
      %v1763 = vadd.f32 0.0, %v1762
      %v1764 = vpop.f32.mrb[0].mxu0
      %v1765 = vpop.f32.mrb[0].mxu0
      %v1766 = vadd.f32 0.0, %v1765
      %v1767 = vpop.f32.mrb[0].mxu0
      %1768 = vmatprep.mubr.bf16.mxu0 0
      %1769 = vmatmul.mubr.bf16.gmra.mrb[0].mxu0 %v1565
      %v1770 = vpop.f32.mrb[0].mxu0
      %v1771 = vadd.f32 0.0, %v1770
      %v1772 = vpop.f32.mrb[0].mxu0
      %v1773 = vpop.f32.mrb[0].mxu0
      %v1774 = vadd.f32 0.0, %v1773
      %v1775 = vpop.f32.mrb[0].mxu0
      %1776 = vmatprep.mubr.bf16.mxu0 0
      %1777 = vmatmul.mubr.bf16.gmra.mrb[0].mxu0 %v1566
      %v1778 = vpop.f32.mrb[0].mxu0
      %v1779 = vadd.f32 0.0, %v1778
      %v1780 = vpop.f32.mrb[0].mxu0
      %v1781 = vpop.f32.mrb[0].mxu0
      %v1782 = vadd.f32 0.0, %v1781
      %v1783 = vpop.f32.mrb[0].mxu0
      %1784 = vmatprep.mubr.bf16.mxu0 0
      %1785 = vmatmul.mubr.bf16.gmra.mrb[0].mxu0 %v1567
      %v1786 = vpop.f32.mrb[0].mxu0
      %v1787 = vadd.f32 0.0, %v1786
      %v1788 = vpop.f32.mrb[0].mxu0
      %v1789 = vpop.f32.mrb[0].mxu0
      %v1790 = vadd.f32 0.0, %v1789
      %v1791 = vpop.f32.mrb[0].mxu0
      %1792 = vdwg.mxu0
      %v1825 = vunpack.c.l.b16 %v1052
      %v1826 = vunpack.c.l.b16 %v1053
      %v1827 = vunpack.c.l.b16 %v1054
      %v1828 = vunpack.c.l.b16 %v1055
      %v1829 = vunpack.c.l.b16 %v1056
      %v1830 = vunpack.c.l.b16 %v1057
      %v1831 = vunpack.c.l.b16 %v1058
      %v1832 = vunpack.c.l.b16 %v1059
      %v1833 = vunpack.c.l.b16 %v1060
      %v1834 = vunpack.c.l.b16 %v1061
      %v1835 = vunpack.c.l.b16 %v1062
      %v1836 = vunpack.c.l.b16 %v1063
      %v1837 = vunpack.c.l.b16 %v1064
      %v1838 = vunpack.c.l.b16 %v1065
      %v1839 = vunpack.c.l.b16 %v1066
      %v1840 = vunpack.c.l.b16 %v1067
      %v1841 = vunpack.c.l.b16 %v1068
      %v1842 = vunpack.c.l.b16 %v1069
      %v1843 = vunpack.c.l.b16 %v1070
      %v1844 = vunpack.c.l.b16 %v1071
      %v1845 = vunpack.c.l.b16 %v1072
      %v1846 = vunpack.c.l.b16 %v1073
      %v1847 = vunpack.c.l.b16 %v1074
      %v1848 = vunpack.c.l.b16 %v1075
      %v1849 = vunpack.c.l.b16 %v1076
      %v1850 = vunpack.c.l.b16 %v1077
      %v1851 = vunpack.c.l.b16 %v1078
      %v1852 = vunpack.c.l.b16 %v1079
      %v1853 = vunpack.c.l.b16 %v1080
      %v1854 = vunpack.c.l.b16 %v1081
      %v1855 = vunpack.c.l.b16 %v1082
      %v1856 = vunpack.c.l.b16 %v1083
      %v1857 = vpack.c.b16 %v1826, %v1825
      %v1858 = vpack.c.b16 %v1828, %v1827
      %v1859 = vpack.c.b16 %v1830, %v1829
      %v1860 = vpack.c.b16 %v1832, %v1831
      %v1861 = vpack.c.b16 %v1834, %v1833
      %v1862 = vpack.c.b16 %v1836, %v1835
      %v1863 = vpack.c.b16 %v1838, %v1837
      %v1864 = vpack.c.b16 %v1840, %v1839
      %v1865 = vpack.c.b16 %v1842, %v1841
      %v1866 = vpack.c.b16 %v1844, %v1843
      %v1867 = vpack.c.b16 %v1846, %v1845
      %v1868 = vpack.c.b16 %v1848, %v1847
      %v1869 = vpack.c.b16 %v1850, %v1849
      %v1870 = vpack.c.b16 %v1852, %v1851
      %v1871 = vpack.c.b16 %v1854, %v1853
      %v1872 = vpack.c.b16 %v1856, %v1855
      %v1905 = vunpack.c.l.b16 %v1084
      %v1906 = vunpack.c.l.b16 %v1085
      %v1907 = vunpack.c.l.b16 %v1086
      %v1908 = vunpack.c.l.b16 %v1087
      %v1909 = vunpack.c.l.b16 %v1088
      %v1910 = vunpack.c.l.b16 %v1089
      %v1911 = vunpack.c.l.b16 %v1090
      %v1912 = vunpack.c.l.b16 %v1091
      %v1913 = vunpack.c.l.b16 %v1092
      %v1914 = vunpack.c.l.b16 %v1093
      %v1915 = vunpack.c.l.b16 %v1094
      %v1916 = vunpack.c.l.b16 %v1095
      %v1917 = vunpack.c.l.b16 %v1096
      %v1918 = vunpack.c.l.b16 %v1097
      %v1919 = vunpack.c.l.b16 %v1098
      %v1920 = vunpack.c.l.b16 %v1099
      %v1921 = vpack.c.b16 %v1906, %v1905
      %v1922 = vpack.c.b16 %v1908, %v1907
      %v1923 = vpack.c.b16 %v1910, %v1909
      %v1924 = vpack.c.b16 %v1912, %v1911
      %v1925 = vpack.c.b16 %v1914, %v1913
      %v1926 = vpack.c.b16 %v1916, %v1915
      %v1927 = vpack.c.b16 %v1918, %v1917
      %v1928 = vpack.c.b16 %v1920, %v1919
      %1937 = vmatprep.subr.bf16.mxu0 0
      %1938 = vmatpush1.bf16.msra.mxu0 %v1921
      %1939 = vmatprep.subr.bf16.mxu0 0
      %1940 = vmatpush1.bf16.msra.mxu0 %v1922
      %1941 = vmatprep.subr.bf16.mxu0 0
      %1942 = vmatpush1.bf16.msra.mxu0 %v1923
      %1943 = vmatprep.subr.bf16.mxu0 0
      %1944 = vmatpush1.bf16.msra.mxu0 %v1924
      %1945 = vmatprep.subr.bf16.mxu0 0
      %1946 = vmatpush1.bf16.msra.mxu0 %v1925
      %1947 = vmatprep.subr.bf16.mxu0 0
      %1948 = vmatpush1.bf16.msra.mxu0 %v1926
      %1949 = vmatprep.subr.bf16.mxu0 0
      %1950 = vmatpush1.bf16.msra.mxu0 %v1927
      %1951 = vmatprep.subr.bf16.mxu0 0
      %1952 = vmatpush1.bf16.msra.mxu0 %v1928
      %1953 = vmatprep.subr.bf16.mxu0 0
      %1954 = vmatpush1.bf16.msra.mxu0 0
      %1955 = vmatprep.subr.bf16.mxu0 0
      %1956 = vmatpush1.bf16.msra.mxu0 0
      %1957 = vmatprep.subr.bf16.mxu0 0
      %1958 = vmatpush1.bf16.msra.mxu0 0
      %1959 = vmatprep.subr.bf16.mxu0 0
      %1960 = vmatpush1.bf16.msra.mxu0 0
      %1961 = vmatprep.subr.bf16.mxu0 0
      %1962 = vmatpush1.bf16.msra.mxu0 0
      %1963 = vmatprep.subr.bf16.mxu0 0
      %1964 = vmatpush1.bf16.msra.mxu0 0
      %1965 = vmatprep.subr.bf16.mxu0 0
      %1966 = vmatpush1.bf16.msra.mxu0 0
      %1967 = vmatprep.subr.bf16.mxu0 0
      %1968 = vmatpush1.bf16.msra.mxu0 0
      %1969 = vmatprep.mubr.bf16.mxu0 0
      %1970 = vmatmul.mubr.bf16.gmra.mrb[0].mxu0 %v1857
      %v1971 = vpop.f32.mrb[0].mxu0
      %v1972 = vadd.f32 %v1667, %v1971
      %v1973 = vpop.f32.mrb[0].mxu0
      %v1974 = vpop.f32.mrb[0].mxu0
      %v1975 = vadd.f32 %v1670, %v1974
      %v1976 = vpop.f32.mrb[0].mxu0
      %1977 = vmatprep.mubr.bf16.mxu0 0
      %1978 = vmatmul.mubr.bf16.gmra.mrb[0].mxu0 %v1858
      %v1979 = vpop.f32.mrb[0].mxu0
      %v1980 = vadd.f32 %v1675, %v1979
      %v1981 = vpop.f32.mrb[0].mxu0
      %v1982 = vpop.f32.mrb[0].mxu0
      %v1983 = vadd.f32 %v1678, %v1982
      %v1984 = vpop.f32.mrb[0].mxu0
      %1985 = vmatprep.mubr.bf16.mxu0 0
      %1986 = vmatmul.mubr.bf16.gmra.mrb[0].mxu0 %v1859
      %v1987 = vpop.f32.mrb[0].mxu0
      %v1988 = vadd.f32 %v1683, %v1987
      %v1989 = vpop.f32.mrb[0].mxu0
      %v1990 = vpop.f32.mrb[0].mxu0
      %v1991 = vadd.f32 %v1686, %v1990
      %v1992 = vpop.f32.mrb[0].mxu0
      %1993 = vmatprep.mubr.bf16.mxu0 0
      %1994 = vmatmul.mubr.bf16.gmra.mrb[0].mxu0 %v1860
      %v1995 = vpop.f32.mrb[0].mxu0
      %v1996 = vadd.f32 %v1691, %v1995
      %v1997 = vpop.f32.mrb[0].mxu0
      %v1998 = vpop.f32.mrb[0].mxu0
      %v1999 = vadd.f32 %v1694, %v1998
      %v2000 = vpop.f32.mrb[0].mxu0
      %2001 = vmatprep.mubr.bf16.mxu0 0
      %2002 = vmatmul.mubr.bf16.gmra.mrb[0].mxu0 %v1861
      %v2003 = vpop.f32.mrb[0].mxu0
      %v2004 = vadd.f32 %v1699, %v2003
      %v2005 = vpop.f32.mrb[0].mxu0
      %v2006 = vpop.f32.mrb[0].mxu0
      %v2007 = vadd.f32 %v1702, %v2006
      %v2008 = vpop.f32.mrb[0].mxu0
      %2009 = vmatprep.mubr.bf16.mxu0 0
      %2010 = vmatmul.mubr.bf16.gmra.mrb[0].mxu0 %v1862
      %v2011 = vpop.f32.mrb[0].mxu0
      %v2012 = vadd.f32 %v1707, %v2011
      %v2013 = vpop.f32.mrb[0].mxu0
      %v2014 = vpop.f32.mrb[0].mxu0
      %v2015 = vadd.f32 %v1710, %v2014
      %v2016 = vpop.f32.mrb[0].mxu0
      %2017 = vmatprep.mubr.bf16.mxu0 0
      %2018 = vmatmul.mubr.bf16.gmra.mrb[0].mxu0 %v1863
      %v2019 = vpop.f32.mrb[0].mxu0
      %v2020 = vadd.f32 %v1715, %v2019
      %v2021 = vpop.f32.mrb[0].mxu0
      %v2022 = vpop.f32.mrb[0].mxu0
      %v2023 = vadd.f32 %v1718, %v2022
      %v2024 = vpop.f32.mrb[0].mxu0
      %2025 = vmatprep.mubr.bf16.mxu0 0
      %2026 = vmatmul.mubr.bf16.gmra.mrb[0].mxu0 %v1864
      %v2027 = vpop.f32.mrb[0].mxu0
      %v2028 = vadd.f32 %v1723, %v2027
      %v2029 = vpop.f32.mrb[0].mxu0
      %v2030 = vpop.f32.mrb[0].mxu0
      %v2031 = vadd.f32 %v1726, %v2030
      %v2032 = vpop.f32.mrb[0].mxu0
      %2033 = vmatprep.mubr.bf16.mxu0 0
      %2034 = vmatmul.mubr.bf16.gmra.mrb[0].mxu0 %v1865
      %v2035 = vpop.f32.mrb[0].mxu0
      %v2036 = vadd.f32 %v1731, %v2035
      %v2037 = vpop.f32.mrb[0].mxu0
      %v2038 = vpop.f32.mrb[0].mxu0
      %v2039 = vadd.f32 %v1734, %v2038
      %v2040 = vpop.f32.mrb[0].mxu0
      %2041 = vmatprep.mubr.bf16.mxu0 0
      %2042 = vmatmul.mubr.bf16.gmra.mrb[0].mxu0 %v1866
      %v2043 = vpop.f32.mrb[0].mxu0
      %v2044 = vadd.f32 %v1739, %v2043
      %v2045 = vpop.f32.mrb[0].mxu0
      %v2046 = vpop.f32.mrb[0].mxu0
      %v2047 = vadd.f32 %v1742, %v2046
      %v2048 = vpop.f32.mrb[0].mxu0
      %2049 = vmatprep.mubr.bf16.mxu0 0
      %2050 = vmatmul.mubr.bf16.gmra.mrb[0].mxu0 %v1867
      %v2051 = vpop.f32.mrb[0].mxu0
      %v2052 = vadd.f32 %v1747, %v2051
      %v2053 = vpop.f32.mrb[0].mxu0
      %v2054 = vpop.f32.mrb[0].mxu0
      %v2055 = vadd.f32 %v1750, %v2054
      %v2056 = vpop.f32.mrb[0].mxu0
      %2057 = vmatprep.mubr.bf16.mxu0 0
      %2058 = vmatmul.mubr.bf16.gmra.mrb[0].mxu0 %v1868
      %v2059 = vpop.f32.mrb[0].mxu0
      %v2060 = vadd.f32 %v1755, %v2059
      %v2061 = vpop.f32.mrb[0].mxu0
      %v2062 = vpop.f32.mrb[0].mxu0
      %v2063 = vadd.f32 %v1758, %v2062
      %v2064 = vpop.f32.mrb[0].mxu0
      %2065 = vmatprep.mubr.bf16.mxu0 0
      %2066 = vmatmul.mubr.bf16.gmra.mrb[0].mxu0 %v1869
      %v2067 = vpop.f32.mrb[0].mxu0
      %v2068 = vadd.f32 %v1763, %v2067
      %v2069 = vpop.f32.mrb[0].mxu0
      %v2070 = vpop.f32.mrb[0].mxu0
      %v2071 = vadd.f32 %v1766, %v2070
      %v2072 = vpop.f32.mrb[0].mxu0
      %2073 = vmatprep.mubr.bf16.mxu0 0
      %2074 = vmatmul.mubr.bf16.gmra.mrb[0].mxu0 %v1870
      %v2075 = vpop.f32.mrb[0].mxu0
      %v2076 = vadd.f32 %v1771, %v2075
      %v2077 = vpop.f32.mrb[0].mxu0
      %v2078 = vpop.f32.mrb[0].mxu0
      %v2079 = vadd.f32 %v1774, %v2078
      %v2080 = vpop.f32.mrb[0].mxu0
      %2081 = vmatprep.mubr.bf16.mxu0 0
      %2082 = vmatmul.mubr.bf16.gmra.mrb[0].mxu0 %v1871
      %v2083 = vpop.f32.mrb[0].mxu0
      %v2084 = vadd.f32 %v1779, %v2083
      %v2085 = vpop.f32.mrb[0].mxu0
      %v2086 = vpop.f32.mrb[0].mxu0
      %v2087 = vadd.f32 %v1782, %v2086
      %v2088 = vpop.f32.mrb[0].mxu0
      %2089 = vmatprep.mubr.bf16.mxu0 0
      %2090 = vmatmul.mubr.bf16.gmra.mrb[0].mxu0 %v1872
      %v2091 = vpop.f32.mrb[0].mxu0
      %v2092 = vadd.f32 %v1787, %v2091
      %v2093 = vpop.f32.mrb[0].mxu0
      %v2094 = vpop.f32.mrb[0].mxu0
      %v2095 = vadd.f32 %v1790, %v2094
      %v2096 = vpop.f32.mrb[0].mxu0
      %2097 = vdwg.mxu0
      %v2098 = vld [vmem:[#allocation2] sm:$0xe]
      %v2099 = vld [vmem:[#allocation2 + $0xc] sm:$0xe]
      %v2100 = vld [vmem:[#allocation2 + $0x18] sm:$0xe]
      %v2101 = vld [vmem:[#allocation2 + $0x24] sm:$0xe]
      %v2102 = vld [vmem:[#allocation2 + $0x30] sm:$0xe]
      %v2103 = vld [vmem:[#allocation2 + $0x3c] sm:$0xe]
      %v2104 = vld [vmem:[#allocation2 + $0x48] sm:$0xe]
      %v2105 = vld [vmem:[#allocation2 + $0x54] sm:$0xe]
      %v2106 = vld [vmem:[#allocation2 + $0x60] sm:$0xe]
      %v2107 = vld [vmem:[#allocation2 + $0x6c] sm:$0xe]
      %v2108 = vld [vmem:[#allocation2 + $0x78] sm:$0xe]
      %v2109 = vld [vmem:[#allocation2 + $0x84] sm:$0xe]
      %v2110 = vld [vmem:[#allocation2 + $0x90] sm:$0xe]
      %v2111 = vld [vmem:[#allocation2 + $0x9c] sm:$0xe]
      %v2112 = vld [vmem:[#allocation2 + $0xa8] sm:$0xe]
      %v2113 = vld [vmem:[#allocation2 + $0xb4] sm:$0xe]
      %vm2146 = vcmask 1042432
      %vm2147 = vcmask 1046532
      %vm2148 = vmor %vm2146, %vm2147
      %v2149 = vrot.slane %v2098, 5
      %v2150 = vrot.slane %v2149, 4
      %v2151 = vrot.slane %v1053, 5
      %v2152 = vsel %vm2148, %v2150, %v2151
      %v2153 = vrot.slane %v2151, 4
      %v2154 = vrot.slane %v1100, 5
      %v2155 = vsel %vm2148, %v2153, %v2154
      %v2156 = vrot.slane %v2099, 5
      %v2157 = vrot.slane %v2156, 4
      %v2158 = vrot.slane %v1055, 5
      %v2159 = vsel %vm2148, %v2157, %v2158
      %v2160 = vrot.slane %v2158, 4
      %v2161 = vrot.slane %v1101, 5
      %v2162 = vsel %vm2148, %v2160, %v2161
      %v2163 = vrot.slane %v2100, 5
      %v2164 = vrot.slane %v2163, 4
      %v2165 = vrot.slane %v1057, 5
      %v2166 = vsel %vm2148, %v2164, %v2165
      %v2167 = vrot.slane %v2165, 4
      %v2168 = vrot.slane %v1102, 5
      %v2169 = vsel %vm2148, %v2167, %v2168
      %v2170 = vrot.slane %v2101, 5
      %v2171 = vrot.slane %v2170, 4
      %v2172 = vrot.slane %v1059, 5
      %v2173 = vsel %vm2148, %v2171, %v2172
      %v2174 = vrot.slane %v2172, 4
      %v2175 = vrot.slane %v1103, 5
      %v2176 = vsel %vm2148, %v2174, %v2175
      %v2177 = vrot.slane %v2102, 5
      %v2178 = vrot.slane %v2177, 4
      %v2179 = vrot.slane %v1061, 5
      %v2180 = vsel %vm2148, %v2178, %v2179
      %v2181 = vrot.slane %v2179, 4
      %v2182 = vrot.slane %v1104, 5
      %v2183 = vsel %vm2148, %v2181, %v2182
      %v2184 = vrot.slane %v2103, 5
      %v2185 = vrot.slane %v2184, 4
      %v2186 = vrot.slane %v1063, 5
      %v2187 = vsel %vm2148, %v2185, %v2186
      %v2188 = vrot.slane %v2186, 4
      %v2189 = vrot.slane %v1105, 5
      %v2190 = vsel %vm2148, %v2188, %v2189
      %v2191 = vrot.slane %v2104, 5
      %v2192 = vrot.slane %v2191, 4
      %v2193 = vrot.slane %v1065, 5
      %v2194 = vsel %vm2148, %v2192, %v2193
      %v2195 = vrot.slane %v2193, 4
      %v2196 = vrot.slane %v1106, 5
      %v2197 = vsel %vm2148, %v2195, %v2196
      %v2198 = vrot.slane %v2105, 5
      %v2199 = vrot.slane %v2198, 4
      %v2200 = vrot.slane %v1067, 5
      %v2201 = vsel %vm2148, %v2199, %v2200
      %v2202 = vrot.slane %v2200, 4
      %v2203 = vrot.slane %v1107, 5
      %v2204 = vsel %vm2148, %v2202, %v2203
      %v2205 = vrot.slane %v2106, 5
      %v2206 = vrot.slane %v2205, 4
      %v2207 = vrot.slane %v1069, 5
      %v2208 = vsel %vm2148, %v2206, %v2207
      %v2209 = vrot.slane %v2207, 4
      %v2210 = vrot.slane %v1108, 5
      %v2211 = vsel %vm2148, %v2209, %v2210
      %v2212 = vrot.slane %v2107, 5
      %v2213 = vrot.slane %v2212, 4
      %v2214 = vrot.slane %v1071, 5
      %v2215 = vsel %vm2148, %v2213, %v2214
      %v2216 = vrot.slane %v2214, 4
      %v2217 = vrot.slane %v1109, 5
      %v2218 = vsel %vm2148, %v2216, %v2217
      %v2219 = vrot.slane %v2108, 5
      %v2220 = vrot.slane %v2219, 4
      %v2221 = vrot.slane %v1073, 5
      %v2222 = vsel %vm2148, %v2220, %v2221
      %v2223 = vrot.slane %v2221, 4
      %v2224 = vrot.slane %v1110, 5
      %v2225 = vsel %vm2148, %v2223, %v2224
      %v2226 = vrot.slane %v2109, 5
      %v2227 = vrot.slane %v2226, 4
      %v2228 = vrot.slane %v1075, 5
      %v2229 = vsel %vm2148, %v2227, %v2228
      %v2230 = vrot.slane %v2228, 4
      %v2231 = vrot.slane %v1111, 5
      %v2232 = vsel %vm2148, %v2230, %v2231
      %v2233 = vrot.slane %v2110, 5
      %v2234 = vrot.slane %v2233, 4
      %v2235 = vrot.slane %v1077, 5
      %v2236 = vsel %vm2148, %v2234, %v2235
      %v2237 = vrot.slane %v2235, 4
      %v2238 = vrot.slane %v1112, 5
      %v2239 = vsel %vm2148, %v2237, %v2238
      %v2240 = vrot.slane %v2111, 5
      %v2241 = vrot.slane %v2240, 4
      %v2242 = vrot.slane %v1079, 5
      %v2243 = vsel %vm2148, %v2241, %v2242
      %v2244 = vrot.slane %v2242, 4
      %v2245 = vrot.slane %v1113, 5
      %v2246 = vsel %vm2148, %v2244, %v2245
      %v2247 = vrot.slane %v2112, 5
      %v2248 = vrot.slane %v2247, 4
      %v2249 = vrot.slane %v1081, 5
      %v2250 = vsel %vm2148, %v2248, %v2249
      %v2251 = vrot.slane %v2249, 4
      %v2252 = vrot.slane %v1114, 5
      %v2253 = vsel %vm2148, %v2251, %v2252
      %v2254 = vrot.slane %v2113, 5
      %v2255 = vrot.slane %v2254, 4
      %v2256 = vrot.slane %v1083, 5
      %v2257 = vsel %vm2148, %v2255, %v2256
      %v2258 = vrot.slane %v2256, 4
      %v2259 = vrot.slane %v1115, 5
      %v2260 = vsel %vm2148, %v2258, %v2259
      %s2261 = scalar_lea.vmem %s3, 128
      %v2262 = vld [vmem:[%s2261] sm:$0xf]
      %v2263 = vld [vmem:[%s2261 + $0x4] sm:$0xf]
      %v2264 = vld [vmem:[%s2261 + $0x8] sm:$0xf]
      %v2265 = vld [vmem:[%s2261 + $0xc] sm:$0xf]
      %v2266 = vld [vmem:[%s2261 + $0x10] sm:$0xf]
      %v2267 = vld [vmem:[%s2261 + $0x14] sm:$0xf]
      %v2268 = vld [vmem:[%s2261 + $0x18] sm:$0xf]
      %v2269 = vld [vmem:[%s2261 + $0x1c] sm:$0xf]
      %v2270 = vld [vmem:[%s2261 + $0x20] sm:$0xf]
      %v2271 = vld [vmem:[%s2261 + $0x24] sm:$0xf]
      %v2272 = vld [vmem:[%s2261 + $0x28] sm:$0xf]
      %v2273 = vld [vmem:[%s2261 + $0x2c] sm:$0xf]
      %v2274 = vld [vmem:[%s2261 + $0x30] sm:$0xf]
      %v2275 = vld [vmem:[%s2261 + $0x34] sm:$0xf]
      %v2276 = vld [vmem:[%s2261 + $0x38] sm:$0xf]
      %v2277 = vld [vmem:[%s2261 + $0x3c] sm:$0xf]
      %v2278 = vunpack.c.l.b16 %v2152
      %v2279 = vunpack.c.l.b16 %v2155
      %v2280 = vunpack.c.l.b16 %v2159
      %v2281 = vunpack.c.l.b16 %v2162
      %v2282 = vunpack.c.l.b16 %v2166
      %v2283 = vunpack.c.l.b16 %v2169
      %v2284 = vunpack.c.l.b16 %v2173
      %v2285 = vunpack.c.l.b16 %v2176
      %v2286 = vunpack.c.l.b16 %v2180
      %v2287 = vunpack.c.l.b16 %v2183
      %v2288 = vunpack.c.l.b16 %v2187
      %v2289 = vunpack.c.l.b16 %v2190
      %v2290 = vunpack.c.l.b16 %v2194
      %v2291 = vunpack.c.l.b16 %v2197
      %v2292 = vunpack.c.l.b16 %v2201
      %v2293 = vunpack.c.l.b16 %v2204
      %v2294 = vunpack.c.l.b16 %v2208
      %v2295 = vunpack.c.l.b16 %v2211
      %v2296 = vunpack.c.l.b16 %v2215
      %v2297 = vunpack.c.l.b16 %v2218
      %v2298 = vunpack.c.l.b16 %v2222
      %v2299 = vunpack.c.l.b16 %v2225
      %v2300 = vunpack.c.l.b16 %v2229
      %v2301 = vunpack.c.l.b16 %v2232
      %v2302 = vunpack.c.l.b16 %v2236
      %v2303 = vunpack.c.l.b16 %v2239
      %v2304 = vunpack.c.l.b16 %v2243
      %v2305 = vunpack.c.l.b16 %v2246
      %v2306 = vunpack.c.l.b16 %v2250
      %v2307 = vunpack.c.l.b16 %v2253
      %v2308 = vunpack.c.l.b16 %v2257
      %v2309 = vunpack.c.l.b16 %v2260
      %v2310 = vpack.c.b16 %v2279, %v2278
      %v2311 = vpack.c.b16 %v2281, %v2280
      %v2312 = vpack.c.b16 %v2283, %v2282
      %v2313 = vpack.c.b16 %v2285, %v2284
      %v2314 = vpack.c.b16 %v2287, %v2286
      %v2315 = vpack.c.b16 %v2289, %v2288
      %v2316 = vpack.c.b16 %v2291, %v2290
      %v2317 = vpack.c.b16 %v2293, %v2292
      %v2318 = vpack.c.b16 %v2295, %v2294
      %v2319 = vpack.c.b16 %v2297, %v2296
      %v2320 = vpack.c.b16 %v2299, %v2298
      %v2321 = vpack.c.b16 %v2301, %v2300
      %v2322 = vpack.c.b16 %v2303, %v2302
      %v2323 = vpack.c.b16 %v2305, %v2304
      %v2324 = vpack.c.b16 %v2307, %v2306
      %v2325 = vpack.c.b16 %v2309, %v2308
      %v2358 = vunpack.c.l.b16 %v2262
      %v2359 = vunpack.c.l.b16 %v2263
      %v2360 = vunpack.c.l.b16 %v2264
      %v2361 = vunpack.c.l.b16 %v2265
      %v2362 = vunpack.c.l.b16 %v2266
      %v2363 = vunpack.c.l.b16 %v2267
      %v2364 = vunpack.c.l.b16 %v2268
      %v2365 = vunpack.c.l.b16 %v2269
      %v2366 = vunpack.c.l.b16 %v2270
      %v2367 = vunpack.c.l.b16 %v2271
      %v2368 = vunpack.c.l.b16 %v2272
      %v2369 = vunpack.c.l.b16 %v2273
      %v2370 = vunpack.c.l.b16 %v2274
      %v2371 = vunpack.c.l.b16 %v2275
      %v2372 = vunpack.c.l.b16 %v2276
      %v2373 = vunpack.c.l.b16 %v2277
      %v2374 = vpack.c.b16 %v2359, %v2358
      %v2375 = vpack.c.b16 %v2361, %v2360
      %v2376 = vpack.c.b16 %v2363, %v2362
      %v2377 = vpack.c.b16 %v2365, %v2364
      %v2378 = vpack.c.b16 %v2367, %v2366
      %v2379 = vpack.c.b16 %v2369, %v2368
      %v2380 = vpack.c.b16 %v2371, %v2370
      %v2381 = vpack.c.b16 %v2373, %v2372
      %2390 = vmatprep.subr.bf16.mxu0 0
      %2391 = vmatpush1.bf16.msra.mxu0 %v2374
      %2392 = vmatprep.subr.bf16.mxu0 0
      %2393 = vmatpush1.bf16.msra.mxu0 %v2375
      %2394 = vmatprep.subr.bf16.mxu0 0
      %2395 = vmatpush1.bf16.msra.mxu0 %v2376
      %2396 = vmatprep.subr.bf16.mxu0 0
      %2397 = vmatpush1.bf16.msra.mxu0 %v2377
      %2398 = vmatprep.subr.bf16.mxu0 0
      %2399 = vmatpush1.bf16.msra.mxu0 %v2378
      %2400 = vmatprep.subr.bf16.mxu0 0
      %2401 = vmatpush1.bf16.msra.mxu0 %v2379
      %2402 = vmatprep.subr.bf16.mxu0 0
      %2403 = vmatpush1.bf16.msra.mxu0 %v2380
      %2404 = vmatprep.subr.bf16.mxu0 0
      %2405 = vmatpush1.bf16.msra.mxu0 %v2381
      %2406 = vmatprep.subr.bf16.mxu0 0
      %2407 = vmatpush1.bf16.msra.mxu0 0
      %2408 = vmatprep.subr.bf16.mxu0 0
      %2409 = vmatpush1.bf16.msra.mxu0 0
      %2410 = vmatprep.subr.bf16.mxu0 0
      %2411 = vmatpush1.bf16.msra.mxu0 0
      %2412 = vmatprep.subr.bf16.mxu0 0
      %2413 = vmatpush1.bf16.msra.mxu0 0
      %2414 = vmatprep.subr.bf16.mxu0 0
      %2415 = vmatpush1.bf16.msra.mxu0 0
      %2416 = vmatprep.subr.bf16.mxu0 0
      %2417 = vmatpush1.bf16.msra.mxu0 0
      %2418 = vmatprep.subr.bf16.mxu0 0
      %2419 = vmatpush1.bf16.msra.mxu0 0
      %2420 = vmatprep.subr.bf16.mxu0 0
      %2421 = vmatpush1.bf16.msra.mxu0 0
      %2422 = vmatprep.mubr.bf16.mxu0 0
      %2423 = vmatmul.mubr.bf16.gmra.mrb[0].mxu0 %v2310
      %v2424 = vpop.f32.mrb[0].mxu0
      %v2425 = vadd.f32 0.0, %v2424
      %v2426 = vpop.f32.mrb[0].mxu0
      %v2427 = vpop.f32.mrb[0].mxu0
      %v2428 = vadd.f32 0.0, %v2427
      %v2429 = vpop.f32.mrb[0].mxu0
      %2430 = vmatprep.mubr.bf16.mxu0 0
      %2431 = vmatmul.mubr.bf16.gmra.mrb[0].mxu0 %v2311
      %v2432 = vpop.f32.mrb[0].mxu0
      %v2433 = vadd.f32 0.0, %v2432
      %v2434 = vpop.f32.mrb[0].mxu0
      %v2435 = vpop.f32.mrb[0].mxu0
      %v2436 = vadd.f32 0.0, %v2435
      %v2437 = vpop.f32.mrb[0].mxu0
      %2438 = vmatprep.mubr.bf16.mxu0 0
      %2439 = vmatmul.mubr.bf16.gmra.mrb[0].mxu0 %v2312
      %v2440 = vpop.f32.mrb[0].mxu0
      %v2441 = vadd.f32 0.0, %v2440
      %v2442 = vpop.f32.mrb[0].mxu0
      %v2443 = vpop.f32.mrb[0].mxu0
      %v2444 = vadd.f32 0.0, %v2443
      %v2445 = vpop.f32.mrb[0].mxu0
      %2446 = vmatprep.mubr.bf16.mxu0 0
      %2447 = vmatmul.mubr.bf16.gmra.mrb[0].mxu0 %v2313
      %v2448 = vpop.f32.mrb[0].mxu0
      %v2449 = vadd.f32 0.0, %v2448
      %v2450 = vpop.f32.mrb[0].mxu0
      %v2451 = vpop.f32.mrb[0].mxu0
      %v2452 = vadd.f32 0.0, %v2451
      %v2453 = vpop.f32.mrb[0].mxu0
      %2454 = vmatprep.mubr.bf16.mxu0 0
      %2455 = vmatmul.mubr.bf16.gmra.mrb[0].mxu0 %v2314
      %v2456 = vpop.f32.mrb[0].mxu0
      %v2457 = vadd.f32 0.0, %v2456
      %v2458 = vpop.f32.mrb[0].mxu0
      %v2459 = vpop.f32.mrb[0].mxu0
      %v2460 = vadd.f32 0.0, %v2459
      %v2461 = vpop.f32.mrb[0].mxu0
      %2462 = vmatprep.mubr.bf16.mxu0 0
      %2463 = vmatmul.mubr.bf16.gmra.mrb[0].mxu0 %v2315
      %v2464 = vpop.f32.mrb[0].mxu0
      %v2465 = vadd.f32 0.0, %v2464
      %v2466 = vpop.f32.mrb[0].mxu0
      %v2467 = vpop.f32.mrb[0].mxu0
      %v2468 = vadd.f32 0.0, %v2467
      %v2469 = vpop.f32.mrb[0].mxu0
      %2470 = vmatprep.mubr.bf16.mxu0 0
      %2471 = vmatmul.mubr.bf16.gmra.mrb[0].mxu0 %v2316
      %v2472 = vpop.f32.mrb[0].mxu0
      %v2473 = vadd.f32 0.0, %v2472
      %v2474 = vpop.f32.mrb[0].mxu0
      %v2475 = vpop.f32.mrb[0].mxu0
      %v2476 = vadd.f32 0.0, %v2475
      %v2477 = vpop.f32.mrb[0].mxu0
      %2478 = vmatprep.mubr.bf16.mxu0 0
      %2479 = vmatmul.mubr.bf16.gmra.mrb[0].mxu0 %v2317
      %v2480 = vpop.f32.mrb[0].mxu0
      %v2481 = vadd.f32 0.0, %v2480
      %v2482 = vpop.f32.mrb[0].mxu0
      %v2483 = vpop.f32.mrb[0].mxu0
      %v2484 = vadd.f32 0.0, %v2483
      %v2485 = vpop.f32.mrb[0].mxu0
      %2486 = vmatprep.mubr.bf16.mxu0 0
      %2487 = vmatmul.mubr.bf16.gmra.mrb[0].mxu0 %v2318
      %v2488 = vpop.f32.mrb[0].mxu0
      %v2489 = vadd.f32 0.0, %v2488
      %v2490 = vpop.f32.mrb[0].mxu0
      %v2491 = vpop.f32.mrb[0].mxu0
      %v2492 = vadd.f32 0.0, %v2491
      %v2493 = vpop.f32.mrb[0].mxu0
      %2494 = vmatprep.mubr.bf16.mxu0 0
      %2495 = vmatmul.mubr.bf16.gmra.mrb[0].mxu0 %v2319
      %v2496 = vpop.f32.mrb[0].mxu0
      %v2497 = vadd.f32 0.0, %v2496
      %v2498 = vpop.f32.mrb[0].mxu0
      %v2499 = vpop.f32.mrb[0].mxu0
      %v2500 = vadd.f32 0.0, %v2499
      %v2501 = vpop.f32.mrb[0].mxu0
      %2502 = vmatprep.mubr.bf16.mxu0 0
      %2503 = vmatmul.mubr.bf16.gmra.mrb[0].mxu0 %v2320
      %v2504 = vpop.f32.mrb[0].mxu0
      %v2505 = vadd.f32 0.0, %v2504
      %v2506 = vpop.f32.mrb[0].mxu0
      %v2507 = vpop.f32.mrb[0].mxu0
      %v2508 = vadd.f32 0.0, %v2507
      %v2509 = vpop.f32.mrb[0].mxu0
      %2510 = vmatprep.mubr.bf16.mxu0 0
      %2511 = vmatmul.mubr.bf16.gmra.mrb[0].mxu0 %v2321
      %v2512 = vpop.f32.mrb[0].mxu0
      %v2513 = vadd.f32 0.0, %v2512
      %v2514 = vpop.f32.mrb[0].mxu0
      %v2515 = vpop.f32.mrb[0].mxu0
      %v2516 = vadd.f32 0.0, %v2515
      %v2517 = vpop.f32.mrb[0].mxu0
      %2518 = vmatprep.mubr.bf16.mxu0 0
      %2519 = vmatmul.mubr.bf16.gmra.mrb[0].mxu0 %v2322
      %v2520 = vpop.f32.mrb[0].mxu0
      %v2521 = vadd.f32 0.0, %v2520
      %v2522 = vpop.f32.mrb[0].mxu0
      %v2523 = vpop.f32.mrb[0].mxu0
      %v2524 = vadd.f32 0.0, %v2523
      %v2525 = vpop.f32.mrb[0].mxu0
      %2526 = vmatprep.mubr.bf16.mxu0 0
      %2527 = vmatmul.mubr.bf16.gmra.mrb[0].mxu0 %v2323
      %v2528 = vpop.f32.mrb[0].mxu0
      %v2529 = vadd.f32 0.0, %v2528
      %v2530 = vpop.f32.mrb[0].mxu0
      %v2531 = vpop.f32.mrb[0].mxu0
      %v2532 = vadd.f32 0.0, %v2531
      %v2533 = vpop.f32.mrb[0].mxu0
      %2534 = vmatprep.mubr.bf16.mxu0 0
      %2535 = vmatmul.mubr.bf16.gmra.mrb[0].mxu0 %v2324
      %v2536 = vpop.f32.mrb[0].mxu0
      %v2537 = vadd.f32 0.0, %v2536
      %v2538 = vpop.f32.mrb[0].mxu0
      %v2539 = vpop.f32.mrb[0].mxu0
      %v2540 = vadd.f32 0.0, %v2539
      %v2541 = vpop.f32.mrb[0].mxu0
      %2542 = vmatprep.mubr.bf16.mxu0 0
      %2543 = vmatmul.mubr.bf16.gmra.mrb[0].mxu0 %v2325
      %v2544 = vpop.f32.mrb[0].mxu0
      %v2545 = vadd.f32 0.0, %v2544
      %v2546 = vpop.f32.mrb[0].mxu0
      %v2547 = vpop.f32.mrb[0].mxu0
      %v2548 = vadd.f32 0.0, %v2547
      %v2549 = vpop.f32.mrb[0].mxu0
      %2550 = vdwg.mxu0
      %v2551 = vadd.f32 %v1972, %v2425
      %v2552 = vadd.f32 %v1975, %v2428
      %v2553 = vadd.f32 %v1980, %v2433
      %v2554 = vadd.f32 %v1983, %v2436
      %v2555 = vadd.f32 %v1988, %v2441
      %v2556 = vadd.f32 %v1991, %v2444
      %v2557 = vadd.f32 %v1996, %v2449
      %v2558 = vadd.f32 %v1999, %v2452
      %v2559 = vadd.f32 %v2004, %v2457
      %v2560 = vadd.f32 %v2007, %v2460
      %v2561 = vadd.f32 %v2012, %v2465
      %v2562 = vadd.f32 %v2015, %v2468
      %v2563 = vadd.f32 %v2020, %v2473
      %v2564 = vadd.f32 %v2023, %v2476
      %v2565 = vadd.f32 %v2028, %v2481
      %v2566 = vadd.f32 %v2031, %v2484
      %v2567 = vadd.f32 %v2036, %v2489
      %v2568 = vadd.f32 %v2039, %v2492
      %v2569 = vadd.f32 %v2044, %v2497
      %v2570 = vadd.f32 %v2047, %v2500
      %v2571 = vadd.f32 %v2052, %v2505
      %v2572 = vadd.f32 %v2055, %v2508
      %v2573 = vadd.f32 %v2060, %v2513
      %v2574 = vadd.f32 %v2063, %v2516
      %v2575 = vadd.f32 %v2068, %v2521
      %v2576 = vadd.f32 %v2071, %v2524
      %v2577 = vadd.f32 %v2076, %v2529
      %v2578 = vadd.f32 %v2079, %v2532
      %v2579 = vadd.f32 %v2084, %v2537
      %v2580 = vadd.f32 %v2087, %v2540
      %v2581 = vadd.f32 %v2092, %v2545
      %v2582 = vadd.f32 %v2095, %v2548
      %v2583 = vld [vmem:[%s246] sm:$0xf]
      %v2584 = vld [vmem:[%s246 + $0x4] sm:$0xf]
      %v2585 = vld [vmem:[%s246 + $0xc] sm:$0xf]
      %v2586 = vld [vmem:[%s246 + $0x10] sm:$0xf]
      %v2587 = vld [vmem:[%s246 + $0x18] sm:$0xf]
      %v2588 = vld [vmem:[%s246 + $0x1c] sm:$0xf]
      %v2589 = vld [vmem:[%s246 + $0x24] sm:$0xf]
      %v2590 = vld [vmem:[%s246 + $0x28] sm:$0xf]
      %v2591 = vld [vmem:[%s246 + $0x30] sm:$0xf]
      %v2592 = vld [vmem:[%s246 + $0x34] sm:$0xf]
      %v2593 = vld [vmem:[%s246 + $0x3c] sm:$0xf]
      %v2594 = vld [vmem:[%s246 + $0x40] sm:$0xf]
      %v2595 = vld [vmem:[%s246 + $0x48] sm:$0xf]
      %v2596 = vld [vmem:[%s246 + $0x4c] sm:$0xf]
      %v2597 = vld [vmem:[%s246 + $0x54] sm:$0xf]
      %v2598 = vld [vmem:[%s246 + $0x58] sm:$0xf]
      %v2599 = vld [vmem:[%s246 + $0x60] sm:$0xf]
      %v2600 = vld [vmem:[%s246 + $0x64] sm:$0xf]
      %v2601 = vld [vmem:[%s246 + $0x6c] sm:$0xf]
      %v2602 = vld [vmem:[%s246 + $0x70] sm:$0xf]
      %v2603 = vld [vmem:[%s246 + $0x78] sm:$0xf]
      %v2604 = vld [vmem:[%s246 + $0x7c] sm:$0xf]
      %v2605 = vld [vmem:[%s246 + $0x84] sm:$0xf]
      %v2606 = vld [vmem:[%s246 + $0x88] sm:$0xf]
      %v2607 = vld [vmem:[%s246 + $0x90] sm:$0xf]
      %v2608 = vld [vmem:[%s246 + $0x94] sm:$0xf]
      %v2609 = vld [vmem:[%s246 + $0x9c] sm:$0xf]
      %v2610 = vld [vmem:[%s246 + $0xa0] sm:$0xf]
      %v2611 = vld [vmem:[%s246 + $0xa8] sm:$0xf]
      %v2612 = vld [vmem:[%s246 + $0xac] sm:$0xf]
      %v2613 = vld [vmem:[%s246 + $0xb4] sm:$0xf]
      %v2614 = vld [vmem:[%s246 + $0xb8] sm:$0xf]
      %s2615 = scalar_lea.vmem %s3, 192
      %v2616 = vld [vmem:[%s2615] sm:$0xf]
      %v2617 = vld [vmem:[%s2615 + $0x4] sm:$0xf]
      %v2618 = vld [vmem:[%s2615 + $0x8] sm:$0xf]
      %v2619 = vld [vmem:[%s2615 + $0xc] sm:$0xf]
      %v2620 = vld [vmem:[%s2615 + $0x10] sm:$0xf]
      %v2621 = vld [vmem:[%s2615 + $0x14] sm:$0xf]
      %v2622 = vld [vmem:[%s2615 + $0x18] sm:$0xf]
      %v2623 = vld [vmem:[%s2615 + $0x1c] sm:$0xf]
      %v2624 = vld [vmem:[%s2615 + $0x20] sm:$0xf]
      %v2625 = vld [vmem:[%s2615 + $0x24] sm:$0xf]
      %v2626 = vld [vmem:[%s2615 + $0x28] sm:$0xf]
      %v2627 = vld [vmem:[%s2615 + $0x2c] sm:$0xf]
      %v2628 = vld [vmem:[%s2615 + $0x30] sm:$0xf]
      %v2629 = vld [vmem:[%s2615 + $0x34] sm:$0xf]
      %v2630 = vld [vmem:[%s2615 + $0x38] sm:$0xf]
      %v2631 = vld [vmem:[%s2615 + $0x3c] sm:$0xf]
      %v2664 = vunpack.c.l.b16 %v2583
      %v2665 = vunpack.c.l.b16 %v2584
      %v2666 = vunpack.c.l.b16 %v2585
      %v2667 = vunpack.c.l.b16 %v2586
      %v2668 = vunpack.c.l.b16 %v2587
      %v2669 = vunpack.c.l.b16 %v2588
      %v2670 = vunpack.c.l.b16 %v2589
      %v2671 = vunpack.c.l.b16 %v2590
      %v2672 = vunpack.c.l.b16 %v2591
      %v2673 = vunpack.c.l.b16 %v2592
      %v2674 = vunpack.c.l.b16 %v2593
      %v2675 = vunpack.c.l.b16 %v2594
      %v2676 = vunpack.c.l.b16 %v2595
      %v2677 = vunpack.c.l.b16 %v2596
      %v2678 = vunpack.c.l.b16 %v2597
      %v2679 = vunpack.c.l.b16 %v2598
      %v2680 = vunpack.c.l.b16 %v2599
      %v2681 = vunpack.c.l.b16 %v2600
      %v2682 = vunpack.c.l.b16 %v2601
      %v2683 = vunpack.c.l.b16 %v2602
      %v2684 = vunpack.c.l.b16 %v2603
      %v2685 = vunpack.c.l.b16 %v2604
      %v2686 = vunpack.c.l.b16 %v2605
      %v2687 = vunpack.c.l.b16 %v2606
      %v2688 = vunpack.c.l.b16 %v2607
      %v2689 = vunpack.c.l.b16 %v2608
      %v2690 = vunpack.c.l.b16 %v2609
      %v2691 = vunpack.c.l.b16 %v2610
      %v2692 = vunpack.c.l.b16 %v2611
      %v2693 = vunpack.c.l.b16 %v2612
      %v2694 = vunpack.c.l.b16 %v2613
      %v2695 = vunpack.c.l.b16 %v2614
      %v2696 = vpack.c.b16 %v2665, %v2664
      %v2697 = vpack.c.b16 %v2667, %v2666
      %v2698 = vpack.c.b16 %v2669, %v2668
      %v2699 = vpack.c.b16 %v2671, %v2670
      %v2700 = vpack.c.b16 %v2673, %v2672
      %v2701 = vpack.c.b16 %v2675, %v2674
      %v2702 = vpack.c.b16 %v2677, %v2676
      %v2703 = vpack.c.b16 %v2679, %v2678
      %v2704 = vpack.c.b16 %v2681, %v2680
      %v2705 = vpack.c.b16 %v2683, %v2682
      %v2706 = vpack.c.b16 %v2685, %v2684
      %v2707 = vpack.c.b16 %v2687, %v2686
      %v2708 = vpack.c.b16 %v2689, %v2688
      %v2709 = vpack.c.b16 %v2691, %v2690
      %v2710 = vpack.c.b16 %v2693, %v2692
      %v2711 = vpack.c.b16 %v2695, %v2694
      %v2744 = vunpack.c.l.b16 %v2616
      %v2745 = vunpack.c.l.b16 %v2617
      %v2746 = vunpack.c.l.b16 %v2618
      %v2747 = vunpack.c.l.b16 %v2619
      %v2748 = vunpack.c.l.b16 %v2620
      %v2749 = vunpack.c.l.b16 %v2621
      %v2750 = vunpack.c.l.b16 %v2622
      %v2751 = vunpack.c.l.b16 %v2623
      %v2752 = vunpack.c.l.b16 %v2624
      %v2753 = vunpack.c.l.b16 %v2625
      %v2754 = vunpack.c.l.b16 %v2626
      %v2755 = vunpack.c.l.b16 %v2627
      %v2756 = vunpack.c.l.b16 %v2628
      %v2757 = vunpack.c.l.b16 %v2629
      %v2758 = vunpack.c.l.b16 %v2630
      %v2759 = vunpack.c.l.b16 %v2631
      %v2760 = vpack.c.b16 %v2745, %v2744
      %v2761 = vpack.c.b16 %v2747, %v2746
      %v2762 = vpack.c.b16 %v2749, %v2748
      %v2763 = vpack.c.b16 %v2751, %v2750
      %v2764 = vpack.c.b16 %v2753, %v2752
      %v2765 = vpack.c.b16 %v2755, %v2754
      %v2766 = vpack.c.b16 %v2757, %v2756
      %v2767 = vpack.c.b16 %v2759, %v2758
      %2776 = vmatprep.subr.bf16.mxu0 0
      %2777 = vmatpush1.bf16.msra.mxu0 %v2760
      %2778 = vmatprep.subr.bf16.mxu0 0
      %2779 = vmatpush1.bf16.msra.mxu0 %v2761
      %2780 = vmatprep.subr.bf16.mxu0 0
      %2781 = vmatpush1.bf16.msra.mxu0 %v2762
      %2782 = vmatprep.subr.bf16.mxu0 0
      %2783 = vmatpush1.bf16.msra.mxu0 %v2763
      %2784 = vmatprep.subr.bf16.mxu0 0
      %2785 = vmatpush1.bf16.msra.mxu0 %v2764
      %2786 = vmatprep.subr.bf16.mxu0 0
      %2787 = vmatpush1.bf16.msra.mxu0 %v2765
      %2788 = vmatprep.subr.bf16.mxu0 0
      %2789 = vmatpush1.bf16.msra.mxu0 %v2766
      %2790 = vmatprep.subr.bf16.mxu0 0
      %2791 = vmatpush1.bf16.msra.mxu0 %v2767
      %2792 = vmatprep.subr.bf16.mxu0 0
      %2793 = vmatpush1.bf16.msra.mxu0 0
      %2794 = vmatprep.subr.bf16.mxu0 0
      %2795 = vmatpush1.bf16.msra.mxu0 0
      %2796 = vmatprep.subr.bf16.mxu0 0
      %2797 = vmatpush1.bf16.msra.mxu0 0
      %2798 = vmatprep.subr.bf16.mxu0 0
      %2799 = vmatpush1.bf16.msra.mxu0 0
      %2800 = vmatprep.subr.bf16.mxu0 0
      %2801 = vmatpush1.bf16.msra.mxu0 0
      %2802 = vmatprep.subr.bf16.mxu0 0
      %2803 = vmatpush1.bf16.msra.mxu0 0
      %2804 = vmatprep.subr.bf16.mxu0 0
      %2805 = vmatpush1.bf16.msra.mxu0 0
      %2806 = vmatprep.subr.bf16.mxu0 0
      %2807 = vmatpush1.bf16.msra.mxu0 0
      %2808 = vmatprep.mubr.bf16.mxu0 0
      %2809 = vmatmul.mubr.bf16.gmra.mrb[0].mxu0 %v2696
      %v2810 = vpop.f32.mrb[0].mxu0
      %v2811 = vadd.f32 0.0, %v2810
      %v2812 = vpop.f32.mrb[0].mxu0
      %v2813 = vpop.f32.mrb[0].mxu0
      %v2814 = vadd.f32 0.0, %v2813
      %v2815 = vpop.f32.mrb[0].mxu0
      %2816 = vmatprep.mubr.bf16.mxu0 0
      %2817 = vmatmul.mubr.bf16.gmra.mrb[0].mxu0 %v2697
      %v2818 = vpop.f32.mrb[0].mxu0
      %v2819 = vadd.f32 0.0, %v2818
      %v2820 = vpop.f32.mrb[0].mxu0
      %v2821 = vpop.f32.mrb[0].mxu0
      %v2822 = vadd.f32 0.0, %v2821
      %v2823 = vpop.f32.mrb[0].mxu0
      %2824 = vmatprep.mubr.bf16.mxu0 0
      %2825 = vmatmul.mubr.bf16.gmra.mrb[0].mxu0 %v2698
      %v2826 = vpop.f32.mrb[0].mxu0
      %v2827 = vadd.f32 0.0, %v2826
      %v2828 = vpop.f32.mrb[0].mxu0
      %v2829 = vpop.f32.mrb[0].mxu0
      %v2830 = vadd.f32 0.0, %v2829
      %v2831 = vpop.f32.mrb[0].mxu0
      %2832 = vmatprep.mubr.bf16.mxu0 0
      %2833 = vmatmul.mubr.bf16.gmra.mrb[0].mxu0 %v2699
      %v2834 = vpop.f32.mrb[0].mxu0
      %v2835 = vadd.f32 0.0, %v2834
      %v2836 = vpop.f32.mrb[0].mxu0
      %v2837 = vpop.f32.mrb[0].mxu0
      %v2838 = vadd.f32 0.0, %v2837
      %v2839 = vpop.f32.mrb[0].mxu0
      %2840 = vmatprep.mubr.bf16.mxu0 0
      %2841 = vmatmul.mubr.bf16.gmra.mrb[0].mxu0 %v2700
      %v2842 = vpop.f32.mrb[0].mxu0
      %v2843 = vadd.f32 0.0, %v2842
      %v2844 = vpop.f32.mrb[0].mxu0
      %v2845 = vpop.f32.mrb[0].mxu0
      %v2846 = vadd.f32 0.0, %v2845
      %v2847 = vpop.f32.mrb[0].mxu0
      %2848 = vmatprep.mubr.bf16.mxu0 0
      %2849 = vmatmul.mubr.bf16.gmra.mrb[0].mxu0 %v2701
      %v2850 = vpop.f32.mrb[0].mxu0
      %v2851 = vadd.f32 0.0, %v2850
      %v2852 = vpop.f32.mrb[0].mxu0
      %v2853 = vpop.f32.mrb[0].mxu0
      %v2854 = vadd.f32 0.0, %v2853
      %v2855 = vpop.f32.mrb[0].mxu0
      %2856 = vmatprep.mubr.bf16.mxu0 0
      %2857 = vmatmul.mubr.bf16.gmra.mrb[0].mxu0 %v2702
      %v2858 = vpop.f32.mrb[0].mxu0
      %v2859 = vadd.f32 0.0, %v2858
      %v2860 = vpop.f32.mrb[0].mxu0
      %v2861 = vpop.f32.mrb[0].mxu0
      %v2862 = vadd.f32 0.0, %v2861
      %v2863 = vpop.f32.mrb[0].mxu0
      %2864 = vmatprep.mubr.bf16.mxu0 0
      %2865 = vmatmul.mubr.bf16.gmra.mrb[0].mxu0 %v2703
      %v2866 = vpop.f32.mrb[0].mxu0
      %v2867 = vadd.f32 0.0, %v2866
      %v2868 = vpop.f32.mrb[0].mxu0
      %v2869 = vpop.f32.mrb[0].mxu0
      %v2870 = vadd.f32 0.0, %v2869
      %v2871 = vpop.f32.mrb[0].mxu0
      %2872 = vmatprep.mubr.bf16.mxu0 0
      %2873 = vmatmul.mubr.bf16.gmra.mrb[0].mxu0 %v2704
      %v2874 = vpop.f32.mrb[0].mxu0
      %v2875 = vadd.f32 0.0, %v2874
      %v2876 = vpop.f32.mrb[0].mxu0
      %v2877 = vpop.f32.mrb[0].mxu0
      %v2878 = vadd.f32 0.0, %v2877
      %v2879 = vpop.f32.mrb[0].mxu0
      %2880 = vmatprep.mubr.bf16.mxu0 0
      %2881 = vmatmul.mubr.bf16.gmra.mrb[0].mxu0 %v2705
      %v2882 = vpop.f32.mrb[0].mxu0
      %v2883 = vadd.f32 0.0, %v2882
      %v2884 = vpop.f32.mrb[0].mxu0
      %v2885 = vpop.f32.mrb[0].mxu0
      %v2886 = vadd.f32 0.0, %v2885
      %v2887 = vpop.f32.mrb[0].mxu0
      %2888 = vmatprep.mubr.bf16.mxu0 0
      %2889 = vmatmul.mubr.bf16.gmra.mrb[0].mxu0 %v2706
      %v2890 = vpop.f32.mrb[0].mxu0
      %v2891 = vadd.f32 0.0, %v2890
      %v2892 = vpop.f32.mrb[0].mxu0
      %v2893 = vpop.f32.mrb[0].mxu0
      %v2894 = vadd.f32 0.0, %v2893
      %v2895 = vpop.f32.mrb[0].mxu0
      %2896 = vmatprep.mubr.bf16.mxu0 0
      %2897 = vmatmul.mubr.bf16.gmra.mrb[0].mxu0 %v2707
      %v2898 = vpop.f32.mrb[0].mxu0
      %v2899 = vadd.f32 0.0, %v2898
      %v2900 = vpop.f32.mrb[0].mxu0
      %v2901 = vpop.f32.mrb[0].mxu0
      %v2902 = vadd.f32 0.0, %v2901
      %v2903 = vpop.f32.mrb[0].mxu0
      %2904 = vmatprep.mubr.bf16.mxu0 0
      %2905 = vmatmul.mubr.bf16.gmra.mrb[0].mxu0 %v2708
      %v2906 = vpop.f32.mrb[0].mxu0
      %v2907 = vadd.f32 0.0, %v2906
      %v2908 = vpop.f32.mrb[0].mxu0
      %v2909 = vpop.f32.mrb[0].mxu0
      %v2910 = vadd.f32 0.0, %v2909
      %v2911 = vpop.f32.mrb[0].mxu0
      %2912 = vmatprep.mubr.bf16.mxu0 0
      %2913 = vmatmul.mubr.bf16.gmra.mrb[0].mxu0 %v2709
      %v2914 = vpop.f32.mrb[0].mxu0
      %v2915 = vadd.f32 0.0, %v2914
      %v2916 = vpop.f32.mrb[0].mxu0
      %v2917 = vpop.f32.mrb[0].mxu0
      %v2918 = vadd.f32 0.0, %v2917
      %v2919 = vpop.f32.mrb[0].mxu0
      %2920 = vmatprep.mubr.bf16.mxu0 0
      %2921 = vmatmul.mubr.bf16.gmra.mrb[0].mxu0 %v2710
      %v2922 = vpop.f32.mrb[0].mxu0
      %v2923 = vadd.f32 0.0, %v2922
      %v2924 = vpop.f32.mrb[0].mxu0
      %v2925 = vpop.f32.mrb[0].mxu0
      %v2926 = vadd.f32 0.0, %v2925
      %v2927 = vpop.f32.mrb[0].mxu0
      %2928 = vmatprep.mubr.bf16.mxu0 0
      %2929 = vmatmul.mubr.bf16.gmra.mrb[0].mxu0 %v2711
      %v2930 = vpop.f32.mrb[0].mxu0
      %v2931 = vadd.f32 0.0, %v2930
      %v2932 = vpop.f32.mrb[0].mxu0
      %v2933 = vpop.f32.mrb[0].mxu0
      %v2934 = vadd.f32 0.0, %v2933
      %v2935 = vpop.f32.mrb[0].mxu0
      %2936 = vdwg.mxu0
      %v2937 = vadd.f32 %v2551, %v2811
      %v2938 = vadd.f32 %v2552, %v2814
      %v2939 = vadd.f32 %v2553, %v2819
      %v2940 = vadd.f32 %v2554, %v2822
      %v2941 = vadd.f32 %v2555, %v2827
      %v2942 = vadd.f32 %v2556, %v2830
      %v2943 = vadd.f32 %v2557, %v2835
      %v2944 = vadd.f32 %v2558, %v2838
      %v2945 = vadd.f32 %v2559, %v2843
      %v2946 = vadd.f32 %v2560, %v2846
      %v2947 = vadd.f32 %v2561, %v2851
      %v2948 = vadd.f32 %v2562, %v2854
      %v2949 = vadd.f32 %v2563, %v2859
      %v2950 = vadd.f32 %v2564, %v2862
      %v2951 = vadd.f32 %v2565, %v2867
      %v2952 = vadd.f32 %v2566, %v2870
      %v2953 = vadd.f32 %v2567, %v2875
      %v2954 = vadd.f32 %v2568, %v2878
      %v2955 = vadd.f32 %v2569, %v2883
      %v2956 = vadd.f32 %v2570, %v2886
      %v2957 = vadd.f32 %v2571, %v2891
      %v2958 = vadd.f32 %v2572, %v2894
      %v2959 = vadd.f32 %v2573, %v2899
      %v2960 = vadd.f32 %v2574, %v2902
      %v2961 = vadd.f32 %v2575, %v2907
      %v2962 = vadd.f32 %v2576, %v2910
      %v2963 = vadd.f32 %v2577, %v2915
      %v2964 = vadd.f32 %v2578, %v2918
      %v2965 = vadd.f32 %v2579, %v2923
      %v2966 = vadd.f32 %v2580, %v2926
      %v2967 = vadd.f32 %v2581, %v2931
      %v2968 = vadd.f32 %v2582, %v2934
      %v2969 = vld [vmem:[%s246] sm:$0xf]
      %v2970 = vld [vmem:[%s246 + $0x4] sm:$0xf]
      %v2971 = vld [vmem:[%s246 + $0x8] sm:$0x1]
      %v2972 = vld [vmem:[%s246 + $0xc] sm:$0xf]
      %v2973 = vld [vmem:[%s246 + $0x10] sm:$0xf]
      %v2974 = vld [vmem:[%s246 + $0x14] sm:$0x1]
      %v2975 = vld [vmem:[%s246 + $0x18] sm:$0xf]
      %v2976 = vld [vmem:[%s246 + $0x1c] sm:$0xf]
      %v2977 = vld [vmem:[%s246 + $0x20] sm:$0x1]
      %v2978 = vld [vmem:[%s246 + $0x24] sm:$0xf]
      %v2979 = vld [vmem:[%s246 + $0x28] sm:$0xf]
      %v2980 = vld [vmem:[%s246 + $0x2c] sm:$0x1]
      %v2981 = vld [vmem:[%s246 + $0x30] sm:$0xf]
      %v2982 = vld [vmem:[%s246 + $0x34] sm:$0xf]
      %v2983 = vld [vmem:[%s246 + $0x38] sm:$0x1]
      %v2984 = vld [vmem:[%s246 + $0x3c] sm:$0xf]
      %v2985 = vld [vmem:[%s246 + $0x40] sm:$0xf]
      %v2986 = vld [vmem:[%s246 + $0x44] sm:$0x1]
      %v2987 = vld [vmem:[%s246 + $0x48] sm:$0xf]
      %v2988 = vld [vmem:[%s246 + $0x4c] sm:$0xf]
      %v2989 = vld [vmem:[%s246 + $0x50] sm:$0x1]
      %v2990 = vld [vmem:[%s246 + $0x54] sm:$0xf]
      %v2991 = vld [vmem:[%s246 + $0x58] sm:$0xf]
      %v2992 = vld [vmem:[%s246 + $0x5c] sm:$0x1]
      %v2993 = vld [vmem:[%s246 + $0x60] sm:$0xf]
      %v2994 = vld [vmem:[%s246 + $0x64] sm:$0xf]
      %v2995 = vld [vmem:[%s246 + $0x68] sm:$0x1]
      %v2996 = vld [vmem:[%s246 + $0x6c] sm:$0xf]
      %v2997 = vld [vmem:[%s246 + $0x70] sm:$0xf]
      %v2998 = vld [vmem:[%s246 + $0x74] sm:$0x1]
      %v2999 = vld [vmem:[%s246 + $0x78] sm:$0xf]
      %v3000 = vld [vmem:[%s246 + $0x7c] sm:$0xf]
      %v3001 = vld [vmem:[%s246 + $0x80] sm:$0x1]
      %v3002 = vld [vmem:[%s246 + $0x84] sm:$0xf]
      %v3003 = vld [vmem:[%s246 + $0x88] sm:$0xf]
      %v3004 = vld [vmem:[%s246 + $0x8c] sm:$0x1]
      %v3005 = vld [vmem:[%s246 + $0x90] sm:$0xf]
      %v3006 = vld [vmem:[%s246 + $0x94] sm:$0xf]
      %v3007 = vld [vmem:[%s246 + $0x98] sm:$0x1]
      %v3008 = vld [vmem:[%s246 + $0x9c] sm:$0xf]
      %v3009 = vld [vmem:[%s246 + $0xa0] sm:$0xf]
      %v3010 = vld [vmem:[%s246 + $0xa4] sm:$0x1]
      %v3011 = vld [vmem:[%s246 + $0xa8] sm:$0xf]
      %v3012 = vld [vmem:[%s246 + $0xac] sm:$0xf]
      %v3013 = vld [vmem:[%s246 + $0xb0] sm:$0x1]
      %v3014 = vld [vmem:[%s246 + $0xb4] sm:$0xf]
      %v3015 = vld [vmem:[%s246 + $0xb8] sm:$0xf]
      %v3016 = vld [vmem:[%s246 + $0xbc] sm:$0x1]
      %v3018 = vshrl.u32 %v2969, 16
      %v3020 = vrot.slane %v3018, 4
      %v3021 = vshll.u32 %v2969, 16
      %v3023 = vrot.slane %v3021, 5
      %v3024 = vor.u32 %v3020, %v3023
      %v3025 = vrot.slane %v3024, 4
      %v3027 = vshll.u32 %v2970, 16
      %v3029 = vrot.slane %v3027, 5
      %v3030 = vsel %vm1118, %v3025, %v3029
      %v3031 = vshrl.u32 %v2970, 16
      %v3033 = vrot.slane %v3031, 4
      %v3034 = vor.u32 %v3033, %v3029
      %v3035 = vrot.slane %v3034, 4
      %v3037 = vshll.u32 %v2971, 16
      %v3039 = vrot.slane %v3037, 5
      %v3040 = vsel %vm1118, %v3035, %v3039
      %v3042 = vshrl.u32 %v2972, 16
      %v3044 = vrot.slane %v3042, 4
      %v3045 = vshll.u32 %v2972, 16
      %v3047 = vrot.slane %v3045, 5
      %v3048 = vor.u32 %v3044, %v3047
      %v3049 = vrot.slane %v3048, 4
      %v3051 = vshll.u32 %v2973, 16
      %v3053 = vrot.slane %v3051, 5
      %v3054 = vsel %vm1118, %v3049, %v3053
      %v3055 = vshrl.u32 %v2973, 16
      %v3057 = vrot.slane %v3055, 4
      %v3058 = vor.u32 %v3057, %v3053
      %v3059 = vrot.slane %v3058, 4
      %v3061 = vshll.u32 %v2974, 16
      %v3063 = vrot.slane %v3061, 5
      %v3064 = vsel %vm1118, %v3059, %v3063
      %v3066 = vshrl.u32 %v2975, 16
      %v3068 = vrot.slane %v3066, 4
      %v3069 = vshll.u32 %v2975, 16
      %v3071 = vrot.slane %v3069, 5
      %v3072 = vor.u32 %v3068, %v3071
      %v3073 = vrot.slane %v3072, 4
      %v3075 = vshll.u32 %v2976, 16
      %v3077 = vrot.slane %v3075, 5
      %v3078 = vsel %vm1118, %v3073, %v3077
      %v3079 = vshrl.u32 %v2976, 16
      %v3081 = vrot.slane %v3079, 4
      %v3082 = vor.u32 %v3081, %v3077
      %v3083 = vrot.slane %v3082, 4
      %v3085 = vshll.u32 %v2977, 16
      %v3087 = vrot.slane %v3085, 5
      %v3088 = vsel %vm1118, %v3083, %v3087
      %v3090 = vshrl.u32 %v2978, 16
      %v3092 = vrot.slane %v3090, 4
      %v3093 = vshll.u32 %v2978, 16
      %v3095 = vrot.slane %v3093, 5
      %v3096 = vor.u32 %v3092, %v3095
      %v3097 = vrot.slane %v3096, 4
      %v3099 = vshll.u32 %v2979, 16
      %v3101 = vrot.slane %v3099, 5
      %v3102 = vsel %vm1118, %v3097, %v3101
      %v3103 = vshrl.u32 %v2979, 16
      %v3105 = vrot.slane %v3103, 4
      %v3106 = vor.u32 %v3105, %v3101
      %v3107 = vrot.slane %v3106, 4
      %v3109 = vshll.u32 %v2980, 16
      %v3111 = vrot.slane %v3109, 5
      %v3112 = vsel %vm1118, %v3107, %v3111
      %v3114 = vshrl.u32 %v2981, 16
      %v3116 = vrot.slane %v3114, 4
      %v3117 = vshll.u32 %v2981, 16
      %v3119 = vrot.slane %v3117, 5
      %v3120 = vor.u32 %v3116, %v3119
      %v3121 = vrot.slane %v3120, 4
      %v3123 = vshll.u32 %v2982, 16
      %v3125 = vrot.slane %v3123, 5
      %v3126 = vsel %vm1118, %v3121, %v3125
      %v3127 = vshrl.u32 %v2982, 16
      %v3129 = vrot.slane %v3127, 4
      %v3130 = vor.u32 %v3129, %v3125
      %v3131 = vrot.slane %v3130, 4
      %v3133 = vshll.u32 %v2983, 16
      %v3135 = vrot.slane %v3133, 5
      %v3136 = vsel %vm1118, %v3131, %v3135
      %v3138 = vshrl.u32 %v2984, 16
      %v3140 = vrot.slane %v3138, 4
      %v3141 = vshll.u32 %v2984, 16
      %v3143 = vrot.slane %v3141, 5
      %v3144 = vor.u32 %v3140, %v3143
      %v3145 = vrot.slane %v3144, 4
      %v3147 = vshll.u32 %v2985, 16
      %v3149 = vrot.slane %v3147, 5
      %v3150 = vsel %vm1118, %v3145, %v3149
      %v3151 = vshrl.u32 %v2985, 16
      %v3153 = vrot.slane %v3151, 4
      %v3154 = vor.u32 %v3153, %v3149
      %v3155 = vrot.slane %v3154, 4
      %v3157 = vshll.u32 %v2986, 16
      %v3159 = vrot.slane %v3157, 5
      %v3160 = vsel %vm1118, %v3155, %v3159
      %v3162 = vshrl.u32 %v2987, 16
      %v3164 = vrot.slane %v3162, 4
      %v3165 = vshll.u32 %v2987, 16
      %v3167 = vrot.slane %v3165, 5
      %v3168 = vor.u32 %v3164, %v3167
      %v3169 = vrot.slane %v3168, 4
      %v3171 = vshll.u32 %v2988, 16
      %v3173 = vrot.slane %v3171, 5
      %v3174 = vsel %vm1118, %v3169, %v3173
      %v3175 = vshrl.u32 %v2988, 16
      %v3177 = vrot.slane %v3175, 4
      %v3178 = vor.u32 %v3177, %v3173
      %v3179 = vrot.slane %v3178, 4
      %v3181 = vshll.u32 %v2989, 16
      %v3183 = vrot.slane %v3181, 5
      %v3184 = vsel %vm1118, %v3179, %v3183
      %v3186 = vshrl.u32 %v2990, 16
      %v3188 = vrot.slane %v3186, 4
      %v3189 = vshll.u32 %v2990, 16
      %v3191 = vrot.slane %v3189, 5
      %v3192 = vor.u32 %v3188, %v3191
      %v3193 = vrot.slane %v3192, 4
      %v3195 = vshll.u32 %v2991, 16
      %v3197 = vrot.slane %v3195, 5
      %v3198 = vsel %vm1118, %v3193, %v3197
      %v3199 = vshrl.u32 %v2991, 16
      %v3201 = vrot.slane %v3199, 4
      %v3202 = vor.u32 %v3201, %v3197
      %v3203 = vrot.slane %v3202, 4
      %v3205 = vshll.u32 %v2992, 16
      %v3207 = vrot.slane %v3205, 5
      %v3208 = vsel %vm1118, %v3203, %v3207
      %v3210 = vshrl.u32 %v2993, 16
      %v3212 = vrot.slane %v3210, 4
      %v3213 = vshll.u32 %v2993, 16
      %v3215 = vrot.slane %v3213, 5
      %v3216 = vor.u32 %v3212, %v3215
      %v3217 = vrot.slane %v3216, 4
      %v3219 = vshll.u32 %v2994, 16
      %v3221 = vrot.slane %v3219, 5
      %v3222 = vsel %vm1118, %v3217, %v3221
      %v3223 = vshrl.u32 %v2994, 16
      %v3225 = vrot.slane %v3223, 4
      %v3226 = vor.u32 %v3225, %v3221
      %v3227 = vrot.slane %v3226, 4
      %v3229 = vshll.u32 %v2995, 16
      %v3231 = vrot.slane %v3229, 5
      %v3232 = vsel %vm1118, %v3227, %v3231
      %v3234 = vshrl.u32 %v2996, 16
      %v3236 = vrot.slane %v3234, 4
      %v3237 = vshll.u32 %v2996, 16
      %v3239 = vrot.slane %v3237, 5
      %v3240 = vor.u32 %v3236, %v3239
      %v3241 = vrot.slane %v3240, 4
      %v3243 = vshll.u32 %v2997, 16
      %v3245 = vrot.slane %v3243, 5
      %v3246 = vsel %vm1118, %v3241, %v3245
      %v3247 = vshrl.u32 %v2997, 16
      %v3249 = vrot.slane %v3247, 4
      %v3250 = vor.u32 %v3249, %v3245
      %v3251 = vrot.slane %v3250, 4
      %v3253 = vshll.u32 %v2998, 16
      %v3255 = vrot.slane %v3253, 5
      %v3256 = vsel %vm1118, %v3251, %v3255
      %v3258 = vshrl.u32 %v2999, 16
      %v3260 = vrot.slane %v3258, 4
      %v3261 = vshll.u32 %v2999, 16
      %v3263 = vrot.slane %v3261, 5
      %v3264 = vor.u32 %v3260, %v3263
      %v3265 = vrot.slane %v3264, 4
      %v3267 = vshll.u32 %v3000, 16
      %v3269 = vrot.slane %v3267, 5
      %v3270 = vsel %vm1118, %v3265, %v3269
      %v3271 = vshrl.u32 %v3000, 16
      %v3273 = vrot.slane %v3271, 4
      %v3274 = vor.u32 %v3273, %v3269
      %v3275 = vrot.slane %v3274, 4
      %v3277 = vshll.u32 %v3001, 16
      %v3279 = vrot.slane %v3277, 5
      %v3280 = vsel %vm1118, %v3275, %v3279
      %v3282 = vshrl.u32 %v3002, 16
      %v3284 = vrot.slane %v3282, 4
      %v3285 = vshll.u32 %v3002, 16
      %v3287 = vrot.slane %v3285, 5
      %v3288 = vor.u32 %v3284, %v3287
      %v3289 = vrot.slane %v3288, 4
      %v3291 = vshll.u32 %v3003, 16
      %v3293 = vrot.slane %v3291, 5
      %v3294 = vsel %vm1118, %v3289, %v3293
      %v3295 = vshrl.u32 %v3003, 16
      %v3297 = vrot.slane %v3295, 4
      %v3298 = vor.u32 %v3297, %v3293
      %v3299 = vrot.slane %v3298, 4
      %v3301 = vshll.u32 %v3004, 16
      %v3303 = vrot.slane %v3301, 5
      %v3304 = vsel %vm1118, %v3299, %v3303
      %v3306 = vshrl.u32 %v3005, 16
      %v3308 = vrot.slane %v3306, 4
      %v3309 = vshll.u32 %v3005, 16
      %v3311 = vrot.slane %v3309, 5
      %v3312 = vor.u32 %v3308, %v3311
      %v3313 = vrot.slane %v3312, 4
      %v3315 = vshll.u32 %v3006, 16
      %v3317 = vrot.slane %v3315, 5
      %v3318 = vsel %vm1118, %v3313, %v3317
      %v3319 = vshrl.u32 %v3006, 16
      %v3321 = vrot.slane %v3319, 4
      %v3322 = vor.u32 %v3321, %v3317
      %v3323 = vrot.slane %v3322, 4
      %v3325 = vshll.u32 %v3007, 16
      %v3327 = vrot.slane %v3325, 5
      %v3328 = vsel %vm1118, %v3323, %v3327
      %v3330 = vshrl.u32 %v3008, 16
      %v3332 = vrot.slane %v3330, 4
      %v3333 = vshll.u32 %v3008, 16
      %v3335 = vrot.slane %v3333, 5
      %v3336 = vor.u32 %v3332, %v3335
      %v3337 = vrot.slane %v3336, 4
      %v3339 = vshll.u32 %v3009, 16
      %v3341 = vrot.slane %v3339, 5
      %v3342 = vsel %vm1118, %v3337, %v3341
      %v3343 = vshrl.u32 %v3009, 16
      %v3345 = vrot.slane %v3343, 4
      %v3346 = vor.u32 %v3345, %v3341
      %v3347 = vrot.slane %v3346, 4
      %v3349 = vshll.u32 %v3010, 16
      %v3351 = vrot.slane %v3349, 5
      %v3352 = vsel %vm1118, %v3347, %v3351
      %v3354 = vshrl.u32 %v3011, 16
      %v3356 = vrot.slane %v3354, 4
      %v3357 = vshll.u32 %v3011, 16
      %v3359 = vrot.slane %v3357, 5
      %v3360 = vor.u32 %v3356, %v3359
      %v3361 = vrot.slane %v3360, 4
      %v3363 = vshll.u32 %v3012, 16
      %v3365 = vrot.slane %v3363, 5
      %v3366 = vsel %vm1118, %v3361, %v3365
      %v3367 = vshrl.u32 %v3012, 16
      %v3369 = vrot.slane %v3367, 4
      %v3370 = vor.u32 %v3369, %v3365
      %v3371 = vrot.slane %v3370, 4
      %v3373 = vshll.u32 %v3013, 16
      %v3375 = vrot.slane %v3373, 5
      %v3376 = vsel %vm1118, %v3371, %v3375
      %v3378 = vshrl.u32 %v3014, 16
      %v3380 = vrot.slane %v3378, 4
      %v3381 = vshll.u32 %v3014, 16
      %v3383 = vrot.slane %v3381, 5
      %v3384 = vor.u32 %v3380, %v3383
      %v3385 = vrot.slane %v3384, 4
      %v3387 = vshll.u32 %v3015, 16
      %v3389 = vrot.slane %v3387, 5
      %v3390 = vsel %vm1118, %v3385, %v3389
      %v3391 = vshrl.u32 %v3015, 16
      %v3393 = vrot.slane %v3391, 4
      %v3394 = vor.u32 %v3393, %v3389
      %v3395 = vrot.slane %v3394, 4
      %v3397 = vshll.u32 %v3016, 16
      %v3399 = vrot.slane %v3397, 5
      %v3400 = vsel %vm1118, %v3395, %v3399
      %s3401 = scalar_lea.vmem %s3, 256
      %v3402 = vld [vmem:[%s3401] sm:$0xf]
      %v3403 = vld [vmem:[%s3401 + $0x4] sm:$0xf]
      %v3404 = vld [vmem:[%s3401 + $0x8] sm:$0xf]
      %v3405 = vld [vmem:[%s3401 + $0xc] sm:$0xf]
      %v3406 = vld [vmem:[%s3401 + $0x10] sm:$0xf]
      %v3407 = vld [vmem:[%s3401 + $0x14] sm:$0xf]
      %v3408 = vld [vmem:[%s3401 + $0x18] sm:$0xf]
      %v3409 = vld [vmem:[%s3401 + $0x1c] sm:$0xf]
      %v3410 = vld [vmem:[%s3401 + $0x20] sm:$0xf]
      %v3411 = vld [vmem:[%s3401 + $0x24] sm:$0xf]
      %v3412 = vld [vmem:[%s3401 + $0x28] sm:$0xf]
      %v3413 = vld [vmem:[%s3401 + $0x2c] sm:$0xf]
      %v3414 = vld [vmem:[%s3401 + $0x30] sm:$0xf]
      %v3415 = vld [vmem:[%s3401 + $0x34] sm:$0xf]
      %v3416 = vld [vmem:[%s3401 + $0x38] sm:$0xf]
      %v3417 = vld [vmem:[%s3401 + $0x3c] sm:$0xf]
      %v3418 = vunpack.c.l.b16 %v3030
      %v3419 = vunpack.c.l.b16 %v3040
      %v3420 = vunpack.c.l.b16 %v3054
      %v3421 = vunpack.c.l.b16 %v3064
      %v3422 = vunpack.c.l.b16 %v3078
      %v3423 = vunpack.c.l.b16 %v3088
      %v3424 = vunpack.c.l.b16 %v3102
      %v3425 = vunpack.c.l.b16 %v3112
      %v3426 = vunpack.c.l.b16 %v3126
      %v3427 = vunpack.c.l.b16 %v3136
      %v3428 = vunpack.c.l.b16 %v3150
      %v3429 = vunpack.c.l.b16 %v3160
      %v3430 = vunpack.c.l.b16 %v3174
      %v3431 = vunpack.c.l.b16 %v3184
      %v3432 = vunpack.c.l.b16 %v3198
      %v3433 = vunpack.c.l.b16 %v3208
      %v3434 = vunpack.c.l.b16 %v3222
      %v3435 = vunpack.c.l.b16 %v3232
      %v3436 = vunpack.c.l.b16 %v3246
      %v3437 = vunpack.c.l.b16 %v3256
      %v3438 = vunpack.c.l.b16 %v3270
      %v3439 = vunpack.c.l.b16 %v3280
      %v3440 = vunpack.c.l.b16 %v3294
      %v3441 = vunpack.c.l.b16 %v3304
      %v3442 = vunpack.c.l.b16 %v3318
      %v3443 = vunpack.c.l.b16 %v3328
      %v3444 = vunpack.c.l.b16 %v3342
      %v3445 = vunpack.c.l.b16 %v3352
      %v3446 = vunpack.c.l.b16 %v3366
      %v3447 = vunpack.c.l.b16 %v3376
      %v3448 = vunpack.c.l.b16 %v3390
      %v3449 = vunpack.c.l.b16 %v3400
      %v3450 = vpack.c.b16 %v3419, %v3418
      %v3451 = vpack.c.b16 %v3421, %v3420
      %v3452 = vpack.c.b16 %v3423, %v3422
      %v3453 = vpack.c.b16 %v3425, %v3424
      %v3454 = vpack.c.b16 %v3427, %v3426
      %v3455 = vpack.c.b16 %v3429, %v3428
      %v3456 = vpack.c.b16 %v3431, %v3430
      %v3457 = vpack.c.b16 %v3433, %v3432
      %v3458 = vpack.c.b16 %v3435, %v3434
      %v3459 = vpack.c.b16 %v3437, %v3436
      %v3460 = vpack.c.b16 %v3439, %v3438
      %v3461 = vpack.c.b16 %v3441, %v3440
      %v3462 = vpack.c.b16 %v3443, %v3442
      %v3463 = vpack.c.b16 %v3445, %v3444
      %v3464 = vpack.c.b16 %v3447, %v3446
      %v3465 = vpack.c.b16 %v3449, %v3448
      %v3498 = vunpack.c.l.b16 %v3402
      %v3499 = vunpack.c.l.b16 %v3403
      %v3500 = vunpack.c.l.b16 %v3404
      %v3501 = vunpack.c.l.b16 %v3405
      %v3502 = vunpack.c.l.b16 %v3406
      %v3503 = vunpack.c.l.b16 %v3407
      %v3504 = vunpack.c.l.b16 %v3408
      %v3505 = vunpack.c.l.b16 %v3409
      %v3506 = vunpack.c.l.b16 %v3410
      %v3507 = vunpack.c.l.b16 %v3411
      %v3508 = vunpack.c.l.b16 %v3412
      %v3509 = vunpack.c.l.b16 %v3413
      %v3510 = vunpack.c.l.b16 %v3414
      %v3511 = vunpack.c.l.b16 %v3415
      %v3512 = vunpack.c.l.b16 %v3416
      %v3513 = vunpack.c.l.b16 %v3417
      %v3514 = vpack.c.b16 %v3499, %v3498
      %v3515 = vpack.c.b16 %v3501, %v3500
      %v3516 = vpack.c.b16 %v3503, %v3502
      %v3517 = vpack.c.b16 %v3505, %v3504
      %v3518 = vpack.c.b16 %v3507, %v3506
      %v3519 = vpack.c.b16 %v3509, %v3508
      %v3520 = vpack.c.b16 %v3511, %v3510
      %v3521 = vpack.c.b16 %v3513, %v3512
      %3530 = vmatprep.subr.bf16.mxu0 0
      %3531 = vmatpush1.bf16.msra.mxu0 %v3514
      %3532 = vmatprep.subr.bf16.mxu0 0
      %3533 = vmatpush1.bf16.msra.mxu0 %v3515
      %3534 = vmatprep.subr.bf16.mxu0 0
      %3535 = vmatpush1.bf16.msra.mxu0 %v3516
      %3536 = vmatprep.subr.bf16.mxu0 0
      %3537 = vmatpush1.bf16.msra.mxu0 %v3517
      %3538 = vmatprep.subr.bf16.mxu0 0
      %3539 = vmatpush1.bf16.msra.mxu0 %v3518
      %3540 = vmatprep.subr.bf16.mxu0 0
      %3541 = vmatpush1.bf16.msra.mxu0 %v3519
      %3542 = vmatprep.subr.bf16.mxu0 0
      %3543 = vmatpush1.bf16.msra.mxu0 %v3520
      %3544 = vmatprep.subr.bf16.mxu0 0
      %3545 = vmatpush1.bf16.msra.mxu0 %v3521
      %3546 = vmatprep.subr.bf16.mxu0 0
      %3547 = vmatpush1.bf16.msra.mxu0 0
      %3548 = vmatprep.subr.bf16.mxu0 0
      %3549 = vmatpush1.bf16.msra.mxu0 0
      %3550 = vmatprep.subr.bf16.mxu0 0
      %3551 = vmatpush1.bf16.msra.mxu0 0
      %3552 = vmatprep.subr.bf16.mxu0 0
      %3553 = vmatpush1.bf16.msra.mxu0 0
      %3554 = vmatprep.subr.bf16.mxu0 0
      %3555 = vmatpush1.bf16.msra.mxu0 0
      %3556 = vmatprep.subr.bf16.mxu0 0
      %3557 = vmatpush1.bf16.msra.mxu0 0
      %3558 = vmatprep.subr.bf16.mxu0 0
      %3559 = vmatpush1.bf16.msra.mxu0 0
      %3560 = vmatprep.subr.bf16.mxu0 0
      %3561 = vmatpush1.bf16.msra.mxu0 0
      %3562 = vmatprep.mubr.bf16.mxu0 0
      %3563 = vmatmul.mubr.bf16.gmra.mrb[0].mxu0 %v3450
      %v3564 = vpop.f32.mrb[0].mxu0
      %v3565 = vadd.f32 0.0, %v3564
      %v3566 = vpop.f32.mrb[0].mxu0
      %v3567 = vpop.f32.mrb[0].mxu0
      %v3568 = vadd.f32 0.0, %v3567
      %v3569 = vpop.f32.mrb[0].mxu0
      %3570 = vmatprep.mubr.bf16.mxu0 0
      %3571 = vmatmul.mubr.bf16.gmra.mrb[0].mxu0 %v3451
      %v3572 = vpop.f32.mrb[0].mxu0
      %v3573 = vadd.f32 0.0, %v3572
      %v3574 = vpop.f32.mrb[0].mxu0
      %v3575 = vpop.f32.mrb[0].mxu0
      %v3576 = vadd.f32 0.0, %v3575
      %v3577 = vpop.f32.mrb[0].mxu0
      %3578 = vmatprep.mubr.bf16.mxu0 0
      %3579 = vmatmul.mubr.bf16.gmra.mrb[0].mxu0 %v3452
      %v3580 = vpop.f32.mrb[0].mxu0
      %v3581 = vadd.f32 0.0, %v3580
      %v3582 = vpop.f32.mrb[0].mxu0
      %v3583 = vpop.f32.mrb[0].mxu0
      %v3584 = vadd.f32 0.0, %v3583
      %v3585 = vpop.f32.mrb[0].mxu0
      %3586 = vmatprep.mubr.bf16.mxu0 0
      %3587 = vmatmul.mubr.bf16.gmra.mrb[0].mxu0 %v3453
      %v3588 = vpop.f32.mrb[0].mxu0
      %v3589 = vadd.f32 0.0, %v3588
      %v3590 = vpop.f32.mrb[0].mxu0
      %v3591 = vpop.f32.mrb[0].mxu0
      %v3592 = vadd.f32 0.0, %v3591
      %v3593 = vpop.f32.mrb[0].mxu0
      %3594 = vmatprep.mubr.bf16.mxu0 0
      %3595 = vmatmul.mubr.bf16.gmra.mrb[0].mxu0 %v3454
      %v3596 = vpop.f32.mrb[0].mxu0
      %v3597 = vadd.f32 0.0, %v3596
      %v3598 = vpop.f32.mrb[0].mxu0
      %v3599 = vpop.f32.mrb[0].mxu0
      %v3600 = vadd.f32 0.0, %v3599
      %v3601 = vpop.f32.mrb[0].mxu0
      %3602 = vmatprep.mubr.bf16.mxu0 0
      %3603 = vmatmul.mubr.bf16.gmra.mrb[0].mxu0 %v3455
      %v3604 = vpop.f32.mrb[0].mxu0
      %v3605 = vadd.f32 0.0, %v3604
      %v3606 = vpop.f32.mrb[0].mxu0
      %v3607 = vpop.f32.mrb[0].mxu0
      %v3608 = vadd.f32 0.0, %v3607
      %v3609 = vpop.f32.mrb[0].mxu0
      %3610 = vmatprep.mubr.bf16.mxu0 0
      %3611 = vmatmul.mubr.bf16.gmra.mrb[0].mxu0 %v3456
      %v3612 = vpop.f32.mrb[0].mxu0
      %v3613 = vadd.f32 0.0, %v3612
      %v3614 = vpop.f32.mrb[0].mxu0
      %v3615 = vpop.f32.mrb[0].mxu0
      %v3616 = vadd.f32 0.0, %v3615
      %v3617 = vpop.f32.mrb[0].mxu0
      %3618 = vmatprep.mubr.bf16.mxu0 0
      %3619 = vmatmul.mubr.bf16.gmra.mrb[0].mxu0 %v3457
      %v3620 = vpop.f32.mrb[0].mxu0
      %v3621 = vadd.f32 0.0, %v3620
      %v3622 = vpop.f32.mrb[0].mxu0
      %v3623 = vpop.f32.mrb[0].mxu0
      %v3624 = vadd.f32 0.0, %v3623
      %v3625 = vpop.f32.mrb[0].mxu0
      %3626 = vmatprep.mubr.bf16.mxu0 0
      %3627 = vmatmul.mubr.bf16.gmra.mrb[0].mxu0 %v3458
      %v3628 = vpop.f32.mrb[0].mxu0
      %v3629 = vadd.f32 0.0, %v3628
      %v3630 = vpop.f32.mrb[0].mxu0
      %v3631 = vpop.f32.mrb[0].mxu0
      %v3632 = vadd.f32 0.0, %v3631
      %v3633 = vpop.f32.mrb[0].mxu0
      %3634 = vmatprep.mubr.bf16.mxu0 0
      %3635 = vmatmul.mubr.bf16.gmra.mrb[0].mxu0 %v3459
      %v3636 = vpop.f32.mrb[0].mxu0
      %v3637 = vadd.f32 0.0, %v3636
      %v3638 = vpop.f32.mrb[0].mxu0
      %v3639 = vpop.f32.mrb[0].mxu0
      %v3640 = vadd.f32 0.0, %v3639
      %v3641 = vpop.f32.mrb[0].mxu0
      %3642 = vmatprep.mubr.bf16.mxu0 0
      %3643 = vmatmul.mubr.bf16.gmra.mrb[0].mxu0 %v3460
      %v3644 = vpop.f32.mrb[0].mxu0
      %v3645 = vadd.f32 0.0, %v3644
      %v3646 = vpop.f32.mrb[0].mxu0
      %v3647 = vpop.f32.mrb[0].mxu0
      %v3648 = vadd.f32 0.0, %v3647
      %v3649 = vpop.f32.mrb[0].mxu0
      %3650 = vmatprep.mubr.bf16.mxu0 0
      %3651 = vmatmul.mubr.bf16.gmra.mrb[0].mxu0 %v3461
      %v3652 = vpop.f32.mrb[0].mxu0
      %v3653 = vadd.f32 0.0, %v3652
      %v3654 = vpop.f32.mrb[0].mxu0
      %v3655 = vpop.f32.mrb[0].mxu0
      %v3656 = vadd.f32 0.0, %v3655
      %v3657 = vpop.f32.mrb[0].mxu0
      %3658 = vmatprep.mubr.bf16.mxu0 0
      %3659 = vmatmul.mubr.bf16.gmra.mrb[0].mxu0 %v3462
      %v3660 = vpop.f32.mrb[0].mxu0
      %v3661 = vadd.f32 0.0, %v3660
      %v3662 = vpop.f32.mrb[0].mxu0
      %v3663 = vpop.f32.mrb[0].mxu0
      %v3664 = vadd.f32 0.0, %v3663
      %v3665 = vpop.f32.mrb[0].mxu0
      %3666 = vmatprep.mubr.bf16.mxu0 0
      %3667 = vmatmul.mubr.bf16.gmra.mrb[0].mxu0 %v3463
      %v3668 = vpop.f32.mrb[0].mxu0
      %v3669 = vadd.f32 0.0, %v3668
      %v3670 = vpop.f32.mrb[0].mxu0
      %v3671 = vpop.f32.mrb[0].mxu0
      %v3672 = vadd.f32 0.0, %v3671
      %v3673 = vpop.f32.mrb[0].mxu0
      %3674 = vmatprep.mubr.bf16.mxu0 0
      %3675 = vmatmul.mubr.bf16.gmra.mrb[0].mxu0 %v3464
      %v3676 = vpop.f32.mrb[0].mxu0
      %v3677 = vadd.f32 0.0, %v3676
      %v3678 = vpop.f32.mrb[0].mxu0
      %v3679 = vpop.f32.mrb[0].mxu0
      %v3680 = vadd.f32 0.0, %v3679
      %v3681 = vpop.f32.mrb[0].mxu0
      %3682 = vmatprep.mubr.bf16.mxu0 0
      %3683 = vmatmul.mubr.bf16.gmra.mrb[0].mxu0 %v3465
      %v3684 = vpop.f32.mrb[0].mxu0
      %v3685 = vadd.f32 0.0, %v3684
      %v3686 = vpop.f32.mrb[0].mxu0
      %v3687 = vpop.f32.mrb[0].mxu0
      %v3688 = vadd.f32 0.0, %v3687
      %v3689 = vpop.f32.mrb[0].mxu0
      %3690 = vdwg.mxu0
      %v3691 = vadd.f32 %v2937, %v3565
      %v3692 = vadd.f32 %v2938, %v3568
      %v3693 = vadd.f32 %v2939, %v3573
      %v3694 = vadd.f32 %v2940, %v3576
      %v3695 = vadd.f32 %v2941, %v3581
      %v3696 = vadd.f32 %v2942, %v3584
      %v3697 = vadd.f32 %v2943, %v3589
      %v3698 = vadd.f32 %v2944, %v3592
      %v3699 = vadd.f32 %v2945, %v3597
      %v3700 = vadd.f32 %v2946, %v3600
      %v3701 = vadd.f32 %v2947, %v3605
      %v3702 = vadd.f32 %v2948, %v3608
      %v3703 = vadd.f32 %v2949, %v3613
      %v3704 = vadd.f32 %v2950, %v3616
      %v3705 = vadd.f32 %v2951, %v3621
      %v3706 = vadd.f32 %v2952, %v3624
      %v3707 = vadd.f32 %v2953, %v3629
      %v3708 = vadd.f32 %v2954, %v3632
      %v3709 = vadd.f32 %v2955, %v3637
      %v3710 = vadd.f32 %v2956, %v3640
      %v3711 = vadd.f32 %v2957, %v3645
      %v3712 = vadd.f32 %v2958, %v3648
      %v3713 = vadd.f32 %v2959, %v3653
      %v3714 = vadd.f32 %v2960, %v3656
      %v3715 = vadd.f32 %v2961, %v3661
      %v3716 = vadd.f32 %v2962, %v3664
      %v3717 = vadd.f32 %v2963, %v3669
      %v3718 = vadd.f32 %v2964, %v3672
      %v3719 = vadd.f32 %v2965, %v3677
      %v3720 = vadd.f32 %v2966, %v3680
      %v3721 = vadd.f32 %v2967, %v3685
      %v3722 = vadd.f32 %v2968, %v3688
      %v3723 = vld [vmem:[%s246] sm:$0xe]
      %v3724 = vld [vmem:[%s246 + $0xc] sm:$0xe]
      %v3725 = vld [vmem:[%s246 + $0x18] sm:$0xe]
      %v3726 = vld [vmem:[%s246 + $0x24] sm:$0xe]
      %v3727 = vld [vmem:[%s246 + $0x30] sm:$0xe]
      %v3728 = vld [vmem:[%s246 + $0x3c] sm:$0xe]
      %v3729 = vld [vmem:[%s246 + $0x48] sm:$0xe]
      %v3730 = vld [vmem:[%s246 + $0x54] sm:$0xe]
      %v3731 = vld [vmem:[%s246 + $0x60] sm:$0xe]
      %v3732 = vld [vmem:[%s246 + $0x6c] sm:$0xe]
      %v3733 = vld [vmem:[%s246 + $0x78] sm:$0xe]
      %v3734 = vld [vmem:[%s246 + $0x84] sm:$0xe]
      %v3735 = vld [vmem:[%s246 + $0x90] sm:$0xe]
      %v3736 = vld [vmem:[%s246 + $0x9c] sm:$0xe]
      %v3737 = vld [vmem:[%s246 + $0xa8] sm:$0xe]
      %v3738 = vld [vmem:[%s246 + $0xb4] sm:$0xe]
      %v3787 = vrot.slane %v3723, 5
      %v3788 = vrot.slane %v3787, 4
      %v3789 = vrot.slane %v2970, 5
      %v3790 = vsel %vm2148, %v3788, %v3789
      %v3791 = vrot.slane %v3789, 4
      %v3792 = vrot.slane %v2971, 5
      %v3793 = vsel %vm2148, %v3791, %v3792
      %v3794 = vrot.slane %v3724, 5
      %v3795 = vrot.slane %v3794, 4
      %v3796 = vrot.slane %v2973, 5
      %v3797 = vsel %vm2148, %v3795, %v3796
      %v3798 = vrot.slane %v3796, 4
      %v3799 = vrot.slane %v2974, 5
      %v3800 = vsel %vm2148, %v3798, %v3799
      %v3801 = vrot.slane %v3725, 5
      %v3802 = vrot.slane %v3801, 4
      %v3803 = vrot.slane %v2976, 5
      %v3804 = vsel %vm2148, %v3802, %v3803
      %v3805 = vrot.slane %v3803, 4
      %v3806 = vrot.slane %v2977, 5
      %v3807 = vsel %vm2148, %v3805, %v3806
      %v3808 = vrot.slane %v3726, 5
      %v3809 = vrot.slane %v3808, 4
      %v3810 = vrot.slane %v2979, 5
      %v3811 = vsel %vm2148, %v3809, %v3810
      %v3812 = vrot.slane %v3810, 4
      %v3813 = vrot.slane %v2980, 5
      %v3814 = vsel %vm2148, %v3812, %v3813
      %v3815 = vrot.slane %v3727, 5
      %v3816 = vrot.slane %v3815, 4
      %v3817 = vrot.slane %v2982, 5
      %v3818 = vsel %vm2148, %v3816, %v3817
      %v3819 = vrot.slane %v3817, 4
      %v3820 = vrot.slane %v2983, 5
      %v3821 = vsel %vm2148, %v3819, %v3820
      %v3822 = vrot.slane %v3728, 5
      %v3823 = vrot.slane %v3822, 4
      %v3824 = vrot.slane %v2985, 5
      %v3825 = vsel %vm2148, %v3823, %v3824
      %v3826 = vrot.slane %v3824, 4
      %v3827 = vrot.slane %v2986, 5
      %v3828 = vsel %vm2148, %v3826, %v3827
      %v3829 = vrot.slane %v3729, 5
      %v3830 = vrot.slane %v3829, 4
      %v3831 = vrot.slane %v2988, 5
      %v3832 = vsel %vm2148, %v3830, %v3831
      %v3833 = vrot.slane %v3831, 4
      %v3834 = vrot.slane %v2989, 5
      %v3835 = vsel %vm2148, %v3833, %v3834
      %v3836 = vrot.slane %v3730, 5
      %v3837 = vrot.slane %v3836, 4
      %v3838 = vrot.slane %v2991, 5
      %v3839 = vsel %vm2148, %v3837, %v3838
      %v3840 = vrot.slane %v3838, 4
      %v3841 = vrot.slane %v2992, 5
      %v3842 = vsel %vm2148, %v3840, %v3841
      %v3843 = vrot.slane %v3731, 5
      %v3844 = vrot.slane %v3843, 4
      %v3845 = vrot.slane %v2994, 5
      %v3846 = vsel %vm2148, %v3844, %v3845
      %v3847 = vrot.slane %v3845, 4
      %v3848 = vrot.slane %v2995, 5
      %v3849 = vsel %vm2148, %v3847, %v3848
      %v3850 = vrot.slane %v3732, 5
      %v3851 = vrot.slane %v3850, 4
      %v3852 = vrot.slane %v2997, 5
      %v3853 = vsel %vm2148, %v3851, %v3852
      %v3854 = vrot.slane %v3852, 4
      %v3855 = vrot.slane %v2998, 5
      %v3856 = vsel %vm2148, %v3854, %v3855
      %v3857 = vrot.slane %v3733, 5
      %v3858 = vrot.slane %v3857, 4
      %v3859 = vrot.slane %v3000, 5
      %v3860 = vsel %vm2148, %v3858, %v3859
      %v3861 = vrot.slane %v3859, 4
      %v3862 = vrot.slane %v3001, 5
      %v3863 = vsel %vm2148, %v3861, %v3862
      %v3864 = vrot.slane %v3734, 5
      %v3865 = vrot.slane %v3864, 4
      %v3866 = vrot.slane %v3003, 5
      %v3867 = vsel %vm2148, %v3865, %v3866
      %v3868 = vrot.slane %v3866, 4
      %v3869 = vrot.slane %v3004, 5
      %v3870 = vsel %vm2148, %v3868, %v3869
      %v3871 = vrot.slane %v3735, 5
      %v3872 = vrot.slane %v3871, 4
      %v3873 = vrot.slane %v3006, 5
      %v3874 = vsel %vm2148, %v3872, %v3873
      %v3875 = vrot.slane %v3873, 4
      %v3876 = vrot.slane %v3007, 5
      %v3877 = vsel %vm2148, %v3875, %v3876
      %v3878 = vrot.slane %v3736, 5
      %v3879 = vrot.slane %v3878, 4
      %v3880 = vrot.slane %v3009, 5
      %v3881 = vsel %vm2148, %v3879, %v3880
      %v3882 = vrot.slane %v3880, 4
      %v3883 = vrot.slane %v3010, 5
      %v3884 = vsel %vm2148, %v3882, %v3883
      %v3885 = vrot.slane %v3737, 5
      %v3886 = vrot.slane %v3885, 4
      %v3887 = vrot.slane %v3012, 5
      %v3888 = vsel %vm2148, %v3886, %v3887
      %v3889 = vrot.slane %v3887, 4
      %v3890 = vrot.slane %v3013, 5
      %v3891 = vsel %vm2148, %v3889, %v3890
      %v3892 = vrot.slane %v3738, 5
      %v3893 = vrot.slane %v3892, 4
      %v3894 = vrot.slane %v3015, 5
      %v3895 = vsel %vm2148, %v3893, %v3894
      %v3896 = vrot.slane %v3894, 4
      %v3897 = vrot.slane %v3016, 5
      %v3898 = vsel %vm2148, %v3896, %v3897
      %s3899 = scalar_lea.vmem %s3, 320
      %v3900 = vld [vmem:[%s3899] sm:$0xf]
      %v3901 = vld [vmem:[%s3899 + $0x4] sm:$0xf]
      %v3902 = vld [vmem:[%s3899 + $0x8] sm:$0xf]
      %v3903 = vld [vmem:[%s3899 + $0xc] sm:$0xf]
      %v3904 = vld [vmem:[%s3899 + $0x10] sm:$0xf]
      %v3905 = vld [vmem:[%s3899 + $0x14] sm:$0xf]
      %v3906 = vld [vmem:[%s3899 + $0x18] sm:$0xf]
      %v3907 = vld [vmem:[%s3899 + $0x1c] sm:$0xf]
      %v3908 = vld [vmem:[%s3899 + $0x20] sm:$0xf]
      %v3909 = vld [vmem:[%s3899 + $0x24] sm:$0xf]
      %v3910 = vld [vmem:[%s3899 + $0x28] sm:$0xf]
      %v3911 = vld [vmem:[%s3899 + $0x2c] sm:$0xf]
      %v3912 = vld [vmem:[%s3899 + $0x30] sm:$0xf]
      %v3913 = vld [vmem:[%s3899 + $0x34] sm:$0xf]
      %v3914 = vld [vmem:[%s3899 + $0x38] sm:$0xf]
      %v3915 = vld [vmem:[%s3899 + $0x3c] sm:$0xf]
      %v3916 = vunpack.c.l.b16 %v3790
      %v3917 = vunpack.c.l.b16 %v3793
      %v3918 = vunpack.c.l.b16 %v3797
      %v3919 = vunpack.c.l.b16 %v3800
      %v3920 = vunpack.c.l.b16 %v3804
      %v3921 = vunpack.c.l.b16 %v3807
      %v3922 = vunpack.c.l.b16 %v3811
      %v3923 = vunpack.c.l.b16 %v3814
      %v3924 = vunpack.c.l.b16 %v3818
      %v3925 = vunpack.c.l.b16 %v3821
      %v3926 = vunpack.c.l.b16 %v3825
      %v3927 = vunpack.c.l.b16 %v3828
      %v3928 = vunpack.c.l.b16 %v3832
      %v3929 = vunpack.c.l.b16 %v3835
      %v3930 = vunpack.c.l.b16 %v3839
      %v3931 = vunpack.c.l.b16 %v3842
      %v3932 = vunpack.c.l.b16 %v3846
      %v3933 = vunpack.c.l.b16 %v3849
      %v3934 = vunpack.c.l.b16 %v3853
      %v3935 = vunpack.c.l.b16 %v3856
      %v3936 = vunpack.c.l.b16 %v3860
      %v3937 = vunpack.c.l.b16 %v3863
      %v3938 = vunpack.c.l.b16 %v3867
      %v3939 = vunpack.c.l.b16 %v3870
      %v3940 = vunpack.c.l.b16 %v3874
      %v3941 = vunpack.c.l.b16 %v3877
      %v3942 = vunpack.c.l.b16 %v3881
      %v3943 = vunpack.c.l.b16 %v3884
      %v3944 = vunpack.c.l.b16 %v3888
      %v3945 = vunpack.c.l.b16 %v3891
      %v3946 = vunpack.c.l.b16 %v3895
      %v3947 = vunpack.c.l.b16 %v3898
      %v3948 = vpack.c.b16 %v3917, %v3916
      %v3949 = vpack.c.b16 %v3919, %v3918
      %v3950 = vpack.c.b16 %v3921, %v3920
      %v3951 = vpack.c.b16 %v3923, %v3922
      %v3952 = vpack.c.b16 %v3925, %v3924
      %v3953 = vpack.c.b16 %v3927, %v3926
      %v3954 = vpack.c.b16 %v3929, %v3928
      %v3955 = vpack.c.b16 %v3931, %v3930
      %v3956 = vpack.c.b16 %v3933, %v3932
      %v3957 = vpack.c.b16 %v3935, %v3934
      %v3958 = vpack.c.b16 %v3937, %v3936
      %v3959 = vpack.c.b16 %v3939, %v3938
      %v3960 = vpack.c.b16 %v3941, %v3940
      %v3961 = vpack.c.b16 %v3943, %v3942
      %v3962 = vpack.c.b16 %v3945, %v3944
      %v3963 = vpack.c.b16 %v3947, %v3946
      %v3996 = vunpack.c.l.b16 %v3900
      %v3997 = vunpack.c.l.b16 %v3901
      %v3998 = vunpack.c.l.b16 %v3902
      %v3999 = vunpack.c.l.b16 %v3903
      %v4000 = vunpack.c.l.b16 %v3904
      %v4001 = vunpack.c.l.b16 %v3905
      %v4002 = vunpack.c.l.b16 %v3906
      %v4003 = vunpack.c.l.b16 %v3907
      %v4004 = vunpack.c.l.b16 %v3908
      %v4005 = vunpack.c.l.b16 %v3909
      %v4006 = vunpack.c.l.b16 %v3910
      %v4007 = vunpack.c.l.b16 %v3911
      %v4008 = vunpack.c.l.b16 %v3912
      %v4009 = vunpack.c.l.b16 %v3913
      %v4010 = vunpack.c.l.b16 %v3914
      %v4011 = vunpack.c.l.b16 %v3915
      %v4012 = vpack.c.b16 %v3997, %v3996
      %v4013 = vpack.c.b16 %v3999, %v3998
      %v4014 = vpack.c.b16 %v4001, %v4000
      %v4015 = vpack.c.b16 %v4003, %v4002
      %v4016 = vpack.c.b16 %v4005, %v4004
      %v4017 = vpack.c.b16 %v4007, %v4006
      %v4018 = vpack.c.b16 %v4009, %v4008
      %v4019 = vpack.c.b16 %v4011, %v4010
      %4028 = vmatprep.subr.bf16.mxu0 0
      %4029 = vmatpush1.bf16.msra.mxu0 %v4012
      %4030 = vmatprep.subr.bf16.mxu0 0
      %4031 = vmatpush1.bf16.msra.mxu0 %v4013
      %4032 = vmatprep.subr.bf16.mxu0 0
      %4033 = vmatpush1.bf16.msra.mxu0 %v4014
      %4034 = vmatprep.subr.bf16.mxu0 0
      %4035 = vmatpush1.bf16.msra.mxu0 %v4015
      %4036 = vmatprep.subr.bf16.mxu0 0
      %4037 = vmatpush1.bf16.msra.mxu0 %v4016
      %4038 = vmatprep.subr.bf16.mxu0 0
      %4039 = vmatpush1.bf16.msra.mxu0 %v4017
      %4040 = vmatprep.subr.bf16.mxu0 0
      %4041 = vmatpush1.bf16.msra.mxu0 %v4018
      %4042 = vmatprep.subr.bf16.mxu0 0
      %4043 = vmatpush1.bf16.msra.mxu0 %v4019
      %4044 = vmatprep.subr.bf16.mxu0 0
      %4045 = vmatpush1.bf16.msra.mxu0 0
      %4046 = vmatprep.subr.bf16.mxu0 0
      %4047 = vmatpush1.bf16.msra.mxu0 0
      %4048 = vmatprep.subr.bf16.mxu0 0
      %4049 = vmatpush1.bf16.msra.mxu0 0
      %4050 = vmatprep.subr.bf16.mxu0 0
      %4051 = vmatpush1.bf16.msra.mxu0 0
      %4052 = vmatprep.subr.bf16.mxu0 0
      %4053 = vmatpush1.bf16.msra.mxu0 0
      %4054 = vmatprep.subr.bf16.mxu0 0
      %4055 = vmatpush1.bf16.msra.mxu0 0
      %4056 = vmatprep.subr.bf16.mxu0 0
      %4057 = vmatpush1.bf16.msra.mxu0 0
      %4058 = vmatprep.subr.bf16.mxu0 0
      %4059 = vmatpush1.bf16.msra.mxu0 0
      %4060 = vmatprep.mubr.bf16.mxu0 0
      %4061 = vmatmul.mubr.bf16.gmra.mrb[0].mxu0 %v3948
      %v4062 = vpop.f32.mrb[0].mxu0
      %v4063 = vadd.f32 0.0, %v4062
      %v4064 = vpop.f32.mrb[0].mxu0
      %v4065 = vpop.f32.mrb[0].mxu0
      %v4066 = vadd.f32 0.0, %v4065
      %v4067 = vpop.f32.mrb[0].mxu0
      %4068 = vmatprep.mubr.bf16.mxu0 0
      %4069 = vmatmul.mubr.bf16.gmra.mrb[0].mxu0 %v3949
      %v4070 = vpop.f32.mrb[0].mxu0
      %v4071 = vadd.f32 0.0, %v4070
      %v4072 = vpop.f32.mrb[0].mxu0
      %v4073 = vpop.f32.mrb[0].mxu0
      %v4074 = vadd.f32 0.0, %v4073
      %v4075 = vpop.f32.mrb[0].mxu0
      %4076 = vmatprep.mubr.bf16.mxu0 0
      %4077 = vmatmul.mubr.bf16.gmra.mrb[0].mxu0 %v3950
      %v4078 = vpop.f32.mrb[0].mxu0
      %v4079 = vadd.f32 0.0, %v4078
      %v4080 = vpop.f32.mrb[0].mxu0
      %v4081 = vpop.f32.mrb[0].mxu0
      %v4082 = vadd.f32 0.0, %v4081
      %v4083 = vpop.f32.mrb[0].mxu0
      %4084 = vmatprep.mubr.bf16.mxu0 0
      %4085 = vmatmul.mubr.bf16.gmra.mrb[0].mxu0 %v3951
      %v4086 = vpop.f32.mrb[0].mxu0
      %v4087 = vadd.f32 0.0, %v4086
      %v4088 = vpop.f32.mrb[0].mxu0
      %v4089 = vpop.f32.mrb[0].mxu0
      %v4090 = vadd.f32 0.0, %v4089
      %v4091 = vpop.f32.mrb[0].mxu0
      %4092 = vmatprep.mubr.bf16.mxu0 0
      %4093 = vmatmul.mubr.bf16.gmra.mrb[0].mxu0 %v3952
      %v4094 = vpop.f32.mrb[0].mxu0
      %v4095 = vadd.f32 0.0, %v4094
      %v4096 = vpop.f32.mrb[0].mxu0
      %v4097 = vpop.f32.mrb[0].mxu0
      %v4098 = vadd.f32 0.0, %v4097
      %v4099 = vpop.f32.mrb[0].mxu0
      %4100 = vmatprep.mubr.bf16.mxu0 0
      %4101 = vmatmul.mubr.bf16.gmra.mrb[0].mxu0 %v3953
      %v4102 = vpop.f32.mrb[0].mxu0
      %v4103 = vadd.f32 0.0, %v4102
      %v4104 = vpop.f32.mrb[0].mxu0
      %v4105 = vpop.f32.mrb[0].mxu0
      %v4106 = vadd.f32 0.0, %v4105
      %v4107 = vpop.f32.mrb[0].mxu0
      %4108 = vmatprep.mubr.bf16.mxu0 0
      %4109 = vmatmul.mubr.bf16.gmra.mrb[0].mxu0 %v3954
      %v4110 = vpop.f32.mrb[0].mxu0
      %v4111 = vadd.f32 0.0, %v4110
      %v4112 = vpop.f32.mrb[0].mxu0
      %v4113 = vpop.f32.mrb[0].mxu0
      %v4114 = vadd.f32 0.0, %v4113
      %v4115 = vpop.f32.mrb[0].mxu0
      %4116 = vmatprep.mubr.bf16.mxu0 0
      %4117 = vmatmul.mubr.bf16.gmra.mrb[0].mxu0 %v3955
      %v4118 = vpop.f32.mrb[0].mxu0
      %v4119 = vadd.f32 0.0, %v4118
      %v4120 = vpop.f32.mrb[0].mxu0
      %v4121 = vpop.f32.mrb[0].mxu0
      %v4122 = vadd.f32 0.0, %v4121
      %v4123 = vpop.f32.mrb[0].mxu0
      %4124 = vmatprep.mubr.bf16.mxu0 0
      %4125 = vmatmul.mubr.bf16.gmra.mrb[0].mxu0 %v3956
      %v4126 = vpop.f32.mrb[0].mxu0
      %v4127 = vadd.f32 0.0, %v4126
      %v4128 = vpop.f32.mrb[0].mxu0
      %v4129 = vpop.f32.mrb[0].mxu0
      %v4130 = vadd.f32 0.0, %v4129
      %v4131 = vpop.f32.mrb[0].mxu0
      %4132 = vmatprep.mubr.bf16.mxu0 0
      %4133 = vmatmul.mubr.bf16.gmra.mrb[0].mxu0 %v3957
      %v4134 = vpop.f32.mrb[0].mxu0
      %v4135 = vadd.f32 0.0, %v4134
      %v4136 = vpop.f32.mrb[0].mxu0
      %v4137 = vpop.f32.mrb[0].mxu0
      %v4138 = vadd.f32 0.0, %v4137
      %v4139 = vpop.f32.mrb[0].mxu0
      %4140 = vmatprep.mubr.bf16.mxu0 0
      %4141 = vmatmul.mubr.bf16.gmra.mrb[0].mxu0 %v3958
      %v4142 = vpop.f32.mrb[0].mxu0
      %v4143 = vadd.f32 0.0, %v4142
      %v4144 = vpop.f32.mrb[0].mxu0
      %v4145 = vpop.f32.mrb[0].mxu0
      %v4146 = vadd.f32 0.0, %v4145
      %v4147 = vpop.f32.mrb[0].mxu0
      %4148 = vmatprep.mubr.bf16.mxu0 0
      %4149 = vmatmul.mubr.bf16.gmra.mrb[0].mxu0 %v3959
      %v4150 = vpop.f32.mrb[0].mxu0
      %v4151 = vadd.f32 0.0, %v4150
      %v4152 = vpop.f32.mrb[0].mxu0
      %v4153 = vpop.f32.mrb[0].mxu0
      %v4154 = vadd.f32 0.0, %v4153
      %v4155 = vpop.f32.mrb[0].mxu0
      %4156 = vmatprep.mubr.bf16.mxu0 0
      %4157 = vmatmul.mubr.bf16.gmra.mrb[0].mxu0 %v3960
      %v4158 = vpop.f32.mrb[0].mxu0
      %v4159 = vadd.f32 0.0, %v4158
      %v4160 = vpop.f32.mrb[0].mxu0
      %v4161 = vpop.f32.mrb[0].mxu0
      %v4162 = vadd.f32 0.0, %v4161
      %v4163 = vpop.f32.mrb[0].mxu0
      %4164 = vmatprep.mubr.bf16.mxu0 0
      %4165 = vmatmul.mubr.bf16.gmra.mrb[0].mxu0 %v3961
      %v4166 = vpop.f32.mrb[0].mxu0
      %v4167 = vadd.f32 0.0, %v4166
      %v4168 = vpop.f32.mrb[0].mxu0
      %v4169 = vpop.f32.mrb[0].mxu0
      %v4170 = vadd.f32 0.0, %v4169
      %v4171 = vpop.f32.mrb[0].mxu0
      %4172 = vmatprep.mubr.bf16.mxu0 0
      %4173 = vmatmul.mubr.bf16.gmra.mrb[0].mxu0 %v3962
      %v4174 = vpop.f32.mrb[0].mxu0
      %v4175 = vadd.f32 0.0, %v4174
      %v4176 = vpop.f32.mrb[0].mxu0
      %v4177 = vpop.f32.mrb[0].mxu0
      %v4178 = vadd.f32 0.0, %v4177
      %v4179 = vpop.f32.mrb[0].mxu0
      %4180 = vmatprep.mubr.bf16.mxu0 0
      %4181 = vmatmul.mubr.bf16.gmra.mrb[0].mxu0 %v3963
      %v4182 = vpop.f32.mrb[0].mxu0
      %v4183 = vadd.f32 0.0, %v4182
      %v4184 = vpop.f32.mrb[0].mxu0
      %v4185 = vpop.f32.mrb[0].mxu0
      %v4186 = vadd.f32 0.0, %v4185
      %v4187 = vpop.f32.mrb[0].mxu0
      %4188 = vdwg.mxu0
      %v4189 = vadd.f32 %v3691, %v4063
      %v4190 = vadd.f32 %v3692, %v4066
      %v4191 = vadd.f32 %v3693, %v4071
      %v4192 = vadd.f32 %v3694, %v4074
      %v4193 = vadd.f32 %v3695, %v4079
      %v4194 = vadd.f32 %v3696, %v4082
      %v4195 = vadd.f32 %v3697, %v4087
      %v4196 = vadd.f32 %v3698, %v4090
      %v4197 = vadd.f32 %v3699, %v4095
      %v4198 = vadd.f32 %v3700, %v4098
      %v4199 = vadd.f32 %v3701, %v4103
      %v4200 = vadd.f32 %v3702, %v4106
      %v4201 = vadd.f32 %v3703, %v4111
      %v4202 = vadd.f32 %v3704, %v4114
      %v4203 = vadd.f32 %v3705, %v4119
      %v4204 = vadd.f32 %v3706, %v4122
      %v4205 = vadd.f32 %v3707, %v4127
      %v4206 = vadd.f32 %v3708, %v4130
      %v4207 = vadd.f32 %v3709, %v4135
      %v4208 = vadd.f32 %v3710, %v4138
      %v4209 = vadd.f32 %v3711, %v4143
      %v4210 = vadd.f32 %v3712, %v4146
      %v4211 = vadd.f32 %v3713, %v4151
      %v4212 = vadd.f32 %v3714, %v4154
      %v4213 = vadd.f32 %v3715, %v4159
      %v4214 = vadd.f32 %v3716, %v4162
      %v4215 = vadd.f32 %v3717, %v4167
      %v4216 = vadd.f32 %v3718, %v4170
      %v4217 = vadd.f32 %v3719, %v4175
      %v4218 = vadd.f32 %v3720, %v4178
      %v4219 = vadd.f32 %v3721, %v4183
      %v4220 = vadd.f32 %v3722, %v4186
      %s4221 = scalar_lea.vmem [#allocation2], 24
      %v4222 = vld [vmem:[%s4221] sm:$0xf]
      %v4223 = vld [vmem:[%s4221 + $0x4] sm:$0xf]
      %v4224 = vld [vmem:[%s4221 + $0xc] sm:$0xf]
      %v4225 = vld [vmem:[%s4221 + $0x10] sm:$0xf]
      %v4226 = vld [vmem:[%s4221 + $0x18] sm:$0xf]
      %v4227 = vld [vmem:[%s4221 + $0x1c] sm:$0xf]
      %v4228 = vld [vmem:[%s4221 + $0x24] sm:$0xf]
      %v4229 = vld [vmem:[%s4221 + $0x28] sm:$0xf]
      %v4230 = vld [vmem:[%s4221 + $0x30] sm:$0xf]
      %v4231 = vld [vmem:[%s4221 + $0x34] sm:$0xf]
      %v4232 = vld [vmem:[%s4221 + $0x3c] sm:$0xf]
      %v4233 = vld [vmem:[%s4221 + $0x40] sm:$0xf]
      %v4234 = vld [vmem:[%s4221 + $0x48] sm:$0xf]
      %v4235 = vld [vmem:[%s4221 + $0x4c] sm:$0xf]
      %v4236 = vld [vmem:[%s4221 + $0x54] sm:$0xf]
      %v4237 = vld [vmem:[%s4221 + $0x58] sm:$0xf]
      %v4238 = vld [vmem:[%s4221 + $0x60] sm:$0xf]
      %v4239 = vld [vmem:[%s4221 + $0x64] sm:$0xf]
      %v4240 = vld [vmem:[%s4221 + $0x6c] sm:$0xf]
      %v4241 = vld [vmem:[%s4221 + $0x70] sm:$0xf]
      %v4242 = vld [vmem:[%s4221 + $0x78] sm:$0xf]
      %v4243 = vld [vmem:[%s4221 + $0x7c] sm:$0xf]
      %v4244 = vld [vmem:[%s4221 + $0x84] sm:$0xf]
      %v4245 = vld [vmem:[%s4221 + $0x88] sm:$0xf]
      %v4246 = vld [vmem:[%s4221 + $0x90] sm:$0xf]
      %v4247 = vld [vmem:[%s4221 + $0x94] sm:$0xf]
      %v4248 = vld [vmem:[%s4221 + $0x9c] sm:$0xf]
      %v4249 = vld [vmem:[%s4221 + $0xa0] sm:$0xf]
      %v4250 = vld [vmem:[%s4221 + $0xa8] sm:$0xf]
      %v4251 = vld [vmem:[%s4221 + $0xac] sm:$0xf]
      %v4252 = vld [vmem:[%s4221 + $0xb4] sm:$0xf]
      %v4253 = vld [vmem:[%s4221 + $0xb8] sm:$0xf]
      %s4254 = scalar_lea.vmem %s3, 384
      %v4255 = vld [vmem:[%s4254] sm:$0xf]
      %v4256 = vld [vmem:[%s4254 + $0x4] sm:$0xf]
      %v4257 = vld [vmem:[%s4254 + $0x8] sm:$0xf]
      %v4258 = vld [vmem:[%s4254 + $0xc] sm:$0xf]
      %v4259 = vld [vmem:[%s4254 + $0x10] sm:$0xf]
      %v4260 = vld [vmem:[%s4254 + $0x14] sm:$0xf]
      %v4261 = vld [vmem:[%s4254 + $0x18] sm:$0xf]
      %v4262 = vld [vmem:[%s4254 + $0x1c] sm:$0xf]
      %v4263 = vld [vmem:[%s4254 + $0x20] sm:$0xf]
      %v4264 = vld [vmem:[%s4254 + $0x24] sm:$0xf]
      %v4265 = vld [vmem:[%s4254 + $0x28] sm:$0xf]
      %v4266 = vld [vmem:[%s4254 + $0x2c] sm:$0xf]
      %v4267 = vld [vmem:[%s4254 + $0x30] sm:$0xf]
      %v4268 = vld [vmem:[%s4254 + $0x34] sm:$0xf]
      %v4269 = vld [vmem:[%s4254 + $0x38] sm:$0xf]
      %v4270 = vld [vmem:[%s4254 + $0x3c] sm:$0xf]
      %v4303 = vunpack.c.l.b16 %v4222
      %v4304 = vunpack.c.l.b16 %v4223
      %v4305 = vunpack.c.l.b16 %v4224
      %v4306 = vunpack.c.l.b16 %v4225
      %v4307 = vunpack.c.l.b16 %v4226
      %v4308 = vunpack.c.l.b16 %v4227
      %v4309 = vunpack.c.l.b16 %v4228
      %v4310 = vunpack.c.l.b16 %v4229
      %v4311 = vunpack.c.l.b16 %v4230
      %v4312 = vunpack.c.l.b16 %v4231
      %v4313 = vunpack.c.l.b16 %v4232
      %v4314 = vunpack.c.l.b16 %v4233
      %v4315 = vunpack.c.l.b16 %v4234
      %v4316 = vunpack.c.l.b16 %v4235
      %v4317 = vunpack.c.l.b16 %v4236
      %v4318 = vunpack.c.l.b16 %v4237
      %v4319 = vunpack.c.l.b16 %v4238
      %v4320 = vunpack.c.l.b16 %v4239
      %v4321 = vunpack.c.l.b16 %v4240
      %v4322 = vunpack.c.l.b16 %v4241
      %v4323 = vunpack.c.l.b16 %v4242
      %v4324 = vunpack.c.l.b16 %v4243
      %v4325 = vunpack.c.l.b16 %v4244
      %v4326 = vunpack.c.l.b16 %v4245
      %v4327 = vunpack.c.l.b16 %v4246
      %v4328 = vunpack.c.l.b16 %v4247
      %v4329 = vunpack.c.l.b16 %v4248
      %v4330 = vunpack.c.l.b16 %v4249
      %v4331 = vunpack.c.l.b16 %v4250
      %v4332 = vunpack.c.l.b16 %v4251
      %v4333 = vunpack.c.l.b16 %v4252
      %v4334 = vunpack.c.l.b16 %v4253
      %v4335 = vpack.c.b16 %v4304, %v4303
      %v4336 = vpack.c.b16 %v4306, %v4305
      %v4337 = vpack.c.b16 %v4308, %v4307
      %v4338 = vpack.c.b16 %v4310, %v4309
      %v4339 = vpack.c.b16 %v4312, %v4311
      %v4340 = vpack.c.b16 %v4314, %v4313
      %v4341 = vpack.c.b16 %v4316, %v4315
      %v4342 = vpack.c.b16 %v4318, %v4317
      %v4343 = vpack.c.b16 %v4320, %v4319
      %v4344 = vpack.c.b16 %v4322, %v4321
      %v4345 = vpack.c.b16 %v4324, %v4323
      %v4346 = vpack.c.b16 %v4326, %v4325
      %v4347 = vpack.c.b16 %v4328, %v4327
      %v4348 = vpack.c.b16 %v4330, %v4329
      %v4349 = vpack.c.b16 %v4332, %v4331
      %v4350 = vpack.c.b16 %v4334, %v4333
      %v4383 = vunpack.c.l.b16 %v4255
      %v4384 = vunpack.c.l.b16 %v4256
      %v4385 = vunpack.c.l.b16 %v4257
      %v4386 = vunpack.c.l.b16 %v4258
      %v4387 = vunpack.c.l.b16 %v4259
      %v4388 = vunpack.c.l.b16 %v4260
      %v4389 = vunpack.c.l.b16 %v4261
      %v4390 = vunpack.c.l.b16 %v4262
      %v4391 = vunpack.c.l.b16 %v4263
      %v4392 = vunpack.c.l.b16 %v4264
      %v4393 = vunpack.c.l.b16 %v4265
      %v4394 = vunpack.c.l.b16 %v4266
      %v4395 = vunpack.c.l.b16 %v4267
      %v4396 = vunpack.c.l.b16 %v4268
      %v4397 = vunpack.c.l.b16 %v4269
      %v4398 = vunpack.c.l.b16 %v4270
      %v4399 = vpack.c.b16 %v4384, %v4383
      %v4400 = vpack.c.b16 %v4386, %v4385
      %v4401 = vpack.c.b16 %v4388, %v4387
      %v4402 = vpack.c.b16 %v4390, %v4389
      %v4403 = vpack.c.b16 %v4392, %v4391
      %v4404 = vpack.c.b16 %v4394, %v4393
      %v4405 = vpack.c.b16 %v4396, %v4395
      %v4406 = vpack.c.b16 %v4398, %v4397
      %4415 = vmatprep.subr.bf16.mxu0 0
      %4416 = vmatpush1.bf16.msra.mxu0 %v4399
      %4417 = vmatprep.subr.bf16.mxu0 0
      %4418 = vmatpush1.bf16.msra.mxu0 %v4400
      %4419 = vmatprep.subr.bf16.mxu0 0
      %4420 = vmatpush1.bf16.msra.mxu0 %v4401
      %4421 = vmatprep.subr.bf16.mxu0 0
      %4422 = vmatpush1.bf16.msra.mxu0 %v4402
      %4423 = vmatprep.subr.bf16.mxu0 0
      %4424 = vmatpush1.bf16.msra.mxu0 %v4403
      %4425 = vmatprep.subr.bf16.mxu0 0
      %4426 = vmatpush1.bf16.msra.mxu0 %v4404
      %4427 = vmatprep.subr.bf16.mxu0 0
      %4428 = vmatpush1.bf16.msra.mxu0 %v4405
      %4429 = vmatprep.subr.bf16.mxu0 0
      %4430 = vmatpush1.bf16.msra.mxu0 %v4406
      %4431 = vmatprep.subr.bf16.mxu0 0
      %4432 = vmatpush1.bf16.msra.mxu0 0
      %4433 = vmatprep.subr.bf16.mxu0 0
      %4434 = vmatpush1.bf16.msra.mxu0 0
      %4435 = vmatprep.subr.bf16.mxu0 0
      %4436 = vmatpush1.bf16.msra.mxu0 0
      %4437 = vmatprep.subr.bf16.mxu0 0
      %4438 = vmatpush1.bf16.msra.mxu0 0
      %4439 = vmatprep.subr.bf16.mxu0 0
      %4440 = vmatpush1.bf16.msra.mxu0 0
      %4441 = vmatprep.subr.bf16.mxu0 0
      %4442 = vmatpush1.bf16.msra.mxu0 0
      %4443 = vmatprep.subr.bf16.mxu0 0
      %4444 = vmatpush1.bf16.msra.mxu0 0
      %4445 = vmatprep.subr.bf16.mxu0 0
      %4446 = vmatpush1.bf16.msra.mxu0 0
      %4447 = vmatprep.mubr.bf16.mxu0 0
      %4448 = vmatmul.mubr.bf16.gmra.mrb[0].mxu0 %v4335
      %v4449 = vpop.f32.mrb[0].mxu0
      %v4450 = vadd.f32 0.0, %v4449
      %v4451 = vpop.f32.mrb[0].mxu0
      %v4452 = vpop.f32.mrb[0].mxu0
      %v4453 = vadd.f32 0.0, %v4452
      %v4454 = vpop.f32.mrb[0].mxu0
      %4455 = vmatprep.mubr.bf16.mxu0 0
      %4456 = vmatmul.mubr.bf16.gmra.mrb[0].mxu0 %v4336
      %v4457 = vpop.f32.mrb[0].mxu0
      %v4458 = vadd.f32 0.0, %v4457
      %v4459 = vpop.f32.mrb[0].mxu0
      %v4460 = vpop.f32.mrb[0].mxu0
      %v4461 = vadd.f32 0.0, %v4460
      %v4462 = vpop.f32.mrb[0].mxu0
      %4463 = vmatprep.mubr.bf16.mxu0 0
      %4464 = vmatmul.mubr.bf16.gmra.mrb[0].mxu0 %v4337
      %v4465 = vpop.f32.mrb[0].mxu0
      %v4466 = vadd.f32 0.0, %v4465
      %v4467 = vpop.f32.mrb[0].mxu0
      %v4468 = vpop.f32.mrb[0].mxu0
      %v4469 = vadd.f32 0.0, %v4468
      %v4470 = vpop.f32.mrb[0].mxu0
      %4471 = vmatprep.mubr.bf16.mxu0 0
      %4472 = vmatmul.mubr.bf16.gmra.mrb[0].mxu0 %v4338
      %v4473 = vpop.f32.mrb[0].mxu0
      %v4474 = vadd.f32 0.0, %v4473
      %v4475 = vpop.f32.mrb[0].mxu0
      %v4476 = vpop.f32.mrb[0].mxu0
      %v4477 = vadd.f32 0.0, %v4476
      %v4478 = vpop.f32.mrb[0].mxu0
      %4479 = vmatprep.mubr.bf16.mxu0 0
      %4480 = vmatmul.mubr.bf16.gmra.mrb[0].mxu0 %v4339
      %v4481 = vpop.f32.mrb[0].mxu0
      %v4482 = vadd.f32 0.0, %v4481
      %v4483 = vpop.f32.mrb[0].mxu0
      %v4484 = vpop.f32.mrb[0].mxu0
      %v4485 = vadd.f32 0.0, %v4484
      %v4486 = vpop.f32.mrb[0].mxu0
      %4487 = vmatprep.mubr.bf16.mxu0 0
      %4488 = vmatmul.mubr.bf16.gmra.mrb[0].mxu0 %v4340
      %v4489 = vpop.f32.mrb[0].mxu0
      %v4490 = vadd.f32 0.0, %v4489
      %v4491 = vpop.f32.mrb[0].mxu0
      %v4492 = vpop.f32.mrb[0].mxu0
      %v4493 = vadd.f32 0.0, %v4492
      %v4494 = vpop.f32.mrb[0].mxu0
      %4495 = vmatprep.mubr.bf16.mxu0 0
      %4496 = vmatmul.mubr.bf16.gmra.mrb[0].mxu0 %v4341
      %v4497 = vpop.f32.mrb[0].mxu0
      %v4498 = vadd.f32 0.0, %v4497
      %v4499 = vpop.f32.mrb[0].mxu0
      %v4500 = vpop.f32.mrb[0].mxu0
      %v4501 = vadd.f32 0.0, %v4500
      %v4502 = vpop.f32.mrb[0].mxu0
      %4503 = vmatprep.mubr.bf16.mxu0 0
      %4504 = vmatmul.mubr.bf16.gmra.mrb[0].mxu0 %v4342
      %v4505 = vpop.f32.mrb[0].mxu0
      %v4506 = vadd.f32 0.0, %v4505
      %v4507 = vpop.f32.mrb[0].mxu0
      %v4508 = vpop.f32.mrb[0].mxu0
      %v4509 = vadd.f32 0.0, %v4508
      %v4510 = vpop.f32.mrb[0].mxu0
      %4511 = vmatprep.mubr.bf16.mxu0 0
      %4512 = vmatmul.mubr.bf16.gmra.mrb[0].mxu0 %v4343
      %v4513 = vpop.f32.mrb[0].mxu0
      %v4514 = vadd.f32 0.0, %v4513
      %v4515 = vpop.f32.mrb[0].mxu0
      %v4516 = vpop.f32.mrb[0].mxu0
      %v4517 = vadd.f32 0.0, %v4516
      %v4518 = vpop.f32.mrb[0].mxu0
      %4519 = vmatprep.mubr.bf16.mxu0 0
      %4520 = vmatmul.mubr.bf16.gmra.mrb[0].mxu0 %v4344
      %v4521 = vpop.f32.mrb[0].mxu0
      %v4522 = vadd.f32 0.0, %v4521
      %v4523 = vpop.f32.mrb[0].mxu0
      %v4524 = vpop.f32.mrb[0].mxu0
      %v4525 = vadd.f32 0.0, %v4524
      %v4526 = vpop.f32.mrb[0].mxu0
      %4527 = vmatprep.mubr.bf16.mxu0 0
      %4528 = vmatmul.mubr.bf16.gmra.mrb[0].mxu0 %v4345
      %v4529 = vpop.f32.mrb[0].mxu0
      %v4530 = vadd.f32 0.0, %v4529
      %v4531 = vpop.f32.mrb[0].mxu0
      %v4532 = vpop.f32.mrb[0].mxu0
      %v4533 = vadd.f32 0.0, %v4532
      %v4534 = vpop.f32.mrb[0].mxu0
      %4535 = vmatprep.mubr.bf16.mxu0 0
      %4536 = vmatmul.mubr.bf16.gmra.mrb[0].mxu0 %v4346
      %v4537 = vpop.f32.mrb[0].mxu0
      %v4538 = vadd.f32 0.0, %v4537
      %v4539 = vpop.f32.mrb[0].mxu0
      %v4540 = vpop.f32.mrb[0].mxu0
      %v4541 = vadd.f32 0.0, %v4540
      %v4542 = vpop.f32.mrb[0].mxu0
      %4543 = vmatprep.mubr.bf16.mxu0 0
      %4544 = vmatmul.mubr.bf16.gmra.mrb[0].mxu0 %v4347
      %v4545 = vpop.f32.mrb[0].mxu0
      %v4546 = vadd.f32 0.0, %v4545
      %v4547 = vpop.f32.mrb[0].mxu0
      %v4548 = vpop.f32.mrb[0].mxu0
      %v4549 = vadd.f32 0.0, %v4548
      %v4550 = vpop.f32.mrb[0].mxu0
      %4551 = vmatprep.mubr.bf16.mxu0 0
      %4552 = vmatmul.mubr.bf16.gmra.mrb[0].mxu0 %v4348
      %v4553 = vpop.f32.mrb[0].mxu0
      %v4554 = vadd.f32 0.0, %v4553
      %v4555 = vpop.f32.mrb[0].mxu0
      %v4556 = vpop.f32.mrb[0].mxu0
      %v4557 = vadd.f32 0.0, %v4556
      %v4558 = vpop.f32.mrb[0].mxu0
      %4559 = vmatprep.mubr.bf16.mxu0 0
      %4560 = vmatmul.mubr.bf16.gmra.mrb[0].mxu0 %v4349
      %v4561 = vpop.f32.mrb[0].mxu0
      %v4562 = vadd.f32 0.0, %v4561
      %v4563 = vpop.f32.mrb[0].mxu0
      %v4564 = vpop.f32.mrb[0].mxu0
      %v4565 = vadd.f32 0.0, %v4564
      %v4566 = vpop.f32.mrb[0].mxu0
      %4567 = vmatprep.mubr.bf16.mxu0 0
      %4568 = vmatmul.mubr.bf16.gmra.mrb[0].mxu0 %v4350
      %v4569 = vpop.f32.mrb[0].mxu0
      %v4570 = vadd.f32 0.0, %v4569
      %v4571 = vpop.f32.mrb[0].mxu0
      %v4572 = vpop.f32.mrb[0].mxu0
      %v4573 = vadd.f32 0.0, %v4572
      %v4574 = vpop.f32.mrb[0].mxu0
      %4575 = vdwg.mxu0
      %v4576 = vadd.f32 %v4189, %v4450
      %v4577 = vadd.f32 %v4190, %v4453
      %v4578 = vadd.f32 %v4191, %v4458
      %v4579 = vadd.f32 %v4192, %v4461
      %v4580 = vadd.f32 %v4193, %v4466
      %v4581 = vadd.f32 %v4194, %v4469
      %v4582 = vadd.f32 %v4195, %v4474
      %v4583 = vadd.f32 %v4196, %v4477
      %v4584 = vadd.f32 %v4197, %v4482
      %v4585 = vadd.f32 %v4198, %v4485
      %v4586 = vadd.f32 %v4199, %v4490
      %v4587 = vadd.f32 %v4200, %v4493
      %v4588 = vadd.f32 %v4201, %v4498
      %v4589 = vadd.f32 %v4202, %v4501
      %v4590 = vadd.f32 %v4203, %v4506
      %v4591 = vadd.f32 %v4204, %v4509
      %v4592 = vadd.f32 %v4205, %v4514
      %v4593 = vadd.f32 %v4206, %v4517
      %v4594 = vadd.f32 %v4207, %v4522
      %v4595 = vadd.f32 %v4208, %v4525
      %v4596 = vadd.f32 %v4209, %v4530
      %v4597 = vadd.f32 %v4210, %v4533
      %v4598 = vadd.f32 %v4211, %v4538
      %v4599 = vadd.f32 %v4212, %v4541
      %v4600 = vadd.f32 %v4213, %v4546
      %v4601 = vadd.f32 %v4214, %v4549
      %v4602 = vadd.f32 %v4215, %v4554
      %v4603 = vadd.f32 %v4216, %v4557
      %v4604 = vadd.f32 %v4217, %v4562
      %v4605 = vadd.f32 %v4218, %v4565
      %v4606 = vadd.f32 %v4219, %v4570
      %v4607 = vadd.f32 %v4220, %v4573
      %v4608 = vld [vmem:[%s4221] sm:$0xf]
      %v4609 = vld [vmem:[%s4221 + $0x4] sm:$0xf]
      %v4610 = vld [vmem:[%s4221 + $0x8] sm:$0x1]
      %v4611 = vld [vmem:[%s4221 + $0xc] sm:$0xf]
      %v4612 = vld [vmem:[%s4221 + $0x10] sm:$0xf]
      %v4613 = vld [vmem:[%s4221 + $0x14] sm:$0x1]
      %v4614 = vld [vmem:[%s4221 + $0x18] sm:$0xf]
      %v4615 = vld [vmem:[%s4221 + $0x1c] sm:$0xf]
      %v4616 = vld [vmem:[%s4221 + $0x20] sm:$0x1]
      %v4617 = vld [vmem:[%s4221 + $0x24] sm:$0xf]
      %v4618 = vld [vmem:[%s4221 + $0x28] sm:$0xf]
      %v4619 = vld [vmem:[%s4221 + $0x2c] sm:$0x1]
      %v4620 = vld [vmem:[%s4221 + $0x30] sm:$0xf]
      %v4621 = vld [vmem:[%s4221 + $0x34] sm:$0xf]
      %v4622 = vld [vmem:[%s4221 + $0x38] sm:$0x1]
      %v4623 = vld [vmem:[%s4221 + $0x3c] sm:$0xf]
      %v4624 = vld [vmem:[%s4221 + $0x40] sm:$0xf]
      %v4625 = vld [vmem:[%s4221 + $0x44] sm:$0x1]
      %v4626 = vld [vmem:[%s4221 + $0x48] sm:$0xf]
      %v4627 = vld [vmem:[%s4221 + $0x4c] sm:$0xf]
      %v4628 = vld [vmem:[%s4221 + $0x50] sm:$0x1]
      %v4629 = vld [vmem:[%s4221 + $0x54] sm:$0xf]
      %v4630 = vld [vmem:[%s4221 + $0x58] sm:$0xf]
      %v4631 = vld [vmem:[%s4221 + $0x5c] sm:$0x1]
      %v4632 = vld [vmem:[%s4221 + $0x60] sm:$0xf]
      %v4633 = vld [vmem:[%s4221 + $0x64] sm:$0xf]
      %v4634 = vld [vmem:[%s4221 + $0x68] sm:$0x1]
      %v4635 = vld [vmem:[%s4221 + $0x6c] sm:$0xf]
      %v4636 = vld [vmem:[%s4221 + $0x70] sm:$0xf]
      %v4637 = vld [vmem:[%s4221 + $0x74] sm:$0x1]
      %v4638 = vld [vmem:[%s4221 + $0x78] sm:$0xf]
      %v4639 = vld [vmem:[%s4221 + $0x7c] sm:$0xf]
      %v4640 = vld [vmem:[%s4221 + $0x80] sm:$0x1]
      %v4641 = vld [vmem:[%s4221 + $0x84] sm:$0xf]
      %v4642 = vld [vmem:[%s4221 + $0x88] sm:$0xf]
      %v4643 = vld [vmem:[%s4221 + $0x8c] sm:$0x1]
      %v4644 = vld [vmem:[%s4221 + $0x90] sm:$0xf]
      %v4645 = vld [vmem:[%s4221 + $0x94] sm:$0xf]
      %v4646 = vld [vmem:[%s4221 + $0x98] sm:$0x1]
      %v4647 = vld [vmem:[%s4221 + $0x9c] sm:$0xf]
      %v4648 = vld [vmem:[%s4221 + $0xa0] sm:$0xf]
      %v4649 = vld [vmem:[%s4221 + $0xa4] sm:$0x1]
      %v4650 = vld [vmem:[%s4221 + $0xa8] sm:$0xf]
      %v4651 = vld [vmem:[%s4221 + $0xac] sm:$0xf]
      %v4652 = vld [vmem:[%s4221 + $0xb0] sm:$0x1]
      %v4653 = vld [vmem:[%s4221 + $0xb4] sm:$0xf]
      %v4654 = vld [vmem:[%s4221 + $0xb8] sm:$0xf]
      %v4655 = vld [vmem:[%s4221 + $0xbc] sm:$0x1]
      %v4657 = vshrl.u32 %v4608, 16
      %v4659 = vrot.slane %v4657, 4
      %v4660 = vshll.u32 %v4608, 16
      %v4662 = vrot.slane %v4660, 5
      %v4663 = vor.u32 %v4659, %v4662
      %v4664 = vrot.slane %v4663, 4
      %v4666 = vshll.u32 %v4609, 16
      %v4668 = vrot.slane %v4666, 5
      %v4669 = vsel %vm1118, %v4664, %v4668
      %v4670 = vshrl.u32 %v4609, 16
      %v4672 = vrot.slane %v4670, 4
      %v4673 = vor.u32 %v4672, %v4668
      %v4674 = vrot.slane %v4673, 4
      %v4676 = vshll.u32 %v4610, 16
      %v4678 = vrot.slane %v4676, 5
      %v4679 = vsel %vm1118, %v4674, %v4678
      %v4681 = vshrl.u32 %v4611, 16
      %v4683 = vrot.slane %v4681, 4
      %v4684 = vshll.u32 %v4611, 16
      %v4686 = vrot.slane %v4684, 5
      %v4687 = vor.u32 %v4683, %v4686
      %v4688 = vrot.slane %v4687, 4
      %v4690 = vshll.u32 %v4612, 16
      %v4692 = vrot.slane %v4690, 5
      %v4693 = vsel %vm1118, %v4688, %v4692
      %v4694 = vshrl.u32 %v4612, 16
      %v4696 = vrot.slane %v4694, 4
      %v4697 = vor.u32 %v4696, %v4692
      %v4698 = vrot.slane %v4697, 4
      %v4700 = vshll.u32 %v4613, 16
      %v4702 = vrot.slane %v4700, 5
      %v4703 = vsel %vm1118, %v4698, %v4702
      %v4705 = vshrl.u32 %v4614, 16
      %v4707 = vrot.slane %v4705, 4
      %v4708 = vshll.u32 %v4614, 16
      %v4710 = vrot.slane %v4708, 5
      %v4711 = vor.u32 %v4707, %v4710
      %v4712 = vrot.slane %v4711, 4
      %v4714 = vshll.u32 %v4615, 16
      %v4716 = vrot.slane %v4714, 5
      %v4717 = vsel %vm1118, %v4712, %v4716
      %v4718 = vshrl.u32 %v4615, 16
      %v4720 = vrot.slane %v4718, 4
      %v4721 = vor.u32 %v4720, %v4716
      %v4722 = vrot.slane %v4721, 4
      %v4724 = vshll.u32 %v4616, 16
      %v4726 = vrot.slane %v4724, 5
      %v4727 = vsel %vm1118, %v4722, %v4726
      %v4729 = vshrl.u32 %v4617, 16
      %v4731 = vrot.slane %v4729, 4
      %v4732 = vshll.u32 %v4617, 16
      %v4734 = vrot.slane %v4732, 5
      %v4735 = vor.u32 %v4731, %v4734
      %v4736 = vrot.slane %v4735, 4
      %v4738 = vshll.u32 %v4618, 16
      %v4740 = vrot.slane %v4738, 5
      %v4741 = vsel %vm1118, %v4736, %v4740
      %v4742 = vshrl.u32 %v4618, 16
      %v4744 = vrot.slane %v4742, 4
      %v4745 = vor.u32 %v4744, %v4740
      %v4746 = vrot.slane %v4745, 4
      %v4748 = vshll.u32 %v4619, 16
      %v4750 = vrot.slane %v4748, 5
      %v4751 = vsel %vm1118, %v4746, %v4750
      %v4753 = vshrl.u32 %v4620, 16
      %v4755 = vrot.slane %v4753, 4
      %v4756 = vshll.u32 %v4620, 16
      %v4758 = vrot.slane %v4756, 5
      %v4759 = vor.u32 %v4755, %v4758
      %v4760 = vrot.slane %v4759, 4
      %v4762 = vshll.u32 %v4621, 16
      %v4764 = vrot.slane %v4762, 5
      %v4765 = vsel %vm1118, %v4760, %v4764
      %v4766 = vshrl.u32 %v4621, 16
      %v4768 = vrot.slane %v4766, 4
      %v4769 = vor.u32 %v4768, %v4764
      %v4770 = vrot.slane %v4769, 4
      %v4772 = vshll.u32 %v4622, 16
      %v4774 = vrot.slane %v4772, 5
      %v4775 = vsel %vm1118, %v4770, %v4774
      %v4777 = vshrl.u32 %v4623, 16
      %v4779 = vrot.slane %v4777, 4
      %v4780 = vshll.u32 %v4623, 16
      %v4782 = vrot.slane %v4780, 5
      %v4783 = vor.u32 %v4779, %v4782
      %v4784 = vrot.slane %v4783, 4
      %v4786 = vshll.u32 %v4624, 16
      %v4788 = vrot.slane %v4786, 5
      %v4789 = vsel %vm1118, %v4784, %v4788
      %v4790 = vshrl.u32 %v4624, 16
      %v4792 = vrot.slane %v4790, 4
      %v4793 = vor.u32 %v4792, %v4788
      %v4794 = vrot.slane %v4793, 4
      %v4796 = vshll.u32 %v4625, 16
      %v4798 = vrot.slane %v4796, 5
      %v4799 = vsel %vm1118, %v4794, %v4798
      %v4801 = vshrl.u32 %v4626, 16
      %v4803 = vrot.slane %v4801, 4
      %v4804 = vshll.u32 %v4626, 16
      %v4806 = vrot.slane %v4804, 5
      %v4807 = vor.u32 %v4803, %v4806
      %v4808 = vrot.slane %v4807, 4
      %v4810 = vshll.u32 %v4627, 16
      %v4812 = vrot.slane %v4810, 5
      %v4813 = vsel %vm1118, %v4808, %v4812
      %v4814 = vshrl.u32 %v4627, 16
      %v4816 = vrot.slane %v4814, 4
      %v4817 = vor.u32 %v4816, %v4812
      %v4818 = vrot.slane %v4817, 4
      %v4820 = vshll.u32 %v4628, 16
      %v4822 = vrot.slane %v4820, 5
      %v4823 = vsel %vm1118, %v4818, %v4822
      %v4825 = vshrl.u32 %v4629, 16
      %v4827 = vrot.slane %v4825, 4
      %v4828 = vshll.u32 %v4629, 16
      %v4830 = vrot.slane %v4828, 5
      %v4831 = vor.u32 %v4827, %v4830
      %v4832 = vrot.slane %v4831, 4
      %v4834 = vshll.u32 %v4630, 16
      %v4836 = vrot.slane %v4834, 5
      %v4837 = vsel %vm1118, %v4832, %v4836
      %v4838 = vshrl.u32 %v4630, 16
      %v4840 = vrot.slane %v4838, 4
      %v4841 = vor.u32 %v4840, %v4836
      %v4842 = vrot.slane %v4841, 4
      %v4844 = vshll.u32 %v4631, 16
      %v4846 = vrot.slane %v4844, 5
      %v4847 = vsel %vm1118, %v4842, %v4846
      %v4849 = vshrl.u32 %v4632, 16
      %v4851 = vrot.slane %v4849, 4
      %v4852 = vshll.u32 %v4632, 16
      %v4854 = vrot.slane %v4852, 5
      %v4855 = vor.u32 %v4851, %v4854
      %v4856 = vrot.slane %v4855, 4
      %v4858 = vshll.u32 %v4633, 16
      %v4860 = vrot.slane %v4858, 5
      %v4861 = vsel %vm1118, %v4856, %v4860
      %v4862 = vshrl.u32 %v4633, 16
      %v4864 = vrot.slane %v4862, 4
      %v4865 = vor.u32 %v4864, %v4860
      %v4866 = vrot.slane %v4865, 4
      %v4868 = vshll.u32 %v4634, 16
      %v4870 = vrot.slane %v4868, 5
      %v4871 = vsel %vm1118, %v4866, %v4870
      %v4873 = vshrl.u32 %v4635, 16
      %v4875 = vrot.slane %v4873, 4
      %v4876 = vshll.u32 %v4635, 16
      %v4878 = vrot.slane %v4876, 5
      %v4879 = vor.u32 %v4875, %v4878
      %v4880 = vrot.slane %v4879, 4
      %v4882 = vshll.u32 %v4636, 16
      %v4884 = vrot.slane %v4882, 5
      %v4885 = vsel %vm1118, %v4880, %v4884
      %v4886 = vshrl.u32 %v4636, 16
      %v4888 = vrot.slane %v4886, 4
      %v4889 = vor.u32 %v4888, %v4884
      %v4890 = vrot.slane %v4889, 4
      %v4892 = vshll.u32 %v4637, 16
      %v4894 = vrot.slane %v4892, 5
      %v4895 = vsel %vm1118, %v4890, %v4894
      %v4897 = vshrl.u32 %v4638, 16
      %v4899 = vrot.slane %v4897, 4
      %v4900 = vshll.u32 %v4638, 16
      %v4902 = vrot.slane %v4900, 5
      %v4903 = vor.u32 %v4899, %v4902
      %v4904 = vrot.slane %v4903, 4
      %v4906 = vshll.u32 %v4639, 16
      %v4908 = vrot.slane %v4906, 5
      %v4909 = vsel %vm1118, %v4904, %v4908
      %v4910 = vshrl.u32 %v4639, 16
      %v4912 = vrot.slane %v4910, 4
      %v4913 = vor.u32 %v4912, %v4908
      %v4914 = vrot.slane %v4913, 4
      %v4916 = vshll.u32 %v4640, 16
      %v4918 = vrot.slane %v4916, 5
      %v4919 = vsel %vm1118, %v4914, %v4918
      %v4921 = vshrl.u32 %v4641, 16
      %v4923 = vrot.slane %v4921, 4
      %v4924 = vshll.u32 %v4641, 16
      %v4926 = vrot.slane %v4924, 5
      %v4927 = vor.u32 %v4923, %v4926
      %v4928 = vrot.slane %v4927, 4
      %v4930 = vshll.u32 %v4642, 16
      %v4932 = vrot.slane %v4930, 5
      %v4933 = vsel %vm1118, %v4928, %v4932
      %v4934 = vshrl.u32 %v4642, 16
      %v4936 = vrot.slane %v4934, 4
      %v4937 = vor.u32 %v4936, %v4932
      %v4938 = vrot.slane %v4937, 4
      %v4940 = vshll.u32 %v4643, 16
      %v4942 = vrot.slane %v4940, 5
      %v4943 = vsel %vm1118, %v4938, %v4942
      %v4945 = vshrl.u32 %v4644, 16
      %v4947 = vrot.slane %v4945, 4
      %v4948 = vshll.u32 %v4644, 16
      %v4950 = vrot.slane %v4948, 5
      %v4951 = vor.u32 %v4947, %v4950
      %v4952 = vrot.slane %v4951, 4
      %v4954 = vshll.u32 %v4645, 16
      %v4956 = vrot.slane %v4954, 5
      %v4957 = vsel %vm1118, %v4952, %v4956
      %v4958 = vshrl.u32 %v4645, 16
      %v4960 = vrot.slane %v4958, 4
      %v4961 = vor.u32 %v4960, %v4956
      %v4962 = vrot.slane %v4961, 4
      %v4964 = vshll.u32 %v4646, 16
      %v4966 = vrot.slane %v4964, 5
      %v4967 = vsel %vm1118, %v4962, %v4966
      %v4969 = vshrl.u32 %v4647, 16
      %v4971 = vrot.slane %v4969, 4
      %v4972 = vshll.u32 %v4647, 16
      %v4974 = vrot.slane %v4972, 5
      %v4975 = vor.u32 %v4971, %v4974
      %v4976 = vrot.slane %v4975, 4
      %v4978 = vshll.u32 %v4648, 16
      %v4980 = vrot.slane %v4978, 5
      %v4981 = vsel %vm1118, %v4976, %v4980
      %v4982 = vshrl.u32 %v4648, 16
      %v4984 = vrot.slane %v4982, 4
      %v4985 = vor.u32 %v4984, %v4980
      %v4986 = vrot.slane %v4985, 4
      %v4988 = vshll.u32 %v4649, 16
      %v4990 = vrot.slane %v4988, 5
      %v4991 = vsel %vm1118, %v4986, %v4990
      %v4993 = vshrl.u32 %v4650, 16
      %v4995 = vrot.slane %v4993, 4
      %v4996 = vshll.u32 %v4650, 16
      %v4998 = vrot.slane %v4996, 5
      %v4999 = vor.u32 %v4995, %v4998
      %v5000 = vrot.slane %v4999, 4
      %v5002 = vshll.u32 %v4651, 16
      %v5004 = vrot.slane %v5002, 5
      %v5005 = vsel %vm1118, %v5000, %v5004
      %v5006 = vshrl.u32 %v4651, 16
      %v5008 = vrot.slane %v5006, 4
      %v5009 = vor.u32 %v5008, %v5004
      %v5010 = vrot.slane %v5009, 4
      %v5012 = vshll.u32 %v4652, 16
      %v5014 = vrot.slane %v5012, 5
      %v5015 = vsel %vm1118, %v5010, %v5014
      %v5017 = vshrl.u32 %v4653, 16
      %v5019 = vrot.slane %v5017, 4
      %v5020 = vshll.u32 %v4653, 16
      %v5022 = vrot.slane %v5020, 5
      %v5023 = vor.u32 %v5019, %v5022
      %v5024 = vrot.slane %v5023, 4
      %v5026 = vshll.u32 %v4654, 16
      %v5028 = vrot.slane %v5026, 5
      %v5029 = vsel %vm1118, %v5024, %v5028
      %v5030 = vshrl.u32 %v4654, 16
      %v5032 = vrot.slane %v5030, 4
      %v5033 = vor.u32 %v5032, %v5028
      %v5034 = vrot.slane %v5033, 4
      %v5036 = vshll.u32 %v4655, 16
      %v5038 = vrot.slane %v5036, 5
      %v5039 = vsel %vm1118, %v5034, %v5038
      %s5040 = scalar_lea.vmem %s3, 448
      %v5041 = vld [vmem:[%s5040] sm:$0xf]
      %v5042 = vld [vmem:[%s5040 + $0x4] sm:$0xf]
      %v5043 = vld [vmem:[%s5040 + $0x8] sm:$0xf]
      %v5044 = vld [vmem:[%s5040 + $0xc] sm:$0xf]
      %v5045 = vld [vmem:[%s5040 + $0x10] sm:$0xf]
      %v5046 = vld [vmem:[%s5040 + $0x14] sm:$0xf]
      %v5047 = vld [vmem:[%s5040 + $0x18] sm:$0xf]
      %v5048 = vld [vmem:[%s5040 + $0x1c] sm:$0xf]
      %v5049 = vld [vmem:[%s5040 + $0x20] sm:$0xf]
      %v5050 = vld [vmem:[%s5040 + $0x24] sm:$0xf]
      %v5051 = vld [vmem:[%s5040 + $0x28] sm:$0xf]
      %v5052 = vld [vmem:[%s5040 + $0x2c] sm:$0xf]
      %v5053 = vld [vmem:[%s5040 + $0x30] sm:$0xf]
      %v5054 = vld [vmem:[%s5040 + $0x34] sm:$0xf]
      %v5055 = vld [vmem:[%s5040 + $0x38] sm:$0xf]
      %v5056 = vld [vmem:[%s5040 + $0x3c] sm:$0xf]
      %v5057 = vunpack.c.l.b16 %v4669
      %v5058 = vunpack.c.l.b16 %v4679
      %v5059 = vunpack.c.l.b16 %v4693
      %v5060 = vunpack.c.l.b16 %v4703
      %v5061 = vunpack.c.l.b16 %v4717
      %v5062 = vunpack.c.l.b16 %v4727
      %v5063 = vunpack.c.l.b16 %v4741
      %v5064 = vunpack.c.l.b16 %v4751
      %v5065 = vunpack.c.l.b16 %v4765
      %v5066 = vunpack.c.l.b16 %v4775
      %v5067 = vunpack.c.l.b16 %v4789
      %v5068 = vunpack.c.l.b16 %v4799
      %v5069 = vunpack.c.l.b16 %v4813
      %v5070 = vunpack.c.l.b16 %v4823
      %v5071 = vunpack.c.l.b16 %v4837
      %v5072 = vunpack.c.l.b16 %v4847
      %v5073 = vunpack.c.l.b16 %v4861
      %v5074 = vunpack.c.l.b16 %v4871
      %v5075 = vunpack.c.l.b16 %v4885
      %v5076 = vunpack.c.l.b16 %v4895
      %v5077 = vunpack.c.l.b16 %v4909
      %v5078 = vunpack.c.l.b16 %v4919
      %v5079 = vunpack.c.l.b16 %v4933
      %v5080 = vunpack.c.l.b16 %v4943
      %v5081 = vunpack.c.l.b16 %v4957
      %v5082 = vunpack.c.l.b16 %v4967
      %v5083 = vunpack.c.l.b16 %v4981
      %v5084 = vunpack.c.l.b16 %v4991
      %v5085 = vunpack.c.l.b16 %v5005
      %v5086 = vunpack.c.l.b16 %v5015
      %v5087 = vunpack.c.l.b16 %v5029
      %v5088 = vunpack.c.l.b16 %v5039
      %v5089 = vpack.c.b16 %v5058, %v5057
      %v5090 = vpack.c.b16 %v5060, %v5059
      %v5091 = vpack.c.b16 %v5062, %v5061
      %v5092 = vpack.c.b16 %v5064, %v5063
      %v5093 = vpack.c.b16 %v5066, %v5065
      %v5094 = vpack.c.b16 %v5068, %v5067
      %v5095 = vpack.c.b16 %v5070, %v5069
      %v5096 = vpack.c.b16 %v5072, %v5071
      %v5097 = vpack.c.b16 %v5074, %v5073
      %v5098 = vpack.c.b16 %v5076, %v5075
      %v5099 = vpack.c.b16 %v5078, %v5077
      %v5100 = vpack.c.b16 %v5080, %v5079
      %v5101 = vpack.c.b16 %v5082, %v5081
      %v5102 = vpack.c.b16 %v5084, %v5083
      %v5103 = vpack.c.b16 %v5086, %v5085
      %v5104 = vpack.c.b16 %v5088, %v5087
      %v5137 = vunpack.c.l.b16 %v5041
      %v5138 = vunpack.c.l.b16 %v5042
      %v5139 = vunpack.c.l.b16 %v5043
      %v5140 = vunpack.c.l.b16 %v5044
      %v5141 = vunpack.c.l.b16 %v5045
      %v5142 = vunpack.c.l.b16 %v5046
      %v5143 = vunpack.c.l.b16 %v5047
      %v5144 = vunpack.c.l.b16 %v5048
      %v5145 = vunpack.c.l.b16 %v5049
      %v5146 = vunpack.c.l.b16 %v5050
      %v5147 = vunpack.c.l.b16 %v5051
      %v5148 = vunpack.c.l.b16 %v5052
      %v5149 = vunpack.c.l.b16 %v5053
      %v5150 = vunpack.c.l.b16 %v5054
      %v5151 = vunpack.c.l.b16 %v5055
      %v5152 = vunpack.c.l.b16 %v5056
      %v5153 = vpack.c.b16 %v5138, %v5137
      %v5154 = vpack.c.b16 %v5140, %v5139
      %v5155 = vpack.c.b16 %v5142, %v5141
      %v5156 = vpack.c.b16 %v5144, %v5143
      %v5157 = vpack.c.b16 %v5146, %v5145
      %v5158 = vpack.c.b16 %v5148, %v5147
      %v5159 = vpack.c.b16 %v5150, %v5149
      %v5160 = vpack.c.b16 %v5152, %v5151
      %5169 = vmatprep.subr.bf16.mxu0 0
      %5170 = vmatpush1.bf16.msra.mxu0 %v5153
      %5171 = vmatprep.subr.bf16.mxu0 0
      %5172 = vmatpush1.bf16.msra.mxu0 %v5154
      %5173 = vmatprep.subr.bf16.mxu0 0
      %5174 = vmatpush1.bf16.msra.mxu0 %v5155
      %5175 = vmatprep.subr.bf16.mxu0 0
      %5176 = vmatpush1.bf16.msra.mxu0 %v5156
      %5177 = vmatprep.subr.bf16.mxu0 0
      %5178 = vmatpush1.bf16.msra.mxu0 %v5157
      %5179 = vmatprep.subr.bf16.mxu0 0
      %5180 = vmatpush1.bf16.msra.mxu0 %v5158
      %5181 = vmatprep.subr.bf16.mxu0 0
      %5182 = vmatpush1.bf16.msra.mxu0 %v5159
      %5183 = vmatprep.subr.bf16.mxu0 0
      %5184 = vmatpush1.bf16.msra.mxu0 %v5160
      %5185 = vmatprep.subr.bf16.mxu0 0
      %5186 = vmatpush1.bf16.msra.mxu0 0
      %5187 = vmatprep.subr.bf16.mxu0 0
      %5188 = vmatpush1.bf16.msra.mxu0 0
      %5189 = vmatprep.subr.bf16.mxu0 0
      %5190 = vmatpush1.bf16.msra.mxu0 0
      %5191 = vmatprep.subr.bf16.mxu0 0
      %5192 = vmatpush1.bf16.msra.mxu0 0
      %5193 = vmatprep.subr.bf16.mxu0 0
      %5194 = vmatpush1.bf16.msra.mxu0 0
      %5195 = vmatprep.subr.bf16.mxu0 0
      %5196 = vmatpush1.bf16.msra.mxu0 0
      %5197 = vmatprep.subr.bf16.mxu0 0
      %5198 = vmatpush1.bf16.msra.mxu0 0
      %5199 = vmatprep.subr.bf16.mxu0 0
      %5200 = vmatpush1.bf16.msra.mxu0 0
      %5201 = vmatprep.mubr.bf16.mxu0 0
      %5202 = vmatmul.mubr.bf16.gmra.mrb[0].mxu0 %v5089
      %v5203 = vpop.f32.mrb[0].mxu0
      %v5204 = vadd.f32 0.0, %v5203
      %v5205 = vpop.f32.mrb[0].mxu0
      %v5206 = vpop.f32.mrb[0].mxu0
      %v5207 = vadd.f32 0.0, %v5206
      %v5208 = vpop.f32.mrb[0].mxu0
      %5209 = vmatprep.mubr.bf16.mxu0 0
      %5210 = vmatmul.mubr.bf16.gmra.mrb[0].mxu0 %v5090
      %v5211 = vpop.f32.mrb[0].mxu0
      %v5212 = vadd.f32 0.0, %v5211
      %v5213 = vpop.f32.mrb[0].mxu0
      %v5214 = vpop.f32.mrb[0].mxu0
      %v5215 = vadd.f32 0.0, %v5214
      %v5216 = vpop.f32.mrb[0].mxu0
      %5217 = vmatprep.mubr.bf16.mxu0 0
      %5218 = vmatmul.mubr.bf16.gmra.mrb[0].mxu0 %v5091
      %v5219 = vpop.f32.mrb[0].mxu0
      %v5220 = vadd.f32 0.0, %v5219
      %v5221 = vpop.f32.mrb[0].mxu0
      %v5222 = vpop.f32.mrb[0].mxu0
      %v5223 = vadd.f32 0.0, %v5222
      %v5224 = vpop.f32.mrb[0].mxu0
      %5225 = vmatprep.mubr.bf16.mxu0 0
      %5226 = vmatmul.mubr.bf16.gmra.mrb[0].mxu0 %v5092
      %v5227 = vpop.f32.mrb[0].mxu0
      %v5228 = vadd.f32 0.0, %v5227
      %v5229 = vpop.f32.mrb[0].mxu0
      %v5230 = vpop.f32.mrb[0].mxu0
      %v5231 = vadd.f32 0.0, %v5230
      %v5232 = vpop.f32.mrb[0].mxu0
      %5233 = vmatprep.mubr.bf16.mxu0 0
      %5234 = vmatmul.mubr.bf16.gmra.mrb[0].mxu0 %v5093
      %v5235 = vpop.f32.mrb[0].mxu0
      %v5236 = vadd.f32 0.0, %v5235
      %v5237 = vpop.f32.mrb[0].mxu0
      %v5238 = vpop.f32.mrb[0].mxu0
      %v5239 = vadd.f32 0.0, %v5238
      %v5240 = vpop.f32.mrb[0].mxu0
      %5241 = vmatprep.mubr.bf16.mxu0 0
      %5242 = vmatmul.mubr.bf16.gmra.mrb[0].mxu0 %v5094
      %v5243 = vpop.f32.mrb[0].mxu0
      %v5244 = vadd.f32 0.0, %v5243
      %v5245 = vpop.f32.mrb[0].mxu0
      %v5246 = vpop.f32.mrb[0].mxu0
      %v5247 = vadd.f32 0.0, %v5246
      %v5248 = vpop.f32.mrb[0].mxu0
      %5249 = vmatprep.mubr.bf16.mxu0 0
      %5250 = vmatmul.mubr.bf16.gmra.mrb[0].mxu0 %v5095
      %v5251 = vpop.f32.mrb[0].mxu0
      %v5252 = vadd.f32 0.0, %v5251
      %v5253 = vpop.f32.mrb[0].mxu0
      %v5254 = vpop.f32.mrb[0].mxu0
      %v5255 = vadd.f32 0.0, %v5254
      %v5256 = vpop.f32.mrb[0].mxu0
      %5257 = vmatprep.mubr.bf16.mxu0 0
      %5258 = vmatmul.mubr.bf16.gmra.mrb[0].mxu0 %v5096
      %v5259 = vpop.f32.mrb[0].mxu0
      %v5260 = vadd.f32 0.0, %v5259
      %v5261 = vpop.f32.mrb[0].mxu0
      %v5262 = vpop.f32.mrb[0].mxu0
      %v5263 = vadd.f32 0.0, %v5262
      %v5264 = vpop.f32.mrb[0].mxu0
      %5265 = vmatprep.mubr.bf16.mxu0 0
      %5266 = vmatmul.mubr.bf16.gmra.mrb[0].mxu0 %v5097
      %v5267 = vpop.f32.mrb[0].mxu0
      %v5268 = vadd.f32 0.0, %v5267
      %v5269 = vpop.f32.mrb[0].mxu0
      %v5270 = vpop.f32.mrb[0].mxu0
      %v5271 = vadd.f32 0.0, %v5270
      %v5272 = vpop.f32.mrb[0].mxu0
      %5273 = vmatprep.mubr.bf16.mxu0 0
      %5274 = vmatmul.mubr.bf16.gmra.mrb[0].mxu0 %v5098
      %v5275 = vpop.f32.mrb[0].mxu0
      %v5276 = vadd.f32 0.0, %v5275
      %v5277 = vpop.f32.mrb[0].mxu0
      %v5278 = vpop.f32.mrb[0].mxu0
      %v5279 = vadd.f32 0.0, %v5278
      %v5280 = vpop.f32.mrb[0].mxu0
      %5281 = vmatprep.mubr.bf16.mxu0 0
      %5282 = vmatmul.mubr.bf16.gmra.mrb[0].mxu0 %v5099
      %v5283 = vpop.f32.mrb[0].mxu0
      %v5284 = vadd.f32 0.0, %v5283
      %v5285 = vpop.f32.mrb[0].mxu0
      %v5286 = vpop.f32.mrb[0].mxu0
      %v5287 = vadd.f32 0.0, %v5286
      %v5288 = vpop.f32.mrb[0].mxu0
      %5289 = vmatprep.mubr.bf16.mxu0 0
      %5290 = vmatmul.mubr.bf16.gmra.mrb[0].mxu0 %v5100
      %v5291 = vpop.f32.mrb[0].mxu0
      %v5292 = vadd.f32 0.0, %v5291
      %v5293 = vpop.f32.mrb[0].mxu0
      %v5294 = vpop.f32.mrb[0].mxu0
      %v5295 = vadd.f32 0.0, %v5294
      %v5296 = vpop.f32.mrb[0].mxu0
      %5297 = vmatprep.mubr.bf16.mxu0 0
      %5298 = vmatmul.mubr.bf16.gmra.mrb[0].mxu0 %v5101
      %v5299 = vpop.f32.mrb[0].mxu0
      %v5300 = vadd.f32 0.0, %v5299
      %v5301 = vpop.f32.mrb[0].mxu0
      %v5302 = vpop.f32.mrb[0].mxu0
      %v5303 = vadd.f32 0.0, %v5302
      %v5304 = vpop.f32.mrb[0].mxu0
      %5305 = vmatprep.mubr.bf16.mxu0 0
      %5306 = vmatmul.mubr.bf16.gmra.mrb[0].mxu0 %v5102
      %v5307 = vpop.f32.mrb[0].mxu0
      %v5308 = vadd.f32 0.0, %v5307
      %v5309 = vpop.f32.mrb[0].mxu0
      %v5310 = vpop.f32.mrb[0].mxu0
      %v5311 = vadd.f32 0.0, %v5310
      %v5312 = vpop.f32.mrb[0].mxu0
      %5313 = vmatprep.mubr.bf16.mxu0 0
      %5314 = vmatmul.mubr.bf16.gmra.mrb[0].mxu0 %v5103
      %v5315 = vpop.f32.mrb[0].mxu0
      %v5316 = vadd.f32 0.0, %v5315
      %v5317 = vpop.f32.mrb[0].mxu0
      %v5318 = vpop.f32.mrb[0].mxu0
      %v5319 = vadd.f32 0.0, %v5318
      %v5320 = vpop.f32.mrb[0].mxu0
      %5321 = vmatprep.mubr.bf16.mxu0 0
      %5322 = vmatmul.mubr.bf16.gmra.mrb[0].mxu0 %v5104
      %v5323 = vpop.f32.mrb[0].mxu0
      %v5324 = vadd.f32 0.0, %v5323
      %v5325 = vpop.f32.mrb[0].mxu0
      %v5326 = vpop.f32.mrb[0].mxu0
      %v5327 = vadd.f32 0.0, %v5326
      %v5328 = vpop.f32.mrb[0].mxu0
      %5329 = vdwg.mxu0
      %v5330 = vadd.f32 %v4576, %v5204
      %v5331 = vadd.f32 %v4577, %v5207
      %v5332 = vadd.f32 %v4578, %v5212
      %v5333 = vadd.f32 %v4579, %v5215
      %v5334 = vadd.f32 %v4580, %v5220
      %v5335 = vadd.f32 %v4581, %v5223
      %v5336 = vadd.f32 %v4582, %v5228
      %v5337 = vadd.f32 %v4583, %v5231
      %v5338 = vadd.f32 %v4584, %v5236
      %v5339 = vadd.f32 %v4585, %v5239
      %v5340 = vadd.f32 %v4586, %v5244
      %v5341 = vadd.f32 %v4587, %v5247
      %v5342 = vadd.f32 %v4588, %v5252
      %v5343 = vadd.f32 %v4589, %v5255
      %v5344 = vadd.f32 %v4590, %v5260
      %v5345 = vadd.f32 %v4591, %v5263
      %v5346 = vadd.f32 %v4592, %v5268
      %v5347 = vadd.f32 %v4593, %v5271
      %v5348 = vadd.f32 %v4594, %v5276
      %v5349 = vadd.f32 %v4595, %v5279
      %v5350 = vadd.f32 %v4596, %v5284
      %v5351 = vadd.f32 %v4597, %v5287
      %v5352 = vadd.f32 %v4598, %v5292
      %v5353 = vadd.f32 %v4599, %v5295
      %v5354 = vadd.f32 %v4600, %v5300
      %v5355 = vadd.f32 %v4601, %v5303
      %v5356 = vadd.f32 %v4602, %v5308
      %v5357 = vadd.f32 %v4603, %v5311
      %v5358 = vadd.f32 %v4604, %v5316
      %v5359 = vadd.f32 %v4605, %v5319
      %v5360 = vadd.f32 %v4606, %v5324
      %v5361 = vadd.f32 %v4607, %v5327
      %v5362 = vld [vmem:[%s4221] sm:$0xe]
      %v5363 = vld [vmem:[%s4221 + $0xc] sm:$0xe]
      %v5364 = vld [vmem:[%s4221 + $0x18] sm:$0xe]
      %v5365 = vld [vmem:[%s4221 + $0x24] sm:$0xe]
      %v5366 = vld [vmem:[%s4221 + $0x30] sm:$0xe]
      %v5367 = vld [vmem:[%s4221 + $0x3c] sm:$0xe]
      %v5368 = vld [vmem:[%s4221 + $0x48] sm:$0xe]
      %v5369 = vld [vmem:[%s4221 + $0x54] sm:$0xe]
      %v5370 = vld [vmem:[%s4221 + $0x60] sm:$0xe]
      %v5371 = vld [vmem:[%s4221 + $0x6c] sm:$0xe]
      %v5372 = vld [vmem:[%s4221 + $0x78] sm:$0xe]
      %v5373 = vld [vmem:[%s4221 + $0x84] sm:$0xe]
      %v5374 = vld [vmem:[%s4221 + $0x90] sm:$0xe]
      %v5375 = vld [vmem:[%s4221 + $0x9c] sm:$0xe]
      %v5376 = vld [vmem:[%s4221 + $0xa8] sm:$0xe]
      %v5377 = vld [vmem:[%s4221 + $0xb4] sm:$0xe]
      %v5426 = vrot.slane %v5362, 5
      %v5427 = vrot.slane %v5426, 4
      %v5428 = vrot.slane %v4609, 5
      %v5429 = vsel %vm2148, %v5427, %v5428
      %v5430 = vrot.slane %v5428, 4
      %v5431 = vrot.slane %v4610, 5
      %v5432 = vsel %vm2148, %v5430, %v5431
      %v5433 = vrot.slane %v5363, 5
      %v5434 = vrot.slane %v5433, 4
      %v5435 = vrot.slane %v4612, 5
      %v5436 = vsel %vm2148, %v5434, %v5435
      %v5437 = vrot.slane %v5435, 4
      %v5438 = vrot.slane %v4613, 5
      %v5439 = vsel %vm2148, %v5437, %v5438
      %v5440 = vrot.slane %v5364, 5
      %v5441 = vrot.slane %v5440, 4
      %v5442 = vrot.slane %v4615, 5
      %v5443 = vsel %vm2148, %v5441, %v5442
      %v5444 = vrot.slane %v5442, 4
      %v5445 = vrot.slane %v4616, 5
      %v5446 = vsel %vm2148, %v5444, %v5445
      %v5447 = vrot.slane %v5365, 5
      %v5448 = vrot.slane %v5447, 4
      %v5449 = vrot.slane %v4618, 5
      %v5450 = vsel %vm2148, %v5448, %v5449
      %v5451 = vrot.slane %v5449, 4
      %v5452 = vrot.slane %v4619, 5
      %v5453 = vsel %vm2148, %v5451, %v5452
      %v5454 = vrot.slane %v5366, 5
      %v5455 = vrot.slane %v5454, 4
      %v5456 = vrot.slane %v4621, 5
      %v5457 = vsel %vm2148, %v5455, %v5456
      %v5458 = vrot.slane %v5456, 4
      %v5459 = vrot.slane %v4622, 5
      %v5460 = vsel %vm2148, %v5458, %v5459
      %v5461 = vrot.slane %v5367, 5
      %v5462 = vrot.slane %v5461, 4
      %v5463 = vrot.slane %v4624, 5
      %v5464 = vsel %vm2148, %v5462, %v5463
      %v5465 = vrot.slane %v5463, 4
      %v5466 = vrot.slane %v4625, 5
      %v5467 = vsel %vm2148, %v5465, %v5466
      %v5468 = vrot.slane %v5368, 5
      %v5469 = vrot.slane %v5468, 4
      %v5470 = vrot.slane %v4627, 5
      %v5471 = vsel %vm2148, %v5469, %v5470
      %v5472 = vrot.slane %v5470, 4
      %v5473 = vrot.slane %v4628, 5
      %v5474 = vsel %vm2148, %v5472, %v5473
      %v5475 = vrot.slane %v5369, 5
      %v5476 = vrot.slane %v5475, 4
      %v5477 = vrot.slane %v4630, 5
      %v5478 = vsel %vm2148, %v5476, %v5477
      %v5479 = vrot.slane %v5477, 4
      %v5480 = vrot.slane %v4631, 5
      %v5481 = vsel %vm2148, %v5479, %v5480
      %v5482 = vrot.slane %v5370, 5
      %v5483 = vrot.slane %v5482, 4
      %v5484 = vrot.slane %v4633, 5
      %v5485 = vsel %vm2148, %v5483, %v5484
      %v5486 = vrot.slane %v5484, 4
      %v5487 = vrot.slane %v4634, 5
      %v5488 = vsel %vm2148, %v5486, %v5487
      %v5489 = vrot.slane %v5371, 5
      %v5490 = vrot.slane %v5489, 4
      %v5491 = vrot.slane %v4636, 5
      %v5492 = vsel %vm2148, %v5490, %v5491
      %v5493 = vrot.slane %v5491, 4
      %v5494 = vrot.slane %v4637, 5
      %v5495 = vsel %vm2148, %v5493, %v5494
      %v5496 = vrot.slane %v5372, 5
      %v5497 = vrot.slane %v5496, 4
      %v5498 = vrot.slane %v4639, 5
      %v5499 = vsel %vm2148, %v5497, %v5498
      %v5500 = vrot.slane %v5498, 4
      %v5501 = vrot.slane %v4640, 5
      %v5502 = vsel %vm2148, %v5500, %v5501
      %v5503 = vrot.slane %v5373, 5
      %v5504 = vrot.slane %v5503, 4
      %v5505 = vrot.slane %v4642, 5
      %v5506 = vsel %vm2148, %v5504, %v5505
      %v5507 = vrot.slane %v5505, 4
      %v5508 = vrot.slane %v4643, 5
      %v5509 = vsel %vm2148, %v5507, %v5508
      %v5510 = vrot.slane %v5374, 5
      %v5511 = vrot.slane %v5510, 4
      %v5512 = vrot.slane %v4645, 5
      %v5513 = vsel %vm2148, %v5511, %v5512
      %v5514 = vrot.slane %v5512, 4
      %v5515 = vrot.slane %v4646, 5
      %v5516 = vsel %vm2148, %v5514, %v5515
      %v5517 = vrot.slane %v5375, 5
      %v5518 = vrot.slane %v5517, 4
      %v5519 = vrot.slane %v4648, 5
      %v5520 = vsel %vm2148, %v5518, %v5519
      %v5521 = vrot.slane %v5519, 4
      %v5522 = vrot.slane %v4649, 5
      %v5523 = vsel %vm2148, %v5521, %v5522
      %v5524 = vrot.slane %v5376, 5
      %v5525 = vrot.slane %v5524, 4
      %v5526 = vrot.slane %v4651, 5
      %v5527 = vsel %vm2148, %v5525, %v5526
      %v5528 = vrot.slane %v5526, 4
      %v5529 = vrot.slane %v4652, 5
      %v5530 = vsel %vm2148, %v5528, %v5529
      %v5531 = vrot.slane %v5377, 5
      %v5532 = vrot.slane %v5531, 4
      %v5533 = vrot.slane %v4654, 5
      %v5534 = vsel %vm2148, %v5532, %v5533
      %v5535 = vrot.slane %v5533, 4
      %v5536 = vrot.slane %v4655, 5
      %v5537 = vsel %vm2148, %v5535, %v5536
      %s5538 = scalar_lea.vmem %s3, 512
      %v5539 = vld [vmem:[%s5538] sm:$0xf]
      %v5540 = vld [vmem:[%s5538 + $0x4] sm:$0xf]
      %v5541 = vld [vmem:[%s5538 + $0x8] sm:$0xf]
      %v5542 = vld [vmem:[%s5538 + $0xc] sm:$0xf]
      %v5543 = vld [vmem:[%s5538 + $0x10] sm:$0xf]
      %v5544 = vld [vmem:[%s5538 + $0x14] sm:$0xf]
      %v5545 = vld [vmem:[%s5538 + $0x18] sm:$0xf]
      %v5546 = vld [vmem:[%s5538 + $0x1c] sm:$0xf]
      %v5547 = vld [vmem:[%s5538 + $0x20] sm:$0xf]
      %v5548 = vld [vmem:[%s5538 + $0x24] sm:$0xf]
      %v5549 = vld [vmem:[%s5538 + $0x28] sm:$0xf]
      %v5550 = vld [vmem:[%s5538 + $0x2c] sm:$0xf]
      %v5551 = vld [vmem:[%s5538 + $0x30] sm:$0xf]
      %v5552 = vld [vmem:[%s5538 + $0x34] sm:$0xf]
      %v5553 = vld [vmem:[%s5538 + $0x38] sm:$0xf]
      %v5554 = vld [vmem:[%s5538 + $0x3c] sm:$0xf]
      %v5555 = vunpack.c.l.b16 %v5429
      %v5556 = vunpack.c.l.b16 %v5432
      %v5557 = vunpack.c.l.b16 %v5436
      %v5558 = vunpack.c.l.b16 %v5439
      %v5559 = vunpack.c.l.b16 %v5443
      %v5560 = vunpack.c.l.b16 %v5446
      %v5561 = vunpack.c.l.b16 %v5450
      %v5562 = vunpack.c.l.b16 %v5453
      %v5563 = vunpack.c.l.b16 %v5457
      %v5564 = vunpack.c.l.b16 %v5460
      %v5565 = vunpack.c.l.b16 %v5464
      %v5566 = vunpack.c.l.b16 %v5467
      %v5567 = vunpack.c.l.b16 %v5471
      %v5568 = vunpack.c.l.b16 %v5474
      %v5569 = vunpack.c.l.b16 %v5478
      %v5570 = vunpack.c.l.b16 %v5481
      %v5571 = vunpack.c.l.b16 %v5485
      %v5572 = vunpack.c.l.b16 %v5488
      %v5573 = vunpack.c.l.b16 %v5492
      %v5574 = vunpack.c.l.b16 %v5495
      %v5575 = vunpack.c.l.b16 %v5499
      %v5576 = vunpack.c.l.b16 %v5502
      %v5577 = vunpack.c.l.b16 %v5506
      %v5578 = vunpack.c.l.b16 %v5509
      %v5579 = vunpack.c.l.b16 %v5513
      %v5580 = vunpack.c.l.b16 %v5516
      %v5581 = vunpack.c.l.b16 %v5520
      %v5582 = vunpack.c.l.b16 %v5523
      %v5583 = vunpack.c.l.b16 %v5527
      %v5584 = vunpack.c.l.b16 %v5530
      %v5585 = vunpack.c.l.b16 %v5534
      %v5586 = vunpack.c.l.b16 %v5537
      %v5587 = vpack.c.b16 %v5556, %v5555
      %v5588 = vpack.c.b16 %v5558, %v5557
      %v5589 = vpack.c.b16 %v5560, %v5559
      %v5590 = vpack.c.b16 %v5562, %v5561
      %v5591 = vpack.c.b16 %v5564, %v5563
      %v5592 = vpack.c.b16 %v5566, %v5565
      %v5593 = vpack.c.b16 %v5568, %v5567
      %v5594 = vpack.c.b16 %v5570, %v5569
      %v5595 = vpack.c.b16 %v5572, %v5571
      %v5596 = vpack.c.b16 %v5574, %v5573
      %v5597 = vpack.c.b16 %v5576, %v5575
      %v5598 = vpack.c.b16 %v5578, %v5577
      %v5599 = vpack.c.b16 %v5580, %v5579
      %v5600 = vpack.c.b16 %v5582, %v5581
      %v5601 = vpack.c.b16 %v5584, %v5583
      %v5602 = vpack.c.b16 %v5586, %v5585
      %v5635 = vunpack.c.l.b16 %v5539
      %v5636 = vunpack.c.l.b16 %v5540
      %v5637 = vunpack.c.l.b16 %v5541
      %v5638 = vunpack.c.l.b16 %v5542
      %v5639 = vunpack.c.l.b16 %v5543
      %v5640 = vunpack.c.l.b16 %v5544
      %v5641 = vunpack.c.l.b16 %v5545
      %v5642 = vunpack.c.l.b16 %v5546
      %v5643 = vunpack.c.l.b16 %v5547
      %v5644 = vunpack.c.l.b16 %v5548
      %v5645 = vunpack.c.l.b16 %v5549
      %v5646 = vunpack.c.l.b16 %v5550
      %v5647 = vunpack.c.l.b16 %v5551
      %v5648 = vunpack.c.l.b16 %v5552
      %v5649 = vunpack.c.l.b16 %v5553
      %v5650 = vunpack.c.l.b16 %v5554
      %v5651 = vpack.c.b16 %v5636, %v5635
      %v5652 = vpack.c.b16 %v5638, %v5637
      %v5653 = vpack.c.b16 %v5640, %v5639
      %v5654 = vpack.c.b16 %v5642, %v5641
      %v5655 = vpack.c.b16 %v5644, %v5643
      %v5656 = vpack.c.b16 %v5646, %v5645
      %v5657 = vpack.c.b16 %v5648, %v5647
      %v5658 = vpack.c.b16 %v5650, %v5649
      %5667 = vmatprep.subr.bf16.mxu0 0
      %5668 = vmatpush1.bf16.msra.mxu0 %v5651
      %5669 = vmatprep.subr.bf16.mxu0 0
      %5670 = vmatpush1.bf16.msra.mxu0 %v5652
      %5671 = vmatprep.subr.bf16.mxu0 0
      %5672 = vmatpush1.bf16.msra.mxu0 %v5653
      %5673 = vmatprep.subr.bf16.mxu0 0
      %5674 = vmatpush1.bf16.msra.mxu0 %v5654
      %5675 = vmatprep.subr.bf16.mxu0 0
      %5676 = vmatpush1.bf16.msra.mxu0 %v5655
      %5677 = vmatprep.subr.bf16.mxu0 0
      %5678 = vmatpush1.bf16.msra.mxu0 %v5656
      %5679 = vmatprep.subr.bf16.mxu0 0
      %5680 = vmatpush1.bf16.msra.mxu0 %v5657
      %5681 = vmatprep.subr.bf16.mxu0 0
      %5682 = vmatpush1.bf16.msra.mxu0 %v5658
      %5683 = vmatprep.subr.bf16.mxu0 0
      %5684 = vmatpush1.bf16.msra.mxu0 0
      %5685 = vmatprep.subr.bf16.mxu0 0
      %5686 = vmatpush1.bf16.msra.mxu0 0
      %5687 = vmatprep.subr.bf16.mxu0 0
      %5688 = vmatpush1.bf16.msra.mxu0 0
      %5689 = vmatprep.subr.bf16.mxu0 0
      %5690 = vmatpush1.bf16.msra.mxu0 0
      %5691 = vmatprep.subr.bf16.mxu0 0
      %5692 = vmatpush1.bf16.msra.mxu0 0
      %5693 = vmatprep.subr.bf16.mxu0 0
      %5694 = vmatpush1.bf16.msra.mxu0 0
      %5695 = vmatprep.subr.bf16.mxu0 0
      %5696 = vmatpush1.bf16.msra.mxu0 0
      %5697 = vmatprep.subr.bf16.mxu0 0
      %5698 = vmatpush1.bf16.msra.mxu0 0
      %5699 = vmatprep.mubr.bf16.mxu0 0
      %5700 = vmatmul.mubr.bf16.gmra.mrb[0].mxu0 %v5587
      %v5701 = vpop.f32.mrb[0].mxu0
      %v5702 = vadd.f32 0.0, %v5701
      %v5703 = vpop.f32.mrb[0].mxu0
      %v5704 = vpop.f32.mrb[0].mxu0
      %v5705 = vadd.f32 0.0, %v5704
      %v5706 = vpop.f32.mrb[0].mxu0
      %5707 = vmatprep.mubr.bf16.mxu0 0
      %5708 = vmatmul.mubr.bf16.gmra.mrb[0].mxu0 %v5588
      %v5709 = vpop.f32.mrb[0].mxu0
      %v5710 = vadd.f32 0.0, %v5709
      %v5711 = vpop.f32.mrb[0].mxu0
      %v5712 = vpop.f32.mrb[0].mxu0
      %v5713 = vadd.f32 0.0, %v5712
      %v5714 = vpop.f32.mrb[0].mxu0
      %5715 = vmatprep.mubr.bf16.mxu0 0
      %5716 = vmatmul.mubr.bf16.gmra.mrb[0].mxu0 %v5589
      %v5717 = vpop.f32.mrb[0].mxu0
      %v5718 = vadd.f32 0.0, %v5717
      %v5719 = vpop.f32.mrb[0].mxu0
      %v5720 = vpop.f32.mrb[0].mxu0
      %v5721 = vadd.f32 0.0, %v5720
      %v5722 = vpop.f32.mrb[0].mxu0
      %5723 = vmatprep.mubr.bf16.mxu0 0
      %5724 = vmatmul.mubr.bf16.gmra.mrb[0].mxu0 %v5590
      %v5725 = vpop.f32.mrb[0].mxu0
      %v5726 = vadd.f32 0.0, %v5725
      %v5727 = vpop.f32.mrb[0].mxu0
      %v5728 = vpop.f32.mrb[0].mxu0
      %v5729 = vadd.f32 0.0, %v5728
      %v5730 = vpop.f32.mrb[0].mxu0
      %5731 = vmatprep.mubr.bf16.mxu0 0
      %5732 = vmatmul.mubr.bf16.gmra.mrb[0].mxu0 %v5591
      %v5733 = vpop.f32.mrb[0].mxu0
      %v5734 = vadd.f32 0.0, %v5733
      %v5735 = vpop.f32.mrb[0].mxu0
      %v5736 = vpop.f32.mrb[0].mxu0
      %v5737 = vadd.f32 0.0, %v5736
      %v5738 = vpop.f32.mrb[0].mxu0
      %5739 = vmatprep.mubr.bf16.mxu0 0
      %5740 = vmatmul.mubr.bf16.gmra.mrb[0].mxu0 %v5592
      %v5741 = vpop.f32.mrb[0].mxu0
      %v5742 = vadd.f32 0.0, %v5741
      %v5743 = vpop.f32.mrb[0].mxu0
      %v5744 = vpop.f32.mrb[0].mxu0
      %v5745 = vadd.f32 0.0, %v5744
      %v5746 = vpop.f32.mrb[0].mxu0
      %5747 = vmatprep.mubr.bf16.mxu0 0
      %5748 = vmatmul.mubr.bf16.gmra.mrb[0].mxu0 %v5593
      %v5749 = vpop.f32.mrb[0].mxu0
      %v5750 = vadd.f32 0.0, %v5749
      %v5751 = vpop.f32.mrb[0].mxu0
      %v5752 = vpop.f32.mrb[0].mxu0
      %v5753 = vadd.f32 0.0, %v5752
      %v5754 = vpop.f32.mrb[0].mxu0
      %5755 = vmatprep.mubr.bf16.mxu0 0
      %5756 = vmatmul.mubr.bf16.gmra.mrb[0].mxu0 %v5594
      %v5757 = vpop.f32.mrb[0].mxu0
      %v5758 = vadd.f32 0.0, %v5757
      %v5759 = vpop.f32.mrb[0].mxu0
      %v5760 = vpop.f32.mrb[0].mxu0
      %v5761 = vadd.f32 0.0, %v5760
      %v5762 = vpop.f32.mrb[0].mxu0
      %5763 = vmatprep.mubr.bf16.mxu0 0
      %5764 = vmatmul.mubr.bf16.gmra.mrb[0].mxu0 %v5595
      %v5765 = vpop.f32.mrb[0].mxu0
      %v5766 = vadd.f32 0.0, %v5765
      %v5767 = vpop.f32.mrb[0].mxu0
      %v5768 = vpop.f32.mrb[0].mxu0
      %v5769 = vadd.f32 0.0, %v5768
      %v5770 = vpop.f32.mrb[0].mxu0
      %5771 = vmatprep.mubr.bf16.mxu0 0
      %5772 = vmatmul.mubr.bf16.gmra.mrb[0].mxu0 %v5596
      %v5773 = vpop.f32.mrb[0].mxu0
      %v5774 = vadd.f32 0.0, %v5773
      %v5775 = vpop.f32.mrb[0].mxu0
      %v5776 = vpop.f32.mrb[0].mxu0
      %v5777 = vadd.f32 0.0, %v5776
      %v5778 = vpop.f32.mrb[0].mxu0
      %5779 = vmatprep.mubr.bf16.mxu0 0
      %5780 = vmatmul.mubr.bf16.gmra.mrb[0].mxu0 %v5597
      %v5781 = vpop.f32.mrb[0].mxu0
      %v5782 = vadd.f32 0.0, %v5781
      %v5783 = vpop.f32.mrb[0].mxu0
      %v5784 = vpop.f32.mrb[0].mxu0
      %v5785 = vadd.f32 0.0, %v5784
      %v5786 = vpop.f32.mrb[0].mxu0
      %5787 = vmatprep.mubr.bf16.mxu0 0
      %5788 = vmatmul.mubr.bf16.gmra.mrb[0].mxu0 %v5598
      %v5789 = vpop.f32.mrb[0].mxu0
      %v5790 = vadd.f32 0.0, %v5789
      %v5791 = vpop.f32.mrb[0].mxu0
      %v5792 = vpop.f32.mrb[0].mxu0
      %v5793 = vadd.f32 0.0, %v5792
      %v5794 = vpop.f32.mrb[0].mxu0
      %5795 = vmatprep.mubr.bf16.mxu0 0
      %5796 = vmatmul.mubr.bf16.gmra.mrb[0].mxu0 %v5599
      %v5797 = vpop.f32.mrb[0].mxu0
      %v5798 = vadd.f32 0.0, %v5797
      %v5799 = vpop.f32.mrb[0].mxu0
      %v5800 = vpop.f32.mrb[0].mxu0
      %v5801 = vadd.f32 0.0, %v5800
      %v5802 = vpop.f32.mrb[0].mxu0
      %5803 = vmatprep.mubr.bf16.mxu0 0
      %5804 = vmatmul.mubr.bf16.gmra.mrb[0].mxu0 %v5600
      %v5805 = vpop.f32.mrb[0].mxu0
      %v5806 = vadd.f32 0.0, %v5805
      %v5807 = vpop.f32.mrb[0].mxu0
      %v5808 = vpop.f32.mrb[0].mxu0
      %v5809 = vadd.f32 0.0, %v5808
      %v5810 = vpop.f32.mrb[0].mxu0
      %5811 = vmatprep.mubr.bf16.mxu0 0
      %5812 = vmatmul.mubr.bf16.gmra.mrb[0].mxu0 %v5601
      %v5813 = vpop.f32.mrb[0].mxu0
      %v5814 = vadd.f32 0.0, %v5813
      %v5815 = vpop.f32.mrb[0].mxu0
      %v5816 = vpop.f32.mrb[0].mxu0
      %v5817 = vadd.f32 0.0, %v5816
      %v5818 = vpop.f32.mrb[0].mxu0
      %5819 = vmatprep.mubr.bf16.mxu0 0
      %5820 = vmatmul.mubr.bf16.gmra.mrb[0].mxu0 %v5602
      %v5821 = vpop.f32.mrb[0].mxu0
      %v5822 = vadd.f32 0.0, %v5821
      %v5823 = vpop.f32.mrb[0].mxu0
      %v5824 = vpop.f32.mrb[0].mxu0
      %v5825 = vadd.f32 0.0, %v5824
      %v5826 = vpop.f32.mrb[0].mxu0
      %5827 = vdwg.mxu0
      %v5828 = vadd.f32 %v5330, %v5702
      %v5829 = vadd.f32 %v5331, %v5705
      %v5830 = vadd.f32 %v5332, %v5710
      %v5831 = vadd.f32 %v5333, %v5713
      %v5832 = vadd.f32 %v5334, %v5718
      %v5833 = vadd.f32 %v5335, %v5721
      %v5834 = vadd.f32 %v5336, %v5726
      %v5835 = vadd.f32 %v5337, %v5729
      %v5836 = vadd.f32 %v5338, %v5734
      %v5837 = vadd.f32 %v5339, %v5737
      %v5838 = vadd.f32 %v5340, %v5742
      %v5839 = vadd.f32 %v5341, %v5745
      %v5840 = vadd.f32 %v5342, %v5750
      %v5841 = vadd.f32 %v5343, %v5753
      %v5842 = vadd.f32 %v5344, %v5758
      %v5843 = vadd.f32 %v5345, %v5761
      %v5844 = vadd.f32 %v5346, %v5766
      %v5845 = vadd.f32 %v5347, %v5769
      %v5846 = vadd.f32 %v5348, %v5774
      %v5847 = vadd.f32 %v5349, %v5777
      %v5848 = vadd.f32 %v5350, %v5782
      %v5849 = vadd.f32 %v5351, %v5785
      %v5850 = vadd.f32 %v5352, %v5790
      %v5851 = vadd.f32 %v5353, %v5793
      %v5852 = vadd.f32 %v5354, %v5798
      %v5853 = vadd.f32 %v5355, %v5801
      %v5854 = vadd.f32 %v5356, %v5806
      %v5855 = vadd.f32 %v5357, %v5809
      %v5856 = vadd.f32 %v5358, %v5814
      %v5857 = vadd.f32 %v5359, %v5817
      %v5858 = vadd.f32 %v5360, %v5822
      %v5859 = vadd.f32 %v5361, %v5825
      %v5860 = vpack.c.bf16 %v5829, %v5828
      %v5861 = vpack.c.bf16 %v5831, %v5830
      %v5862 = vpack.c.bf16 %v5833, %v5832
      %v5863 = vpack.c.bf16 %v5835, %v5834
      %v5864 = vpack.c.bf16 %v5837, %v5836
      %v5865 = vpack.c.bf16 %v5839, %v5838
      %v5866 = vpack.c.bf16 %v5841, %v5840
      %v5867 = vpack.c.bf16 %v5843, %v5842
      %v5868 = vpack.c.bf16 %v5845, %v5844
      %v5869 = vpack.c.bf16 %v5847, %v5846
      %v5870 = vpack.c.bf16 %v5849, %v5848
      %v5871 = vpack.c.bf16 %v5851, %v5850
      %v5872 = vpack.c.bf16 %v5853, %v5852
      %v5873 = vpack.c.bf16 %v5855, %v5854
      %v5874 = vpack.c.bf16 %v5857, %v5856
      %v5875 = vpack.c.bf16 %v5859, %v5858
      %v5892 = vunpack.c.l.b16 %v5860
      %v5893 = vunpack.c.h.b16 %v5860
      %v5894 = vunpack.c.l.b16 %v5861
      %v5895 = vunpack.c.h.b16 %v5861
      %v5896 = vunpack.c.l.b16 %v5862
      %v5897 = vunpack.c.h.b16 %v5862
      %v5898 = vunpack.c.l.b16 %v5863
      %v5899 = vunpack.c.h.b16 %v5863
      %v5900 = vunpack.c.l.b16 %v5864
      %v5901 = vunpack.c.h.b16 %v5864
      %v5902 = vunpack.c.l.b16 %v5865
      %v5903 = vunpack.c.h.b16 %v5865
      %v5904 = vunpack.c.l.b16 %v5866
      %v5905 = vunpack.c.h.b16 %v5866
      %v5906 = vunpack.c.l.b16 %v5867
      %v5907 = vunpack.c.h.b16 %v5867
      %v5908 = vunpack.c.l.b16 %v5868
      %v5909 = vunpack.c.h.b16 %v5868
      %v5910 = vunpack.c.l.b16 %v5869
      %v5911 = vunpack.c.h.b16 %v5869
      %v5912 = vunpack.c.l.b16 %v5870
      %v5913 = vunpack.c.h.b16 %v5870
      %v5914 = vunpack.c.l.b16 %v5871
      %v5915 = vunpack.c.h.b16 %v5871
      %v5916 = vunpack.c.l.b16 %v5872
      %v5917 = vunpack.c.h.b16 %v5872
      %v5918 = vunpack.c.l.b16 %v5873
      %v5919 = vunpack.c.h.b16 %v5873
      %v5920 = vunpack.c.l.b16 %v5874
      %v5921 = vunpack.c.h.b16 %v5874
      %v5922 = vunpack.c.l.b16 %v5875
      %v5923 = vunpack.c.h.b16 %v5875
      %v5924 = vpack.c.b16 %v5892, %v5892
      %v5925 = vpack.c.b16 %v5893, %v5893
      %v5926 = vpack.c.b16 %v5894, %v5894
      %v5927 = vpack.c.b16 %v5895, %v5895
      %v5928 = vpack.c.b16 %v5896, %v5896
      %v5929 = vpack.c.b16 %v5897, %v5897
      %v5930 = vpack.c.b16 %v5898, %v5898
      %v5931 = vpack.c.b16 %v5899, %v5899
      %v5932 = vpack.c.b16 %v5900, %v5900
      %v5933 = vpack.c.b16 %v5901, %v5901
      %v5934 = vpack.c.b16 %v5902, %v5902
      %v5935 = vpack.c.b16 %v5903, %v5903
      %v5936 = vpack.c.b16 %v5904, %v5904
      %v5937 = vpack.c.b16 %v5905, %v5905
      %v5938 = vpack.c.b16 %v5906, %v5906
      %v5939 = vpack.c.b16 %v5907, %v5907
      %v5940 = vpack.c.b16 %v5908, %v5908
      %v5941 = vpack.c.b16 %v5909, %v5909
      %v5942 = vpack.c.b16 %v5910, %v5910
      %v5943 = vpack.c.b16 %v5911, %v5911
      %v5944 = vpack.c.b16 %v5912, %v5912
      %v5945 = vpack.c.b16 %v5913, %v5913
      %v5946 = vpack.c.b16 %v5914, %v5914
      %v5947 = vpack.c.b16 %v5915, %v5915
      %v5948 = vpack.c.b16 %v5916, %v5916
      %v5949 = vpack.c.b16 %v5917, %v5917
      %v5950 = vpack.c.b16 %v5918, %v5918
      %v5951 = vpack.c.b16 %v5919, %v5919
      %v5952 = vpack.c.b16 %v5920, %v5920
      %v5953 = vpack.c.b16 %v5921, %v5921
      %v5954 = vpack.c.b16 %v5922, %v5922
      %v5955 = vpack.c.b16 %v5923, %v5923
      %5988 = vst [vmem:[%s231] sm:$0xf] %v5924
      %5989 = vst [vmem:[%s231 + $0x4] sm:$0xf] %v5925
      %5990 = vst [vmem:[%s231 + $0x8] sm:$0xf] %v5926
      %5991 = vst [vmem:[%s231 + $0xc] sm:$0xf] %v5927
      %5992 = vst [vmem:[%s231 + $0x10] sm:$0xf] %v5928
      %5993 = vst [vmem:[%s231 + $0x14] sm:$0xf] %v5929
      %5994 = vst [vmem:[%s231 + $0x18] sm:$0xf] %v5930
      %5995 = vst [vmem:[%s231 + $0x1c] sm:$0xf] %v5931
      %5996 = vst [vmem:[%s231 + $0x20] sm:$0xf] %v5932
      %5997 = vst [vmem:[%s231 + $0x24] sm:$0xf] %v5933
      %5998 = vst [vmem:[%s231 + $0x28] sm:$0xf] %v5934
      %5999 = vst [vmem:[%s231 + $0x2c] sm:$0xf] %v5935
      %6000 = vst [vmem:[%s231 + $0x30] sm:$0xf] %v5936
      %6001 = vst [vmem:[%s231 + $0x34] sm:$0xf] %v5937
      %6002 = vst [vmem:[%s231 + $0x38] sm:$0xf] %v5938
      %6003 = vst [vmem:[%s231 + $0x3c] sm:$0xf] %v5939
      %6004 = vst [vmem:[%s231 + $0x40] sm:$0xf] %v5940
      %6005 = vst [vmem:[%s231 + $0x44] sm:$0xf] %v5941
      %6006 = vst [vmem:[%s231 + $0x48] sm:$0xf] %v5942
      %6007 = vst [vmem:[%s231 + $0x4c] sm:$0xf] %v5943
      %6008 = vst [vmem:[%s231 + $0x50] sm:$0xf] %v5944
      %6009 = vst [vmem:[%s231 + $0x54] sm:$0xf] %v5945
      %6010 = vst [vmem:[%s231 + $0x58] sm:$0xf] %v5946
      %6011 = vst [vmem:[%s231 + $0x5c] sm:$0xf] %v5947
      %6012 = vst [vmem:[%s231 + $0x60] sm:$0xf] %v5948
      %6013 = vst [vmem:[%s231 + $0x64] sm:$0xf] %v5949
      %6014 = vst [vmem:[%s231 + $0x68] sm:$0xf] %v5950
      %6015 = vst [vmem:[%s231 + $0x6c] sm:$0xf] %v5951
      %6016 = vst [vmem:[%s231 + $0x70] sm:$0xf] %v5952
      %6017 = vst [vmem:[%s231 + $0x74] sm:$0xf] %v5953
      %6018 = vst [vmem:[%s231 + $0x78] sm:$0xf] %v5954
      %6019 = vst [vmem:[%s231 + $0x7c] sm:$0xf] %v5955
      %v6020 = vadd.f32 %v5828, %v5829
      %v6021 = vadd.f32 %v6020, %v5830
      %v6022 = vadd.f32 %v6021, %v5831
      %v6023 = vadd.f32 %v6022, %v5832
      %v6024 = vadd.f32 %v6023, %v5833
      %v6025 = vadd.f32 %v6024, %v5834
      %v6026 = vadd.f32 %v6025, %v5835
      %v6027 = vadd.f32 %v6026, %v5836
      %v6028 = vadd.f32 %v6027, %v5837
      %v6029 = vadd.f32 %v6028, %v5838
      %v6030 = vadd.f32 %v6029, %v5839
      %v6031 = vadd.f32 %v6030, %v5840
      %v6032 = vadd.f32 %v6031, %v5841
      %v6033 = vadd.f32 %v6032, %v5842
      %v6034 = vadd.f32 %v6033, %v5843
      %v6035 = vadd.f32 %v6034, %v5844
      %v6036 = vadd.f32 %v6035, %v5845
      %v6037 = vadd.f32 %v6036, %v5846
      %v6038 = vadd.f32 %v6037, %v5847
      %v6039 = vadd.f32 %v6038, %v5848
      %v6040 = vadd.f32 %v6039, %v5849
      %v6041 = vadd.f32 %v6040, %v5850
      %v6042 = vadd.f32 %v6041, %v5851
      %v6043 = vadd.f32 %v6042, %v5852
      %v6044 = vadd.f32 %v6043, %v5853
      %v6045 = vadd.f32 %v6044, %v5854
      %v6046 = vadd.f32 %v6045, %v5855
      %v6047 = vadd.f32 %v6046, %v5856
      %v6048 = vadd.f32 %v6047, %v5857
      %v6049 = vadd.f32 %v6048, %v5858
      %v6050 = vadd.f32 %v6049, %v5859
      %v6051 = vrot.slane %v6050, 4
      %v6052 = vadd.f32 %v6050, %v6051
      %v6053 = vrot.slane %v6052, 2
      %v6054 = vadd.f32 %v6052, %v6053
      %v6055 = vrot.slane %v6054, 1
      %v6056 = vadd.f32 %v6054, %v6055
      %v6057 = vadd.f32 %v6056, 0.0
      %v6058 = vmul.f32 %v5828, %v5828
      %v6059 = vmul.f32 %v5829, %v5829
      %v6060 = vmul.f32 %v5830, %v5830
      %v6061 = vmul.f32 %v5831, %v5831
      %v6062 = vmul.f32 %v5832, %v5832
      %v6063 = vmul.f32 %v5833, %v5833
      %v6064 = vmul.f32 %v5834, %v5834
      %v6065 = vmul.f32 %v5835, %v5835
      %v6066 = vmul.f32 %v5836, %v5836
      %v6067 = vmul.f32 %v5837, %v5837
      %v6068 = vmul.f32 %v5838, %v5838
      %v6069 = vmul.f32 %v5839, %v5839
      %v6070 = vmul.f32 %v5840, %v5840
      %v6071 = vmul.f32 %v5841, %v5841
      %v6072 = vmul.f32 %v5842, %v5842
      %v6073 = vmul.f32 %v5843, %v5843
      %v6074 = vmul.f32 %v5844, %v5844
      %v6075 = vmul.f32 %v5845, %v5845
      %v6076 = vmul.f32 %v5846, %v5846
      %v6077 = vmul.f32 %v5847, %v5847
      %v6078 = vmul.f32 %v5848, %v5848
      %v6079 = vmul.f32 %v5849, %v5849
      %v6080 = vmul.f32 %v5850, %v5850
      %v6081 = vmul.f32 %v5851, %v5851
      %v6082 = vmul.f32 %v5852, %v5852
      %v6083 = vmul.f32 %v5853, %v5853
      %v6084 = vmul.f32 %v5854, %v5854
      %v6085 = vmul.f32 %v5855, %v5855
      %v6086 = vmul.f32 %v5856, %v5856
      %v6087 = vmul.f32 %v5857, %v5857
      %v6088 = vmul.f32 %v5858, %v5858
      %v6089 = vmul.f32 %v5859, %v5859
      %v6090 = vadd.f32 %v6058, %v6059
      %v6091 = vadd.f32 %v6090, %v6060
      %v6092 = vadd.f32 %v6091, %v6061
      %v6093 = vadd.f32 %v6092, %v6062
      %v6094 = vadd.f32 %v6093, %v6063
      %v6095 = vadd.f32 %v6094, %v6064
      %v6096 = vadd.f32 %v6095, %v6065
      %v6097 = vadd.f32 %v6096, %v6066
      %v6098 = vadd.f32 %v6097, %v6067
      %v6099 = vadd.f32 %v6098, %v6068
      %v6100 = vadd.f32 %v6099, %v6069
      %v6101 = vadd.f32 %v6100, %v6070
      %v6102 = vadd.f32 %v6101, %v6071
      %v6103 = vadd.f32 %v6102, %v6072
      %v6104 = vadd.f32 %v6103, %v6073
      %v6105 = vadd.f32 %v6104, %v6074
      %v6106 = vadd.f32 %v6105, %v6075
      %v6107 = vadd.f32 %v6106, %v6076
      %v6108 = vadd.f32 %v6107, %v6077
      %v6109 = vadd.f32 %v6108, %v6078
      %v6110 = vadd.f32 %v6109, %v6079
      %v6111 = vadd.f32 %v6110, %v6080
      %v6112 = vadd.f32 %v6111, %v6081
      %v6113 = vadd.f32 %v6112, %v6082
      %v6114 = vadd.f32 %v6113, %v6083
      %v6115 = vadd.f32 %v6114, %v6084
      %v6116 = vadd.f32 %v6115, %v6085
      %v6117 = vadd.f32 %v6116, %v6086
      %v6118 = vadd.f32 %v6117, %v6087
      %v6119 = vadd.f32 %v6118, %v6088
      %v6120 = vadd.f32 %v6119, %v6089
      %v6121 = vrot.slane %v6120, 4
      %v6122 = vadd.f32 %v6120, %v6121
      %v6123 = vrot.slane %v6122, 2
      %v6124 = vadd.f32 %v6122, %v6123
      %v6125 = vrot.slane %v6124, 1
      %v6126 = vadd.f32 %v6124, %v6125
      %v6127 = vadd.f32 %v6126, 0.0
      %vm6128 = vcmask 1040384
      %v6129 = vsel %vm6128, %v6057, %v6127
      %6130 = vst [vmem:[%s235] sm:$0x3] %v6129
      %p6131 = scmp.lt.s32.totalorder %s17, 1
      %s6132 = scalar_select %p6131, %s17, 1
      %s6133 = smul.addr %s6132, 32
      %s6134 = smul.addr %s6133, 4
      %s6135 = scalar_lea.vmem %s4, %s6134
      %p6136 = scmp.lt.s32.totalorder %s17, 1
      %s6137 = scalar_select %p6136, %s17, 1
      %s6138 = smul.addr %s6137, 2
      %s6139 = scalar_lea.vmem %s5, %s6138
      // Predicated region
      $region37: #{double_conv.3} parent=35 // pred_check
        %p6140 = pneg %p124
      $region38: #{double_conv.3} parent=35 // pred_check_branch
        %6142 = sbr.rel (%p6140) target = $region40
      $region39: #{double_conv.3} parent=35 // pred_region
        _
      $region40: #{double_conv.3} parent=35 // pred_fallthru
        _
      // Predicated region
      $region41: #{double_conv.3} parent=35 // pred_check
        %p6143 = pneg %p150
      $region42: #{double_conv.3} parent=35 // pred_check_branch
        %6145 = sbr.rel (%p6143) target = $region44
      $region43: #{double_conv.3} parent=35 // pred_region
        _
      $region44: #{double_conv.3} parent=35 // pred_fallthru
        _
    $region36: #{double_conv.3} parent=5 // pred_fallthru
      _
    %p6146 = scmp.le.s32.totalorder 2, %s12
    // Predicated region
    $region45: #{double_conv.3} parent=5 // pred_check
      %p6147 = pneg %p6146
    $region46: #{double_conv.3} parent=5 // pred_check_branch
      %6149 = sbr.rel (%p6147) target = $region48
    $region47: #{double_conv.3} parent=5 // pred_region
      %s6150 = ssub.s32 %s12, 2
      // Predicated region
      $region49: #{double_conv.3} parent=47 // pred_check
        %p6151 = pneg %p130
      $region50: #{double_conv.3} parent=47 // pred_check_branch
        %6153 = sbr.rel (%p6151) target = $region52
      $region51: #{double_conv.3} parent=47 // pred_region
        %p6154 = scmp.lt.s32.totalorder %s18, 1
        %s6155 = scalar_select %p6154, %s18, 1
        %s6156 = smul.addr %s6155, 32
        %s6157 = smul.addr %s6156, 4
        %s6158 = scalar_lea.vmem %s4, %s6157
      $region52: #{double_conv.3} parent=47 // pred_fallthru
        _
      // Predicated region
      $region53: #{double_conv.3} parent=47 // pred_check
        %p6159 = pneg %p156
      $region54: #{double_conv.3} parent=47 // pred_check_branch
        %6161 = sbr.rel (%p6159) target = $region56
      $region55: #{double_conv.3} parent=47 // pred_region
        %p6162 = scmp.lt.s32.totalorder %s18, 1
        %s6163 = scalar_select %p6162, %s18, 1
        %s6164 = smul.addr %s6163, 2
        %s6165 = scalar_lea.vmem %s5, %s6164
      $region56: #{double_conv.3} parent=47 // pred_fallthru
        _
    $region48: #{double_conv.3} parent=5 // pred_fallthru
      _
  $region6: #{double_conv.3} parent=0 // loop_footer
    %s16 = sadd.s32 1, %s12
  $region7: #{double_conv.3} parent=0 // loop_footer_branch
    %11 = sbr.rel target = $region3
  $region8: #{double_conv.3} parent=0 // loop_exit
    _

</llo_original>
